<compile_context>
chip_gen: v5e
topology: v5e:2x2
jax: 0.10.0
libtpu: 0.0.40
codegen_flags: <defaults>
</compile_context>

<pallas_src>
import functools

import numpy as np
import jax
import jax.numpy as jnp
from jax import lax
from jax.experimental import pallas as pl
from jax.experimental.pallas import tpu as pltpu


def _round_up(x, m):
    return ((x + m - 1) // m) * m


# ----------------------------------------------------------------------------
# Host-side weight preprocessing (runs once, outside the forward pass)
# ----------------------------------------------------------------------------
# Subpixel decomposition of ConvTranspose2d(k=3, s=2, p=1, out_p=1):
#   out[2i+r, 2j+c] = sum_{di,dj in {0,1}} x_pad[i+di, j+dj] @ W[kh(r,di), kw(c,dj)]
# with (phase, tap) -> kernel-index map {(0,0):1, (1,0):2, (1,1):0}, (0,1) invalid.
_KMAP = {(0, 0): 1, (1, 0): 2, (1, 1): 0}


def _s2d_convtranspose_weight(w_t):
    """torch ConvTranspose2d weight (Cin, Cout, 3, 3) -> (4*Cin, 4*Cout).

    Rows grouped by tap a = di*2 + dj, columns grouped by output phase 2r + c.
    """
    w_t = np.asarray(w_t, np.float32)
    Cin, Cout = w_t.shape[0], w_t.shape[1]
    wcat = np.zeros((4 * Cin, 4 * Cout), np.float32)
    for di in range(2):
        for dj in range(2):
            a = di * 2 + dj
            for r in range(2):
                for c in range(2):
                    if (r, di) not in _KMAP or (c, dj) not in _KMAP:
                        continue
                    kh, kw = _KMAP[(r, di)], _KMAP[(c, dj)]
                    blk = 2 * r + c
                    wcat[a * Cin:(a + 1) * Cin, blk * Cout:(blk + 1) * Cout] = \
                        w_t[:, :, kh, kw]
    return wcat


def prepare_params(params, X_shape, z_dim):
    """Pack torch-layout parameters into kernel-ready arrays + static config."""
    B, C, H, W = X_shape
    H4, W4 = H // 4, W // 4
    H2, W2 = H // 2, W // 2
    C1, C2, C3 = 256, 128, 64

    # padded-flat (PF) layout constants per stage
    S1 = W4 + 1                                   # stride of the H/4 x W/4 grid
    N1 = _round_up((H4 - 1) * S1 + W4, 8)         # rows of stage-1 output computed
    R1 = _round_up(N1 + S1 + 1, 8)                # rows of the h0 PF scratch
    S2 = W2 + 1                                   # stride of the H/2 x W/2 grid
    N2 = _round_up((H2 - 1) * S2 + W2, 8)
    R2 = _round_up(N2 + S2 + 1, 8)
    S3 = W + 2                                    # stride of the H x W grid (+1 halo each side)
    N3 = H * S3                                   # final output rows (lane-dense)
    R3 = _round_up(N3 + 2 * S3 + 2, 8)
    cfg = dict(H4=H4, W4=W4, C1=C1, C2=C2, C3=C3,
               S1=S1, N1=N1, R1=R1, S2=S2, N2=N2, R2=R2, S3=S3, N3=N3, R3=R3)

    # Linear: permute columns so (z @ W) is already NHWC-flat (i, j, c) ordered.
    w_lin = np.asarray(params['w_lin'], np.float32)
    b_lin = np.asarray(params['b_lin'], np.float32)
    wlin = w_lin.reshape(z_dim, C1, H4, W4).transpose(0, 2, 3, 1) \
                .reshape(z_dim, H4 * W4 * C1)
    blin = b_lin.reshape(C1, H4, W4).transpose(1, 2, 0).reshape(1, H4 * W4 * C1)

    # ConvTranspose stages: packed subpixel weights, bias tiled over 4 phases.
    w1 = _s2d_convtranspose_weight(params['w_ct1'])                 # (4*C1, 4*C2)
    b1 = np.tile(np.asarray(params['b_ct1'], np.float32), 4).reshape(1, 4 * C2)
    w2 = _s2d_convtranspose_weight(params['w_ct2'])                 # (4*C2, 4*C3)
    b2 = np.tile(np.asarray(params['b_ct2'], np.float32), 4).reshape(1, 4 * C3)

    # Final Conv2d(64 -> 1): one 64-vector per tap.
    w3 = np.asarray(params['w_conv'], np.float32)[0].transpose(1, 2, 0).reshape(9, C3)
    b3 = np.asarray(params['b_conv'], np.float32).reshape(1, 1)

    # 0/1 pixel-shuffle matrices (phase blocks -> next stage's PF layout).
    p1 = np.zeros((R2, 4 * N1), np.float32)
    for u in range(H2):
        for v in range(W2):
            blk = (u % 2) * 2 + (v % 2)
            p1[u * S2 + v, blk * N1 + (u // 2) * S1 + (v // 2)] = 1.0
    p2 = np.zeros((R3, 4 * N2), np.float32)
    for p in range(H):
        for q in range(W):
            blk = (p % 2) * 2 + (q % 2)
            p2[(p + 1) * S3 + (q + 1), blk * N2 + (p // 2) * S2 + (q // 2)] = 1.0

    prep = {k: jnp.asarray(v) for k, v in dict(
        wlin=wlin, blin=blin, w1=w1, b1=b1, p1=p1,
        w2=w2, b2=b2, p2=p2, w3=w3, b3=b3).items()}
    return prep, cfg


# ----------------------------------------------------------------------------
# The fused Pallas kernel (one grid step = one batch element)
# ----------------------------------------------------------------------------
def _decoder_kernel(z_ref, wlin_ref, blin_ref,
                    w1_ref, b1_ref, p1_ref,
                    w2_ref, b2_ref, p2_ref,
                    w3_ref, b3_ref,
                    o_ref,
                    h0_ref, y1_ref, y2_ref,
                    *, cfg):
    H4, W4 = cfg['H4'], cfg['W4']
    C1, C2, C3 = cfg['C1'], cfg['C2'], cfg['C3']
    S1, N1 = cfg['S1'], cfg['N1']
    S2, N2 = cfg['S2'], cfg['N2']
    S3, N3 = cfg['S3'], cfg['N3']
    f32 = jnp.float32

    # ---------------- Linear(z_dim -> H4*W4*C1), columns already NHWC ----------------
    h0 = jnp.dot(z_ref[0], wlin_ref[...], preferred_element_type=f32) + blin_ref[...]

    # scatter base-grid rows into the zero-padded flat scratch (pad rows stay 0)
    h0_ref[...] = jnp.zeros(h0_ref.shape, f32)
    for s in range(H4 * W4):
        r = (s // W4) * S1 + (s % W4)
        h0_ref[r:r + 1, :] = h0[:, s * C1:(s + 1) * C1]

    # ---------- ConvTranspose2d(C1->C2, k3 s2 p1 op1) + LeakyReLU: one matmul ----------
    x1 = jnp.concatenate(
        [h0_ref[o:o + N1, :] for o in (0, 1, S1, S1 + 1)], axis=1)          # (N1, 4*C1)
    a1 = jnp.dot(x1, w1_ref[...], preferred_element_type=f32) + b1_ref[...]
    a1 = jnp.where(a1 >= 0, a1, 0.01 * a1)                                   # (N1, 4*C2)

    # pixel-shuffle the 4 phase blocks onto the H/2 x W/2 PF grid (MXU, 0/1 matrix)
    y1_ref[...] = jnp.dot(
        p1_ref[...],
        jnp.concatenate([a1[:, b * C2:(b + 1) * C2] for b in range(4)], axis=0),
        preferred_element_type=f32)                                          # (R2, C2)

    # ---------- ConvTranspose2d(C2->C3, k3 s2 p1 op1) + LeakyReLU: one matmul ----------
    x2 = jnp.concatenate(
        [y1_ref[o:o + N2, :] for o in (0, 1, S2, S2 + 1)], axis=1)          # (N2, 4*C2)
    a2 = jnp.dot(x2, w2_ref[...], preferred_element_type=f32) + b2_ref[...]
    a2 = jnp.where(a2 >= 0, a2, 0.01 * a2)                                   # (N2, 4*C3)

    y2_ref[...] = jnp.dot(
        p2_ref[...],
        jnp.concatenate([a2[:, b * C3:(b + 1) * C3] for b in range(4)], axis=0),
        preferred_element_type=f32)                                          # (R3, C3)

    # ---------- Conv2d(C3->1, k3, pad 1): lane-dense (1, N3) result ----------
    out = jnp.zeros((1, N3), f32)
    for kh in range(3):
        for kw in range(3):
            o = kh * S3 + kw
            out = out + lax.dot_general(
                w3_ref[kh * 3 + kw:kh * 3 + kw + 1, :],       # (1, C3)
                y2_ref[o:o + N3, :],                          # (N3, C3)
                dimension_numbers=(((1,), (1,)), ((), ())),
                preferred_element_type=f32)                   # (1, N3)
    o_ref[0] = out + b3_ref[...]


# ----------------------------------------------------------------------------
# Wrapper
# ----------------------------------------------------------------------------
def decoder_forward(z, prep, *, cfg, X_shape):
    B, C, H, W = X_shape
    z_dim = z.shape[-1]
    N3, S3 = cfg['N3'], cfg['S3']

    wlin, blin = prep['wlin'], prep['blin']
    w1, b1, p1 = prep['w1'], prep['b1'], prep['p1']
    w2, b2, p2 = prep['w2'], prep['b2'], prep['p2']
    w3, b3 = prep['w3'], prep['b3']

    out_pf = pl.pallas_call(
        functools.partial(_decoder_kernel, cfg=cfg),
        out_shape=jax.ShapeDtypeStruct((B, 1, N3), jnp.float32),
        grid=(B,),
        in_specs=[
            pl.BlockSpec((1, 1, z_dim), lambda b: (b, 0, 0)),
            pl.BlockSpec(wlin.shape, lambda b: (0, 0)),
            pl.BlockSpec(blin.shape, lambda b: (0, 0)),
            pl.BlockSpec(w1.shape, lambda b: (0, 0)),
            pl.BlockSpec(b1.shape, lambda b: (0, 0)),
            pl.BlockSpec(p1.shape, lambda b: (0, 0)),
            pl.BlockSpec(w2.shape, lambda b: (0, 0)),
            pl.BlockSpec(b2.shape, lambda b: (0, 0)),
            pl.BlockSpec(p2.shape, lambda b: (0, 0)),
            pl.BlockSpec(w3.shape, lambda b: (0, 0)),
            pl.BlockSpec(b3.shape, lambda b: (0, 0)),
        ],
        out_specs=pl.BlockSpec((1, 1, N3), lambda b: (b, 0, 0)),
        scratch_shapes=[
            pltpu.VMEM((cfg['R1'], cfg['C1']), jnp.float32),   # h0 PF
            pltpu.VMEM((cfg['R2'], cfg['C2']), jnp.float32),   # y1 PF
            pltpu.VMEM((cfg['R3'], cfg['C3']), jnp.float32),   # y2 PF
        ],
        compiler_params=pltpu.CompilerParams(
            dimension_semantics=("parallel",)),
    )(z.reshape(B, 1, z_dim), wlin, blin, w1, b1, p1, w2, b2, p2, w3, b3)

    # PF rows -> (B, H, W), then torch-style squeeze()
    out = out_pf.reshape(B, H, S3)[:, :, :W]
    return jnp.squeeze(out)


# ----------------------------------------------------------------------------
# Pure-JAX reference (independent math; validates the Pallas path)
# ----------------------------------------------------------------------------
def _conv3x3_ref(x_pad, w9, bias, *, leaky):
    B, Hp, Wp, Cin = x_pad.shape
    H, W = Hp - 2, Wp - 2
    Cout = w9.shape[-1]
    acc = jnp.zeros((B, H, W, Cout), jnp.float32)
    for kh in range(3):
        for kw in range(3):
            acc = acc + jnp.einsum('bhwc,cd->bhwd',
                                   x_pad[:, kh:kh + H, kw:kw + W, :],
                                   w9[kh * 3 + kw])
    acc = acc + bias.reshape(1, 1, 1, Cout)
    if leaky:
        acc = jnp.where(acc >= 0, acc, 0.01 * acc)
    return acc


def _convtranspose_prep(x_nhwc, w_t):
    B, Hin, Win, Cin = x_nhwc.shape
    Cout = w_t.shape[1]
    up = jnp.zeros((B, 2 * Hin - 1, 2 * Win - 1, Cin), x_nhwc.dtype)
    up = up.at[:, ::2, ::2, :].set(x_nhwc)
    x_pad = jnp.pad(up, ((0, 0), (1, 2), (1, 2), (0, 0)))
    w_flip = w_t[:, :, ::-1, ::-1]
    w9 = jnp.transpose(w_flip, (2, 3, 0, 1)).reshape(9, Cin, Cout)
    return x_pad, w9


def _conv2d_prep(x_nhwc, w_pt):
    Cout, Cin = w_pt.shape[0], w_pt.shape[1]
    x_pad = jnp.pad(x_nhwc, ((0, 0), (1, 1), (1, 1), (0, 0)))
    w9 = jnp.transpose(w_pt, (2, 3, 1, 0)).reshape(9, Cin, Cout)
    return x_pad, w9


def decoder_forward_ref(z, params, X_shape):
    B, C, H, W = X_shape
    h = jnp.dot(z, params['w_lin']) + params['b_lin'][None, :]
    h = h.reshape(-1, 256, H // 4, W // 4)
    h = jnp.transpose(h, (0, 2, 3, 1))
    xp, w9 = _convtranspose_prep(h, params['w_ct1'])
    h = _conv3x3_ref(xp, w9, params['b_ct1'], leaky=True)
    xp, w9 = _convtranspose_prep(h, params['w_ct2'])
    h = _conv3x3_ref(xp, w9, params['b_ct2'], leaky=True)
    xp, w9 = _conv2d_prep(h, params['w_conv'])
    h = _conv3x3_ref(xp, w9, params['b_conv'], leaky=False)
    h = jnp.transpose(h, (0, 3, 1, 2))
    return jnp.squeeze(h)


# ----------------------------------------------------------------------------
# Deterministic synthetic parameters (torch layouts)
# ----------------------------------------------------------------------------
def init_params(key, X_shape, z_dim):
    B, C, H, W = X_shape
    ks = jax.random.split(key, 8)
    s = 0.05
    return {
        'w_lin':  s * jax.random.normal(ks[0], (z_dim, 16 * H * W), jnp.float32),
        'b_lin':  s * jax.random.normal(ks[1], (16 * H * W,), jnp.float32),
        'w_ct1':  s * jax.random.normal(ks[2], (256, 128, 3, 3), jnp.float32),
        'b_ct1':  s * jax.random.normal(ks[3], (128,), jnp.float32),
        'w_ct2':  s * jax.random.normal(ks[4], (128, 64, 3, 3), jnp.float32),
        'b_ct2':  s * jax.random.normal(ks[5], (64,), jnp.float32),
        'w_conv': s * jax.random.normal(ks[6], (1, 64, 3, 3), jnp.float32),
        'b_conv': s * jax.random.normal(ks[7], (1,), jnp.float32),
    }


if __name__ == "__main__":
    X_shape = (2, 1, 16, 16)      # (B, C, H, W)
    z_dim = 8

    key = jax.random.PRNGKey(0)
    kp, kz = jax.random.split(key)
    params = init_params(kp, X_shape, z_dim)
    z = jax.random.normal(kz, (X_shape[0], z_dim), jnp.float32)

    prep, cfg = prepare_params(params, X_shape, z_dim)
    fwd = jax.jit(functools.partial(decoder_forward, cfg=cfg, X_shape=X_shape))

    out = jax.block_until_ready(fwd(z, prep))
    assert out.shape == (X_shape[0], X_shape[2], X_shape[3]), out.shape

    ref = jax.block_until_ready(
        jax.jit(functools.partial(decoder_forward_ref, X_shape=X_shape))(z, params))
    max_err = float(jnp.max(jnp.abs(out - ref)))
    assert jnp.allclose(out, ref, rtol=1e-3, atol=1e-3), max_err

    print("KERNEL_OK")
</pallas_src>

<mosaic_0001>
module attributes {stable_mosaic.version = 11 : i64} {
  func.func @_decoder_kernel(%arg0: i32, %arg1: memref<1x1x8xf32, #tpu.memory_space<vmem>>, %arg2: memref<8x4096xf32, #tpu.memory_space<vmem>>, %arg3: memref<1x4096xf32, #tpu.memory_space<vmem>>, %arg4: memref<1024x512xf32, #tpu.memory_space<vmem>>, %arg5: memref<1x512xf32, #tpu.memory_space<vmem>>, %arg6: memref<88x96xf32, #tpu.memory_space<vmem>>, %arg7: memref<512x256xf32, #tpu.memory_space<vmem>>, %arg8: memref<1x256xf32, #tpu.memory_space<vmem>>, %arg9: memref<328x288xf32, #tpu.memory_space<vmem>>, %arg10: memref<9x64xf32, #tpu.memory_space<vmem>>, %arg11: memref<1x1xf32, #tpu.memory_space<vmem>>, %arg12: memref<1x1x288xf32, #tpu.memory_space<vmem>>, %arg13: memref<32x256xf32, #tpu.memory_space<vmem>>, %arg14: memref<88x128xf32, #tpu.memory_space<vmem>>, %arg15: memref<328x64xf32, #tpu.memory_space<vmem>>) attributes {dimension_semantics = [#tpu.dimension_semantics<parallel>], iteration_bounds = array<i64: 2>, scalar_prefetch = 0 : i64, scratch_operands = 3 : i64, tpu.core_type = #tpu.core_type<tc>, window_params = [{transform_indices = @transform_0, window_bounds = array<i64: 1, 1, 8>}, {pipeline_mode = #tpu.pipeline_mode<synchronous>, transform_indices = @transform_1, window_bounds = array<i64: 8, 4096>}, {pipeline_mode = #tpu.pipeline_mode<synchronous>, transform_indices = @transform_2, window_bounds = array<i64: 1, 4096>}, {pipeline_mode = #tpu.pipeline_mode<synchronous>, transform_indices = @transform_3, window_bounds = array<i64: 1024, 512>}, {pipeline_mode = #tpu.pipeline_mode<synchronous>, transform_indices = @transform_4, window_bounds = array<i64: 1, 512>}, {pipeline_mode = #tpu.pipeline_mode<synchronous>, transform_indices = @transform_5, window_bounds = array<i64: 88, 96>}, {pipeline_mode = #tpu.pipeline_mode<synchronous>, transform_indices = @transform_6, window_bounds = array<i64: 512, 256>}, {pipeline_mode = #tpu.pipeline_mode<synchronous>, transform_indices = @transform_7, window_bounds = array<i64: 1, 256>}, {pipeline_mode = #tpu.pipeline_mode<synchronous>, transform_indices = @transform_8, window_bounds = array<i64: 328, 288>}, {pipeline_mode = #tpu.pipeline_mode<synchronous>, transform_indices = @transform_9, window_bounds = array<i64: 9, 64>}, {pipeline_mode = #tpu.pipeline_mode<synchronous>, transform_indices = @transform_10, window_bounds = array<i64: 1, 1>}, {transform_indices = @transform_11, window_bounds = array<i64: 1, 1, 288>}]} {
    %c0 = arith.constant 0 : index
    %c0_0 = arith.constant 0 : index
    %c0_1 = arith.constant 0 : index
    %0 = vector.load %arg1[%c0, %c0_0, %c0_1] : memref<1x1x8xf32, #tpu.memory_space<vmem>>, vector<1x1x8xf32>
    %1 = vector.shape_cast %0 : vector<1x1x8xf32> to vector<1x8xf32>
    %c0_2 = arith.constant 0 : index
    %c0_3 = arith.constant 0 : index
    %2 = vector.load %arg2[%c0_2, %c0_3] : memref<8x4096xf32, #tpu.memory_space<vmem>>, vector<8x4096xf32>
    %cst = arith.constant dense<0.000000e+00> : vector<1x4096xf32>
    %3 = tpu.matmul %1, %2, %cst {dimension_numbers = #tpu.dot_dimension_numbers<[1], [0], [0], [1], [0, 0, 1, 1], [], []>} : vector<1x8xf32>, vector<8x4096xf32>, vector<1x4096xf32> -> vector<1x4096xf32>
    %c0_4 = arith.constant 0 : index
    %c0_5 = arith.constant 0 : index
    %4 = vector.load %arg3[%c0_4, %c0_5] : memref<1x4096xf32, #tpu.memory_space<vmem>>, vector<1x4096xf32>
    %5 = arith.addf %3, %4 : vector<1x4096xf32>
    %cst_6 = arith.constant 0.000000e+00 : f32
    %6 = vector.broadcast %cst_6 : f32 to vector<32x256xf32>
    %c0_7 = arith.constant 0 : index
    %c0_8 = arith.constant 0 : index
    %7 = vector.load %arg13[%c0_7, %c0_8] : memref<32x256xf32, #tpu.memory_space<vmem>>, vector<32x256xf32>
    tpu.vector_store %arg13[%c0_7, %c0_8], %6 {strides = array<i32>} : memref<32x256xf32, #tpu.memory_space<vmem>>, vector<32x256xf32>,
    %8 = vector.extract_strided_slice %5 {offsets = [0, 0], sizes = [1, 256], strides = [1, 1]} : vector<1x4096xf32> to vector<1x256xf32>
    %c0_9 = arith.constant 0 : index
    %c0_10 = arith.constant 0 : index
    %9 = vector.load %arg13[%c0_9, %c0_10] : memref<32x256xf32, #tpu.memory_space<vmem>>, vector<1x256xf32>
    tpu.vector_store %arg13[%c0_9, %c0_10], %8 {strides = array<i32>} : memref<32x256xf32, #tpu.memory_space<vmem>>, vector<1x256xf32>,
    %10 = vector.extract_strided_slice %5 {offsets = [0, 256], sizes = [1, 256], strides = [1, 1]} : vector<1x4096xf32> to vector<1x256xf32>
    %c1 = arith.constant 1 : index
    %c0_11 = arith.constant 0 : index
    %11 = vector.load %arg13[%c1, %c0_11] : memref<32x256xf32, #tpu.memory_space<vmem>>, vector<1x256xf32>
    tpu.vector_store %arg13[%c1, %c0_11], %10 {strides = array<i32>} : memref<32x256xf32, #tpu.memory_space<vmem>>, vector<1x256xf32>,
    %12 = vector.extract_strided_slice %5 {offsets = [0, 512], sizes = [1, 256], strides = [1, 1]} : vector<1x4096xf32> to vector<1x256xf32>
    %c2 = arith.constant 2 : index
    %c0_12 = arith.constant 0 : index
    %13 = vector.load %arg13[%c2, %c0_12] : memref<32x256xf32, #tpu.memory_space<vmem>>, vector<1x256xf32>
    tpu.vector_store %arg13[%c2, %c0_12], %12 {strides = array<i32>} : memref<32x256xf32, #tpu.memory_space<vmem>>, vector<1x256xf32>,
    %14 = vector.extract_strided_slice %5 {offsets = [0, 768], sizes = [1, 256], strides = [1, 1]} : vector<1x4096xf32> to vector<1x256xf32>
    %c3 = arith.constant 3 : index
    %c0_13 = arith.constant 0 : index
    %15 = vector.load %arg13[%c3, %c0_13] : memref<32x256xf32, #tpu.memory_space<vmem>>, vector<1x256xf32>
    tpu.vector_store %arg13[%c3, %c0_13], %14 {strides = array<i32>} : memref<32x256xf32, #tpu.memory_space<vmem>>, vector<1x256xf32>,
    %16 = vector.extract_strided_slice %5 {offsets = [0, 1024], sizes = [1, 256], strides = [1, 1]} : vector<1x4096xf32> to vector<1x256xf32>
    %c5 = arith.constant 5 : index
    %c0_14 = arith.constant 0 : index
    %17 = vector.load %arg13[%c5, %c0_14] : memref<32x256xf32, #tpu.memory_space<vmem>>, vector<1x256xf32>
    tpu.vector_store %arg13[%c5, %c0_14], %16 {strides = array<i32>} : memref<32x256xf32, #tpu.memory_space<vmem>>, vector<1x256xf32>,
    %18 = vector.extract_strided_slice %5 {offsets = [0, 1280], sizes = [1, 256], strides = [1, 1]} : vector<1x4096xf32> to vector<1x256xf32>
    %c6 = arith.constant 6 : index
    %c0_15 = arith.constant 0 : index
    %19 = vector.load %arg13[%c6, %c0_15] : memref<32x256xf32, #tpu.memory_space<vmem>>, vector<1x256xf32>
    tpu.vector_store %arg13[%c6, %c0_15], %18 {strides = array<i32>} : memref<32x256xf32, #tpu.memory_space<vmem>>, vector<1x256xf32>,
    %20 = vector.extract_strided_slice %5 {offsets = [0, 1536], sizes = [1, 256], strides = [1, 1]} : vector<1x4096xf32> to vector<1x256xf32>
    %c7 = arith.constant 7 : index
    %c0_16 = arith.constant 0 : index
    %21 = vector.load %arg13[%c7, %c0_16] : memref<32x256xf32, #tpu.memory_space<vmem>>, vector<1x256xf32>
    tpu.vector_store %arg13[%c7, %c0_16], %20 {strides = array<i32>} : memref<32x256xf32, #tpu.memory_space<vmem>>, vector<1x256xf32>,
    %22 = vector.extract_strided_slice %5 {offsets = [0, 1792], sizes = [1, 256], strides = [1, 1]} : vector<1x4096xf32> to vector<1x256xf32>
    %c8 = arith.constant 8 : index
    %c0_17 = arith.constant 0 : index
    %23 = vector.load %arg13[%c8, %c0_17] : memref<32x256xf32, #tpu.memory_space<vmem>>, vector<1x256xf32>
    tpu.vector_store %arg13[%c8, %c0_17], %22 {strides = array<i32>} : memref<32x256xf32, #tpu.memory_space<vmem>>, vector<1x256xf32>,
    %24 = vector.extract_strided_slice %5 {offsets = [0, 2048], sizes = [1, 256], strides = [1, 1]} : vector<1x4096xf32> to vector<1x256xf32>
    %c10 = arith.constant 10 : index
    %c0_18 = arith.constant 0 : index
    %25 = vector.load %arg13[%c10, %c0_18] : memref<32x256xf32, #tpu.memory_space<vmem>>, vector<1x256xf32>
    tpu.vector_store %arg13[%c10, %c0_18], %24 {strides = array<i32>} : memref<32x256xf32, #tpu.memory_space<vmem>>, vector<1x256xf32>,
    %26 = vector.extract_strided_slice %5 {offsets = [0, 2304], sizes = [1, 256], strides = [1, 1]} : vector<1x4096xf32> to vector<1x256xf32>
    %c11 = arith.constant 11 : index
    %c0_19 = arith.constant 0 : index
    %27 = vector.load %arg13[%c11, %c0_19] : memref<32x256xf32, #tpu.memory_space<vmem>>, vector<1x256xf32>
    tpu.vector_store %arg13[%c11, %c0_19], %26 {strides = array<i32>} : memref<32x256xf32, #tpu.memory_space<vmem>>, vector<1x256xf32>,
    %28 = vector.extract_strided_slice %5 {offsets = [0, 2560], sizes = [1, 256], strides = [1, 1]} : vector<1x4096xf32> to vector<1x256xf32>
    %c12 = arith.constant 12 : index
    %c0_20 = arith.constant 0 : index
    %29 = vector.load %arg13[%c12, %c0_20] : memref<32x256xf32, #tpu.memory_space<vmem>>, vector<1x256xf32>
    tpu.vector_store %arg13[%c12, %c0_20], %28 {strides = array<i32>} : memref<32x256xf32, #tpu.memory_space<vmem>>, vector<1x256xf32>,
    %30 = vector.extract_strided_slice %5 {offsets = [0, 2816], sizes = [1, 256], strides = [1, 1]} : vector<1x4096xf32> to vector<1x256xf32>
    %c13 = arith.constant 13 : index
    %c0_21 = arith.constant 0 : index
    %31 = vector.load %arg13[%c13, %c0_21] : memref<32x256xf32, #tpu.memory_space<vmem>>, vector<1x256xf32>
    tpu.vector_store %arg13[%c13, %c0_21], %30 {strides = array<i32>} : memref<32x256xf32, #tpu.memory_space<vmem>>, vector<1x256xf32>,
    %32 = vector.extract_strided_slice %5 {offsets = [0, 3072], sizes = [1, 256], strides = [1, 1]} : vector<1x4096xf32> to vector<1x256xf32>
    %c15 = arith.constant 15 : index
    %c0_22 = arith.constant 0 : index
    %33 = vector.load %arg13[%c15, %c0_22] : memref<32x256xf32, #tpu.memory_space<vmem>>, vector<1x256xf32>
    tpu.vector_store %arg13[%c15, %c0_22], %32 {strides = array<i32>} : memref<32x256xf32, #tpu.memory_space<vmem>>, vector<1x256xf32>,
    %34 = vector.extract_strided_slice %5 {offsets = [0, 3328], sizes = [1, 256], strides = [1, 1]} : vector<1x4096xf32> to vector<1x256xf32>
    %c16 = arith.constant 16 : index
    %c0_23 = arith.constant 0 : index
    %35 = vector.load %arg13[%c16, %c0_23] : memref<32x256xf32, #tpu.memory_space<vmem>>, vector<1x256xf32>
    tpu.vector_store %arg13[%c16, %c0_23], %34 {strides = array<i32>} : memref<32x256xf32, #tpu.memory_space<vmem>>, vector<1x256xf32>,
    %36 = vector.extract_strided_slice %5 {offsets = [0, 3584], sizes = [1, 256], strides = [1, 1]} : vector<1x4096xf32> to vector<1x256xf32>
    %c17 = arith.constant 17 : index
    %c0_24 = arith.constant 0 : index
    %37 = vector.load %arg13[%c17, %c0_24] : memref<32x256xf32, #tpu.memory_space<vmem>>, vector<1x256xf32>
    tpu.vector_store %arg13[%c17, %c0_24], %36 {strides = array<i32>} : memref<32x256xf32, #tpu.memory_space<vmem>>, vector<1x256xf32>,
    %38 = vector.extract_strided_slice %5 {offsets = [0, 3840], sizes = [1, 256], strides = [1, 1]} : vector<1x4096xf32> to vector<1x256xf32>
    %c18 = arith.constant 18 : index
    %c0_25 = arith.constant 0 : index
    %39 = vector.load %arg13[%c18, %c0_25] : memref<32x256xf32, #tpu.memory_space<vmem>>, vector<1x256xf32>
    tpu.vector_store %arg13[%c18, %c0_25], %38 {strides = array<i32>} : memref<32x256xf32, #tpu.memory_space<vmem>>, vector<1x256xf32>,
    %c0_26 = arith.constant 0 : index
    %c0_27 = arith.constant 0 : index
    %40 = vector.load %arg13[%c0_26, %c0_27] : memref<32x256xf32, #tpu.memory_space<vmem>>, vector<24x256xf32>
    %c1_28 = arith.constant 1 : index
    %c0_29 = arith.constant 0 : index
    %41 = vector.load %arg13[%c1_28, %c0_29] : memref<32x256xf32, #tpu.memory_space<vmem>>, vector<24x256xf32>
    %c5_30 = arith.constant 5 : index
    %c0_31 = arith.constant 0 : index
    %42 = vector.load %arg13[%c5_30, %c0_31] : memref<32x256xf32, #tpu.memory_space<vmem>>, vector<24x256xf32>
    %c6_32 = arith.constant 6 : index
    %c0_33 = arith.constant 0 : index
    %43 = vector.load %arg13[%c6_32, %c0_33] : memref<32x256xf32, #tpu.memory_space<vmem>>, vector<24x256xf32>
    %44 = tpu.concatenate %40, %41, %42, %43 in 1 : vector<24x256xf32>, vector<24x256xf32>, vector<24x256xf32>, vector<24x256xf32> -> vector<24x1024xf32>
    %c0_34 = arith.constant 0 : index
    %c0_35 = arith.constant 0 : index
    %45 = vector.load %arg4[%c0_34, %c0_35] : memref<1024x512xf32, #tpu.memory_space<vmem>>, vector<1024x512xf32>
    %cst_36 = arith.constant dense<0.000000e+00> : vector<24x512xf32>
    %46 = tpu.matmul %44, %45, %cst_36 {dimension_numbers = #tpu.dot_dimension_numbers<[1], [0], [0], [1], [0, 0, 1, 1], [], []>} : vector<24x1024xf32>, vector<1024x512xf32>, vector<24x512xf32> -> vector<24x512xf32>
    %c0_37 = arith.constant 0 : index
    %c0_38 = arith.constant 0 : index
    %47 = vector.load %arg5[%c0_37, %c0_38] : memref<1x512xf32, #tpu.memory_space<vmem>>, vector<1x512xf32>
    %48 = vector.broadcast %47 : vector<1x512xf32> to vector<24x512xf32>
    %49 = arith.addf %46, %48 : vector<24x512xf32>
    %cst_39 = arith.constant 0.000000e+00 : f32
    %50 = vector.broadcast %cst_39 : f32 to vector<24x512xf32>
    %51 = arith.cmpf oge, %49, %50 : vector<24x512xf32>
    %cst_40 = arith.constant 0.00999999977 : f32
    %52 = vector.broadcast %cst_40 : f32 to vector<24x512xf32>
    %53 = arith.mulf %52, %49 : vector<24x512xf32>
    %54 = arith.select %51, %49, %53 : vector<24x512xi1>, vector<24x512xf32>
    %c0_41 = arith.constant 0 : index
    %c0_42 = arith.constant 0 : index
    %55 = vector.load %arg6[%c0_41, %c0_42] : memref<88x96xf32, #tpu.memory_space<vmem>>, vector<88x96xf32>
    %56 = vector.extract_strided_slice %54 {offsets = [0, 0], sizes = [24, 128], strides = [1, 1]} : vector<24x512xf32> to vector<24x128xf32>
    %57 = vector.extract_strided_slice %54 {offsets = [0, 128], sizes = [24, 128], strides = [1, 1]} : vector<24x512xf32> to vector<24x128xf32>
    %58 = vector.extract_strided_slice %54 {offsets = [0, 256], sizes = [24, 128], strides = [1, 1]} : vector<24x512xf32> to vector<24x128xf32>
    %59 = vector.extract_strided_slice %54 {offsets = [0, 384], sizes = [24, 128], strides = [1, 1]} : vector<24x512xf32> to vector<24x128xf32>
    %60 = tpu.concatenate %56, %57, %58, %59 in 0 : vector<24x128xf32>, vector<24x128xf32>, vector<24x128xf32>, vector<24x128xf32> -> vector<96x128xf32>
    %cst_43 = arith.constant dense<0.000000e+00> : vector<88x128xf32>
    %61 = tpu.matmul %55, %60, %cst_43 {dimension_numbers = #tpu.dot_dimension_numbers<[1], [0], [0], [1], [0, 0, 1, 1], [], []>} : vector<88x96xf32>, vector<96x128xf32>, vector<88x128xf32> -> vector<88x128xf32>
    %c0_44 = arith.constant 0 : index
    %c0_45 = arith.constant 0 : index
    %62 = vector.load %arg14[%c0_44, %c0_45] : memref<88x128xf32, #tpu.memory_space<vmem>>, vector<88x128xf32>
    tpu.vector_store %arg14[%c0_44, %c0_45], %61 {strides = array<i32>} : memref<88x128xf32, #tpu.memory_space<vmem>>, vector<88x128xf32>,
    %c0_46 = arith.constant 0 : index
    %c0_47 = arith.constant 0 : index
    %63 = vector.load %arg14[%c0_46, %c0_47] : memref<88x128xf32, #tpu.memory_space<vmem>>, vector<72x128xf32>
    %c1_48 = arith.constant 1 : index
    %c0_49 = arith.constant 0 : index
    %64 = vector.load %arg14[%c1_48, %c0_49] : memref<88x128xf32, #tpu.memory_space<vmem>>, vector<72x128xf32>
    %c9 = arith.constant 9 : index
    %c0_50 = arith.constant 0 : index
    %65 = vector.load %arg14[%c9, %c0_50] : memref<88x128xf32, #tpu.memory_space<vmem>>, vector<72x128xf32>
    %c10_51 = arith.constant 10 : index
    %c0_52 = arith.constant 0 : index
    %66 = vector.load %arg14[%c10_51, %c0_52] : memref<88x128xf32, #tpu.memory_space<vmem>>, vector<72x128xf32>
    %67 = tpu.concatenate %63, %64, %65, %66 in 1 : vector<72x128xf32>, vector<72x128xf32>, vector<72x128xf32>, vector<72x128xf32> -> vector<72x512xf32>
    %c0_53 = arith.constant 0 : index
    %c0_54 = arith.constant 0 : index
    %68 = vector.load %arg7[%c0_53, %c0_54] : memref<512x256xf32, #tpu.memory_space<vmem>>, vector<512x256xf32>
    %cst_55 = arith.constant dense<0.000000e+00> : vector<72x256xf32>
    %69 = tpu.matmul %67, %68, %cst_55 {dimension_numbers = #tpu.dot_dimension_numbers<[1], [0], [0], [1], [0, 0, 1, 1], [], []>} : vector<72x512xf32>, vector<512x256xf32>, vector<72x256xf32> -> vector<72x256xf32>
    %c0_56 = arith.constant 0 : index
    %c0_57 = arith.constant 0 : index
    %70 = vector.load %arg8[%c0_56, %c0_57] : memref<1x256xf32, #tpu.memory_space<vmem>>, vector<1x256xf32>
    %71 = vector.broadcast %70 : vector<1x256xf32> to vector<72x256xf32>
    %72 = arith.addf %69, %71 : vector<72x256xf32>
    %cst_58 = arith.constant 0.000000e+00 : f32
    %73 = vector.broadcast %cst_58 : f32 to vector<72x256xf32>
    %74 = arith.cmpf oge, %72, %73 : vector<72x256xf32>
    %cst_59 = arith.constant 0.00999999977 : f32
    %75 = vector.broadcast %cst_59 : f32 to vector<72x256xf32>
    %76 = arith.mulf %75, %72 : vector<72x256xf32>
    %77 = arith.select %74, %72, %76 : vector<72x256xi1>, vector<72x256xf32>
    %c0_60 = arith.constant 0 : index
    %c0_61 = arith.constant 0 : index
    %78 = vector.load %arg9[%c0_60, %c0_61] : memref<328x288xf32, #tpu.memory_space<vmem>>, vector<328x288xf32>
    %79 = vector.extract_strided_slice %77 {offsets = [0, 0], sizes = [72, 64], strides = [1, 1]} : vector<72x256xf32> to vector<72x64xf32>
    %80 = vector.extract_strided_slice %77 {offsets = [0, 64], sizes = [72, 64], strides = [1, 1]} : vector<72x256xf32> to vector<72x64xf32>
    %81 = vector.extract_strided_slice %77 {offsets = [0, 128], sizes = [72, 64], strides = [1, 1]} : vector<72x256xf32> to vector<72x64xf32>
    %82 = vector.extract_strided_slice %77 {offsets = [0, 192], sizes = [72, 64], strides = [1, 1]} : vector<72x256xf32> to vector<72x64xf32>
    %83 = tpu.concatenate %79, %80, %81, %82 in 0 : vector<72x64xf32>, vector<72x64xf32>, vector<72x64xf32>, vector<72x64xf32> -> vector<288x64xf32>
    %cst_62 = arith.constant dense<0.000000e+00> : vector<328x64xf32>
    %84 = tpu.matmul %78, %83, %cst_62 {dimension_numbers = #tpu.dot_dimension_numbers<[1], [0], [0], [1], [0, 0, 1, 1], [], []>} : vector<328x288xf32>, vector<288x64xf32>, vector<328x64xf32> -> vector<328x64xf32>
    %c0_63 = arith.constant 0 : index
    %c0_64 = arith.constant 0 : index
    %85 = vector.load %arg15[%c0_63, %c0_64] : memref<328x64xf32, #tpu.memory_space<vmem>>, vector<328x64xf32>
    tpu.vector_store %arg15[%c0_63, %c0_64], %84 {strides = array<i32>} : memref<328x64xf32, #tpu.memory_space<vmem>>, vector<328x64xf32>,
    %cst_65 = arith.constant 0.000000e+00 : f32
    %86 = vector.broadcast %cst_65 : f32 to vector<1x288xf32>
    %c0_66 = arith.constant 0 : index
    %c0_67 = arith.constant 0 : index
    %87 = vector.load %arg10[%c0_66, %c0_67] : memref<9x64xf32, #tpu.memory_space<vmem>>, vector<1x64xf32>
    %c0_68 = arith.constant 0 : index
    %c0_69 = arith.constant 0 : index
    %88 = vector.load %arg15[%c0_68, %c0_69] : memref<328x64xf32, #tpu.memory_space<vmem>>, vector<288x64xf32>
    %cst_70 = arith.constant dense<0.000000e+00> : vector<1x288xf32>
    %89 = tpu.matmul %87, %88, %cst_70 {dimension_numbers = #tpu.dot_dimension_numbers<[1], [1], [0], [0], [0, 0, 1, 0], [], []>} : vector<1x64xf32>, vector<288x64xf32>, vector<1x288xf32> -> vector<1x288xf32>
    %90 = arith.addf %86, %89 : vector<1x288xf32>
    %c1_71 = arith.constant 1 : index
    %c0_72 = arith.constant 0 : index
    %91 = vector.load %arg10[%c1_71, %c0_72] : memref<9x64xf32, #tpu.memory_space<vmem>>, vector<1x64xf32>
    %c1_73 = arith.constant 1 : index
    %c0_74 = arith.constant 0 : index
    %92 = vector.load %arg15[%c1_73, %c0_74] : memref<328x64xf32, #tpu.memory_space<vmem>>, vector<288x64xf32>
    %cst_75 = arith.constant dense<0.000000e+00> : vector<1x288xf32>
    %93 = tpu.matmul %91, %92, %cst_75 {dimension_numbers = #tpu.dot_dimension_numbers<[1], [1], [0], [0], [0, 0, 1, 0], [], []>} : vector<1x64xf32>, vector<288x64xf32>, vector<1x288xf32> -> vector<1x288xf32>
    %94 = arith.addf %90, %93 : vector<1x288xf32>
    %c2_76 = arith.constant 2 : index
    %c0_77 = arith.constant 0 : index
    %95 = vector.load %arg10[%c2_76, %c0_77] : memref<9x64xf32, #tpu.memory_space<vmem>>, vector<1x64xf32>
    %c2_78 = arith.constant 2 : index
    %c0_79 = arith.constant 0 : index
    %96 = vector.load %arg15[%c2_78, %c0_79] : memref<328x64xf32, #tpu.memory_space<vmem>>, vector<288x64xf32>
    %cst_80 = arith.constant dense<0.000000e+00> : vector<1x288xf32>
    %97 = tpu.matmul %95, %96, %cst_80 {dimension_numbers = #tpu.dot_dimension_numbers<[1], [1], [0], [0], [0, 0, 1, 0], [], []>} : vector<1x64xf32>, vector<288x64xf32>, vector<1x288xf32> -> vector<1x288xf32>
    %98 = arith.addf %94, %97 : vector<1x288xf32>
    %c3_81 = arith.constant 3 : index
    %c0_82 = arith.constant 0 : index
    %99 = vector.load %arg10[%c3_81, %c0_82] : memref<9x64xf32, #tpu.memory_space<vmem>>, vector<1x64xf32>
    %c18_83 = arith.constant 18 : index
    %c0_84 = arith.constant 0 : index
    %100 = vector.load %arg15[%c18_83, %c0_84] : memref<328x64xf32, #tpu.memory_space<vmem>>, vector<288x64xf32>
    %cst_85 = arith.constant dense<0.000000e+00> : vector<1x288xf32>
    %101 = tpu.matmul %99, %100, %cst_85 {dimension_numbers = #tpu.dot_dimension_numbers<[1], [1], [0], [0], [0, 0, 1, 0], [], []>} : vector<1x64xf32>, vector<288x64xf32>, vector<1x288xf32> -> vector<1x288xf32>
    %102 = arith.addf %98, %101 : vector<1x288xf32>
    %c4 = arith.constant 4 : index
    %c0_86 = arith.constant 0 : index
    %103 = vector.load %arg10[%c4, %c0_86] : memref<9x64xf32, #tpu.memory_space<vmem>>, vector<1x64xf32>
    %c19 = arith.constant 19 : index
    %c0_87 = arith.constant 0 : index
    %104 = vector.load %arg15[%c19, %c0_87] : memref<328x64xf32, #tpu.memory_space<vmem>>, vector<288x64xf32>
    %cst_88 = arith.constant dense<0.000000e+00> : vector<1x288xf32>
    %105 = tpu.matmul %103, %104, %cst_88 {dimension_numbers = #tpu.dot_dimension_numbers<[1], [1], [0], [0], [0, 0, 1, 0], [], []>} : vector<1x64xf32>, vector<288x64xf32>, vector<1x288xf32> -> vector<1x288xf32>
    %106 = arith.addf %102, %105 : vector<1x288xf32>
    %c5_89 = arith.constant 5 : index
    %c0_90 = arith.constant 0 : index
    %107 = vector.load %arg10[%c5_89, %c0_90] : memref<9x64xf32, #tpu.memory_space<vmem>>, vector<1x64xf32>
    %c20 = arith.constant 20 : index
    %c0_91 = arith.constant 0 : index
    %108 = vector.load %arg15[%c20, %c0_91] : memref<328x64xf32, #tpu.memory_space<vmem>>, vector<288x64xf32>
    %cst_92 = arith.constant dense<0.000000e+00> : vector<1x288xf32>
    %109 = tpu.matmul %107, %108, %cst_92 {dimension_numbers = #tpu.dot_dimension_numbers<[1], [1], [0], [0], [0, 0, 1, 0], [], []>} : vector<1x64xf32>, vector<288x64xf32>, vector<1x288xf32> -> vector<1x288xf32>
    %110 = arith.addf %106, %109 : vector<1x288xf32>
    %c6_93 = arith.constant 6 : index
    %c0_94 = arith.constant 0 : index
    %111 = vector.load %arg10[%c6_93, %c0_94] : memref<9x64xf32, #tpu.memory_space<vmem>>, vector<1x64xf32>
    %c36 = arith.constant 36 : index
    %c0_95 = arith.constant 0 : index
    %112 = vector.load %arg15[%c36, %c0_95] : memref<328x64xf32, #tpu.memory_space<vmem>>, vector<288x64xf32>
    %cst_96 = arith.constant dense<0.000000e+00> : vector<1x288xf32>
    %113 = tpu.matmul %111, %112, %cst_96 {dimension_numbers = #tpu.dot_dimension_numbers<[1], [1], [0], [0], [0, 0, 1, 0], [], []>} : vector<1x64xf32>, vector<288x64xf32>, vector<1x288xf32> -> vector<1x288xf32>
    %114 = arith.addf %110, %113 : vector<1x288xf32>
    %c7_97 = arith.constant 7 : index
    %c0_98 = arith.constant 0 : index
    %115 = vector.load %arg10[%c7_97, %c0_98] : memref<9x64xf32, #tpu.memory_space<vmem>>, vector<1x64xf32>
    %c37 = arith.constant 37 : index
    %c0_99 = arith.constant 0 : index
    %116 = vector.load %arg15[%c37, %c0_99] : memref<328x64xf32, #tpu.memory_space<vmem>>, vector<288x64xf32>
    %cst_100 = arith.constant dense<0.000000e+00> : vector<1x288xf32>
    %117 = tpu.matmul %115, %116, %cst_100 {dimension_numbers = #tpu.dot_dimension_numbers<[1], [1], [0], [0], [0, 0, 1, 0], [], []>} : vector<1x64xf32>, vector<288x64xf32>, vector<1x288xf32> -> vector<1x288xf32>
    %118 = arith.addf %114, %117 : vector<1x288xf32>
    %c8_101 = arith.constant 8 : index
    %c0_102 = arith.constant 0 : index
    %119 = vector.load %arg10[%c8_101, %c0_102] : memref<9x64xf32, #tpu.memory_space<vmem>>, vector<1x64xf32>
    %c38 = arith.constant 38 : index
    %c0_103 = arith.constant 0 : index
    %120 = vector.load %arg15[%c38, %c0_103] : memref<328x64xf32, #tpu.memory_space<vmem>>, vector<288x64xf32>
    %cst_104 = arith.constant dense<0.000000e+00> : vector<1x288xf32>
    %121 = tpu.matmul %119, %120, %cst_104 {dimension_numbers = #tpu.dot_dimension_numbers<[1], [1], [0], [0], [0, 0, 1, 0], [], []>} : vector<1x64xf32>, vector<288x64xf32>, vector<1x288xf32> -> vector<1x288xf32>
    %122 = arith.addf %118, %121 : vector<1x288xf32>
    %c0_105 = arith.constant 0 : index
    %c0_106 = arith.constant 0 : index
    %123 = vector.load %arg11[%c0_105, %c0_106] : memref<1x1xf32, #tpu.memory_space<vmem>>, vector<1x1xf32>
    %124 = vector.broadcast %123 : vector<1x1xf32> to vector<1x288xf32>
    %125 = arith.addf %122, %124 : vector<1x288xf32>
    %c0_107 = arith.constant 0 : index
    %c0_108 = arith.constant 0 : index
    %c0_109 = arith.constant 0 : index
    %126 = vector.load %arg12[%c0_107, %c0_108, %c0_109] : memref<1x1x288xf32, #tpu.memory_space<vmem>>, vector<1x1x288xf32>
    %127 = vector.shape_cast %126 : vector<1x1x288xf32> to vector<1x288xf32>
    %128 = vector.shape_cast %125 : vector<1x288xf32> to vector<1x1x288xf32>
    tpu.vector_store %arg12[%c0_107, %c0_108, %c0_109], %128 {strides = array<i32>} : memref<1x1x288xf32, #tpu.memory_space<vmem>>, vector<1x1x288xf32>,
    return
  }
  func.func @transform_0(%arg0: i32) -> (i32, i32, i32) {
    %c0_i32 = arith.constant 0 : i32
    %c0_i32_0 = arith.constant 0 : i32
    %c0_i32_1 = arith.constant 0 : i32
    return %arg0, %c0_i32, %c0_i32_0 : i32, i32, i32
  }
  func.func @transform_1(%arg0: i32) -> (i32, i32) {
    %c0_i32 = arith.constant 0 : i32
    %c0_i32_0 = arith.constant 0 : i32
    %c0_i32_1 = arith.constant 0 : i32
    return %c0_i32, %c0_i32_0 : i32, i32
  }
  func.func @transform_2(%arg0: i32) -> (i32, i32) {
    %c0_i32 = arith.constant 0 : i32
    %c0_i32_0 = arith.constant 0 : i32
    %c0_i32_1 = arith.constant 0 : i32
    return %c0_i32, %c0_i32_0 : i32, i32
  }
  func.func @transform_3(%arg0: i32) -> (i32, i32) {
    %c0_i32 = arith.constant 0 : i32
    %c0_i32_0 = arith.constant 0 : i32
    %c0_i32_1 = arith.constant 0 : i32
    return %c0_i32, %c0_i32_0 : i32, i32
  }
  func.func @transform_4(%arg0: i32) -> (i32, i32) {
    %c0_i32 = arith.constant 0 : i32
    %c0_i32_0 = arith.constant 0 : i32
    %c0_i32_1 = arith.constant 0 : i32
    return %c0_i32, %c0_i32_0 : i32, i32
  }
  func.func @transform_5(%arg0: i32) -> (i32, i32) {
    %c0_i32 = arith.constant 0 : i32
    %c0_i32_0 = arith.constant 0 : i32
    %c0_i32_1 = arith.constant 0 : i32
    return %c0_i32, %c0_i32_0 : i32, i32
  }
  func.func @transform_6(%arg0: i32) -> (i32, i32) {
    %c0_i32 = arith.constant 0 : i32
    %c0_i32_0 = arith.constant 0 : i32
    %c0_i32_1 = arith.constant 0 : i32
    return %c0_i32, %c0_i32_0 : i32, i32
  }
  func.func @transform_7(%arg0: i32) -> (i32, i32) {
    %c0_i32 = arith.constant 0 : i32
    %c0_i32_0 = arith.constant 0 : i32
    %c0_i32_1 = arith.constant 0 : i32
    return %c0_i32, %c0_i32_0 : i32, i32
  }
  func.func @transform_8(%arg0: i32) -> (i32, i32) {
    %c0_i32 = arith.constant 0 : i32
    %c0_i32_0 = arith.constant 0 : i32
    %c0_i32_1 = arith.constant 0 : i32
    return %c0_i32, %c0_i32_0 : i32, i32
  }
  func.func @transform_9(%arg0: i32) -> (i32, i32) {
    %c0_i32 = arith.constant 0 : i32
    %c0_i32_0 = arith.constant 0 : i32
    %c0_i32_1 = arith.constant 0 : i32
    return %c0_i32, %c0_i32_0 : i32, i32
  }
  func.func @transform_10(%arg0: i32) -> (i32, i32) {
    %c0_i32 = arith.constant 0 : i32
    %c0_i32_0 = arith.constant 0 : i32
    %c0_i32_1 = arith.constant 0 : i32
    return %c0_i32, %c0_i32_0 : i32, i32
  }
  func.func @transform_11(%arg0: i32) -> (i32, i32, i32) {
    %c0_i32 = arith.constant 0 : i32
    %c0_i32_0 = arith.constant 0 : i32
    %c0_i32_1 = arith.constant 0 : i32
    return %arg0, %c0_i32, %c0_i32_0 : i32, i32, i32
  }
}

</mosaic_0001>

<llo_original>
// kernel: decoder_forward.1
$region0: #{decoder_forward.1}
  #allocation0 [shape = 'u32[]', space=smem, size = 0x4, offset = 0x4, fixed_abs, tag = 'smem constant byte address 0x4 - core index']
  #allocation1 [shape = 'u32[72,128]{1,0:T(1,128)}', space=vmem, size = 0x9000, scoped, tag = 'internal scratch']
  #allocation2 [shape = 'f32[32,256]{1,0:T(8,128)}', space=vmem, size = 0x8000, scoped, tag = 'scratch operand']
  #allocation3 [shape = 'f32[88,128]{1,0:T(8,128)}', space=vmem, size = 0xb000, scoped, tag = 'scratch operand']
  #allocation4 [shape = 'f32[328,64]{1,0:T(8,128)}', space=vmem, size = 0x29000, scoped, tag = 'scratch operand']
  #allocation5 [shape = 'f32[1,1]{1,0:T(1,128)S(1)}', space=vmem, size = 0x200, scoped, tag = 'scoped memory for decoder_forward.1']
  %s0 = inlined_call_operand.hbm [shape: f32[2,1,8], index: 0, kind: input, shape index: {}]
  %s1 = inlined_call_operand.hbm [shape: f32[8,4096], index: 1, kind: input, shape index: {}]
  %s2 = inlined_call_operand.hbm [shape: f32[1,4096], index: 2, kind: input, shape index: {}]
  %s3 = inlined_call_operand.hbm [shape: f32[1024,512], index: 3, kind: input, shape index: {}]
  %s4 = inlined_call_operand.hbm [shape: f32[1,512], index: 4, kind: input, shape index: {}]
  %s5 = inlined_call_operand.hbm [shape: f32[88,96], index: 5, kind: input, shape index: {}]
  %s6 = inlined_call_operand.hbm [shape: f32[512,256], index: 6, kind: input, shape index: {}]
  %s7 = inlined_call_operand.hbm [shape: f32[1,256], index: 7, kind: input, shape index: {}]
  %s8 = inlined_call_operand.vmem [shape: f32[328,288], index: 8, kind: input, shape index: {}]
  %s9 = inlined_call_operand.hbm [shape: f32[9,64], index: 9, kind: input, shape index: {}]
  %s10 = inlined_call_operand.<no memory space> [shape: f32[1,1], index: 10, kind: input, shape index: {}]
  %s11 = inlined_call_operand.vmem [shape: f32[2,1,288], index: 11, kind: output, shape index: {}]
  %s12 = sld [smem:[#allocation0]]
  $region113: #{decoder_forward.1} parent=0
    _
  %s14 = ssub.s32 1, %s12
  %s15 = scalar_select 0, %s14, %s12
  %v16 = vstv %s10
  %17 = vst [vmem:[#allocation5] sm:$0x1] %v16
  $region1: #{decoder_forward.1} parent=0
    #allocation6 [shape = 'u8[1024]{0}', space=vmem, size = 0x400, scoped, tag = 'input window, operand 0']
    #allocation7 [shape = 's32[2]{0}', space=sflag, size = 0x8, scoped, tag = 'scoped memory for decoder_forward.1']
    #allocation8 [shape = 'u8[131072]{0}', space=vmem, size = 0x20000, scoped, tag = 'input window, operand 1, single buffered']
    #allocation9 [shape = 's32[1]{0}', space=sflag, size = 0x4, scoped, tag = 'scoped memory for decoder_forward.1']
    #allocation10 [shape = 'u8[16384]{0}', space=vmem, size = 0x4000, scoped, tag = 'input window, operand 2, single buffered']
    #allocation11 [shape = 'u8[2097152]{0}', space=vmem, size = 0x200000, scoped, tag = 'input window, operand 3, single buffered']
    #allocation12 [shape = 's32[1]{0}', space=sflag, size = 0x4, scoped, tag = 'scoped memory for decoder_forward.1']
    #allocation13 [shape = 'u8[2048]{0}', space=vmem, size = 0x800, scoped, tag = 'input window, operand 4, single buffered']
    #allocation14 [shape = 'u8[45056]{0}', space=vmem, size = 0xb000, scoped, tag = 'input window, operand 5, single buffered']
    #allocation15 [shape = 's32[1]{0}', space=sflag, size = 0x4, scoped, tag = 'scoped memory for decoder_forward.1']
    #allocation16 [shape = 'u8[524288]{0}', space=vmem, size = 0x80000, scoped, tag = 'input window, operand 6, single buffered']
    #allocation17 [shape = 'u8[1024]{0}', space=vmem, size = 0x400, scoped, tag = 'input window, operand 7, single buffered']
    #allocation18 [shape = 's32[1]{0}', space=sflag, size = 0x4, scoped, tag = 'scoped memory for decoder_forward.1']
    #allocation19 [shape = 'u8[8192]{0}', space=vmem, size = 0x2000, scoped, tag = 'input window, operand 9, single buffered']
    %18 = vsyncpa [#allocation7], 0
    %s19 = scalar_lea.sflag [#allocation7], 1
    %20 = vsyncpa %s19, 0
    %21 = vsyncpa [#allocation9], 0
    %22 = vsyncpa [#allocation12], 0
    %23 = vsyncpa [#allocation15], 0
    %24 = vsyncpa [#allocation18], 0
    loop: start=0, step=1, limit=4
    $region2: #{decoder_forward.1} parent=1 // loop_pre_header
      _
    $region3: #{decoder_forward.1} parent=1 // loop_header
      %s26 = sphi 0, %s30
      %p27 = scmp.ge.s32.totalorder %s26, 4
      %s36 = sphi 0, %s38
      %s39 = sphi 0, %s36
      %s40 = sphi 0, %s39
      %s56 = sphi 0, %s40
      %s60 = sphi 0, %s60
      %s62 = sphi 0, %s60
      %s63 = sphi 0, %s62
      %s77 = sphi 0, %s63
      %s81 = sphi 0, %s81
      %s83 = sphi 0, %s81
      %s84 = sphi 0, %s83
      %s98 = sphi 0, %s84
      %s102 = sphi 0, %s102
      %s104 = sphi 0, %s102
      %s105 = sphi 0, %s104
      %s119 = sphi 0, %s105
      %s123 = sphi 0, %s123
      %s125 = sphi 0, %s123
      %s126 = sphi 0, %s125
      %s140 = sphi 0, %s126
      %s144 = sphi 0, %s144
      %s146 = sphi 0, %s144
      %s147 = sphi 0, %s146
      %s161 = sphi 0, %s147
      %s165 = sphi 0, %s165
      %s167 = sphi 0, %s165
      %s168 = sphi 0, %s167
      %s182 = sphi 0, %s168
      %s186 = sphi 0, %s186
      %s188 = sphi 0, %s186
      %s189 = sphi 0, %s188
      %s203 = sphi 0, %s189
      %s207 = sphi 0, %s207
      %s209 = sphi 0, %s207
      %s210 = sphi 0, %s209
      %s224 = sphi 0, %s210
      %s228 = sphi 0, %s228
      %s230 = sphi 0, %s228
      %s231 = sphi 0, %s230
      %s245 = sphi 0, %s231
      %s249 = sphi 0, %s249
      %s251 = sphi 0, %s249
      %s252 = sphi 0, %s251
      %s266 = sphi 0, %s252
      %s272 = sphi 0, %s274
      %s275 = sphi 0, %s272
      %s276 = sphi 0, %s275
      %s292 = sphi 0, %s276
    $region4: #{decoder_forward.1} parent=1 // loop_header_branch
      %29 = sbr.rel (%p27) target = $region8
    $region5: #{decoder_forward.1} parent=1 // loop_body
      %s31 = ssub.s32 %s26, 1
      %s32 = ssub.s32 %s26, 2
      %s33 = sadd.s32 %s26, 1
      %s34 = ssub.s32 %s26, %s33
      %p35 = scmp.eq.s32.totalorder %s34, 0
      %s37 = sadd.s32 %s36, 1
      %s38 = scalar_select %p35, %s36, %s37
      %p41 = pneg %p35
      %p42 = scmp.eq.s32.totalorder %s26, 1
      %p43 = por %p41, %p42
      %p44 = scmp.ne.s32.totalorder %s36, %s39
      %p45 = scmp.eq.s32.totalorder %s26, 0
      %p46 = por %p44, %p45
      %p47 = scmp.ne.s32.totalorder %s36, %s39
      %p48 = scmp.eq.s32.totalorder %s31, 1
      %p49 = por %p47, %p48
      %p50 = scmp.ne.s32.totalorder %s39, %s40
      %p51 = scmp.eq.s32.totalorder %s31, 0
      %p52 = por %p50, %p51
      %p53 = scmp.ne.s32.totalorder %s39, %s40
      %p54 = scmp.eq.s32.totalorder %s32, 1
      %p55 = por %p53, %p54
      %p57 = scmp.ne.s32.totalorder %s40, %s56
      %p58 = scmp.eq.s32.totalorder %s32, 0
      %p59 = por %p57, %p58
      %s61 = sadd.s32 %s60, 1
      %p64 = scmp.eq.s32.totalorder %s26, 1
      %p65 = scmp.ne.s32.totalorder %s60, %s62
      %p66 = scmp.eq.s32.totalorder %s26, 0
      %p67 = por %p65, %p66
      %p68 = scmp.ne.s32.totalorder %s60, %s62
      %p69 = scmp.eq.s32.totalorder %s31, 1
      %p70 = por %p68, %p69
      %p71 = scmp.ne.s32.totalorder %s62, %s63
      %p72 = scmp.eq.s32.totalorder %s31, 0
      %p73 = por %p71, %p72
      %p74 = scmp.ne.s32.totalorder %s62, %s63
      %p75 = scmp.eq.s32.totalorder %s32, 1
      %p76 = por %p74, %p75
      %p78 = scmp.ne.s32.totalorder %s63, %s77
      %p79 = scmp.eq.s32.totalorder %s32, 0
      %p80 = por %p78, %p79
      %s82 = sadd.s32 %s81, 1
      %p85 = scmp.eq.s32.totalorder %s26, 1
      %p86 = scmp.ne.s32.totalorder %s81, %s83
      %p87 = scmp.eq.s32.totalorder %s26, 0
      %p88 = por %p86, %p87
      %p89 = scmp.ne.s32.totalorder %s81, %s83
      %p90 = scmp.eq.s32.totalorder %s31, 1
      %p91 = por %p89, %p90
      %p92 = scmp.ne.s32.totalorder %s83, %s84
      %p93 = scmp.eq.s32.totalorder %s31, 0
      %p94 = por %p92, %p93
      %p95 = scmp.ne.s32.totalorder %s83, %s84
      %p96 = scmp.eq.s32.totalorder %s32, 1
      %p97 = por %p95, %p96
      %p99 = scmp.ne.s32.totalorder %s84, %s98
      %p100 = scmp.eq.s32.totalorder %s32, 0
      %p101 = por %p99, %p100
      %s103 = sadd.s32 %s102, 1
      %p106 = scmp.eq.s32.totalorder %s26, 1
      %p107 = scmp.ne.s32.totalorder %s102, %s104
      %p108 = scmp.eq.s32.totalorder %s26, 0
      %p109 = por %p107, %p108
      %p110 = scmp.ne.s32.totalorder %s102, %s104
      %p111 = scmp.eq.s32.totalorder %s31, 1
      %p112 = por %p110, %p111
      %p113 = scmp.ne.s32.totalorder %s104, %s105
      %p114 = scmp.eq.s32.totalorder %s31, 0
      %p115 = por %p113, %p114
      %p116 = scmp.ne.s32.totalorder %s104, %s105
      %p117 = scmp.eq.s32.totalorder %s32, 1
      %p118 = por %p116, %p117
      %p120 = scmp.ne.s32.totalorder %s105, %s119
      %p121 = scmp.eq.s32.totalorder %s32, 0
      %p122 = por %p120, %p121
      %s124 = sadd.s32 %s123, 1
      %p127 = scmp.eq.s32.totalorder %s26, 1
      %p128 = scmp.ne.s32.totalorder %s123, %s125
      %p129 = scmp.eq.s32.totalorder %s26, 0
      %p130 = por %p128, %p129
      %p131 = scmp.ne.s32.totalorder %s123, %s125
      %p132 = scmp.eq.s32.totalorder %s31, 1
      %p133 = por %p131, %p132
      %p134 = scmp.ne.s32.totalorder %s125, %s126
      %p135 = scmp.eq.s32.totalorder %s31, 0
      %p136 = por %p134, %p135
      %p137 = scmp.ne.s32.totalorder %s125, %s126
      %p138 = scmp.eq.s32.totalorder %s32, 1
      %p139 = por %p137, %p138
      %p141 = scmp.ne.s32.totalorder %s126, %s140
      %p142 = scmp.eq.s32.totalorder %s32, 0
      %p143 = por %p141, %p142
      %s145 = sadd.s32 %s144, 1
      %p148 = scmp.eq.s32.totalorder %s26, 1
      %p149 = scmp.ne.s32.totalorder %s144, %s146
      %p150 = scmp.eq.s32.totalorder %s26, 0
      %p151 = por %p149, %p150
      %p152 = scmp.ne.s32.totalorder %s144, %s146
      %p153 = scmp.eq.s32.totalorder %s31, 1
      %p154 = por %p152, %p153
      %p155 = scmp.ne.s32.totalorder %s146, %s147
      %p156 = scmp.eq.s32.totalorder %s31, 0
      %p157 = por %p155, %p156
      %p158 = scmp.ne.s32.totalorder %s146, %s147
      %p159 = scmp.eq.s32.totalorder %s32, 1
      %p160 = por %p158, %p159
      %p162 = scmp.ne.s32.totalorder %s147, %s161
      %p163 = scmp.eq.s32.totalorder %s32, 0
      %p164 = por %p162, %p163
      %s166 = sadd.s32 %s165, 1
      %p169 = scmp.eq.s32.totalorder %s26, 1
      %p170 = scmp.ne.s32.totalorder %s165, %s167
      %p171 = scmp.eq.s32.totalorder %s26, 0
      %p172 = por %p170, %p171
      %p173 = scmp.ne.s32.totalorder %s165, %s167
      %p174 = scmp.eq.s32.totalorder %s31, 1
      %p175 = por %p173, %p174
      %p176 = scmp.ne.s32.totalorder %s167, %s168
      %p177 = scmp.eq.s32.totalorder %s31, 0
      %p178 = por %p176, %p177
      %p179 = scmp.ne.s32.totalorder %s167, %s168
      %p180 = scmp.eq.s32.totalorder %s32, 1
      %p181 = por %p179, %p180
      %p183 = scmp.ne.s32.totalorder %s168, %s182
      %p184 = scmp.eq.s32.totalorder %s32, 0
      %p185 = por %p183, %p184
      %s187 = sadd.s32 %s186, 1
      %p190 = scmp.eq.s32.totalorder %s26, 1
      %p191 = scmp.ne.s32.totalorder %s186, %s188
      %p192 = scmp.eq.s32.totalorder %s26, 0
      %p193 = por %p191, %p192
      %p194 = scmp.ne.s32.totalorder %s186, %s188
      %p195 = scmp.eq.s32.totalorder %s31, 1
      %p196 = por %p194, %p195
      %p197 = scmp.ne.s32.totalorder %s188, %s189
      %p198 = scmp.eq.s32.totalorder %s31, 0
      %p199 = por %p197, %p198
      %p200 = scmp.ne.s32.totalorder %s188, %s189
      %p201 = scmp.eq.s32.totalorder %s32, 1
      %p202 = por %p200, %p201
      %p204 = scmp.ne.s32.totalorder %s189, %s203
      %p205 = scmp.eq.s32.totalorder %s32, 0
      %p206 = por %p204, %p205
      %s208 = sadd.s32 %s207, 1
      %p211 = scmp.eq.s32.totalorder %s26, 1
      %p212 = scmp.ne.s32.totalorder %s207, %s209
      %p213 = scmp.eq.s32.totalorder %s26, 0
      %p214 = por %p212, %p213
      %p215 = scmp.ne.s32.totalorder %s207, %s209
      %p216 = scmp.eq.s32.totalorder %s31, 1
      %p217 = por %p215, %p216
      %p218 = scmp.ne.s32.totalorder %s209, %s210
      %p219 = scmp.eq.s32.totalorder %s31, 0
      %p220 = por %p218, %p219
      %p221 = scmp.ne.s32.totalorder %s209, %s210
      %p222 = scmp.eq.s32.totalorder %s32, 1
      %p223 = por %p221, %p222
      %p225 = scmp.ne.s32.totalorder %s210, %s224
      %p226 = scmp.eq.s32.totalorder %s32, 0
      %p227 = por %p225, %p226
      %s229 = sadd.s32 %s228, 1
      %p232 = scmp.eq.s32.totalorder %s26, 1
      %p233 = scmp.ne.s32.totalorder %s228, %s230
      %p234 = scmp.eq.s32.totalorder %s26, 0
      %p235 = por %p233, %p234
      %p236 = scmp.ne.s32.totalorder %s228, %s230
      %p237 = scmp.eq.s32.totalorder %s31, 1
      %p238 = por %p236, %p237
      %p239 = scmp.ne.s32.totalorder %s230, %s231
      %p240 = scmp.eq.s32.totalorder %s31, 0
      %p241 = por %p239, %p240
      %p242 = scmp.ne.s32.totalorder %s230, %s231
      %p243 = scmp.eq.s32.totalorder %s32, 1
      %p244 = por %p242, %p243
      %p246 = scmp.ne.s32.totalorder %s231, %s245
      %p247 = scmp.eq.s32.totalorder %s32, 0
      %p248 = por %p246, %p247
      %s250 = sadd.s32 %s249, 1
      %p253 = scmp.eq.s32.totalorder %s26, 1
      %p254 = scmp.ne.s32.totalorder %s249, %s251
      %p255 = scmp.eq.s32.totalorder %s26, 0
      %p256 = por %p254, %p255
      %p257 = scmp.ne.s32.totalorder %s249, %s251
      %p258 = scmp.eq.s32.totalorder %s31, 1
      %p259 = por %p257, %p258
      %p260 = scmp.ne.s32.totalorder %s251, %s252
      %p261 = scmp.eq.s32.totalorder %s31, 0
      %p262 = por %p260, %p261
      %p263 = scmp.ne.s32.totalorder %s251, %s252
      %p264 = scmp.eq.s32.totalorder %s32, 1
      %p265 = por %p263, %p264
      %p267 = scmp.ne.s32.totalorder %s252, %s266
      %p268 = scmp.eq.s32.totalorder %s32, 0
      %p269 = por %p267, %p268
      %s270 = ssub.s32 %s26, %s33
      %p271 = scmp.eq.s32.totalorder %s270, 0
      %s273 = sadd.s32 %s272, 1
      %s274 = scalar_select %p271, %s272, %s273
      %p277 = pneg %p271
      %p278 = scmp.eq.s32.totalorder %s26, 1
      %p279 = por %p277, %p278
      %p280 = scmp.ne.s32.totalorder %s272, %s275
      %p281 = scmp.eq.s32.totalorder %s26, 0
      %p282 = por %p280, %p281
      %p283 = scmp.ne.s32.totalorder %s272, %s275
      %p284 = scmp.eq.s32.totalorder %s31, 1
      %p285 = por %p283, %p284
      %p286 = scmp.ne.s32.totalorder %s275, %s276
      %p287 = scmp.eq.s32.totalorder %s31, 0
      %p288 = por %p286, %p287
      %p289 = scmp.ne.s32.totalorder %s275, %s276
      %p290 = scmp.eq.s32.totalorder %s32, 1
      %p291 = por %p289, %p290
      %p293 = scmp.ne.s32.totalorder %s276, %s292
      %p294 = scmp.eq.s32.totalorder %s32, 0
      %p295 = por %p293, %p294
      %p296 = scmp.le.s32.totalorder 1, %s26
      %p297 = scmp.lt.s32.totalorder %s26, 3
      %p298 = pnand %p296, %p297
      %p299 = pneg %p298
      // Predicated region
      $region9: #{decoder_forward.1} parent=5 // pred_check
        _
      $region10: #{decoder_forward.1} parent=5 // pred_check_branch
        %301 = sbr.rel (%p298) target = $region12
      $region11: #{decoder_forward.1} parent=5 // pred_region
        %s302 = ssub.s32 %s26, 1
        // Predicated region
        $region13: #{decoder_forward.1} parent=11 // pred_check
          %p303 = pneg %p73
        $region14: #{decoder_forward.1} parent=11 // pred_check_branch
          %305 = sbr.rel (%p303) target = $region16
        $region15: #{decoder_forward.1} parent=11 // pred_region
          %307 = vsyncadd [#allocation9], 0
          %s309 = sshll.u32 %s1, 4
          %s310 = int_to_ptr.hbm [resolvable:$true] %s309
          %s311 = sshll.u32 [#allocation8], 4
          %s312 = int_to_ptr.vmem [resolvable:$true] %s311
          %314 = dma.hbm_to_vmem [thread:$0]  %s310, 4096, %s312, [#allocation9]
        $region16: #{decoder_forward.1} parent=11 // pred_fallthru
          _
        // Predicated region
        $region17: #{decoder_forward.1} parent=11 // pred_check
          %p315 = pneg %p94
        $region18: #{decoder_forward.1} parent=11 // pred_check_branch
          %317 = sbr.rel (%p315) target = $region20
        $region19: #{decoder_forward.1} parent=11 // pred_region
          %319 = vsyncadd [#allocation9], 0
          %s321 = sshll.u32 %s2, 4
          %s322 = int_to_ptr.hbm [resolvable:$true] %s321
          %s323 = sshll.u32 [#allocation10], 4
          %s324 = int_to_ptr.vmem [resolvable:$true] %s323
          %326 = dma.hbm_to_vmem [thread:$0]  %s322, 512, %s324, [#allocation9]
        $region20: #{decoder_forward.1} parent=11 // pred_fallthru
          _
        // Predicated region
        $region21: #{decoder_forward.1} parent=11 // pred_check
          %p327 = pneg %p115
        $region22: #{decoder_forward.1} parent=11 // pred_check_branch
          %329 = sbr.rel (%p327) target = $region24
        $region23: #{decoder_forward.1} parent=11 // pred_region
          %331 = vsyncadd [#allocation12], 0
          %s332 = sshll.u32 %s3, 4
          %s333 = int_to_ptr.hbm [resolvable:$true] %s332
          %s334 = sshll.u32 [#allocation11], 4
          %s335 = int_to_ptr.vmem [resolvable:$true] %s334
          %340 = dma.hbm_to_vmem [thread:$0]  %s333, 65536, %s335, [#allocation12], 512, 512, 32
        $region24: #{decoder_forward.1} parent=11 // pred_fallthru
          _
        // Predicated region
        $region25: #{decoder_forward.1} parent=11 // pred_check
          %p341 = pneg %p136
        $region26: #{decoder_forward.1} parent=11 // pred_check_branch
          %343 = sbr.rel (%p341) target = $region28
        $region27: #{decoder_forward.1} parent=11 // pred_region
          %345 = vsyncadd [#allocation12], 0
          %s347 = sshll.u32 %s4, 4
          %s348 = int_to_ptr.hbm [resolvable:$true] %s347
          %s349 = sshll.u32 [#allocation13], 4
          %s350 = int_to_ptr.vmem [resolvable:$true] %s349
          %352 = dma.hbm_to_vmem [thread:$0]  %s348, 64, %s350, [#allocation12]
        $region28: #{decoder_forward.1} parent=11 // pred_fallthru
          _
        // Predicated region
        $region29: #{decoder_forward.1} parent=11 // pred_check
          %p353 = pneg %p157
        $region30: #{decoder_forward.1} parent=11 // pred_check_branch
          %355 = sbr.rel (%p353) target = $region32
        $region31: #{decoder_forward.1} parent=11 // pred_region
          %357 = vsyncadd [#allocation15], 0
          %s358 = sshll.u32 %s5, 4
          %s359 = int_to_ptr.hbm [resolvable:$true] %s358
          %s360 = sshll.u32 [#allocation14], 4
          %s361 = int_to_ptr.vmem [resolvable:$true] %s360
          %366 = dma.hbm_to_vmem [thread:$0]  %s359, 1408, %s361, [#allocation15], 128, 128, 8
        $region32: #{decoder_forward.1} parent=11 // pred_fallthru
          _
        // Predicated region
        $region33: #{decoder_forward.1} parent=11 // pred_check
          %p367 = pneg %p178
        $region34: #{decoder_forward.1} parent=11 // pred_check_branch
          %369 = sbr.rel (%p367) target = $region36
        $region35: #{decoder_forward.1} parent=11 // pred_region
          %371 = vsyncadd [#allocation15], 0
          %s372 = sshll.u32 %s6, 4
          %s373 = int_to_ptr.hbm [resolvable:$true] %s372
          %s374 = sshll.u32 [#allocation16], 4
          %s375 = int_to_ptr.vmem [resolvable:$true] %s374
          %380 = dma.hbm_to_vmem [thread:$0]  %s373, 16384, %s375, [#allocation15], 256, 256, 16
        $region36: #{decoder_forward.1} parent=11 // pred_fallthru
          _
        // Predicated region
        $region37: #{decoder_forward.1} parent=11 // pred_check
          %p381 = pneg %p199
        $region38: #{decoder_forward.1} parent=11 // pred_check_branch
          %383 = sbr.rel (%p381) target = $region40
        $region39: #{decoder_forward.1} parent=11 // pred_region
          %385 = vsyncadd [#allocation18], 0
          %s387 = sshll.u32 %s7, 4
          %s388 = int_to_ptr.hbm [resolvable:$true] %s387
          %s389 = sshll.u32 [#allocation17], 4
          %s390 = int_to_ptr.vmem [resolvable:$true] %s389
          %392 = dma.hbm_to_vmem [thread:$0]  %s388, 32, %s390, [#allocation18]
        $region40: #{decoder_forward.1} parent=11 // pred_fallthru
          _
        // Predicated region
        $region41: #{decoder_forward.1} parent=11 // pred_check
          %p393 = pneg %p220
        $region42: #{decoder_forward.1} parent=11 // pred_check_branch
          %395 = sbr.rel (%p393) target = $region44
        $region43: #{decoder_forward.1} parent=11 // pred_region
          _
        $region44: #{decoder_forward.1} parent=11 // pred_fallthru
          _
        // Predicated region
        $region45: #{decoder_forward.1} parent=11 // pred_check
          %p396 = pneg %p241
        $region46: #{decoder_forward.1} parent=11 // pred_check_branch
          %398 = sbr.rel (%p396) target = $region48
        $region47: #{decoder_forward.1} parent=11 // pred_region
          %400 = vsyncadd [#allocation18], 0
          %s401 = sshll.u32 %s9, 4
          %s402 = int_to_ptr.hbm [resolvable:$true] %s401
          %s403 = sshll.u32 [#allocation19], 4
          %s404 = int_to_ptr.vmem [resolvable:$true] %s403
          %409 = dma.hbm_to_vmem [thread:$0]  %s402, 256, %s404, [#allocation18], 128, 128, 8
        $region48: #{decoder_forward.1} parent=11 // pred_fallthru
          _
        // Predicated region
        $region49: #{decoder_forward.1} parent=11 // pred_check
          %p410 = pneg %p262
        $region50: #{decoder_forward.1} parent=11 // pred_check_branch
          %412 = sbr.rel (%p410) target = $region52
        $region51: #{decoder_forward.1} parent=11 // pred_region
          _
        $region52: #{decoder_forward.1} parent=11 // pred_fallthru
          _
      $region12: #{decoder_forward.1} parent=5 // pred_fallthru
        _
      %p413 = scmp.lt.s32.totalorder %s26, 2
      // Predicated region
      $region53: #{decoder_forward.1} parent=5 // pred_check
        %p414 = pneg %p413
      $region54: #{decoder_forward.1} parent=5 // pred_check_branch
        %416 = sbr.rel (%p414) target = $region56
      $region55: #{decoder_forward.1} parent=5 // pred_region
        // Predicated region
        $region57: #{decoder_forward.1} parent=55 // pred_check
          %p417 = pneg %p46
        $region58: #{decoder_forward.1} parent=55 // pred_check_branch
          %419 = sbr.rel (%p417) target = $region60
        $region59: #{decoder_forward.1} parent=55 // pred_region
          %s420 = sand.u32 %s36, 1
          %s421 = scalar_lea.sflag [#allocation7], %s420
          %s422 = sand.u32 %s36, 1
          %s423 = scalar_lea.vmem [#allocation6], %s422
          %425 = vsyncadd %s421, 0
          %s426 = scalar_lea.hbm %s0, %s26
          %s428 = sshll.u32 %s426, 4
          %s429 = int_to_ptr.hbm [resolvable:$true] %s428
          %s430 = sshll.u32 %s423, 4
          %s431 = int_to_ptr.vmem [resolvable:$true] %s430
          %433 = dma.hbm_to_vmem [thread:$0]  %s429, 16, %s431, %s421
        $region60: #{decoder_forward.1} parent=55 // pred_fallthru
          _
      $region56: #{decoder_forward.1} parent=5 // pred_fallthru
        _
      %p434 = scmp.le.s32.totalorder 1, %s26
      %p435 = scmp.lt.s32.totalorder %s26, 3
      %p436 = pnand %p434, %p435
      %p437 = pneg %p436
      // Predicated region
      $region61: #{decoder_forward.1} parent=5 // pred_check
        _
      $region62: #{decoder_forward.1} parent=5 // pred_check_branch
        %439 = sbr.rel (%p436) target = $region64
      $region63: #{decoder_forward.1} parent=5 // pred_region
        %s440 = ssub.s32 %s26, 1
        %s441 = sand.u32 %s39, 1
        %s442 = scalar_lea.sflag [#allocation7], %s441
        %s443 = sand.u32 %s39, 1
        %s444 = scalar_lea.vmem [#allocation6], %s443
        // Predicated region
        $region65: #{decoder_forward.1} parent=63 // pred_check
          %p445 = pneg %p52
        $region66: #{decoder_forward.1} parent=63 // pred_check_branch
          %447 = sbr.rel (%p445) target = $region68
        $region67: #{decoder_forward.1} parent=63 // pred_region
          %449 = dma.done %s442, 16
        $region68: #{decoder_forward.1} parent=63 // pred_fallthru
          _
        // Predicated region
        $region69: #{decoder_forward.1} parent=63 // pred_check
          %p450 = pneg %p73
        $region70: #{decoder_forward.1} parent=63 // pred_check_branch
          %452 = sbr.rel (%p450) target = $region72
        $region71: #{decoder_forward.1} parent=63 // pred_region
          %454 = dma.done [#allocation9], 4096
        $region72: #{decoder_forward.1} parent=63 // pred_fallthru
          _
        // Predicated region
        $region73: #{decoder_forward.1} parent=63 // pred_check
          %p455 = pneg %p94
        $region74: #{decoder_forward.1} parent=63 // pred_check_branch
          %457 = sbr.rel (%p455) target = $region76
        $region75: #{decoder_forward.1} parent=63 // pred_region
          %459 = dma.done [#allocation9], 512
        $region76: #{decoder_forward.1} parent=63 // pred_fallthru
          _
        // Predicated region
        $region77: #{decoder_forward.1} parent=63 // pred_check
          %p460 = pneg %p115
        $region78: #{decoder_forward.1} parent=63 // pred_check_branch
          %462 = sbr.rel (%p460) target = $region80
        $region79: #{decoder_forward.1} parent=63 // pred_region
          %464 = dma.done [#allocation12], 65536
        $region80: #{decoder_forward.1} parent=63 // pred_fallthru
          _
        // Predicated region
        $region81: #{decoder_forward.1} parent=63 // pred_check
          %p465 = pneg %p136
        $region82: #{decoder_forward.1} parent=63 // pred_check_branch
          %467 = sbr.rel (%p465) target = $region84
        $region83: #{decoder_forward.1} parent=63 // pred_region
          %469 = dma.done [#allocation12], 64
        $region84: #{decoder_forward.1} parent=63 // pred_fallthru
          _
        // Predicated region
        $region85: #{decoder_forward.1} parent=63 // pred_check
          %p470 = pneg %p157
        $region86: #{decoder_forward.1} parent=63 // pred_check_branch
          %472 = sbr.rel (%p470) target = $region88
        $region87: #{decoder_forward.1} parent=63 // pred_region
          %474 = dma.done [#allocation15], 1408
        $region88: #{decoder_forward.1} parent=63 // pred_fallthru
          _
        // Predicated region
        $region89: #{decoder_forward.1} parent=63 // pred_check
          %p475 = pneg %p178
        $region90: #{decoder_forward.1} parent=63 // pred_check_branch
          %477 = sbr.rel (%p475) target = $region92
        $region91: #{decoder_forward.1} parent=63 // pred_region
          %479 = dma.done [#allocation15], 16384
        $region92: #{decoder_forward.1} parent=63 // pred_fallthru
          _
        // Predicated region
        $region93: #{decoder_forward.1} parent=63 // pred_check
          %p480 = pneg %p199
        $region94: #{decoder_forward.1} parent=63 // pred_check_branch
          %482 = sbr.rel (%p480) target = $region96
        $region95: #{decoder_forward.1} parent=63 // pred_region
          %484 = dma.done [#allocation18], 32
        $region96: #{decoder_forward.1} parent=63 // pred_fallthru
          _
        // Predicated region
        $region97: #{decoder_forward.1} parent=63 // pred_check
          %p485 = pneg %p241
        $region98: #{decoder_forward.1} parent=63 // pred_check_branch
          %487 = sbr.rel (%p485) target = $region100
        $region99: #{decoder_forward.1} parent=63 // pred_region
          %489 = dma.done [#allocation18], 256
        $region100: #{decoder_forward.1} parent=63 // pred_fallthru
          _
        %s490 = sand.u32 %s39, 1
        %s491 = scalar_lea.sflag [#allocation7], %s490
        %s492 = sand.u32 %s39, 1
        %s493 = scalar_lea.vmem [#allocation6], %s492
        %p494 = pneg %p52
        %p495 = pneg %p49
        %p496 = pneg %p73
        %p497 = pneg %p70
        %p498 = pneg %p94
        %p499 = pneg %p91
        %p500 = pneg %p115
        %p501 = pneg %p112
        %p502 = pneg %p136
        %p503 = pneg %p133
        %p504 = pneg %p157
        %p505 = pneg %p154
        %p506 = pneg %p178
        %p507 = pneg %p175
        %p508 = pneg %p199
        %p509 = pneg %p196
        %p510 = pneg %p220
        %p511 = pneg %p217
        %p512 = pneg %p241
        %p513 = pneg %p238
        %p514 = pneg %p262
        %p515 = pneg %p259
        %p516 = pneg %p288
        %p517 = pneg %p285
        %p518 = scmp.lt.s32.totalorder %s31, 1
        %s519 = scalar_select %p518, %s31, 1
        %s520 = smul.addr %s519, 3
        %s521 = scalar_lea.vmem %s11, %s520
        %p522 = scmp.lt.s32.totalorder %s31, 1
        %s523 = scalar_select %p522, %s31, 1
        %s524 = smul.addr %s523, 3
        %s525 = scalar_lea.vmem %s11, %s524
        %v526 = vld [vmem:[%s444] sm:$0x1]
        %v527 = vld [vmem:[#allocation8] sm:$0xff]
        %v528 = vld [vmem:[#allocation8 + $0x8] sm:$0xff]
        %v529 = vld [vmem:[#allocation8 + $0x10] sm:$0xff]
        %v530 = vld [vmem:[#allocation8 + $0x18] sm:$0xff]
        %v531 = vld [vmem:[#allocation8 + $0x20] sm:$0xff]
        %v532 = vld [vmem:[#allocation8 + $0x28] sm:$0xff]
        %v533 = vld [vmem:[#allocation8 + $0x30] sm:$0xff]
        %v534 = vld [vmem:[#allocation8 + $0x38] sm:$0xff]
        %v535 = vld [vmem:[#allocation8 + $0x40] sm:$0xff]
        %v536 = vld [vmem:[#allocation8 + $0x48] sm:$0xff]
        %v537 = vld [vmem:[#allocation8 + $0x50] sm:$0xff]
        %v538 = vld [vmem:[#allocation8 + $0x58] sm:$0xff]
        %v539 = vld [vmem:[#allocation8 + $0x60] sm:$0xff]
        %v540 = vld [vmem:[#allocation8 + $0x68] sm:$0xff]
        %v541 = vld [vmem:[#allocation8 + $0x70] sm:$0xff]
        %v542 = vld [vmem:[#allocation8 + $0x78] sm:$0xff]
        %v543 = vld [vmem:[#allocation8 + $0x80] sm:$0xff]
        %v544 = vld [vmem:[#allocation8 + $0x88] sm:$0xff]
        %v545 = vld [vmem:[#allocation8 + $0x90] sm:$0xff]
        %v546 = vld [vmem:[#allocation8 + $0x98] sm:$0xff]
        %v547 = vld [vmem:[#allocation8 + $0xa0] sm:$0xff]
        %v548 = vld [vmem:[#allocation8 + $0xa8] sm:$0xff]
        %v549 = vld [vmem:[#allocation8 + $0xb0] sm:$0xff]
        %v550 = vld [vmem:[#allocation8 + $0xb8] sm:$0xff]
        %v551 = vld [vmem:[#allocation8 + $0xc0] sm:$0xff]
        %v552 = vld [vmem:[#allocation8 + $0xc8] sm:$0xff]
        %v553 = vld [vmem:[#allocation8 + $0xd0] sm:$0xff]
        %v554 = vld [vmem:[#allocation8 + $0xd8] sm:$0xff]
        %v555 = vld [vmem:[#allocation8 + $0xe0] sm:$0xff]
        %v556 = vld [vmem:[#allocation8 + $0xe8] sm:$0xff]
        %v557 = vld [vmem:[#allocation8 + $0xf0] sm:$0xff]
        %v558 = vld [vmem:[#allocation8 + $0xf8] sm:$0xff]
        %v559 = vld [vmem:[#allocation10] sm:$0xff]
        %v560 = vld [vmem:[#allocation10 + $0x8] sm:$0xff]
        %v561 = vld [vmem:[#allocation10 + $0x10] sm:$0xff]
        %v562 = vld [vmem:[#allocation10 + $0x18] sm:$0xff]
        %v567 = vperm.slane %v559, 0
        %v568 = vperm.slane %v559, 1
        %v569 = vperm.slane %v559, 2
        %v570 = vperm.slane %v559, 3
        %v571 = vperm.slane %v559, 4
        %v572 = vperm.slane %v559, 5
        %v573 = vperm.slane %v559, 6
        %v574 = vperm.slane %v559, 7
        %v575 = vperm.slane %v560, 0
        %v576 = vperm.slane %v560, 1
        %v577 = vperm.slane %v560, 2
        %v578 = vperm.slane %v560, 3
        %v579 = vperm.slane %v560, 4
        %v580 = vperm.slane %v560, 5
        %v581 = vperm.slane %v560, 6
        %v582 = vperm.slane %v560, 7
        %v583 = vperm.slane %v561, 0
        %v584 = vperm.slane %v561, 1
        %v585 = vperm.slane %v561, 2
        %v586 = vperm.slane %v561, 3
        %v587 = vperm.slane %v561, 4
        %v588 = vperm.slane %v561, 5
        %v589 = vperm.slane %v561, 6
        %v590 = vperm.slane %v561, 7
        %v591 = vperm.slane %v562, 0
        %v592 = vperm.slane %v562, 1
        %v593 = vperm.slane %v562, 2
        %v594 = vperm.slane %v562, 3
        %v595 = vperm.slane %v562, 4
        %v596 = vperm.slane %v562, 5
        %v597 = vperm.slane %v562, 6
        %v598 = vperm.slane %v562, 7
        %vm631 = vcmask 64512
        %v633 = vsel %vm631, %v526, 0
        %635 = vmatpush.msra.mxu0 0.0
        %636 = vmatpush.msra.mxu0 0.0
        %637 = vmatpush.msra.mxu0 0.0
        %638 = vmatpush.msra.mxu0 0.0
        %639 = vmatpush.msra.mxu0 0.0
        %640 = vmatpush.msra.mxu0 0.0
        %641 = vmatpush.msra.mxu0 0.0
        %642 = vmatpush.msra.mxu0 0.0
        %643 = vmatpush.msra.mxu0 0.0
        %644 = vmatpush.msra.mxu0 0.0
        %645 = vmatpush.msra.mxu0 0.0
        %646 = vmatpush.msra.mxu0 0.0
        %647 = vmatpush.msra.mxu0 0.0
        %648 = vmatpush.msra.mxu0 0.0
        %649 = vmatpush.msra.mxu0 0.0
        %650 = vmatpush.msra.mxu0 %v527
        %651 = vmatmul.f32.gmra.mxu0 %v633
        %v652 = vpop.f32.mrf.mxu0
        %v653 = vadd.f32 %v567, %v652
        %654 = vdwg.mxu0
        %655 = vmatpush.msra.mxu0 0.0
        %656 = vmatpush.msra.mxu0 0.0
        %657 = vmatpush.msra.mxu0 0.0
        %658 = vmatpush.msra.mxu0 0.0
        %659 = vmatpush.msra.mxu0 0.0
        %660 = vmatpush.msra.mxu0 0.0
        %661 = vmatpush.msra.mxu0 0.0
        %662 = vmatpush.msra.mxu0 0.0
        %663 = vmatpush.msra.mxu0 0.0
        %664 = vmatpush.msra.mxu0 0.0
        %665 = vmatpush.msra.mxu0 0.0
        %666 = vmatpush.msra.mxu0 0.0
        %667 = vmatpush.msra.mxu0 0.0
        %668 = vmatpush.msra.mxu0 0.0
        %669 = vmatpush.msra.mxu0 0.0
        %670 = vmatpush.msra.mxu0 %v528
        %671 = vmatmul.f32.gmra.mxu0 %v633
        %v672 = vpop.f32.mrf.mxu0
        %v673 = vadd.f32 %v568, %v672
        %674 = vdwg.mxu0
        %675 = vmatpush.msra.mxu0 0.0
        %676 = vmatpush.msra.mxu0 0.0
        %677 = vmatpush.msra.mxu0 0.0
        %678 = vmatpush.msra.mxu0 0.0
        %679 = vmatpush.msra.mxu0 0.0
        %680 = vmatpush.msra.mxu0 0.0
        %681 = vmatpush.msra.mxu0 0.0
        %682 = vmatpush.msra.mxu0 0.0
        %683 = vmatpush.msra.mxu0 0.0
        %684 = vmatpush.msra.mxu0 0.0
        %685 = vmatpush.msra.mxu0 0.0
        %686 = vmatpush.msra.mxu0 0.0
        %687 = vmatpush.msra.mxu0 0.0
        %688 = vmatpush.msra.mxu0 0.0
        %689 = vmatpush.msra.mxu0 0.0
        %690 = vmatpush.msra.mxu0 %v529
        %691 = vmatmul.f32.gmra.mxu0 %v633
        %v692 = vpop.f32.mrf.mxu0
        %v693 = vadd.f32 %v569, %v692
        %694 = vdwg.mxu0
        %695 = vmatpush.msra.mxu0 0.0
        %696 = vmatpush.msra.mxu0 0.0
        %697 = vmatpush.msra.mxu0 0.0
        %698 = vmatpush.msra.mxu0 0.0
        %699 = vmatpush.msra.mxu0 0.0
        %700 = vmatpush.msra.mxu0 0.0
        %701 = vmatpush.msra.mxu0 0.0
        %702 = vmatpush.msra.mxu0 0.0
        %703 = vmatpush.msra.mxu0 0.0
        %704 = vmatpush.msra.mxu0 0.0
        %705 = vmatpush.msra.mxu0 0.0
        %706 = vmatpush.msra.mxu0 0.0
        %707 = vmatpush.msra.mxu0 0.0
        %708 = vmatpush.msra.mxu0 0.0
        %709 = vmatpush.msra.mxu0 0.0
        %710 = vmatpush.msra.mxu0 %v530
        %711 = vmatmul.f32.gmra.mxu0 %v633
        %v712 = vpop.f32.mrf.mxu0
        %v713 = vadd.f32 %v570, %v712
        %714 = vdwg.mxu0
        %715 = vmatpush.msra.mxu0 0.0
        %716 = vmatpush.msra.mxu0 0.0
        %717 = vmatpush.msra.mxu0 0.0
        %718 = vmatpush.msra.mxu0 0.0
        %719 = vmatpush.msra.mxu0 0.0
        %720 = vmatpush.msra.mxu0 0.0
        %721 = vmatpush.msra.mxu0 0.0
        %722 = vmatpush.msra.mxu0 0.0
        %723 = vmatpush.msra.mxu0 0.0
        %724 = vmatpush.msra.mxu0 0.0
        %725 = vmatpush.msra.mxu0 0.0
        %726 = vmatpush.msra.mxu0 0.0
        %727 = vmatpush.msra.mxu0 0.0
        %728 = vmatpush.msra.mxu0 0.0
        %729 = vmatpush.msra.mxu0 0.0
        %730 = vmatpush.msra.mxu0 %v531
        %731 = vmatmul.f32.gmra.mxu0 %v633
        %v732 = vpop.f32.mrf.mxu0
        %v733 = vadd.f32 %v571, %v732
        %734 = vdwg.mxu0
        %735 = vmatpush.msra.mxu0 0.0
        %736 = vmatpush.msra.mxu0 0.0
        %737 = vmatpush.msra.mxu0 0.0
        %738 = vmatpush.msra.mxu0 0.0
        %739 = vmatpush.msra.mxu0 0.0
        %740 = vmatpush.msra.mxu0 0.0
        %741 = vmatpush.msra.mxu0 0.0
        %742 = vmatpush.msra.mxu0 0.0
        %743 = vmatpush.msra.mxu0 0.0
        %744 = vmatpush.msra.mxu0 0.0
        %745 = vmatpush.msra.mxu0 0.0
        %746 = vmatpush.msra.mxu0 0.0
        %747 = vmatpush.msra.mxu0 0.0
        %748 = vmatpush.msra.mxu0 0.0
        %749 = vmatpush.msra.mxu0 0.0
        %750 = vmatpush.msra.mxu0 %v532
        %751 = vmatmul.f32.gmra.mxu0 %v633
        %v752 = vpop.f32.mrf.mxu0
        %v753 = vadd.f32 %v572, %v752
        %754 = vdwg.mxu0
        %755 = vmatpush.msra.mxu0 0.0
        %756 = vmatpush.msra.mxu0 0.0
        %757 = vmatpush.msra.mxu0 0.0
        %758 = vmatpush.msra.mxu0 0.0
        %759 = vmatpush.msra.mxu0 0.0
        %760 = vmatpush.msra.mxu0 0.0
        %761 = vmatpush.msra.mxu0 0.0
        %762 = vmatpush.msra.mxu0 0.0
        %763 = vmatpush.msra.mxu0 0.0
        %764 = vmatpush.msra.mxu0 0.0
        %765 = vmatpush.msra.mxu0 0.0
        %766 = vmatpush.msra.mxu0 0.0
        %767 = vmatpush.msra.mxu0 0.0
        %768 = vmatpush.msra.mxu0 0.0
        %769 = vmatpush.msra.mxu0 0.0
        %770 = vmatpush.msra.mxu0 %v533
        %771 = vmatmul.f32.gmra.mxu0 %v633
        %v772 = vpop.f32.mrf.mxu0
        %v773 = vadd.f32 %v573, %v772
        %774 = vdwg.mxu0
        %775 = vmatpush.msra.mxu0 0.0
        %776 = vmatpush.msra.mxu0 0.0
        %777 = vmatpush.msra.mxu0 0.0
        %778 = vmatpush.msra.mxu0 0.0
        %779 = vmatpush.msra.mxu0 0.0
        %780 = vmatpush.msra.mxu0 0.0
        %781 = vmatpush.msra.mxu0 0.0
        %782 = vmatpush.msra.mxu0 0.0
        %783 = vmatpush.msra.mxu0 0.0
        %784 = vmatpush.msra.mxu0 0.0
        %785 = vmatpush.msra.mxu0 0.0
        %786 = vmatpush.msra.mxu0 0.0
        %787 = vmatpush.msra.mxu0 0.0
        %788 = vmatpush.msra.mxu0 0.0
        %789 = vmatpush.msra.mxu0 0.0
        %790 = vmatpush.msra.mxu0 %v534
        %791 = vmatmul.f32.gmra.mxu0 %v633
        %v792 = vpop.f32.mrf.mxu0
        %v793 = vadd.f32 %v574, %v792
        %794 = vdwg.mxu0
        %795 = vmatpush.msra.mxu0 0.0
        %796 = vmatpush.msra.mxu0 0.0
        %797 = vmatpush.msra.mxu0 0.0
        %798 = vmatpush.msra.mxu0 0.0
        %799 = vmatpush.msra.mxu0 0.0
        %800 = vmatpush.msra.mxu0 0.0
        %801 = vmatpush.msra.mxu0 0.0
        %802 = vmatpush.msra.mxu0 0.0
        %803 = vmatpush.msra.mxu0 0.0
        %804 = vmatpush.msra.mxu0 0.0
        %805 = vmatpush.msra.mxu0 0.0
        %806 = vmatpush.msra.mxu0 0.0
        %807 = vmatpush.msra.mxu0 0.0
        %808 = vmatpush.msra.mxu0 0.0
        %809 = vmatpush.msra.mxu0 0.0
        %810 = vmatpush.msra.mxu0 %v535
        %811 = vmatmul.f32.gmra.mxu0 %v633
        %v812 = vpop.f32.mrf.mxu0
        %v813 = vadd.f32 %v575, %v812
        %814 = vdwg.mxu0
        %815 = vmatpush.msra.mxu0 0.0
        %816 = vmatpush.msra.mxu0 0.0
        %817 = vmatpush.msra.mxu0 0.0
        %818 = vmatpush.msra.mxu0 0.0
        %819 = vmatpush.msra.mxu0 0.0
        %820 = vmatpush.msra.mxu0 0.0
        %821 = vmatpush.msra.mxu0 0.0
        %822 = vmatpush.msra.mxu0 0.0
        %823 = vmatpush.msra.mxu0 0.0
        %824 = vmatpush.msra.mxu0 0.0
        %825 = vmatpush.msra.mxu0 0.0
        %826 = vmatpush.msra.mxu0 0.0
        %827 = vmatpush.msra.mxu0 0.0
        %828 = vmatpush.msra.mxu0 0.0
        %829 = vmatpush.msra.mxu0 0.0
        %830 = vmatpush.msra.mxu0 %v536
        %831 = vmatmul.f32.gmra.mxu0 %v633
        %v832 = vpop.f32.mrf.mxu0
        %v833 = vadd.f32 %v576, %v832
        %834 = vdwg.mxu0
        %835 = vmatpush.msra.mxu0 0.0
        %836 = vmatpush.msra.mxu0 0.0
        %837 = vmatpush.msra.mxu0 0.0
        %838 = vmatpush.msra.mxu0 0.0
        %839 = vmatpush.msra.mxu0 0.0
        %840 = vmatpush.msra.mxu0 0.0
        %841 = vmatpush.msra.mxu0 0.0
        %842 = vmatpush.msra.mxu0 0.0
        %843 = vmatpush.msra.mxu0 0.0
        %844 = vmatpush.msra.mxu0 0.0
        %845 = vmatpush.msra.mxu0 0.0
        %846 = vmatpush.msra.mxu0 0.0
        %847 = vmatpush.msra.mxu0 0.0
        %848 = vmatpush.msra.mxu0 0.0
        %849 = vmatpush.msra.mxu0 0.0
        %850 = vmatpush.msra.mxu0 %v537
        %851 = vmatmul.f32.gmra.mxu0 %v633
        %v852 = vpop.f32.mrf.mxu0
        %v853 = vadd.f32 %v577, %v852
        %854 = vdwg.mxu0
        %855 = vmatpush.msra.mxu0 0.0
        %856 = vmatpush.msra.mxu0 0.0
        %857 = vmatpush.msra.mxu0 0.0
        %858 = vmatpush.msra.mxu0 0.0
        %859 = vmatpush.msra.mxu0 0.0
        %860 = vmatpush.msra.mxu0 0.0
        %861 = vmatpush.msra.mxu0 0.0
        %862 = vmatpush.msra.mxu0 0.0
        %863 = vmatpush.msra.mxu0 0.0
        %864 = vmatpush.msra.mxu0 0.0
        %865 = vmatpush.msra.mxu0 0.0
        %866 = vmatpush.msra.mxu0 0.0
        %867 = vmatpush.msra.mxu0 0.0
        %868 = vmatpush.msra.mxu0 0.0
        %869 = vmatpush.msra.mxu0 0.0
        %870 = vmatpush.msra.mxu0 %v538
        %871 = vmatmul.f32.gmra.mxu0 %v633
        %v872 = vpop.f32.mrf.mxu0
        %v873 = vadd.f32 %v578, %v872
        %874 = vdwg.mxu0
        %875 = vmatpush.msra.mxu0 0.0
        %876 = vmatpush.msra.mxu0 0.0
        %877 = vmatpush.msra.mxu0 0.0
        %878 = vmatpush.msra.mxu0 0.0
        %879 = vmatpush.msra.mxu0 0.0
        %880 = vmatpush.msra.mxu0 0.0
        %881 = vmatpush.msra.mxu0 0.0
        %882 = vmatpush.msra.mxu0 0.0
        %883 = vmatpush.msra.mxu0 0.0
        %884 = vmatpush.msra.mxu0 0.0
        %885 = vmatpush.msra.mxu0 0.0
        %886 = vmatpush.msra.mxu0 0.0
        %887 = vmatpush.msra.mxu0 0.0
        %888 = vmatpush.msra.mxu0 0.0
        %889 = vmatpush.msra.mxu0 0.0
        %890 = vmatpush.msra.mxu0 %v539
        %891 = vmatmul.f32.gmra.mxu0 %v633
        %v892 = vpop.f32.mrf.mxu0
        %v893 = vadd.f32 %v579, %v892
        %894 = vdwg.mxu0
        %895 = vmatpush.msra.mxu0 0.0
        %896 = vmatpush.msra.mxu0 0.0
        %897 = vmatpush.msra.mxu0 0.0
        %898 = vmatpush.msra.mxu0 0.0
        %899 = vmatpush.msra.mxu0 0.0
        %900 = vmatpush.msra.mxu0 0.0
        %901 = vmatpush.msra.mxu0 0.0
        %902 = vmatpush.msra.mxu0 0.0
        %903 = vmatpush.msra.mxu0 0.0
        %904 = vmatpush.msra.mxu0 0.0
        %905 = vmatpush.msra.mxu0 0.0
        %906 = vmatpush.msra.mxu0 0.0
        %907 = vmatpush.msra.mxu0 0.0
        %908 = vmatpush.msra.mxu0 0.0
        %909 = vmatpush.msra.mxu0 0.0
        %910 = vmatpush.msra.mxu0 %v540
        %911 = vmatmul.f32.gmra.mxu0 %v633
        %v912 = vpop.f32.mrf.mxu0
        %v913 = vadd.f32 %v580, %v912
        %914 = vdwg.mxu0
        %915 = vmatpush.msra.mxu0 0.0
        %916 = vmatpush.msra.mxu0 0.0
        %917 = vmatpush.msra.mxu0 0.0
        %918 = vmatpush.msra.mxu0 0.0
        %919 = vmatpush.msra.mxu0 0.0
        %920 = vmatpush.msra.mxu0 0.0
        %921 = vmatpush.msra.mxu0 0.0
        %922 = vmatpush.msra.mxu0 0.0
        %923 = vmatpush.msra.mxu0 0.0
        %924 = vmatpush.msra.mxu0 0.0
        %925 = vmatpush.msra.mxu0 0.0
        %926 = vmatpush.msra.mxu0 0.0
        %927 = vmatpush.msra.mxu0 0.0
        %928 = vmatpush.msra.mxu0 0.0
        %929 = vmatpush.msra.mxu0 0.0
        %930 = vmatpush.msra.mxu0 %v541
        %931 = vmatmul.f32.gmra.mxu0 %v633
        %v932 = vpop.f32.mrf.mxu0
        %v933 = vadd.f32 %v581, %v932
        %934 = vdwg.mxu0
        %935 = vmatpush.msra.mxu0 0.0
        %936 = vmatpush.msra.mxu0 0.0
        %937 = vmatpush.msra.mxu0 0.0
        %938 = vmatpush.msra.mxu0 0.0
        %939 = vmatpush.msra.mxu0 0.0
        %940 = vmatpush.msra.mxu0 0.0
        %941 = vmatpush.msra.mxu0 0.0
        %942 = vmatpush.msra.mxu0 0.0
        %943 = vmatpush.msra.mxu0 0.0
        %944 = vmatpush.msra.mxu0 0.0
        %945 = vmatpush.msra.mxu0 0.0
        %946 = vmatpush.msra.mxu0 0.0
        %947 = vmatpush.msra.mxu0 0.0
        %948 = vmatpush.msra.mxu0 0.0
        %949 = vmatpush.msra.mxu0 0.0
        %950 = vmatpush.msra.mxu0 %v542
        %951 = vmatmul.f32.gmra.mxu0 %v633
        %v952 = vpop.f32.mrf.mxu0
        %v953 = vadd.f32 %v582, %v952
        %954 = vdwg.mxu0
        %955 = vmatpush.msra.mxu0 0.0
        %956 = vmatpush.msra.mxu0 0.0
        %957 = vmatpush.msra.mxu0 0.0
        %958 = vmatpush.msra.mxu0 0.0
        %959 = vmatpush.msra.mxu0 0.0
        %960 = vmatpush.msra.mxu0 0.0
        %961 = vmatpush.msra.mxu0 0.0
        %962 = vmatpush.msra.mxu0 0.0
        %963 = vmatpush.msra.mxu0 0.0
        %964 = vmatpush.msra.mxu0 0.0
        %965 = vmatpush.msra.mxu0 0.0
        %966 = vmatpush.msra.mxu0 0.0
        %967 = vmatpush.msra.mxu0 0.0
        %968 = vmatpush.msra.mxu0 0.0
        %969 = vmatpush.msra.mxu0 0.0
        %970 = vmatpush.msra.mxu0 %v543
        %971 = vmatmul.f32.gmra.mxu0 %v633
        %v972 = vpop.f32.mrf.mxu0
        %v973 = vadd.f32 %v583, %v972
        %974 = vdwg.mxu0
        %975 = vmatpush.msra.mxu0 0.0
        %976 = vmatpush.msra.mxu0 0.0
        %977 = vmatpush.msra.mxu0 0.0
        %978 = vmatpush.msra.mxu0 0.0
        %979 = vmatpush.msra.mxu0 0.0
        %980 = vmatpush.msra.mxu0 0.0
        %981 = vmatpush.msra.mxu0 0.0
        %982 = vmatpush.msra.mxu0 0.0
        %983 = vmatpush.msra.mxu0 0.0
        %984 = vmatpush.msra.mxu0 0.0
        %985 = vmatpush.msra.mxu0 0.0
        %986 = vmatpush.msra.mxu0 0.0
        %987 = vmatpush.msra.mxu0 0.0
        %988 = vmatpush.msra.mxu0 0.0
        %989 = vmatpush.msra.mxu0 0.0
        %990 = vmatpush.msra.mxu0 %v544
        %991 = vmatmul.f32.gmra.mxu0 %v633
        %v992 = vpop.f32.mrf.mxu0
        %v993 = vadd.f32 %v584, %v992
        %994 = vdwg.mxu0
        %995 = vmatpush.msra.mxu0 0.0
        %996 = vmatpush.msra.mxu0 0.0
        %997 = vmatpush.msra.mxu0 0.0
        %998 = vmatpush.msra.mxu0 0.0
        %999 = vmatpush.msra.mxu0 0.0
        %1000 = vmatpush.msra.mxu0 0.0
        %1001 = vmatpush.msra.mxu0 0.0
        %1002 = vmatpush.msra.mxu0 0.0
        %1003 = vmatpush.msra.mxu0 0.0
        %1004 = vmatpush.msra.mxu0 0.0
        %1005 = vmatpush.msra.mxu0 0.0
        %1006 = vmatpush.msra.mxu0 0.0
        %1007 = vmatpush.msra.mxu0 0.0
        %1008 = vmatpush.msra.mxu0 0.0
        %1009 = vmatpush.msra.mxu0 0.0
        %1010 = vmatpush.msra.mxu0 %v545
        %1011 = vmatmul.f32.gmra.mxu0 %v633
        %v1012 = vpop.f32.mrf.mxu0
        %v1013 = vadd.f32 %v585, %v1012
        %1014 = vdwg.mxu0
        %1015 = vmatpush.msra.mxu0 0.0
        %1016 = vmatpush.msra.mxu0 0.0
        %1017 = vmatpush.msra.mxu0 0.0
        %1018 = vmatpush.msra.mxu0 0.0
        %1019 = vmatpush.msra.mxu0 0.0
        %1020 = vmatpush.msra.mxu0 0.0
        %1021 = vmatpush.msra.mxu0 0.0
        %1022 = vmatpush.msra.mxu0 0.0
        %1023 = vmatpush.msra.mxu0 0.0
        %1024 = vmatpush.msra.mxu0 0.0
        %1025 = vmatpush.msra.mxu0 0.0
        %1026 = vmatpush.msra.mxu0 0.0
        %1027 = vmatpush.msra.mxu0 0.0
        %1028 = vmatpush.msra.mxu0 0.0
        %1029 = vmatpush.msra.mxu0 0.0
        %1030 = vmatpush.msra.mxu0 %v546
        %1031 = vmatmul.f32.gmra.mxu0 %v633
        %v1032 = vpop.f32.mrf.mxu0
        %v1033 = vadd.f32 %v586, %v1032
        %1034 = vdwg.mxu0
        %1035 = vmatpush.msra.mxu0 0.0
        %1036 = vmatpush.msra.mxu0 0.0
        %1037 = vmatpush.msra.mxu0 0.0
        %1038 = vmatpush.msra.mxu0 0.0
        %1039 = vmatpush.msra.mxu0 0.0
        %1040 = vmatpush.msra.mxu0 0.0
        %1041 = vmatpush.msra.mxu0 0.0
        %1042 = vmatpush.msra.mxu0 0.0
        %1043 = vmatpush.msra.mxu0 0.0
        %1044 = vmatpush.msra.mxu0 0.0
        %1045 = vmatpush.msra.mxu0 0.0
        %1046 = vmatpush.msra.mxu0 0.0
        %1047 = vmatpush.msra.mxu0 0.0
        %1048 = vmatpush.msra.mxu0 0.0
        %1049 = vmatpush.msra.mxu0 0.0
        %1050 = vmatpush.msra.mxu0 %v547
        %1051 = vmatmul.f32.gmra.mxu0 %v633
        %v1052 = vpop.f32.mrf.mxu0
        %v1053 = vadd.f32 %v587, %v1052
        %1054 = vdwg.mxu0
        %1055 = vmatpush.msra.mxu0 0.0
        %1056 = vmatpush.msra.mxu0 0.0
        %1057 = vmatpush.msra.mxu0 0.0
        %1058 = vmatpush.msra.mxu0 0.0
        %1059 = vmatpush.msra.mxu0 0.0
        %1060 = vmatpush.msra.mxu0 0.0
        %1061 = vmatpush.msra.mxu0 0.0
        %1062 = vmatpush.msra.mxu0 0.0
        %1063 = vmatpush.msra.mxu0 0.0
        %1064 = vmatpush.msra.mxu0 0.0
        %1065 = vmatpush.msra.mxu0 0.0
        %1066 = vmatpush.msra.mxu0 0.0
        %1067 = vmatpush.msra.mxu0 0.0
        %1068 = vmatpush.msra.mxu0 0.0
        %1069 = vmatpush.msra.mxu0 0.0
        %1070 = vmatpush.msra.mxu0 %v548
        %1071 = vmatmul.f32.gmra.mxu0 %v633
        %v1072 = vpop.f32.mrf.mxu0
        %v1073 = vadd.f32 %v588, %v1072
        %1074 = vdwg.mxu0
        %1075 = vmatpush.msra.mxu0 0.0
        %1076 = vmatpush.msra.mxu0 0.0
        %1077 = vmatpush.msra.mxu0 0.0
        %1078 = vmatpush.msra.mxu0 0.0
        %1079 = vmatpush.msra.mxu0 0.0
        %1080 = vmatpush.msra.mxu0 0.0
        %1081 = vmatpush.msra.mxu0 0.0
        %1082 = vmatpush.msra.mxu0 0.0
        %1083 = vmatpush.msra.mxu0 0.0
        %1084 = vmatpush.msra.mxu0 0.0
        %1085 = vmatpush.msra.mxu0 0.0
        %1086 = vmatpush.msra.mxu0 0.0
        %1087 = vmatpush.msra.mxu0 0.0
        %1088 = vmatpush.msra.mxu0 0.0
        %1089 = vmatpush.msra.mxu0 0.0
        %1090 = vmatpush.msra.mxu0 %v549
        %1091 = vmatmul.f32.gmra.mxu0 %v633
        %v1092 = vpop.f32.mrf.mxu0
        %v1093 = vadd.f32 %v589, %v1092
        %1094 = vdwg.mxu0
        %1095 = vmatpush.msra.mxu0 0.0
        %1096 = vmatpush.msra.mxu0 0.0
        %1097 = vmatpush.msra.mxu0 0.0
        %1098 = vmatpush.msra.mxu0 0.0
        %1099 = vmatpush.msra.mxu0 0.0
        %1100 = vmatpush.msra.mxu0 0.0
        %1101 = vmatpush.msra.mxu0 0.0
        %1102 = vmatpush.msra.mxu0 0.0
        %1103 = vmatpush.msra.mxu0 0.0
        %1104 = vmatpush.msra.mxu0 0.0
        %1105 = vmatpush.msra.mxu0 0.0
        %1106 = vmatpush.msra.mxu0 0.0
        %1107 = vmatpush.msra.mxu0 0.0
        %1108 = vmatpush.msra.mxu0 0.0
        %1109 = vmatpush.msra.mxu0 0.0
        %1110 = vmatpush.msra.mxu0 %v550
        %1111 = vmatmul.f32.gmra.mxu0 %v633
        %v1112 = vpop.f32.mrf.mxu0
        %v1113 = vadd.f32 %v590, %v1112
        %1114 = vdwg.mxu0
        %1115 = vmatpush.msra.mxu0 0.0
        %1116 = vmatpush.msra.mxu0 0.0
        %1117 = vmatpush.msra.mxu0 0.0
        %1118 = vmatpush.msra.mxu0 0.0
        %1119 = vmatpush.msra.mxu0 0.0
        %1120 = vmatpush.msra.mxu0 0.0
        %1121 = vmatpush.msra.mxu0 0.0
        %1122 = vmatpush.msra.mxu0 0.0
        %1123 = vmatpush.msra.mxu0 0.0
        %1124 = vmatpush.msra.mxu0 0.0
        %1125 = vmatpush.msra.mxu0 0.0
        %1126 = vmatpush.msra.mxu0 0.0
        %1127 = vmatpush.msra.mxu0 0.0
        %1128 = vmatpush.msra.mxu0 0.0
        %1129 = vmatpush.msra.mxu0 0.0
        %1130 = vmatpush.msra.mxu0 %v551
        %1131 = vmatmul.f32.gmra.mxu0 %v633
        %v1132 = vpop.f32.mrf.mxu0
        %v1133 = vadd.f32 %v591, %v1132
        %1134 = vdwg.mxu0
        %1135 = vmatpush.msra.mxu0 0.0
        %1136 = vmatpush.msra.mxu0 0.0
        %1137 = vmatpush.msra.mxu0 0.0
        %1138 = vmatpush.msra.mxu0 0.0
        %1139 = vmatpush.msra.mxu0 0.0
        %1140 = vmatpush.msra.mxu0 0.0
        %1141 = vmatpush.msra.mxu0 0.0
        %1142 = vmatpush.msra.mxu0 0.0
        %1143 = vmatpush.msra.mxu0 0.0
        %1144 = vmatpush.msra.mxu0 0.0
        %1145 = vmatpush.msra.mxu0 0.0
        %1146 = vmatpush.msra.mxu0 0.0
        %1147 = vmatpush.msra.mxu0 0.0
        %1148 = vmatpush.msra.mxu0 0.0
        %1149 = vmatpush.msra.mxu0 0.0
        %1150 = vmatpush.msra.mxu0 %v552
        %1151 = vmatmul.f32.gmra.mxu0 %v633
        %v1152 = vpop.f32.mrf.mxu0
        %v1153 = vadd.f32 %v592, %v1152
        %1154 = vdwg.mxu0
        %1155 = vmatpush.msra.mxu0 0.0
        %1156 = vmatpush.msra.mxu0 0.0
        %1157 = vmatpush.msra.mxu0 0.0
        %1158 = vmatpush.msra.mxu0 0.0
        %1159 = vmatpush.msra.mxu0 0.0
        %1160 = vmatpush.msra.mxu0 0.0
        %1161 = vmatpush.msra.mxu0 0.0
        %1162 = vmatpush.msra.mxu0 0.0
        %1163 = vmatpush.msra.mxu0 0.0
        %1164 = vmatpush.msra.mxu0 0.0
        %1165 = vmatpush.msra.mxu0 0.0
        %1166 = vmatpush.msra.mxu0 0.0
        %1167 = vmatpush.msra.mxu0 0.0
        %1168 = vmatpush.msra.mxu0 0.0
        %1169 = vmatpush.msra.mxu0 0.0
        %1170 = vmatpush.msra.mxu0 %v553
        %1171 = vmatmul.f32.gmra.mxu0 %v633
        %v1172 = vpop.f32.mrf.mxu0
        %v1173 = vadd.f32 %v593, %v1172
        %1174 = vdwg.mxu0
        %1175 = vmatpush.msra.mxu0 0.0
        %1176 = vmatpush.msra.mxu0 0.0
        %1177 = vmatpush.msra.mxu0 0.0
        %1178 = vmatpush.msra.mxu0 0.0
        %1179 = vmatpush.msra.mxu0 0.0
        %1180 = vmatpush.msra.mxu0 0.0
        %1181 = vmatpush.msra.mxu0 0.0
        %1182 = vmatpush.msra.mxu0 0.0
        %1183 = vmatpush.msra.mxu0 0.0
        %1184 = vmatpush.msra.mxu0 0.0
        %1185 = vmatpush.msra.mxu0 0.0
        %1186 = vmatpush.msra.mxu0 0.0
        %1187 = vmatpush.msra.mxu0 0.0
        %1188 = vmatpush.msra.mxu0 0.0
        %1189 = vmatpush.msra.mxu0 0.0
        %1190 = vmatpush.msra.mxu0 %v554
        %1191 = vmatmul.f32.gmra.mxu0 %v633
        %v1192 = vpop.f32.mrf.mxu0
        %v1193 = vadd.f32 %v594, %v1192
        %1194 = vdwg.mxu0
        %1195 = vmatpush.msra.mxu0 0.0
        %1196 = vmatpush.msra.mxu0 0.0
        %1197 = vmatpush.msra.mxu0 0.0
        %1198 = vmatpush.msra.mxu0 0.0
        %1199 = vmatpush.msra.mxu0 0.0
        %1200 = vmatpush.msra.mxu0 0.0
        %1201 = vmatpush.msra.mxu0 0.0
        %1202 = vmatpush.msra.mxu0 0.0
        %1203 = vmatpush.msra.mxu0 0.0
        %1204 = vmatpush.msra.mxu0 0.0
        %1205 = vmatpush.msra.mxu0 0.0
        %1206 = vmatpush.msra.mxu0 0.0
        %1207 = vmatpush.msra.mxu0 0.0
        %1208 = vmatpush.msra.mxu0 0.0
        %1209 = vmatpush.msra.mxu0 0.0
        %1210 = vmatpush.msra.mxu0 %v555
        %1211 = vmatmul.f32.gmra.mxu0 %v633
        %v1212 = vpop.f32.mrf.mxu0
        %v1213 = vadd.f32 %v595, %v1212
        %1214 = vdwg.mxu0
        %1215 = vmatpush.msra.mxu0 0.0
        %1216 = vmatpush.msra.mxu0 0.0
        %1217 = vmatpush.msra.mxu0 0.0
        %1218 = vmatpush.msra.mxu0 0.0
        %1219 = vmatpush.msra.mxu0 0.0
        %1220 = vmatpush.msra.mxu0 0.0
        %1221 = vmatpush.msra.mxu0 0.0
        %1222 = vmatpush.msra.mxu0 0.0
        %1223 = vmatpush.msra.mxu0 0.0
        %1224 = vmatpush.msra.mxu0 0.0
        %1225 = vmatpush.msra.mxu0 0.0
        %1226 = vmatpush.msra.mxu0 0.0
        %1227 = vmatpush.msra.mxu0 0.0
        %1228 = vmatpush.msra.mxu0 0.0
        %1229 = vmatpush.msra.mxu0 0.0
        %1230 = vmatpush.msra.mxu0 %v556
        %1231 = vmatmul.f32.gmra.mxu0 %v633
        %v1232 = vpop.f32.mrf.mxu0
        %v1233 = vadd.f32 %v596, %v1232
        %1234 = vdwg.mxu0
        %1235 = vmatpush.msra.mxu0 0.0
        %1236 = vmatpush.msra.mxu0 0.0
        %1237 = vmatpush.msra.mxu0 0.0
        %1238 = vmatpush.msra.mxu0 0.0
        %1239 = vmatpush.msra.mxu0 0.0
        %1240 = vmatpush.msra.mxu0 0.0
        %1241 = vmatpush.msra.mxu0 0.0
        %1242 = vmatpush.msra.mxu0 0.0
        %1243 = vmatpush.msra.mxu0 0.0
        %1244 = vmatpush.msra.mxu0 0.0
        %1245 = vmatpush.msra.mxu0 0.0
        %1246 = vmatpush.msra.mxu0 0.0
        %1247 = vmatpush.msra.mxu0 0.0
        %1248 = vmatpush.msra.mxu0 0.0
        %1249 = vmatpush.msra.mxu0 0.0
        %1250 = vmatpush.msra.mxu0 %v557
        %1251 = vmatmul.f32.gmra.mxu0 %v633
        %v1252 = vpop.f32.mrf.mxu0
        %v1253 = vadd.f32 %v597, %v1252
        %1254 = vdwg.mxu0
        %1255 = vmatpush.msra.mxu0 0.0
        %1256 = vmatpush.msra.mxu0 0.0
        %1257 = vmatpush.msra.mxu0 0.0
        %1258 = vmatpush.msra.mxu0 0.0
        %1259 = vmatpush.msra.mxu0 0.0
        %1260 = vmatpush.msra.mxu0 0.0
        %1261 = vmatpush.msra.mxu0 0.0
        %1262 = vmatpush.msra.mxu0 0.0
        %1263 = vmatpush.msra.mxu0 0.0
        %1264 = vmatpush.msra.mxu0 0.0
        %1265 = vmatpush.msra.mxu0 0.0
        %1266 = vmatpush.msra.mxu0 0.0
        %1267 = vmatpush.msra.mxu0 0.0
        %1268 = vmatpush.msra.mxu0 0.0
        %1269 = vmatpush.msra.mxu0 0.0
        %1270 = vmatpush.msra.mxu0 %v558
        %1271 = vmatmul.f32.gmra.mxu0 %v633
        %v1272 = vpop.f32.mrf.mxu0
        %v1273 = vadd.f32 %v598, %v1272
        %1274 = vdwg.mxu0
        %1275 = vst [vmem:[#allocation2] sm:$0xff] 0.0
        %1276 = vst [vmem:[#allocation2 + $0x8] sm:$0xff] 0.0
        %1277 = vst [vmem:[#allocation2 + $0x10] sm:$0xff] 0.0
        %1278 = vst [vmem:[#allocation2 + $0x18] sm:$0xff] 0.0
        %1279 = vst [vmem:[#allocation2 + $0x20] sm:$0xff] 0.0
        %1280 = vst [vmem:[#allocation2 + $0x28] sm:$0xff] 0.0
        %1281 = vst [vmem:[#allocation2 + $0x30] sm:$0xff] 0.0
        %1282 = vst [vmem:[#allocation2 + $0x38] sm:$0xff] 0.0
        %v1285 = vrot.slane %v673, 7
        %vm1286 = vcmask 1040384
        %v1287 = vsel %vm1286, %v653, %v1285
        %v1289 = vlaneseq
        %vm1290 = vcmp.ge.s32.totalorder %v1289, 0
        %vm1291 = vcmp.lt.s32.totalorder %v1289, 256
        %vm1292 = vmand %vm1290, %vm1291
        %1293 = vst.msk [vmem:[#allocation2] ss:$8 sm:$0x3] %vm1292, %v1287
        %1294 = vst.msk [vmem:[#allocation2] ss:$8 sm:$0x0] %vm1292, %v1287
        %v1297 = vrot.slane %v713, 7
        %v1298 = vsel %vm1286, %v693, %v1297
        %s1300 = scalar_lea.vmem [#allocation2], 1
        %1301 = vst.msk [vmem:[%s1300] ss:$8 sm:$0x3] %vm1292, %v1298
        %1302 = vst.msk [vmem:[%s1300] ss:$8 sm:$0x0] %vm1292, %v1298
        %v1305 = vrot.slane %v753, 7
        %v1306 = vsel %vm1286, %v733, %v1305
        %s1308 = scalar_lea.vmem [#allocation2], 2
        %1309 = vst.msk [vmem:[%s1308] ss:$8 sm:$0x3] %vm1292, %v1306
        %1310 = vst.msk [vmem:[%s1308] ss:$8 sm:$0x0] %vm1292, %v1306
        %v1313 = vrot.slane %v793, 7
        %v1314 = vsel %vm1286, %v773, %v1313
        %s1316 = scalar_lea.vmem [#allocation2], 3
        %1317 = vst.msk [vmem:[%s1316] ss:$8 sm:$0x3] %vm1292, %v1314
        %1318 = vst.msk [vmem:[%s1316] ss:$8 sm:$0x0] %vm1292, %v1314
        %v1321 = vrot.slane %v833, 7
        %v1322 = vsel %vm1286, %v813, %v1321
        %s1324 = scalar_lea.vmem [#allocation2], 5
        %1325 = vst.msk [vmem:[%s1324] ss:$8 sm:$0x3] %vm1292, %v1322
        %1326 = vst.msk [vmem:[%s1324] ss:$8 sm:$0x0] %vm1292, %v1322
        %v1329 = vrot.slane %v873, 7
        %v1330 = vsel %vm1286, %v853, %v1329
        %s1332 = scalar_lea.vmem [#allocation2], 6
        %1333 = vst.msk [vmem:[%s1332] ss:$8 sm:$0x3] %vm1292, %v1330
        %1334 = vst.msk [vmem:[%s1332] ss:$8 sm:$0x0] %vm1292, %v1330
        %v1337 = vrot.slane %v913, 7
        %v1338 = vsel %vm1286, %v893, %v1337
        %s1340 = scalar_lea.vmem [#allocation2], 7
        %1341 = vst.msk [vmem:[%s1340] ss:$8 sm:$0x3] %vm1292, %v1338
        %1342 = vst.msk [vmem:[%s1340] ss:$8 sm:$0x0] %vm1292, %v1338
        %v1345 = vrot.slane %v953, 7
        %v1346 = vsel %vm1286, %v933, %v1345
        %s1348 = scalar_lea.vmem [#allocation2], 16
        %1349 = vst.msk [vmem:[%s1348] ss:$8 sm:$0x3] %vm1292, %v1346
        %1350 = vst.msk [vmem:[%s1348] ss:$8 sm:$0x0] %vm1292, %v1346
        %v1353 = vrot.slane %v993, 7
        %v1354 = vsel %vm1286, %v973, %v1353
        %s1356 = scalar_lea.vmem [#allocation2], 18
        %1357 = vst.msk [vmem:[%s1356] ss:$8 sm:$0x3] %vm1292, %v1354
        %1358 = vst.msk [vmem:[%s1356] ss:$8 sm:$0x0] %vm1292, %v1354
        %v1361 = vrot.slane %v1033, 7
        %v1362 = vsel %vm1286, %v1013, %v1361
        %s1364 = scalar_lea.vmem [#allocation2], 19
        %1365 = vst.msk [vmem:[%s1364] ss:$8 sm:$0x3] %vm1292, %v1362
        %1366 = vst.msk [vmem:[%s1364] ss:$8 sm:$0x0] %vm1292, %v1362
        %v1369 = vrot.slane %v1073, 7
        %v1370 = vsel %vm1286, %v1053, %v1369
        %s1372 = scalar_lea.vmem [#allocation2], 20
        %1373 = vst.msk [vmem:[%s1372] ss:$8 sm:$0x3] %vm1292, %v1370
        %1374 = vst.msk [vmem:[%s1372] ss:$8 sm:$0x0] %vm1292, %v1370
        %v1377 = vrot.slane %v1113, 7
        %v1378 = vsel %vm1286, %v1093, %v1377
        %s1380 = scalar_lea.vmem [#allocation2], 21
        %1381 = vst.msk [vmem:[%s1380] ss:$8 sm:$0x3] %vm1292, %v1378
        %1382 = vst.msk [vmem:[%s1380] ss:$8 sm:$0x0] %vm1292, %v1378
        %v1385 = vrot.slane %v1153, 7
        %v1386 = vsel %vm1286, %v1133, %v1385
        %s1388 = scalar_lea.vmem [#allocation2], 23
        %1389 = vst.msk [vmem:[%s1388] ss:$8 sm:$0x3] %vm1292, %v1386
        %1390 = vst.msk [vmem:[%s1388] ss:$8 sm:$0x0] %vm1292, %v1386
        %v1393 = vrot.slane %v1193, 7
        %v1394 = vsel %vm1286, %v1173, %v1393
        %s1396 = scalar_lea.vmem [#allocation2], 32
        %1397 = vst.msk [vmem:[%s1396] ss:$8 sm:$0x3] %vm1292, %v1394
        %1398 = vst.msk [vmem:[%s1396] ss:$8 sm:$0x0] %vm1292, %v1394
        %v1401 = vrot.slane %v1233, 7
        %v1402 = vsel %vm1286, %v1213, %v1401
        %s1404 = scalar_lea.vmem [#allocation2], 33
        %1405 = vst.msk [vmem:[%s1404] ss:$8 sm:$0x3] %vm1292, %v1402
        %1406 = vst.msk [vmem:[%s1404] ss:$8 sm:$0x0] %vm1292, %v1402
        %v1409 = vrot.slane %v1273, 7
        %v1410 = vsel %vm1286, %v1253, %v1409
        %s1412 = scalar_lea.vmem [#allocation2], 34
        %1413 = vst.msk [vmem:[%s1412] ss:$8 sm:$0x3] %vm1292, %v1410
        %1414 = vst.msk [vmem:[%s1412] ss:$8 sm:$0x0] %vm1292, %v1410
        %v1415 = vld [vmem:[#allocation2] sm:$0xff]
        %v1416 = vld [vmem:[#allocation2 + $0x8] sm:$0xff]
        %v1417 = vld [vmem:[#allocation2 + $0x10] sm:$0xff]
        %v1418 = vld [vmem:[#allocation2 + $0x18] sm:$0xff]
        %v1419 = vld [vmem:[#allocation2 + $0x20] sm:$0xff]
        %v1420 = vld [vmem:[#allocation2 + $0x28] sm:$0xff]
        %v1421 = vld [vmem:[#allocation2] sm:$0xfe]
        %v1422 = vld [vmem:[#allocation2 + $0x8] sm:$0xfe]
        %v1423 = vld [vmem:[#allocation2 + $0x10] sm:$0xff]
        %v1424 = vld [vmem:[#allocation2 + $0x18] sm:$0xff]
        %v1425 = vld [vmem:[#allocation2 + $0x20] sm:$0xff]
        %v1426 = vld [vmem:[#allocation2 + $0x28] sm:$0xff]
        %v1427 = vld [vmem:[#allocation2 + $0x30] sm:$0x1]
        %v1428 = vld [vmem:[#allocation2 + $0x38] sm:$0x1]
        %v1429 = vld [vmem:[#allocation2] sm:$0xe0]
        %v1430 = vld [vmem:[#allocation2 + $0x8] sm:$0xe0]
        %v1431 = vld [vmem:[#allocation2 + $0x30] sm:$0x1f]
        %v1432 = vld [vmem:[#allocation2 + $0x38] sm:$0x1f]
        %v1433 = vld [vmem:[#allocation2] sm:$0xc0]
        %v1434 = vld [vmem:[#allocation2 + $0x8] sm:$0xc0]
        %v1435 = vld [vmem:[#allocation2 + $0x30] sm:$0x3f]
        %v1436 = vld [vmem:[#allocation2 + $0x38] sm:$0x3f]
        %vm1445 = vcmask 1046528
        %v1446 = vrot.slane %v1421, 1
        %v1447 = vrot.slane %v1423, 1
        %v1448 = vsel %vm1445, %v1446, %v1447
        %v1449 = vrot.slane %v1422, 1
        %v1450 = vrot.slane %v1424, 1
        %v1451 = vsel %vm1445, %v1449, %v1450
        %v1452 = vrot.slane %v1425, 1
        %v1453 = vsel %vm1445, %v1447, %v1452
        %v1454 = vrot.slane %v1426, 1
        %v1455 = vsel %vm1445, %v1450, %v1454
        %v1456 = vrot.slane %v1427, 1
        %v1457 = vsel %vm1445, %v1452, %v1456
        %v1458 = vrot.slane %v1428, 1
        %v1459 = vsel %vm1445, %v1454, %v1458
        %vm1470 = vcmask 1042432
        %v1471 = vrot.slane %v1429, 5
        %v1472 = vrot.slane %v1423, 5
        %v1473 = vsel %vm1470, %v1471, %v1472
        %v1474 = vrot.slane %v1430, 5
        %v1475 = vrot.slane %v1424, 5
        %v1476 = vsel %vm1470, %v1474, %v1475
        %v1477 = vrot.slane %v1425, 5
        %v1478 = vsel %vm1470, %v1472, %v1477
        %v1479 = vrot.slane %v1426, 5
        %v1480 = vsel %vm1470, %v1475, %v1479
        %v1481 = vrot.slane %v1431, 5
        %v1482 = vsel %vm1470, %v1477, %v1481
        %v1483 = vrot.slane %v1432, 5
        %v1484 = vsel %vm1470, %v1479, %v1483
        %vm1495 = vcmask 1041408
        %v1496 = vrot.slane %v1433, 6
        %v1497 = vrot.slane %v1423, 6
        %v1498 = vsel %vm1495, %v1496, %v1497
        %v1499 = vrot.slane %v1434, 6
        %v1500 = vrot.slane %v1424, 6
        %v1501 = vsel %vm1495, %v1499, %v1500
        %v1502 = vrot.slane %v1425, 6
        %v1503 = vsel %vm1495, %v1497, %v1502
        %v1504 = vrot.slane %v1426, 6
        %v1505 = vsel %vm1495, %v1500, %v1504
        %v1506 = vrot.slane %v1435, 6
        %v1507 = vsel %vm1495, %v1502, %v1506
        %v1508 = vrot.slane %v1436, 6
        %v1509 = vsel %vm1495, %v1504, %v1508
        %v1516 = vld [vmem:[#allocation11] sm:$0xff]
        %v1517 = vld [vmem:[#allocation11 + $0x8] sm:$0xff]
        %v1518 = vld [vmem:[#allocation11 + $0x10] sm:$0xff]
        %v1519 = vld [vmem:[#allocation11 + $0x18] sm:$0xff]
        %v1520 = vld [vmem:[#allocation11 + $0x20] sm:$0xff]
        %v1521 = vld [vmem:[#allocation11 + $0x28] sm:$0xff]
        %v1522 = vld [vmem:[#allocation11 + $0x30] sm:$0xff]
        %v1523 = vld [vmem:[#allocation11 + $0x38] sm:$0xff]
        %v1524 = vld [vmem:[#allocation11 + $0x40] sm:$0xff]
        %v1525 = vld [vmem:[#allocation11 + $0x48] sm:$0xff]
        %v1526 = vld [vmem:[#allocation11 + $0x50] sm:$0xff]
        %v1527 = vld [vmem:[#allocation11 + $0x58] sm:$0xff]
        %v1528 = vld [vmem:[#allocation11 + $0x60] sm:$0xff]
        %v1529 = vld [vmem:[#allocation11 + $0x68] sm:$0xff]
        %v1530 = vld [vmem:[#allocation11 + $0x70] sm:$0xff]
        %v1531 = vld [vmem:[#allocation11 + $0x78] sm:$0xff]
        %v1532 = vld [vmem:[#allocation11 + $0x80] sm:$0xff]
        %v1533 = vld [vmem:[#allocation11 + $0x88] sm:$0xff]
        %v1534 = vld [vmem:[#allocation11 + $0x90] sm:$0xff]
        %v1535 = vld [vmem:[#allocation11 + $0x98] sm:$0xff]
        %v1536 = vld [vmem:[#allocation11 + $0xa0] sm:$0xff]
        %v1537 = vld [vmem:[#allocation11 + $0xa8] sm:$0xff]
        %v1538 = vld [vmem:[#allocation11 + $0xb0] sm:$0xff]
        %v1539 = vld [vmem:[#allocation11 + $0xb8] sm:$0xff]
        %v1540 = vld [vmem:[#allocation11 + $0xc0] sm:$0xff]
        %v1541 = vld [vmem:[#allocation11 + $0xc8] sm:$0xff]
        %v1542 = vld [vmem:[#allocation11 + $0xd0] sm:$0xff]
        %v1543 = vld [vmem:[#allocation11 + $0xd8] sm:$0xff]
        %v1544 = vld [vmem:[#allocation11 + $0xe0] sm:$0xff]
        %v1545 = vld [vmem:[#allocation11 + $0xe8] sm:$0xff]
        %v1546 = vld [vmem:[#allocation11 + $0xf0] sm:$0xff]
        %v1547 = vld [vmem:[#allocation11 + $0xf8] sm:$0xff]
        %v1548 = vld [vmem:[#allocation11 + $0x100] sm:$0xff]
        %v1549 = vld [vmem:[#allocation11 + $0x108] sm:$0xff]
        %v1550 = vld [vmem:[#allocation11 + $0x110] sm:$0xff]
        %v1551 = vld [vmem:[#allocation11 + $0x118] sm:$0xff]
        %v1552 = vld [vmem:[#allocation11 + $0x120] sm:$0xff]
        %v1553 = vld [vmem:[#allocation11 + $0x128] sm:$0xff]
        %v1554 = vld [vmem:[#allocation11 + $0x130] sm:$0xff]
        %v1555 = vld [vmem:[#allocation11 + $0x138] sm:$0xff]
        %v1556 = vld [vmem:[#allocation11 + $0x140] sm:$0xff]
        %v1557 = vld [vmem:[#allocation11 + $0x148] sm:$0xff]
        %v1558 = vld [vmem:[#allocation11 + $0x150] sm:$0xff]
        %v1559 = vld [vmem:[#allocation11 + $0x158] sm:$0xff]
        %v1560 = vld [vmem:[#allocation11 + $0x160] sm:$0xff]
        %v1561 = vld [vmem:[#allocation11 + $0x168] sm:$0xff]
        %v1562 = vld [vmem:[#allocation11 + $0x170] sm:$0xff]
        %v1563 = vld [vmem:[#allocation11 + $0x178] sm:$0xff]
        %v1564 = vld [vmem:[#allocation11 + $0x180] sm:$0xff]
        %v1565 = vld [vmem:[#allocation11 + $0x188] sm:$0xff]
        %v1566 = vld [vmem:[#allocation11 + $0x190] sm:$0xff]
        %v1567 = vld [vmem:[#allocation11 + $0x198] sm:$0xff]
        %v1568 = vld [vmem:[#allocation11 + $0x1a0] sm:$0xff]
        %v1569 = vld [vmem:[#allocation11 + $0x1a8] sm:$0xff]
        %v1570 = vld [vmem:[#allocation11 + $0x1b0] sm:$0xff]
        %v1571 = vld [vmem:[#allocation11 + $0x1b8] sm:$0xff]
        %v1572 = vld [vmem:[#allocation11 + $0x1c0] sm:$0xff]
        %v1573 = vld [vmem:[#allocation11 + $0x1c8] sm:$0xff]
        %v1574 = vld [vmem:[#allocation11 + $0x1d0] sm:$0xff]
        %v1575 = vld [vmem:[#allocation11 + $0x1d8] sm:$0xff]
        %v1576 = vld [vmem:[#allocation11 + $0x1e0] sm:$0xff]
        %v1577 = vld [vmem:[#allocation11 + $0x1e8] sm:$0xff]
        %v1578 = vld [vmem:[#allocation11 + $0x1f0] sm:$0xff]
        %v1579 = vld [vmem:[#allocation11 + $0x1f8] sm:$0xff]
        %v1580 = vld [vmem:[#allocation11 + $0x200] sm:$0xff]
        %v1581 = vld [vmem:[#allocation11 + $0x208] sm:$0xff]
        %v1582 = vld [vmem:[#allocation11 + $0x210] sm:$0xff]
        %v1583 = vld [vmem:[#allocation11 + $0x218] sm:$0xff]
        %v1584 = vld [vmem:[#allocation11 + $0x220] sm:$0xff]
        %v1585 = vld [vmem:[#allocation11 + $0x228] sm:$0xff]
        %v1586 = vld [vmem:[#allocation11 + $0x230] sm:$0xff]
        %v1587 = vld [vmem:[#allocation11 + $0x238] sm:$0xff]
        %v1588 = vld [vmem:[#allocation11 + $0x240] sm:$0xff]
        %v1589 = vld [vmem:[#allocation11 + $0x248] sm:$0xff]
        %v1590 = vld [vmem:[#allocation11 + $0x250] sm:$0xff]
        %v1591 = vld [vmem:[#allocation11 + $0x258] sm:$0xff]
        %v1592 = vld [vmem:[#allocation11 + $0x260] sm:$0xff]
        %v1593 = vld [vmem:[#allocation11 + $0x268] sm:$0xff]
        %v1594 = vld [vmem:[#allocation11 + $0x270] sm:$0xff]
        %v1595 = vld [vmem:[#allocation11 + $0x278] sm:$0xff]
        %v1596 = vld [vmem:[#allocation11 + $0x280] sm:$0xff]
        %v1597 = vld [vmem:[#allocation11 + $0x288] sm:$0xff]
        %v1598 = vld [vmem:[#allocation11 + $0x290] sm:$0xff]
        %v1599 = vld [vmem:[#allocation11 + $0x298] sm:$0xff]
        %v1600 = vld [vmem:[#allocation11 + $0x2a0] sm:$0xff]
        %v1601 = vld [vmem:[#allocation11 + $0x2a8] sm:$0xff]
        %v1602 = vld [vmem:[#allocation11 + $0x2b0] sm:$0xff]
        %v1603 = vld [vmem:[#allocation11 + $0x2b8] sm:$0xff]
        %v1604 = vld [vmem:[#allocation11 + $0x2c0] sm:$0xff]
        %v1605 = vld [vmem:[#allocation11 + $0x2c8] sm:$0xff]
        %v1606 = vld [vmem:[#allocation11 + $0x2d0] sm:$0xff]
        %v1607 = vld [vmem:[#allocation11 + $0x2d8] sm:$0xff]
        %v1608 = vld [vmem:[#allocation11 + $0x2e0] sm:$0xff]
        %v1609 = vld [vmem:[#allocation11 + $0x2e8] sm:$0xff]
        %v1610 = vld [vmem:[#allocation11 + $0x2f0] sm:$0xff]
        %v1611 = vld [vmem:[#allocation11 + $0x2f8] sm:$0xff]
        %v1612 = vld [vmem:[#allocation11 + $0x300] sm:$0xff]
        %v1613 = vld [vmem:[#allocation11 + $0x308] sm:$0xff]
        %v1614 = vld [vmem:[#allocation11 + $0x310] sm:$0xff]
        %v1615 = vld [vmem:[#allocation11 + $0x318] sm:$0xff]
        %v1616 = vld [vmem:[#allocation11 + $0x320] sm:$0xff]
        %v1617 = vld [vmem:[#allocation11 + $0x328] sm:$0xff]
        %v1618 = vld [vmem:[#allocation11 + $0x330] sm:$0xff]
        %v1619 = vld [vmem:[#allocation11 + $0x338] sm:$0xff]
        %v1620 = vld [vmem:[#allocation11 + $0x340] sm:$0xff]
        %v1621 = vld [vmem:[#allocation11 + $0x348] sm:$0xff]
        %v1622 = vld [vmem:[#allocation11 + $0x350] sm:$0xff]
        %v1623 = vld [vmem:[#allocation11 + $0x358] sm:$0xff]
        %v1624 = vld [vmem:[#allocation11 + $0x360] sm:$0xff]
        %v1625 = vld [vmem:[#allocation11 + $0x368] sm:$0xff]
        %v1626 = vld [vmem:[#allocation11 + $0x370] sm:$0xff]
        %v1627 = vld [vmem:[#allocation11 + $0x378] sm:$0xff]
        %v1628 = vld [vmem:[#allocation11 + $0x380] sm:$0xff]
        %v1629 = vld [vmem:[#allocation11 + $0x388] sm:$0xff]
        %v1630 = vld [vmem:[#allocation11 + $0x390] sm:$0xff]
        %v1631 = vld [vmem:[#allocation11 + $0x398] sm:$0xff]
        %v1632 = vld [vmem:[#allocation11 + $0x3a0] sm:$0xff]
        %v1633 = vld [vmem:[#allocation11 + $0x3a8] sm:$0xff]
        %v1634 = vld [vmem:[#allocation11 + $0x3b0] sm:$0xff]
        %v1635 = vld [vmem:[#allocation11 + $0x3b8] sm:$0xff]
        %v1636 = vld [vmem:[#allocation11 + $0x3c0] sm:$0xff]
        %v1637 = vld [vmem:[#allocation11 + $0x3c8] sm:$0xff]
        %v1638 = vld [vmem:[#allocation11 + $0x3d0] sm:$0xff]
        %v1639 = vld [vmem:[#allocation11 + $0x3d8] sm:$0xff]
        %v1640 = vld [vmem:[#allocation11 + $0x3e0] sm:$0xff]
        %v1641 = vld [vmem:[#allocation11 + $0x3e8] sm:$0xff]
        %v1642 = vld [vmem:[#allocation11 + $0x3f0] sm:$0xff]
        %v1643 = vld [vmem:[#allocation11 + $0x3f8] sm:$0xff]
        %v1644 = vld [vmem:[#allocation11 + $0x400] sm:$0xff]
        %v1645 = vld [vmem:[#allocation11 + $0x408] sm:$0xff]
        %v1646 = vld [vmem:[#allocation11 + $0x410] sm:$0xff]
        %v1647 = vld [vmem:[#allocation11 + $0x418] sm:$0xff]
        %v1648 = vld [vmem:[#allocation11 + $0x420] sm:$0xff]
        %v1649 = vld [vmem:[#allocation11 + $0x428] sm:$0xff]
        %v1650 = vld [vmem:[#allocation11 + $0x430] sm:$0xff]
        %v1651 = vld [vmem:[#allocation11 + $0x438] sm:$0xff]
        %v1652 = vld [vmem:[#allocation11 + $0x440] sm:$0xff]
        %v1653 = vld [vmem:[#allocation11 + $0x448] sm:$0xff]
        %v1654 = vld [vmem:[#allocation11 + $0x450] sm:$0xff]
        %v1655 = vld [vmem:[#allocation11 + $0x458] sm:$0xff]
        %v1656 = vld [vmem:[#allocation11 + $0x460] sm:$0xff]
        %v1657 = vld [vmem:[#allocation11 + $0x468] sm:$0xff]
        %v1658 = vld [vmem:[#allocation11 + $0x470] sm:$0xff]
        %v1659 = vld [vmem:[#allocation11 + $0x478] sm:$0xff]
        %v1660 = vld [vmem:[#allocation11 + $0x480] sm:$0xff]
        %v1661 = vld [vmem:[#allocation11 + $0x488] sm:$0xff]
        %v1662 = vld [vmem:[#allocation11 + $0x490] sm:$0xff]
        %v1663 = vld [vmem:[#allocation11 + $0x498] sm:$0xff]
        %v1664 = vld [vmem:[#allocation11 + $0x4a0] sm:$0xff]
        %v1665 = vld [vmem:[#allocation11 + $0x4a8] sm:$0xff]
        %v1666 = vld [vmem:[#allocation11 + $0x4b0] sm:$0xff]
        %v1667 = vld [vmem:[#allocation11 + $0x4b8] sm:$0xff]
        %v1668 = vld [vmem:[#allocation11 + $0x4c0] sm:$0xff]
        %v1669 = vld [vmem:[#allocation11 + $0x4c8] sm:$0xff]
        %v1670 = vld [vmem:[#allocation11 + $0x4d0] sm:$0xff]
        %v1671 = vld [vmem:[#allocation11 + $0x4d8] sm:$0xff]
        %v1672 = vld [vmem:[#allocation11 + $0x4e0] sm:$0xff]
        %v1673 = vld [vmem:[#allocation11 + $0x4e8] sm:$0xff]
        %v1674 = vld [vmem:[#allocation11 + $0x4f0] sm:$0xff]
        %v1675 = vld [vmem:[#allocation11 + $0x4f8] sm:$0xff]
        %v1676 = vld [vmem:[#allocation11 + $0x500] sm:$0xff]
        %v1677 = vld [vmem:[#allocation11 + $0x508] sm:$0xff]
        %v1678 = vld [vmem:[#allocation11 + $0x510] sm:$0xff]
        %v1679 = vld [vmem:[#allocation11 + $0x518] sm:$0xff]
        %v1680 = vld [vmem:[#allocation11 + $0x520] sm:$0xff]
        %v1681 = vld [vmem:[#allocation11 + $0x528] sm:$0xff]
        %v1682 = vld [vmem:[#allocation11 + $0x530] sm:$0xff]
        %v1683 = vld [vmem:[#allocation11 + $0x538] sm:$0xff]
        %v1684 = vld [vmem:[#allocation11 + $0x540] sm:$0xff]
        %v1685 = vld [vmem:[#allocation11 + $0x548] sm:$0xff]
        %v1686 = vld [vmem:[#allocation11 + $0x550] sm:$0xff]
        %v1687 = vld [vmem:[#allocation11 + $0x558] sm:$0xff]
        %v1688 = vld [vmem:[#allocation11 + $0x560] sm:$0xff]
        %v1689 = vld [vmem:[#allocation11 + $0x568] sm:$0xff]
        %v1690 = vld [vmem:[#allocation11 + $0x570] sm:$0xff]
        %v1691 = vld [vmem:[#allocation11 + $0x578] sm:$0xff]
        %v1692 = vld [vmem:[#allocation11 + $0x580] sm:$0xff]
        %v1693 = vld [vmem:[#allocation11 + $0x588] sm:$0xff]
        %v1694 = vld [vmem:[#allocation11 + $0x590] sm:$0xff]
        %v1695 = vld [vmem:[#allocation11 + $0x598] sm:$0xff]
        %v1696 = vld [vmem:[#allocation11 + $0x5a0] sm:$0xff]
        %v1697 = vld [vmem:[#allocation11 + $0x5a8] sm:$0xff]
        %v1698 = vld [vmem:[#allocation11 + $0x5b0] sm:$0xff]
        %v1699 = vld [vmem:[#allocation11 + $0x5b8] sm:$0xff]
        %v1700 = vld [vmem:[#allocation11 + $0x5c0] sm:$0xff]
        %v1701 = vld [vmem:[#allocation11 + $0x5c8] sm:$0xff]
        %v1702 = vld [vmem:[#allocation11 + $0x5d0] sm:$0xff]
        %v1703 = vld [vmem:[#allocation11 + $0x5d8] sm:$0xff]
        %v1704 = vld [vmem:[#allocation11 + $0x5e0] sm:$0xff]
        %v1705 = vld [vmem:[#allocation11 + $0x5e8] sm:$0xff]
        %v1706 = vld [vmem:[#allocation11 + $0x5f0] sm:$0xff]
        %v1707 = vld [vmem:[#allocation11 + $0x5f8] sm:$0xff]
        %v1708 = vld [vmem:[#allocation11 + $0x600] sm:$0xff]
        %v1709 = vld [vmem:[#allocation11 + $0x608] sm:$0xff]
        %v1710 = vld [vmem:[#allocation11 + $0x610] sm:$0xff]
        %v1711 = vld [vmem:[#allocation11 + $0x618] sm:$0xff]
        %v1712 = vld [vmem:[#allocation11 + $0x620] sm:$0xff]
        %v1713 = vld [vmem:[#allocation11 + $0x628] sm:$0xff]
        %v1714 = vld [vmem:[#allocation11 + $0x630] sm:$0xff]
        %v1715 = vld [vmem:[#allocation11 + $0x638] sm:$0xff]
        %v1716 = vld [vmem:[#allocation11 + $0x640] sm:$0xff]
        %v1717 = vld [vmem:[#allocation11 + $0x648] sm:$0xff]
        %v1718 = vld [vmem:[#allocation11 + $0x650] sm:$0xff]
        %v1719 = vld [vmem:[#allocation11 + $0x658] sm:$0xff]
        %v1720 = vld [vmem:[#allocation11 + $0x660] sm:$0xff]
        %v1721 = vld [vmem:[#allocation11 + $0x668] sm:$0xff]
        %v1722 = vld [vmem:[#allocation11 + $0x670] sm:$0xff]
        %v1723 = vld [vmem:[#allocation11 + $0x678] sm:$0xff]
        %v1724 = vld [vmem:[#allocation11 + $0x680] sm:$0xff]
        %v1725 = vld [vmem:[#allocation11 + $0x688] sm:$0xff]
        %v1726 = vld [vmem:[#allocation11 + $0x690] sm:$0xff]
        %v1727 = vld [vmem:[#allocation11 + $0x698] sm:$0xff]
        %v1728 = vld [vmem:[#allocation11 + $0x6a0] sm:$0xff]
        %v1729 = vld [vmem:[#allocation11 + $0x6a8] sm:$0xff]
        %v1730 = vld [vmem:[#allocation11 + $0x6b0] sm:$0xff]
        %v1731 = vld [vmem:[#allocation11 + $0x6b8] sm:$0xff]
        %v1732 = vld [vmem:[#allocation11 + $0x6c0] sm:$0xff]
        %v1733 = vld [vmem:[#allocation11 + $0x6c8] sm:$0xff]
        %v1734 = vld [vmem:[#allocation11 + $0x6d0] sm:$0xff]
        %v1735 = vld [vmem:[#allocation11 + $0x6d8] sm:$0xff]
        %v1736 = vld [vmem:[#allocation11 + $0x6e0] sm:$0xff]
        %v1737 = vld [vmem:[#allocation11 + $0x6e8] sm:$0xff]
        %v1738 = vld [vmem:[#allocation11 + $0x6f0] sm:$0xff]
        %v1739 = vld [vmem:[#allocation11 + $0x6f8] sm:$0xff]
        %v1740 = vld [vmem:[#allocation11 + $0x700] sm:$0xff]
        %v1741 = vld [vmem:[#allocation11 + $0x708] sm:$0xff]
        %v1742 = vld [vmem:[#allocation11 + $0x710] sm:$0xff]
        %v1743 = vld [vmem:[#allocation11 + $0x718] sm:$0xff]
        %v1744 = vld [vmem:[#allocation11 + $0x720] sm:$0xff]
        %v1745 = vld [vmem:[#allocation11 + $0x728] sm:$0xff]
        %v1746 = vld [vmem:[#allocation11 + $0x730] sm:$0xff]
        %v1747 = vld [vmem:[#allocation11 + $0x738] sm:$0xff]
        %v1748 = vld [vmem:[#allocation11 + $0x740] sm:$0xff]
        %v1749 = vld [vmem:[#allocation11 + $0x748] sm:$0xff]
        %v1750 = vld [vmem:[#allocation11 + $0x750] sm:$0xff]
        %v1751 = vld [vmem:[#allocation11 + $0x758] sm:$0xff]
        %v1752 = vld [vmem:[#allocation11 + $0x760] sm:$0xff]
        %v1753 = vld [vmem:[#allocation11 + $0x768] sm:$0xff]
        %v1754 = vld [vmem:[#allocation11 + $0x770] sm:$0xff]
        %v1755 = vld [vmem:[#allocation11 + $0x778] sm:$0xff]
        %v1756 = vld [vmem:[#allocation11 + $0x780] sm:$0xff]
        %v1757 = vld [vmem:[#allocation11 + $0x788] sm:$0xff]
        %v1758 = vld [vmem:[#allocation11 + $0x790] sm:$0xff]
        %v1759 = vld [vmem:[#allocation11 + $0x798] sm:$0xff]
        %v1760 = vld [vmem:[#allocation11 + $0x7a0] sm:$0xff]
        %v1761 = vld [vmem:[#allocation11 + $0x7a8] sm:$0xff]
        %v1762 = vld [vmem:[#allocation11 + $0x7b0] sm:$0xff]
        %v1763 = vld [vmem:[#allocation11 + $0x7b8] sm:$0xff]
        %v1764 = vld [vmem:[#allocation11 + $0x7c0] sm:$0xff]
        %v1765 = vld [vmem:[#allocation11 + $0x7c8] sm:$0xff]
        %v1766 = vld [vmem:[#allocation11 + $0x7d0] sm:$0xff]
        %v1767 = vld [vmem:[#allocation11 + $0x7d8] sm:$0xff]
        %v1768 = vld [vmem:[#allocation11 + $0x7e0] sm:$0xff]
        %v1769 = vld [vmem:[#allocation11 + $0x7e8] sm:$0xff]
        %v1770 = vld [vmem:[#allocation11 + $0x7f0] sm:$0xff]
        %v1771 = vld [vmem:[#allocation11 + $0x7f8] sm:$0xff]
        %v1772 = vld [vmem:[#allocation11 + $0x800] sm:$0xff]
        %v1773 = vld [vmem:[#allocation11 + $0x808] sm:$0xff]
        %v1774 = vld [vmem:[#allocation11 + $0x810] sm:$0xff]
        %v1775 = vld [vmem:[#allocation11 + $0x818] sm:$0xff]
        %v1776 = vld [vmem:[#allocation11 + $0x820] sm:$0xff]
        %v1777 = vld [vmem:[#allocation11 + $0x828] sm:$0xff]
        %v1778 = vld [vmem:[#allocation11 + $0x830] sm:$0xff]
        %v1779 = vld [vmem:[#allocation11 + $0x838] sm:$0xff]
        %v1780 = vld [vmem:[#allocation11 + $0x840] sm:$0xff]
        %v1781 = vld [vmem:[#allocation11 + $0x848] sm:$0xff]
        %v1782 = vld [vmem:[#allocation11 + $0x850] sm:$0xff]
        %v1783 = vld [vmem:[#allocation11 + $0x858] sm:$0xff]
        %v1784 = vld [vmem:[#allocation11 + $0x860] sm:$0xff]
        %v1785 = vld [vmem:[#allocation11 + $0x868] sm:$0xff]
        %v1786 = vld [vmem:[#allocation11 + $0x870] sm:$0xff]
        %v1787 = vld [vmem:[#allocation11 + $0x878] sm:$0xff]
        %v1788 = vld [vmem:[#allocation11 + $0x880] sm:$0xff]
        %v1789 = vld [vmem:[#allocation11 + $0x888] sm:$0xff]
        %v1790 = vld [vmem:[#allocation11 + $0x890] sm:$0xff]
        %v1791 = vld [vmem:[#allocation11 + $0x898] sm:$0xff]
        %v1792 = vld [vmem:[#allocation11 + $0x8a0] sm:$0xff]
        %v1793 = vld [vmem:[#allocation11 + $0x8a8] sm:$0xff]
        %v1794 = vld [vmem:[#allocation11 + $0x8b0] sm:$0xff]
        %v1795 = vld [vmem:[#allocation11 + $0x8b8] sm:$0xff]
        %v1796 = vld [vmem:[#allocation11 + $0x8c0] sm:$0xff]
        %v1797 = vld [vmem:[#allocation11 + $0x8c8] sm:$0xff]
        %v1798 = vld [vmem:[#allocation11 + $0x8d0] sm:$0xff]
        %v1799 = vld [vmem:[#allocation11 + $0x8d8] sm:$0xff]
        %v1800 = vld [vmem:[#allocation11 + $0x8e0] sm:$0xff]
        %v1801 = vld [vmem:[#allocation11 + $0x8e8] sm:$0xff]
        %v1802 = vld [vmem:[#allocation11 + $0x8f0] sm:$0xff]
        %v1803 = vld [vmem:[#allocation11 + $0x8f8] sm:$0xff]
        %v1804 = vld [vmem:[#allocation11 + $0x900] sm:$0xff]
        %v1805 = vld [vmem:[#allocation11 + $0x908] sm:$0xff]
        %v1806 = vld [vmem:[#allocation11 + $0x910] sm:$0xff]
        %v1807 = vld [vmem:[#allocation11 + $0x918] sm:$0xff]
        %v1808 = vld [vmem:[#allocation11 + $0x920] sm:$0xff]
        %v1809 = vld [vmem:[#allocation11 + $0x928] sm:$0xff]
        %v1810 = vld [vmem:[#allocation11 + $0x930] sm:$0xff]
        %v1811 = vld [vmem:[#allocation11 + $0x938] sm:$0xff]
        %v1812 = vld [vmem:[#allocation11 + $0x940] sm:$0xff]
        %v1813 = vld [vmem:[#allocation11 + $0x948] sm:$0xff]
        %v1814 = vld [vmem:[#allocation11 + $0x950] sm:$0xff]
        %v1815 = vld [vmem:[#allocation11 + $0x958] sm:$0xff]
        %v1816 = vld [vmem:[#allocation11 + $0x960] sm:$0xff]
        %v1817 = vld [vmem:[#allocation11 + $0x968] sm:$0xff]
        %v1818 = vld [vmem:[#allocation11 + $0x970] sm:$0xff]
        %v1819 = vld [vmem:[#allocation11 + $0x978] sm:$0xff]
        %v1820 = vld [vmem:[#allocation11 + $0x980] sm:$0xff]
        %v1821 = vld [vmem:[#allocation11 + $0x988] sm:$0xff]
        %v1822 = vld [vmem:[#allocation11 + $0x990] sm:$0xff]
        %v1823 = vld [vmem:[#allocation11 + $0x998] sm:$0xff]
        %v1824 = vld [vmem:[#allocation11 + $0x9a0] sm:$0xff]
        %v1825 = vld [vmem:[#allocation11 + $0x9a8] sm:$0xff]
        %v1826 = vld [vmem:[#allocation11 + $0x9b0] sm:$0xff]
        %v1827 = vld [vmem:[#allocation11 + $0x9b8] sm:$0xff]
        %v1828 = vld [vmem:[#allocation11 + $0x9c0] sm:$0xff]
        %v1829 = vld [vmem:[#allocation11 + $0x9c8] sm:$0xff]
        %v1830 = vld [vmem:[#allocation11 + $0x9d0] sm:$0xff]
        %v1831 = vld [vmem:[#allocation11 + $0x9d8] sm:$0xff]
        %v1832 = vld [vmem:[#allocation11 + $0x9e0] sm:$0xff]
        %v1833 = vld [vmem:[#allocation11 + $0x9e8] sm:$0xff]
        %v1834 = vld [vmem:[#allocation11 + $0x9f0] sm:$0xff]
        %v1835 = vld [vmem:[#allocation11 + $0x9f8] sm:$0xff]
        %v1836 = vld [vmem:[#allocation11 + $0xa00] sm:$0xff]
        %v1837 = vld [vmem:[#allocation11 + $0xa08] sm:$0xff]
        %v1838 = vld [vmem:[#allocation11 + $0xa10] sm:$0xff]
        %v1839 = vld [vmem:[#allocation11 + $0xa18] sm:$0xff]
        %v1840 = vld [vmem:[#allocation11 + $0xa20] sm:$0xff]
        %v1841 = vld [vmem:[#allocation11 + $0xa28] sm:$0xff]
        %v1842 = vld [vmem:[#allocation11 + $0xa30] sm:$0xff]
        %v1843 = vld [vmem:[#allocation11 + $0xa38] sm:$0xff]
        %v1844 = vld [vmem:[#allocation11 + $0xa40] sm:$0xff]
        %v1845 = vld [vmem:[#allocation11 + $0xa48] sm:$0xff]
        %v1846 = vld [vmem:[#allocation11 + $0xa50] sm:$0xff]
        %v1847 = vld [vmem:[#allocation11 + $0xa58] sm:$0xff]
        %v1848 = vld [vmem:[#allocation11 + $0xa60] sm:$0xff]
        %v1849 = vld [vmem:[#allocation11 + $0xa68] sm:$0xff]
        %v1850 = vld [vmem:[#allocation11 + $0xa70] sm:$0xff]
        %v1851 = vld [vmem:[#allocation11 + $0xa78] sm:$0xff]
        %v1852 = vld [vmem:[#allocation11 + $0xa80] sm:$0xff]
        %v1853 = vld [vmem:[#allocation11 + $0xa88] sm:$0xff]
        %v1854 = vld [vmem:[#allocation11 + $0xa90] sm:$0xff]
        %v1855 = vld [vmem:[#allocation11 + $0xa98] sm:$0xff]
        %v1856 = vld [vmem:[#allocation11 + $0xaa0] sm:$0xff]
        %v1857 = vld [vmem:[#allocation11 + $0xaa8] sm:$0xff]
        %v1858 = vld [vmem:[#allocation11 + $0xab0] sm:$0xff]
        %v1859 = vld [vmem:[#allocation11 + $0xab8] sm:$0xff]
        %v1860 = vld [vmem:[#allocation11 + $0xac0] sm:$0xff]
        %v1861 = vld [vmem:[#allocation11 + $0xac8] sm:$0xff]
        %v1862 = vld [vmem:[#allocation11 + $0xad0] sm:$0xff]
        %v1863 = vld [vmem:[#allocation11 + $0xad8] sm:$0xff]
        %v1864 = vld [vmem:[#allocation11 + $0xae0] sm:$0xff]
        %v1865 = vld [vmem:[#allocation11 + $0xae8] sm:$0xff]
        %v1866 = vld [vmem:[#allocation11 + $0xaf0] sm:$0xff]
        %v1867 = vld [vmem:[#allocation11 + $0xaf8] sm:$0xff]
        %v1868 = vld [vmem:[#allocation11 + $0xb00] sm:$0xff]
        %v1869 = vld [vmem:[#allocation11 + $0xb08] sm:$0xff]
        %v1870 = vld [vmem:[#allocation11 + $0xb10] sm:$0xff]
        %v1871 = vld [vmem:[#allocation11 + $0xb18] sm:$0xff]
        %v1872 = vld [vmem:[#allocation11 + $0xb20] sm:$0xff]
        %v1873 = vld [vmem:[#allocation11 + $0xb28] sm:$0xff]
        %v1874 = vld [vmem:[#allocation11 + $0xb30] sm:$0xff]
        %v1875 = vld [vmem:[#allocation11 + $0xb38] sm:$0xff]
        %v1876 = vld [vmem:[#allocation11 + $0xb40] sm:$0xff]
        %v1877 = vld [vmem:[#allocation11 + $0xb48] sm:$0xff]
        %v1878 = vld [vmem:[#allocation11 + $0xb50] sm:$0xff]
        %v1879 = vld [vmem:[#allocation11 + $0xb58] sm:$0xff]
        %v1880 = vld [vmem:[#allocation11 + $0xb60] sm:$0xff]
        %v1881 = vld [vmem:[#allocation11 + $0xb68] sm:$0xff]
        %v1882 = vld [vmem:[#allocation11 + $0xb70] sm:$0xff]
        %v1883 = vld [vmem:[#allocation11 + $0xb78] sm:$0xff]
        %v1884 = vld [vmem:[#allocation11 + $0xb80] sm:$0xff]
        %v1885 = vld [vmem:[#allocation11 + $0xb88] sm:$0xff]
        %v1886 = vld [vmem:[#allocation11 + $0xb90] sm:$0xff]
        %v1887 = vld [vmem:[#allocation11 + $0xb98] sm:$0xff]
        %v1888 = vld [vmem:[#allocation11 + $0xba0] sm:$0xff]
        %v1889 = vld [vmem:[#allocation11 + $0xba8] sm:$0xff]
        %v1890 = vld [vmem:[#allocation11 + $0xbb0] sm:$0xff]
        %v1891 = vld [vmem:[#allocation11 + $0xbb8] sm:$0xff]
        %v1892 = vld [vmem:[#allocation11 + $0xbc0] sm:$0xff]
        %v1893 = vld [vmem:[#allocation11 + $0xbc8] sm:$0xff]
        %v1894 = vld [vmem:[#allocation11 + $0xbd0] sm:$0xff]
        %v1895 = vld [vmem:[#allocation11 + $0xbd8] sm:$0xff]
        %v1896 = vld [vmem:[#allocation11 + $0xbe0] sm:$0xff]
        %v1897 = vld [vmem:[#allocation11 + $0xbe8] sm:$0xff]
        %v1898 = vld [vmem:[#allocation11 + $0xbf0] sm:$0xff]
        %v1899 = vld [vmem:[#allocation11 + $0xbf8] sm:$0xff]
        %v1900 = vld [vmem:[#allocation11 + $0xc00] sm:$0xff]
        %v1901 = vld [vmem:[#allocation11 + $0xc08] sm:$0xff]
        %v1902 = vld [vmem:[#allocation11 + $0xc10] sm:$0xff]
        %v1903 = vld [vmem:[#allocation11 + $0xc18] sm:$0xff]
        %v1904 = vld [vmem:[#allocation11 + $0xc20] sm:$0xff]
        %v1905 = vld [vmem:[#allocation11 + $0xc28] sm:$0xff]
        %v1906 = vld [vmem:[#allocation11 + $0xc30] sm:$0xff]
        %v1907 = vld [vmem:[#allocation11 + $0xc38] sm:$0xff]
        %v1908 = vld [vmem:[#allocation11 + $0xc40] sm:$0xff]
        %v1909 = vld [vmem:[#allocation11 + $0xc48] sm:$0xff]
        %v1910 = vld [vmem:[#allocation11 + $0xc50] sm:$0xff]
        %v1911 = vld [vmem:[#allocation11 + $0xc58] sm:$0xff]
        %v1912 = vld [vmem:[#allocation11 + $0xc60] sm:$0xff]
        %v1913 = vld [vmem:[#allocation11 + $0xc68] sm:$0xff]
        %v1914 = vld [vmem:[#allocation11 + $0xc70] sm:$0xff]
        %v1915 = vld [vmem:[#allocation11 + $0xc78] sm:$0xff]
        %v1916 = vld [vmem:[#allocation11 + $0xc80] sm:$0xff]
        %v1917 = vld [vmem:[#allocation11 + $0xc88] sm:$0xff]
        %v1918 = vld [vmem:[#allocation11 + $0xc90] sm:$0xff]
        %v1919 = vld [vmem:[#allocation11 + $0xc98] sm:$0xff]
        %v1920 = vld [vmem:[#allocation11 + $0xca0] sm:$0xff]
        %v1921 = vld [vmem:[#allocation11 + $0xca8] sm:$0xff]
        %v1922 = vld [vmem:[#allocation11 + $0xcb0] sm:$0xff]
        %v1923 = vld [vmem:[#allocation11 + $0xcb8] sm:$0xff]
        %v1924 = vld [vmem:[#allocation11 + $0xcc0] sm:$0xff]
        %v1925 = vld [vmem:[#allocation11 + $0xcc8] sm:$0xff]
        %v1926 = vld [vmem:[#allocation11 + $0xcd0] sm:$0xff]
        %v1927 = vld [vmem:[#allocation11 + $0xcd8] sm:$0xff]
        %v1928 = vld [vmem:[#allocation11 + $0xce0] sm:$0xff]
        %v1929 = vld [vmem:[#allocation11 + $0xce8] sm:$0xff]
        %v1930 = vld [vmem:[#allocation11 + $0xcf0] sm:$0xff]
        %v1931 = vld [vmem:[#allocation11 + $0xcf8] sm:$0xff]
        %v1932 = vld [vmem:[#allocation11 + $0xd00] sm:$0xff]
        %v1933 = vld [vmem:[#allocation11 + $0xd08] sm:$0xff]
        %v1934 = vld [vmem:[#allocation11 + $0xd10] sm:$0xff]
        %v1935 = vld [vmem:[#allocation11 + $0xd18] sm:$0xff]
        %v1936 = vld [vmem:[#allocation11 + $0xd20] sm:$0xff]
        %v1937 = vld [vmem:[#allocation11 + $0xd28] sm:$0xff]
        %v1938 = vld [vmem:[#allocation11 + $0xd30] sm:$0xff]
        %v1939 = vld [vmem:[#allocation11 + $0xd38] sm:$0xff]
        %v1940 = vld [vmem:[#allocation11 + $0xd40] sm:$0xff]
        %v1941 = vld [vmem:[#allocation11 + $0xd48] sm:$0xff]
        %v1942 = vld [vmem:[#allocation11 + $0xd50] sm:$0xff]
        %v1943 = vld [vmem:[#allocation11 + $0xd58] sm:$0xff]
        %v1944 = vld [vmem:[#allocation11 + $0xd60] sm:$0xff]
        %v1945 = vld [vmem:[#allocation11 + $0xd68] sm:$0xff]
        %v1946 = vld [vmem:[#allocation11 + $0xd70] sm:$0xff]
        %v1947 = vld [vmem:[#allocation11 + $0xd78] sm:$0xff]
        %v1948 = vld [vmem:[#allocation11 + $0xd80] sm:$0xff]
        %v1949 = vld [vmem:[#allocation11 + $0xd88] sm:$0xff]
        %v1950 = vld [vmem:[#allocation11 + $0xd90] sm:$0xff]
        %v1951 = vld [vmem:[#allocation11 + $0xd98] sm:$0xff]
        %v1952 = vld [vmem:[#allocation11 + $0xda0] sm:$0xff]
        %v1953 = vld [vmem:[#allocation11 + $0xda8] sm:$0xff]
        %v1954 = vld [vmem:[#allocation11 + $0xdb0] sm:$0xff]
        %v1955 = vld [vmem:[#allocation11 + $0xdb8] sm:$0xff]
        %v1956 = vld [vmem:[#allocation11 + $0xdc0] sm:$0xff]
        %v1957 = vld [vmem:[#allocation11 + $0xdc8] sm:$0xff]
        %v1958 = vld [vmem:[#allocation11 + $0xdd0] sm:$0xff]
        %v1959 = vld [vmem:[#allocation11 + $0xdd8] sm:$0xff]
        %v1960 = vld [vmem:[#allocation11 + $0xde0] sm:$0xff]
        %v1961 = vld [vmem:[#allocation11 + $0xde8] sm:$0xff]
        %v1962 = vld [vmem:[#allocation11 + $0xdf0] sm:$0xff]
        %v1963 = vld [vmem:[#allocation11 + $0xdf8] sm:$0xff]
        %v1964 = vld [vmem:[#allocation11 + $0xe00] sm:$0xff]
        %v1965 = vld [vmem:[#allocation11 + $0xe08] sm:$0xff]
        %v1966 = vld [vmem:[#allocation11 + $0xe10] sm:$0xff]
        %v1967 = vld [vmem:[#allocation11 + $0xe18] sm:$0xff]
        %v1968 = vld [vmem:[#allocation11 + $0xe20] sm:$0xff]
        %v1969 = vld [vmem:[#allocation11 + $0xe28] sm:$0xff]
        %v1970 = vld [vmem:[#allocation11 + $0xe30] sm:$0xff]
        %v1971 = vld [vmem:[#allocation11 + $0xe38] sm:$0xff]
        %v1972 = vld [vmem:[#allocation11 + $0xe40] sm:$0xff]
        %v1973 = vld [vmem:[#allocation11 + $0xe48] sm:$0xff]
        %v1974 = vld [vmem:[#allocation11 + $0xe50] sm:$0xff]
        %v1975 = vld [vmem:[#allocation11 + $0xe58] sm:$0xff]
        %v1976 = vld [vmem:[#allocation11 + $0xe60] sm:$0xff]
        %v1977 = vld [vmem:[#allocation11 + $0xe68] sm:$0xff]
        %v1978 = vld [vmem:[#allocation11 + $0xe70] sm:$0xff]
        %v1979 = vld [vmem:[#allocation11 + $0xe78] sm:$0xff]
        %v1980 = vld [vmem:[#allocation11 + $0xe80] sm:$0xff]
        %v1981 = vld [vmem:[#allocation11 + $0xe88] sm:$0xff]
        %v1982 = vld [vmem:[#allocation11 + $0xe90] sm:$0xff]
        %v1983 = vld [vmem:[#allocation11 + $0xe98] sm:$0xff]
        %v1984 = vld [vmem:[#allocation11 + $0xea0] sm:$0xff]
        %v1985 = vld [vmem:[#allocation11 + $0xea8] sm:$0xff]
        %v1986 = vld [vmem:[#allocation11 + $0xeb0] sm:$0xff]
        %v1987 = vld [vmem:[#allocation11 + $0xeb8] sm:$0xff]
        %v1988 = vld [vmem:[#allocation11 + $0xec0] sm:$0xff]
        %v1989 = vld [vmem:[#allocation11 + $0xec8] sm:$0xff]
        %v1990 = vld [vmem:[#allocation11 + $0xed0] sm:$0xff]
        %v1991 = vld [vmem:[#allocation11 + $0xed8] sm:$0xff]
        %v1992 = vld [vmem:[#allocation11 + $0xee0] sm:$0xff]
        %v1993 = vld [vmem:[#allocation11 + $0xee8] sm:$0xff]
        %v1994 = vld [vmem:[#allocation11 + $0xef0] sm:$0xff]
        %v1995 = vld [vmem:[#allocation11 + $0xef8] sm:$0xff]
        %v1996 = vld [vmem:[#allocation11 + $0xf00] sm:$0xff]
        %v1997 = vld [vmem:[#allocation11 + $0xf08] sm:$0xff]
        %v1998 = vld [vmem:[#allocation11 + $0xf10] sm:$0xff]
        %v1999 = vld [vmem:[#allocation11 + $0xf18] sm:$0xff]
        %v2000 = vld [vmem:[#allocation11 + $0xf20] sm:$0xff]
        %v2001 = vld [vmem:[#allocation11 + $0xf28] sm:$0xff]
        %v2002 = vld [vmem:[#allocation11 + $0xf30] sm:$0xff]
        %v2003 = vld [vmem:[#allocation11 + $0xf38] sm:$0xff]
        %v2004 = vld [vmem:[#allocation11 + $0xf40] sm:$0xff]
        %v2005 = vld [vmem:[#allocation11 + $0xf48] sm:$0xff]
        %v2006 = vld [vmem:[#allocation11 + $0xf50] sm:$0xff]
        %v2007 = vld [vmem:[#allocation11 + $0xf58] sm:$0xff]
        %v2008 = vld [vmem:[#allocation11 + $0xf60] sm:$0xff]
        %v2009 = vld [vmem:[#allocation11 + $0xf68] sm:$0xff]
        %v2010 = vld [vmem:[#allocation11 + $0xf70] sm:$0xff]
        %v2011 = vld [vmem:[#allocation11 + $0xf78] sm:$0xff]
        %v2012 = vld [vmem:[#allocation11 + $0xf80] sm:$0xff]
        %v2013 = vld [vmem:[#allocation11 + $0xf88] sm:$0xff]
        %v2014 = vld [vmem:[#allocation11 + $0xf90] sm:$0xff]
        %v2015 = vld [vmem:[#allocation11 + $0xf98] sm:$0xff]
        %v2016 = vld [vmem:[#allocation11 + $0xfa0] sm:$0xff]
        %v2017 = vld [vmem:[#allocation11 + $0xfa8] sm:$0xff]
        %v2018 = vld [vmem:[#allocation11 + $0xfb0] sm:$0xff]
        %v2019 = vld [vmem:[#allocation11 + $0xfb8] sm:$0xff]
        %v2020 = vld [vmem:[#allocation11 + $0xfc0] sm:$0xff]
        %v2021 = vld [vmem:[#allocation11 + $0xfc8] sm:$0xff]
        %v2022 = vld [vmem:[#allocation11 + $0xfd0] sm:$0xff]
        %v2023 = vld [vmem:[#allocation11 + $0xfd8] sm:$0xff]
        %v2024 = vld [vmem:[#allocation11 + $0xfe0] sm:$0xff]
        %v2025 = vld [vmem:[#allocation11 + $0xfe8] sm:$0xff]
        %v2026 = vld [vmem:[#allocation11 + $0xff0] sm:$0xff]
        %v2027 = vld [vmem:[#allocation11 + $0xff8] sm:$0xff]
        %v2028 = vld [vmem:[#allocation13] sm:$0xf]
        %v2030 = vperm.slane %v2028, 0
        %v2031 = vperm.slane %v2028, 1
        %v2032 = vperm.slane %v2028, 2
        %v2033 = vperm.slane %v2028, 3
        %2038 = vmatpush.msra.mxu0 %v1576
        %2039 = vmatpush.msra.mxu0 %v1572
        %2040 = vmatpush.msra.mxu0 %v1568
        %2041 = vmatpush.msra.mxu0 %v1564
        %2042 = vmatpush.msra.mxu0 %v1560
        %2043 = vmatpush.msra.mxu0 %v1556
        %2044 = vmatpush.msra.mxu0 %v1552
        %2045 = vmatpush.msra.mxu0 %v1548
        %2046 = vmatpush.msra.mxu0 %v1544
        %2047 = vmatpush.msra.mxu0 %v1540
        %2048 = vmatpush.msra.mxu0 %v1536
        %2049 = vmatpush.msra.mxu0 %v1532
        %2050 = vmatpush.msra.mxu0 %v1528
        %2051 = vmatpush.msra.mxu0 %v1524
        %2052 = vmatpush.msra.mxu0 %v1520
        %2053 = vmatpush.msra.mxu0 %v1516
        %2054 = vmatmul.f32.gmra.mxu0 %v1415
        %v2055 = vpop.f32.mrf.mxu0
        %v2056 = vadd.f32 %v2030, %v2055
        %2057 = vmatmul.f32.gmra.mxu0 %v1417
        %v2058 = vpop.f32.mrf.mxu0
        %v2059 = vadd.f32 %v2030, %v2058
        %2060 = vmatmul.f32.gmra.mxu0 %v1419
        %v2061 = vpop.f32.mrf.mxu0
        %v2062 = vadd.f32 %v2030, %v2061
        %2063 = vdwg.mxu0
        %2064 = vmatpush.msra.mxu0 %v1640
        %2065 = vmatpush.msra.mxu0 %v1636
        %2066 = vmatpush.msra.mxu0 %v1632
        %2067 = vmatpush.msra.mxu0 %v1628
        %2068 = vmatpush.msra.mxu0 %v1624
        %2069 = vmatpush.msra.mxu0 %v1620
        %2070 = vmatpush.msra.mxu0 %v1616
        %2071 = vmatpush.msra.mxu0 %v1612
        %2072 = vmatpush.msra.mxu0 %v1608
        %2073 = vmatpush.msra.mxu0 %v1604
        %2074 = vmatpush.msra.mxu0 %v1600
        %2075 = vmatpush.msra.mxu0 %v1596
        %2076 = vmatpush.msra.mxu0 %v1592
        %2077 = vmatpush.msra.mxu0 %v1588
        %2078 = vmatpush.msra.mxu0 %v1584
        %2079 = vmatpush.msra.mxu0 %v1580
        %2080 = vmatmul.f32.gmra.mxu0 %v1416
        %v2081 = vpop.f32.mrf.mxu0
        %v2082 = vadd.f32 %v2056, %v2081
        %2083 = vmatmul.f32.gmra.mxu0 %v1418
        %v2084 = vpop.f32.mrf.mxu0
        %v2085 = vadd.f32 %v2059, %v2084
        %2086 = vmatmul.f32.gmra.mxu0 %v1420
        %v2087 = vpop.f32.mrf.mxu0
        %v2088 = vadd.f32 %v2062, %v2087
        %2089 = vdwg.mxu0
        %2090 = vmatpush.msra.mxu0 %v1704
        %2091 = vmatpush.msra.mxu0 %v1700
        %2092 = vmatpush.msra.mxu0 %v1696
        %2093 = vmatpush.msra.mxu0 %v1692
        %2094 = vmatpush.msra.mxu0 %v1688
        %2095 = vmatpush.msra.mxu0 %v1684
        %2096 = vmatpush.msra.mxu0 %v1680
        %2097 = vmatpush.msra.mxu0 %v1676
        %2098 = vmatpush.msra.mxu0 %v1672
        %2099 = vmatpush.msra.mxu0 %v1668
        %2100 = vmatpush.msra.mxu0 %v1664
        %2101 = vmatpush.msra.mxu0 %v1660
        %2102 = vmatpush.msra.mxu0 %v1656
        %2103 = vmatpush.msra.mxu0 %v1652
        %2104 = vmatpush.msra.mxu0 %v1648
        %2105 = vmatpush.msra.mxu0 %v1644
        %2106 = vmatmul.f32.gmra.mxu0 %v1448
        %v2107 = vpop.f32.mrf.mxu0
        %v2108 = vadd.f32 %v2082, %v2107
        %2109 = vmatmul.f32.gmra.mxu0 %v1453
        %v2110 = vpop.f32.mrf.mxu0
        %v2111 = vadd.f32 %v2085, %v2110
        %2112 = vmatmul.f32.gmra.mxu0 %v1457
        %v2113 = vpop.f32.mrf.mxu0
        %v2114 = vadd.f32 %v2088, %v2113
        %2115 = vdwg.mxu0
        %2116 = vmatpush.msra.mxu0 %v1768
        %2117 = vmatpush.msra.mxu0 %v1764
        %2118 = vmatpush.msra.mxu0 %v1760
        %2119 = vmatpush.msra.mxu0 %v1756
        %2120 = vmatpush.msra.mxu0 %v1752
        %2121 = vmatpush.msra.mxu0 %v1748
        %2122 = vmatpush.msra.mxu0 %v1744
        %2123 = vmatpush.msra.mxu0 %v1740
        %2124 = vmatpush.msra.mxu0 %v1736
        %2125 = vmatpush.msra.mxu0 %v1732
        %2126 = vmatpush.msra.mxu0 %v1728
        %2127 = vmatpush.msra.mxu0 %v1724
        %2128 = vmatpush.msra.mxu0 %v1720
        %2129 = vmatpush.msra.mxu0 %v1716
        %2130 = vmatpush.msra.mxu0 %v1712
        %2131 = vmatpush.msra.mxu0 %v1708
        %2132 = vmatmul.f32.gmra.mxu0 %v1451
        %v2133 = vpop.f32.mrf.mxu0
        %v2134 = vadd.f32 %v2108, %v2133
        %2135 = vmatmul.f32.gmra.mxu0 %v1455
        %v2136 = vpop.f32.mrf.mxu0
        %v2137 = vadd.f32 %v2111, %v2136
        %2138 = vmatmul.f32.gmra.mxu0 %v1459
        %v2139 = vpop.f32.mrf.mxu0
        %v2140 = vadd.f32 %v2114, %v2139
        %2141 = vdwg.mxu0
        %2142 = vmatpush.msra.mxu0 %v1832
        %2143 = vmatpush.msra.mxu0 %v1828
        %2144 = vmatpush.msra.mxu0 %v1824
        %2145 = vmatpush.msra.mxu0 %v1820
        %2146 = vmatpush.msra.mxu0 %v1816
        %2147 = vmatpush.msra.mxu0 %v1812
        %2148 = vmatpush.msra.mxu0 %v1808
        %2149 = vmatpush.msra.mxu0 %v1804
        %2150 = vmatpush.msra.mxu0 %v1800
        %2151 = vmatpush.msra.mxu0 %v1796
        %2152 = vmatpush.msra.mxu0 %v1792
        %2153 = vmatpush.msra.mxu0 %v1788
        %2154 = vmatpush.msra.mxu0 %v1784
        %2155 = vmatpush.msra.mxu0 %v1780
        %2156 = vmatpush.msra.mxu0 %v1776
        %2157 = vmatpush.msra.mxu0 %v1772
        %2158 = vmatmul.f32.gmra.mxu0 %v1473
        %v2159 = vpop.f32.mrf.mxu0
        %v2160 = vadd.f32 %v2134, %v2159
        %2161 = vmatmul.f32.gmra.mxu0 %v1478
        %v2162 = vpop.f32.mrf.mxu0
        %v2163 = vadd.f32 %v2137, %v2162
        %2164 = vmatmul.f32.gmra.mxu0 %v1482
        %v2165 = vpop.f32.mrf.mxu0
        %v2166 = vadd.f32 %v2140, %v2165
        %2167 = vdwg.mxu0
        %2168 = vmatpush.msra.mxu0 %v1896
        %2169 = vmatpush.msra.mxu0 %v1892
        %2170 = vmatpush.msra.mxu0 %v1888
        %2171 = vmatpush.msra.mxu0 %v1884
        %2172 = vmatpush.msra.mxu0 %v1880
        %2173 = vmatpush.msra.mxu0 %v1876
        %2174 = vmatpush.msra.mxu0 %v1872
        %2175 = vmatpush.msra.mxu0 %v1868
        %2176 = vmatpush.msra.mxu0 %v1864
        %2177 = vmatpush.msra.mxu0 %v1860
        %2178 = vmatpush.msra.mxu0 %v1856
        %2179 = vmatpush.msra.mxu0 %v1852
        %2180 = vmatpush.msra.mxu0 %v1848
        %2181 = vmatpush.msra.mxu0 %v1844
        %2182 = vmatpush.msra.mxu0 %v1840
        %2183 = vmatpush.msra.mxu0 %v1836
        %2184 = vmatmul.f32.gmra.mxu0 %v1476
        %v2185 = vpop.f32.mrf.mxu0
        %v2186 = vadd.f32 %v2160, %v2185
        %2187 = vmatmul.f32.gmra.mxu0 %v1480
        %v2188 = vpop.f32.mrf.mxu0
        %v2189 = vadd.f32 %v2163, %v2188
        %2190 = vmatmul.f32.gmra.mxu0 %v1484
        %v2191 = vpop.f32.mrf.mxu0
        %v2192 = vadd.f32 %v2166, %v2191
        %2193 = vdwg.mxu0
        %2194 = vmatpush.msra.mxu0 %v1960
        %2195 = vmatpush.msra.mxu0 %v1956
        %2196 = vmatpush.msra.mxu0 %v1952
        %2197 = vmatpush.msra.mxu0 %v1948
        %2198 = vmatpush.msra.mxu0 %v1944
        %2199 = vmatpush.msra.mxu0 %v1940
        %2200 = vmatpush.msra.mxu0 %v1936
        %2201 = vmatpush.msra.mxu0 %v1932
        %2202 = vmatpush.msra.mxu0 %v1928
        %2203 = vmatpush.msra.mxu0 %v1924
        %2204 = vmatpush.msra.mxu0 %v1920
        %2205 = vmatpush.msra.mxu0 %v1916
        %2206 = vmatpush.msra.mxu0 %v1912
        %2207 = vmatpush.msra.mxu0 %v1908
        %2208 = vmatpush.msra.mxu0 %v1904
        %2209 = vmatpush.msra.mxu0 %v1900
        %2210 = vmatmul.f32.gmra.mxu0 %v1498
        %v2211 = vpop.f32.mrf.mxu0
        %v2212 = vadd.f32 %v2186, %v2211
        %2213 = vmatmul.f32.gmra.mxu0 %v1503
        %v2214 = vpop.f32.mrf.mxu0
        %v2215 = vadd.f32 %v2189, %v2214
        %2216 = vmatmul.f32.gmra.mxu0 %v1507
        %v2217 = vpop.f32.mrf.mxu0
        %v2218 = vadd.f32 %v2192, %v2217
        %2219 = vdwg.mxu0
        %2220 = vmatpush.msra.mxu0 %v2024
        %2221 = vmatpush.msra.mxu0 %v2020
        %2222 = vmatpush.msra.mxu0 %v2016
        %2223 = vmatpush.msra.mxu0 %v2012
        %2224 = vmatpush.msra.mxu0 %v2008
        %2225 = vmatpush.msra.mxu0 %v2004
        %2226 = vmatpush.msra.mxu0 %v2000
        %2227 = vmatpush.msra.mxu0 %v1996
        %2228 = vmatpush.msra.mxu0 %v1992
        %2229 = vmatpush.msra.mxu0 %v1988
        %2230 = vmatpush.msra.mxu0 %v1984
        %2231 = vmatpush.msra.mxu0 %v1980
        %2232 = vmatpush.msra.mxu0 %v1976
        %2233 = vmatpush.msra.mxu0 %v1972
        %2234 = vmatpush.msra.mxu0 %v1968
        %2235 = vmatpush.msra.mxu0 %v1964
        %2236 = vmatmul.f32.gmra.mxu0 %v1501
        %v2237 = vpop.f32.mrf.mxu0
        %v2238 = vadd.f32 %v2212, %v2237
        %2239 = vmatmul.f32.gmra.mxu0 %v1505
        %v2240 = vpop.f32.mrf.mxu0
        %v2241 = vadd.f32 %v2215, %v2240
        %2242 = vmatmul.f32.gmra.mxu0 %v1509
        %v2243 = vpop.f32.mrf.mxu0
        %v2244 = vadd.f32 %v2218, %v2243
        %2245 = vdwg.mxu0
        %2246 = vmatpush.msra.mxu0 %v1577
        %2247 = vmatpush.msra.mxu0 %v1573
        %2248 = vmatpush.msra.mxu0 %v1569
        %2249 = vmatpush.msra.mxu0 %v1565
        %2250 = vmatpush.msra.mxu0 %v1561
        %2251 = vmatpush.msra.mxu0 %v1557
        %2252 = vmatpush.msra.mxu0 %v1553
        %2253 = vmatpush.msra.mxu0 %v1549
        %2254 = vmatpush.msra.mxu0 %v1545
        %2255 = vmatpush.msra.mxu0 %v1541
        %2256 = vmatpush.msra.mxu0 %v1537
        %2257 = vmatpush.msra.mxu0 %v1533
        %2258 = vmatpush.msra.mxu0 %v1529
        %2259 = vmatpush.msra.mxu0 %v1525
        %2260 = vmatpush.msra.mxu0 %v1521
        %2261 = vmatpush.msra.mxu0 %v1517
        %2262 = vmatmul.f32.gmra.mxu0 %v1415
        %v2263 = vpop.f32.mrf.mxu0
        %v2264 = vadd.f32 %v2031, %v2263
        %2265 = vmatmul.f32.gmra.mxu0 %v1417
        %v2266 = vpop.f32.mrf.mxu0
        %v2267 = vadd.f32 %v2031, %v2266
        %2268 = vmatmul.f32.gmra.mxu0 %v1419
        %v2269 = vpop.f32.mrf.mxu0
        %v2270 = vadd.f32 %v2031, %v2269
        %2271 = vdwg.mxu0
        %2272 = vmatpush.msra.mxu0 %v1641
        %2273 = vmatpush.msra.mxu0 %v1637
        %2274 = vmatpush.msra.mxu0 %v1633
        %2275 = vmatpush.msra.mxu0 %v1629
        %2276 = vmatpush.msra.mxu0 %v1625
        %2277 = vmatpush.msra.mxu0 %v1621
        %2278 = vmatpush.msra.mxu0 %v1617
        %2279 = vmatpush.msra.mxu0 %v1613
        %2280 = vmatpush.msra.mxu0 %v1609
        %2281 = vmatpush.msra.mxu0 %v1605
        %2282 = vmatpush.msra.mxu0 %v1601
        %2283 = vmatpush.msra.mxu0 %v1597
        %2284 = vmatpush.msra.mxu0 %v1593
        %2285 = vmatpush.msra.mxu0 %v1589
        %2286 = vmatpush.msra.mxu0 %v1585
        %2287 = vmatpush.msra.mxu0 %v1581
        %2288 = vmatmul.f32.gmra.mxu0 %v1416
        %v2289 = vpop.f32.mrf.mxu0
        %v2290 = vadd.f32 %v2264, %v2289
        %2291 = vmatmul.f32.gmra.mxu0 %v1418
        %v2292 = vpop.f32.mrf.mxu0
        %v2293 = vadd.f32 %v2267, %v2292
        %2294 = vmatmul.f32.gmra.mxu0 %v1420
        %v2295 = vpop.f32.mrf.mxu0
        %v2296 = vadd.f32 %v2270, %v2295
        %2297 = vdwg.mxu0
        %2298 = vmatpush.msra.mxu0 %v1705
        %2299 = vmatpush.msra.mxu0 %v1701
        %2300 = vmatpush.msra.mxu0 %v1697
        %2301 = vmatpush.msra.mxu0 %v1693
        %2302 = vmatpush.msra.mxu0 %v1689
        %2303 = vmatpush.msra.mxu0 %v1685
        %2304 = vmatpush.msra.mxu0 %v1681
        %2305 = vmatpush.msra.mxu0 %v1677
        %2306 = vmatpush.msra.mxu0 %v1673
        %2307 = vmatpush.msra.mxu0 %v1669
        %2308 = vmatpush.msra.mxu0 %v1665
        %2309 = vmatpush.msra.mxu0 %v1661
        %2310 = vmatpush.msra.mxu0 %v1657
        %2311 = vmatpush.msra.mxu0 %v1653
        %2312 = vmatpush.msra.mxu0 %v1649
        %2313 = vmatpush.msra.mxu0 %v1645
        %2314 = vmatmul.f32.gmra.mxu0 %v1448
        %v2315 = vpop.f32.mrf.mxu0
        %v2316 = vadd.f32 %v2290, %v2315
        %2317 = vmatmul.f32.gmra.mxu0 %v1453
        %v2318 = vpop.f32.mrf.mxu0
        %v2319 = vadd.f32 %v2293, %v2318
        %2320 = vmatmul.f32.gmra.mxu0 %v1457
        %v2321 = vpop.f32.mrf.mxu0
        %v2322 = vadd.f32 %v2296, %v2321
        %2323 = vdwg.mxu0
        %2324 = vmatpush.msra.mxu0 %v1769
        %2325 = vmatpush.msra.mxu0 %v1765
        %2326 = vmatpush.msra.mxu0 %v1761
        %2327 = vmatpush.msra.mxu0 %v1757
        %2328 = vmatpush.msra.mxu0 %v1753
        %2329 = vmatpush.msra.mxu0 %v1749
        %2330 = vmatpush.msra.mxu0 %v1745
        %2331 = vmatpush.msra.mxu0 %v1741
        %2332 = vmatpush.msra.mxu0 %v1737
        %2333 = vmatpush.msra.mxu0 %v1733
        %2334 = vmatpush.msra.mxu0 %v1729
        %2335 = vmatpush.msra.mxu0 %v1725
        %2336 = vmatpush.msra.mxu0 %v1721
        %2337 = vmatpush.msra.mxu0 %v1717
        %2338 = vmatpush.msra.mxu0 %v1713
        %2339 = vmatpush.msra.mxu0 %v1709
        %2340 = vmatmul.f32.gmra.mxu0 %v1451
        %v2341 = vpop.f32.mrf.mxu0
        %v2342 = vadd.f32 %v2316, %v2341
        %2343 = vmatmul.f32.gmra.mxu0 %v1455
        %v2344 = vpop.f32.mrf.mxu0
        %v2345 = vadd.f32 %v2319, %v2344
        %2346 = vmatmul.f32.gmra.mxu0 %v1459
        %v2347 = vpop.f32.mrf.mxu0
        %v2348 = vadd.f32 %v2322, %v2347
        %2349 = vdwg.mxu0
        %2350 = vmatpush.msra.mxu0 %v1833
        %2351 = vmatpush.msra.mxu0 %v1829
        %2352 = vmatpush.msra.mxu0 %v1825
        %2353 = vmatpush.msra.mxu0 %v1821
        %2354 = vmatpush.msra.mxu0 %v1817
        %2355 = vmatpush.msra.mxu0 %v1813
        %2356 = vmatpush.msra.mxu0 %v1809
        %2357 = vmatpush.msra.mxu0 %v1805
        %2358 = vmatpush.msra.mxu0 %v1801
        %2359 = vmatpush.msra.mxu0 %v1797
        %2360 = vmatpush.msra.mxu0 %v1793
        %2361 = vmatpush.msra.mxu0 %v1789
        %2362 = vmatpush.msra.mxu0 %v1785
        %2363 = vmatpush.msra.mxu0 %v1781
        %2364 = vmatpush.msra.mxu0 %v1777
        %2365 = vmatpush.msra.mxu0 %v1773
        %2366 = vmatmul.f32.gmra.mxu0 %v1473
        %v2367 = vpop.f32.mrf.mxu0
        %v2368 = vadd.f32 %v2342, %v2367
        %2369 = vmatmul.f32.gmra.mxu0 %v1478
        %v2370 = vpop.f32.mrf.mxu0
        %v2371 = vadd.f32 %v2345, %v2370
        %2372 = vmatmul.f32.gmra.mxu0 %v1482
        %v2373 = vpop.f32.mrf.mxu0
        %v2374 = vadd.f32 %v2348, %v2373
        %2375 = vdwg.mxu0
        %2376 = vmatpush.msra.mxu0 %v1897
        %2377 = vmatpush.msra.mxu0 %v1893
        %2378 = vmatpush.msra.mxu0 %v1889
        %2379 = vmatpush.msra.mxu0 %v1885
        %2380 = vmatpush.msra.mxu0 %v1881
        %2381 = vmatpush.msra.mxu0 %v1877
        %2382 = vmatpush.msra.mxu0 %v1873
        %2383 = vmatpush.msra.mxu0 %v1869
        %2384 = vmatpush.msra.mxu0 %v1865
        %2385 = vmatpush.msra.mxu0 %v1861
        %2386 = vmatpush.msra.mxu0 %v1857
        %2387 = vmatpush.msra.mxu0 %v1853
        %2388 = vmatpush.msra.mxu0 %v1849
        %2389 = vmatpush.msra.mxu0 %v1845
        %2390 = vmatpush.msra.mxu0 %v1841
        %2391 = vmatpush.msra.mxu0 %v1837
        %2392 = vmatmul.f32.gmra.mxu0 %v1476
        %v2393 = vpop.f32.mrf.mxu0
        %v2394 = vadd.f32 %v2368, %v2393
        %2395 = vmatmul.f32.gmra.mxu0 %v1480
        %v2396 = vpop.f32.mrf.mxu0
        %v2397 = vadd.f32 %v2371, %v2396
        %2398 = vmatmul.f32.gmra.mxu0 %v1484
        %v2399 = vpop.f32.mrf.mxu0
        %v2400 = vadd.f32 %v2374, %v2399
        %2401 = vdwg.mxu0
        %2402 = vmatpush.msra.mxu0 %v1961
        %2403 = vmatpush.msra.mxu0 %v1957
        %2404 = vmatpush.msra.mxu0 %v1953
        %2405 = vmatpush.msra.mxu0 %v1949
        %2406 = vmatpush.msra.mxu0 %v1945
        %2407 = vmatpush.msra.mxu0 %v1941
        %2408 = vmatpush.msra.mxu0 %v1937
        %2409 = vmatpush.msra.mxu0 %v1933
        %2410 = vmatpush.msra.mxu0 %v1929
        %2411 = vmatpush.msra.mxu0 %v1925
        %2412 = vmatpush.msra.mxu0 %v1921
        %2413 = vmatpush.msra.mxu0 %v1917
        %2414 = vmatpush.msra.mxu0 %v1913
        %2415 = vmatpush.msra.mxu0 %v1909
        %2416 = vmatpush.msra.mxu0 %v1905
        %2417 = vmatpush.msra.mxu0 %v1901
        %2418 = vmatmul.f32.gmra.mxu0 %v1498
        %v2419 = vpop.f32.mrf.mxu0
        %v2420 = vadd.f32 %v2394, %v2419
        %2421 = vmatmul.f32.gmra.mxu0 %v1503
        %v2422 = vpop.f32.mrf.mxu0
        %v2423 = vadd.f32 %v2397, %v2422
        %2424 = vmatmul.f32.gmra.mxu0 %v1507
        %v2425 = vpop.f32.mrf.mxu0
        %v2426 = vadd.f32 %v2400, %v2425
        %2427 = vdwg.mxu0
        %2428 = vmatpush.msra.mxu0 %v2025
        %2429 = vmatpush.msra.mxu0 %v2021
        %2430 = vmatpush.msra.mxu0 %v2017
        %2431 = vmatpush.msra.mxu0 %v2013
        %2432 = vmatpush.msra.mxu0 %v2009
        %2433 = vmatpush.msra.mxu0 %v2005
        %2434 = vmatpush.msra.mxu0 %v2001
        %2435 = vmatpush.msra.mxu0 %v1997
        %2436 = vmatpush.msra.mxu0 %v1993
        %2437 = vmatpush.msra.mxu0 %v1989
        %2438 = vmatpush.msra.mxu0 %v1985
        %2439 = vmatpush.msra.mxu0 %v1981
        %2440 = vmatpush.msra.mxu0 %v1977
        %2441 = vmatpush.msra.mxu0 %v1973
        %2442 = vmatpush.msra.mxu0 %v1969
        %2443 = vmatpush.msra.mxu0 %v1965
        %2444 = vmatmul.f32.gmra.mxu0 %v1501
        %v2445 = vpop.f32.mrf.mxu0
        %v2446 = vadd.f32 %v2420, %v2445
        %2447 = vmatmul.f32.gmra.mxu0 %v1505
        %v2448 = vpop.f32.mrf.mxu0
        %v2449 = vadd.f32 %v2423, %v2448
        %2450 = vmatmul.f32.gmra.mxu0 %v1509
        %v2451 = vpop.f32.mrf.mxu0
        %v2452 = vadd.f32 %v2426, %v2451
        %2453 = vdwg.mxu0
        %2454 = vmatpush.msra.mxu0 %v1578
        %2455 = vmatpush.msra.mxu0 %v1574
        %2456 = vmatpush.msra.mxu0 %v1570
        %2457 = vmatpush.msra.mxu0 %v1566
        %2458 = vmatpush.msra.mxu0 %v1562
        %2459 = vmatpush.msra.mxu0 %v1558
        %2460 = vmatpush.msra.mxu0 %v1554
        %2461 = vmatpush.msra.mxu0 %v1550
        %2462 = vmatpush.msra.mxu0 %v1546
        %2463 = vmatpush.msra.mxu0 %v1542
        %2464 = vmatpush.msra.mxu0 %v1538
        %2465 = vmatpush.msra.mxu0 %v1534
        %2466 = vmatpush.msra.mxu0 %v1530
        %2467 = vmatpush.msra.mxu0 %v1526
        %2468 = vmatpush.msra.mxu0 %v1522
        %2469 = vmatpush.msra.mxu0 %v1518
        %2470 = vmatmul.f32.gmra.mxu0 %v1415
        %v2471 = vpop.f32.mrf.mxu0
        %v2472 = vadd.f32 %v2032, %v2471
        %2473 = vmatmul.f32.gmra.mxu0 %v1417
        %v2474 = vpop.f32.mrf.mxu0
        %v2475 = vadd.f32 %v2032, %v2474
        %2476 = vmatmul.f32.gmra.mxu0 %v1419
        %v2477 = vpop.f32.mrf.mxu0
        %v2478 = vadd.f32 %v2032, %v2477
        %2479 = vdwg.mxu0
        %2480 = vmatpush.msra.mxu0 %v1642
        %2481 = vmatpush.msra.mxu0 %v1638
        %2482 = vmatpush.msra.mxu0 %v1634
        %2483 = vmatpush.msra.mxu0 %v1630
        %2484 = vmatpush.msra.mxu0 %v1626
        %2485 = vmatpush.msra.mxu0 %v1622
        %2486 = vmatpush.msra.mxu0 %v1618
        %2487 = vmatpush.msra.mxu0 %v1614
        %2488 = vmatpush.msra.mxu0 %v1610
        %2489 = vmatpush.msra.mxu0 %v1606
        %2490 = vmatpush.msra.mxu0 %v1602
        %2491 = vmatpush.msra.mxu0 %v1598
        %2492 = vmatpush.msra.mxu0 %v1594
        %2493 = vmatpush.msra.mxu0 %v1590
        %2494 = vmatpush.msra.mxu0 %v1586
        %2495 = vmatpush.msra.mxu0 %v1582
        %2496 = vmatmul.f32.gmra.mxu0 %v1416
        %v2497 = vpop.f32.mrf.mxu0
        %v2498 = vadd.f32 %v2472, %v2497
        %2499 = vmatmul.f32.gmra.mxu0 %v1418
        %v2500 = vpop.f32.mrf.mxu0
        %v2501 = vadd.f32 %v2475, %v2500
        %2502 = vmatmul.f32.gmra.mxu0 %v1420
        %v2503 = vpop.f32.mrf.mxu0
        %v2504 = vadd.f32 %v2478, %v2503
        %2505 = vdwg.mxu0
        %2506 = vmatpush.msra.mxu0 %v1706
        %2507 = vmatpush.msra.mxu0 %v1702
        %2508 = vmatpush.msra.mxu0 %v1698
        %2509 = vmatpush.msra.mxu0 %v1694
        %2510 = vmatpush.msra.mxu0 %v1690
        %2511 = vmatpush.msra.mxu0 %v1686
        %2512 = vmatpush.msra.mxu0 %v1682
        %2513 = vmatpush.msra.mxu0 %v1678
        %2514 = vmatpush.msra.mxu0 %v1674
        %2515 = vmatpush.msra.mxu0 %v1670
        %2516 = vmatpush.msra.mxu0 %v1666
        %2517 = vmatpush.msra.mxu0 %v1662
        %2518 = vmatpush.msra.mxu0 %v1658
        %2519 = vmatpush.msra.mxu0 %v1654
        %2520 = vmatpush.msra.mxu0 %v1650
        %2521 = vmatpush.msra.mxu0 %v1646
        %2522 = vmatmul.f32.gmra.mxu0 %v1448
        %v2523 = vpop.f32.mrf.mxu0
        %v2524 = vadd.f32 %v2498, %v2523
        %2525 = vmatmul.f32.gmra.mxu0 %v1453
        %v2526 = vpop.f32.mrf.mxu0
        %v2527 = vadd.f32 %v2501, %v2526
        %2528 = vmatmul.f32.gmra.mxu0 %v1457
        %v2529 = vpop.f32.mrf.mxu0
        %v2530 = vadd.f32 %v2504, %v2529
        %2531 = vdwg.mxu0
        %2532 = vmatpush.msra.mxu0 %v1770
        %2533 = vmatpush.msra.mxu0 %v1766
        %2534 = vmatpush.msra.mxu0 %v1762
        %2535 = vmatpush.msra.mxu0 %v1758
        %2536 = vmatpush.msra.mxu0 %v1754
        %2537 = vmatpush.msra.mxu0 %v1750
        %2538 = vmatpush.msra.mxu0 %v1746
        %2539 = vmatpush.msra.mxu0 %v1742
        %2540 = vmatpush.msra.mxu0 %v1738
        %2541 = vmatpush.msra.mxu0 %v1734
        %2542 = vmatpush.msra.mxu0 %v1730
        %2543 = vmatpush.msra.mxu0 %v1726
        %2544 = vmatpush.msra.mxu0 %v1722
        %2545 = vmatpush.msra.mxu0 %v1718
        %2546 = vmatpush.msra.mxu0 %v1714
        %2547 = vmatpush.msra.mxu0 %v1710
        %2548 = vmatmul.f32.gmra.mxu0 %v1451
        %v2549 = vpop.f32.mrf.mxu0
        %v2550 = vadd.f32 %v2524, %v2549
        %2551 = vmatmul.f32.gmra.mxu0 %v1455
        %v2552 = vpop.f32.mrf.mxu0
        %v2553 = vadd.f32 %v2527, %v2552
        %2554 = vmatmul.f32.gmra.mxu0 %v1459
        %v2555 = vpop.f32.mrf.mxu0
        %v2556 = vadd.f32 %v2530, %v2555
        %2557 = vdwg.mxu0
        %2558 = vmatpush.msra.mxu0 %v1834
        %2559 = vmatpush.msra.mxu0 %v1830
        %2560 = vmatpush.msra.mxu0 %v1826
        %2561 = vmatpush.msra.mxu0 %v1822
        %2562 = vmatpush.msra.mxu0 %v1818
        %2563 = vmatpush.msra.mxu0 %v1814
        %2564 = vmatpush.msra.mxu0 %v1810
        %2565 = vmatpush.msra.mxu0 %v1806
        %2566 = vmatpush.msra.mxu0 %v1802
        %2567 = vmatpush.msra.mxu0 %v1798
        %2568 = vmatpush.msra.mxu0 %v1794
        %2569 = vmatpush.msra.mxu0 %v1790
        %2570 = vmatpush.msra.mxu0 %v1786
        %2571 = vmatpush.msra.mxu0 %v1782
        %2572 = vmatpush.msra.mxu0 %v1778
        %2573 = vmatpush.msra.mxu0 %v1774
        %2574 = vmatmul.f32.gmra.mxu0 %v1473
        %v2575 = vpop.f32.mrf.mxu0
        %v2576 = vadd.f32 %v2550, %v2575
        %2577 = vmatmul.f32.gmra.mxu0 %v1478
        %v2578 = vpop.f32.mrf.mxu0
        %v2579 = vadd.f32 %v2553, %v2578
        %2580 = vmatmul.f32.gmra.mxu0 %v1482
        %v2581 = vpop.f32.mrf.mxu0
        %v2582 = vadd.f32 %v2556, %v2581
        %2583 = vdwg.mxu0
        %2584 = vmatpush.msra.mxu0 %v1898
        %2585 = vmatpush.msra.mxu0 %v1894
        %2586 = vmatpush.msra.mxu0 %v1890
        %2587 = vmatpush.msra.mxu0 %v1886
        %2588 = vmatpush.msra.mxu0 %v1882
        %2589 = vmatpush.msra.mxu0 %v1878
        %2590 = vmatpush.msra.mxu0 %v1874
        %2591 = vmatpush.msra.mxu0 %v1870
        %2592 = vmatpush.msra.mxu0 %v1866
        %2593 = vmatpush.msra.mxu0 %v1862
        %2594 = vmatpush.msra.mxu0 %v1858
        %2595 = vmatpush.msra.mxu0 %v1854
        %2596 = vmatpush.msra.mxu0 %v1850
        %2597 = vmatpush.msra.mxu0 %v1846
        %2598 = vmatpush.msra.mxu0 %v1842
        %2599 = vmatpush.msra.mxu0 %v1838
        %2600 = vmatmul.f32.gmra.mxu0 %v1476
        %v2601 = vpop.f32.mrf.mxu0
        %v2602 = vadd.f32 %v2576, %v2601
        %2603 = vmatmul.f32.gmra.mxu0 %v1480
        %v2604 = vpop.f32.mrf.mxu0
        %v2605 = vadd.f32 %v2579, %v2604
        %2606 = vmatmul.f32.gmra.mxu0 %v1484
        %v2607 = vpop.f32.mrf.mxu0
        %v2608 = vadd.f32 %v2582, %v2607
        %2609 = vdwg.mxu0
        %2610 = vmatpush.msra.mxu0 %v1962
        %2611 = vmatpush.msra.mxu0 %v1958
        %2612 = vmatpush.msra.mxu0 %v1954
        %2613 = vmatpush.msra.mxu0 %v1950
        %2614 = vmatpush.msra.mxu0 %v1946
        %2615 = vmatpush.msra.mxu0 %v1942
        %2616 = vmatpush.msra.mxu0 %v1938
        %2617 = vmatpush.msra.mxu0 %v1934
        %2618 = vmatpush.msra.mxu0 %v1930
        %2619 = vmatpush.msra.mxu0 %v1926
        %2620 = vmatpush.msra.mxu0 %v1922
        %2621 = vmatpush.msra.mxu0 %v1918
        %2622 = vmatpush.msra.mxu0 %v1914
        %2623 = vmatpush.msra.mxu0 %v1910
        %2624 = vmatpush.msra.mxu0 %v1906
        %2625 = vmatpush.msra.mxu0 %v1902
        %2626 = vmatmul.f32.gmra.mxu0 %v1498
        %v2627 = vpop.f32.mrf.mxu0
        %v2628 = vadd.f32 %v2602, %v2627
        %2629 = vmatmul.f32.gmra.mxu0 %v1503
        %v2630 = vpop.f32.mrf.mxu0
        %v2631 = vadd.f32 %v2605, %v2630
        %2632 = vmatmul.f32.gmra.mxu0 %v1507
        %v2633 = vpop.f32.mrf.mxu0
        %v2634 = vadd.f32 %v2608, %v2633
        %2635 = vdwg.mxu0
        %2636 = vmatpush.msra.mxu0 %v2026
        %2637 = vmatpush.msra.mxu0 %v2022
        %2638 = vmatpush.msra.mxu0 %v2018
        %2639 = vmatpush.msra.mxu0 %v2014
        %2640 = vmatpush.msra.mxu0 %v2010
        %2641 = vmatpush.msra.mxu0 %v2006
        %2642 = vmatpush.msra.mxu0 %v2002
        %2643 = vmatpush.msra.mxu0 %v1998
        %2644 = vmatpush.msra.mxu0 %v1994
        %2645 = vmatpush.msra.mxu0 %v1990
        %2646 = vmatpush.msra.mxu0 %v1986
        %2647 = vmatpush.msra.mxu0 %v1982
        %2648 = vmatpush.msra.mxu0 %v1978
        %2649 = vmatpush.msra.mxu0 %v1974
        %2650 = vmatpush.msra.mxu0 %v1970
        %2651 = vmatpush.msra.mxu0 %v1966
        %2652 = vmatmul.f32.gmra.mxu0 %v1501
        %v2653 = vpop.f32.mrf.mxu0
        %v2654 = vadd.f32 %v2628, %v2653
        %2655 = vmatmul.f32.gmra.mxu0 %v1505
        %v2656 = vpop.f32.mrf.mxu0
        %v2657 = vadd.f32 %v2631, %v2656
        %2658 = vmatmul.f32.gmra.mxu0 %v1509
        %v2659 = vpop.f32.mrf.mxu0
        %v2660 = vadd.f32 %v2634, %v2659
        %2661 = vdwg.mxu0
        %2662 = vmatpush.msra.mxu0 %v1579
        %2663 = vmatpush.msra.mxu0 %v1575
        %2664 = vmatpush.msra.mxu0 %v1571
        %2665 = vmatpush.msra.mxu0 %v1567
        %2666 = vmatpush.msra.mxu0 %v1563
        %2667 = vmatpush.msra.mxu0 %v1559
        %2668 = vmatpush.msra.mxu0 %v1555
        %2669 = vmatpush.msra.mxu0 %v1551
        %2670 = vmatpush.msra.mxu0 %v1547
        %2671 = vmatpush.msra.mxu0 %v1543
        %2672 = vmatpush.msra.mxu0 %v1539
        %2673 = vmatpush.msra.mxu0 %v1535
        %2674 = vmatpush.msra.mxu0 %v1531
        %2675 = vmatpush.msra.mxu0 %v1527
        %2676 = vmatpush.msra.mxu0 %v1523
        %2677 = vmatpush.msra.mxu0 %v1519
        %2678 = vmatmul.f32.gmra.mxu0 %v1415
        %v2679 = vpop.f32.mrf.mxu0
        %v2680 = vadd.f32 %v2033, %v2679
        %2681 = vmatmul.f32.gmra.mxu0 %v1417
        %v2682 = vpop.f32.mrf.mxu0
        %v2683 = vadd.f32 %v2033, %v2682
        %2684 = vmatmul.f32.gmra.mxu0 %v1419
        %v2685 = vpop.f32.mrf.mxu0
        %v2686 = vadd.f32 %v2033, %v2685
        %2687 = vdwg.mxu0
        %2688 = vmatpush.msra.mxu0 %v1643
        %2689 = vmatpush.msra.mxu0 %v1639
        %2690 = vmatpush.msra.mxu0 %v1635
        %2691 = vmatpush.msra.mxu0 %v1631
        %2692 = vmatpush.msra.mxu0 %v1627
        %2693 = vmatpush.msra.mxu0 %v1623
        %2694 = vmatpush.msra.mxu0 %v1619
        %2695 = vmatpush.msra.mxu0 %v1615
        %2696 = vmatpush.msra.mxu0 %v1611
        %2697 = vmatpush.msra.mxu0 %v1607
        %2698 = vmatpush.msra.mxu0 %v1603
        %2699 = vmatpush.msra.mxu0 %v1599
        %2700 = vmatpush.msra.mxu0 %v1595
        %2701 = vmatpush.msra.mxu0 %v1591
        %2702 = vmatpush.msra.mxu0 %v1587
        %2703 = vmatpush.msra.mxu0 %v1583
        %2704 = vmatmul.f32.gmra.mxu0 %v1416
        %v2705 = vpop.f32.mrf.mxu0
        %v2706 = vadd.f32 %v2680, %v2705
        %2707 = vmatmul.f32.gmra.mxu0 %v1418
        %v2708 = vpop.f32.mrf.mxu0
        %v2709 = vadd.f32 %v2683, %v2708
        %2710 = vmatmul.f32.gmra.mxu0 %v1420
        %v2711 = vpop.f32.mrf.mxu0
        %v2712 = vadd.f32 %v2686, %v2711
        %2713 = vdwg.mxu0
        %2714 = vmatpush.msra.mxu0 %v1707
        %2715 = vmatpush.msra.mxu0 %v1703
        %2716 = vmatpush.msra.mxu0 %v1699
        %2717 = vmatpush.msra.mxu0 %v1695
        %2718 = vmatpush.msra.mxu0 %v1691
        %2719 = vmatpush.msra.mxu0 %v1687
        %2720 = vmatpush.msra.mxu0 %v1683
        %2721 = vmatpush.msra.mxu0 %v1679
        %2722 = vmatpush.msra.mxu0 %v1675
        %2723 = vmatpush.msra.mxu0 %v1671
        %2724 = vmatpush.msra.mxu0 %v1667
        %2725 = vmatpush.msra.mxu0 %v1663
        %2726 = vmatpush.msra.mxu0 %v1659
        %2727 = vmatpush.msra.mxu0 %v1655
        %2728 = vmatpush.msra.mxu0 %v1651
        %2729 = vmatpush.msra.mxu0 %v1647
        %2730 = vmatmul.f32.gmra.mxu0 %v1448
        %v2731 = vpop.f32.mrf.mxu0
        %v2732 = vadd.f32 %v2706, %v2731
        %2733 = vmatmul.f32.gmra.mxu0 %v1453
        %v2734 = vpop.f32.mrf.mxu0
        %v2735 = vadd.f32 %v2709, %v2734
        %2736 = vmatmul.f32.gmra.mxu0 %v1457
        %v2737 = vpop.f32.mrf.mxu0
        %v2738 = vadd.f32 %v2712, %v2737
        %2739 = vdwg.mxu0
        %2740 = vmatpush.msra.mxu0 %v1771
        %2741 = vmatpush.msra.mxu0 %v1767
        %2742 = vmatpush.msra.mxu0 %v1763
        %2743 = vmatpush.msra.mxu0 %v1759
        %2744 = vmatpush.msra.mxu0 %v1755
        %2745 = vmatpush.msra.mxu0 %v1751
        %2746 = vmatpush.msra.mxu0 %v1747
        %2747 = vmatpush.msra.mxu0 %v1743
        %2748 = vmatpush.msra.mxu0 %v1739
        %2749 = vmatpush.msra.mxu0 %v1735
        %2750 = vmatpush.msra.mxu0 %v1731
        %2751 = vmatpush.msra.mxu0 %v1727
        %2752 = vmatpush.msra.mxu0 %v1723
        %2753 = vmatpush.msra.mxu0 %v1719
        %2754 = vmatpush.msra.mxu0 %v1715
        %2755 = vmatpush.msra.mxu0 %v1711
        %2756 = vmatmul.f32.gmra.mxu0 %v1451
        %v2757 = vpop.f32.mrf.mxu0
        %v2758 = vadd.f32 %v2732, %v2757
        %2759 = vmatmul.f32.gmra.mxu0 %v1455
        %v2760 = vpop.f32.mrf.mxu0
        %v2761 = vadd.f32 %v2735, %v2760
        %2762 = vmatmul.f32.gmra.mxu0 %v1459
        %v2763 = vpop.f32.mrf.mxu0
        %v2764 = vadd.f32 %v2738, %v2763
        %2765 = vdwg.mxu0
        %2766 = vmatpush.msra.mxu0 %v1835
        %2767 = vmatpush.msra.mxu0 %v1831
        %2768 = vmatpush.msra.mxu0 %v1827
        %2769 = vmatpush.msra.mxu0 %v1823
        %2770 = vmatpush.msra.mxu0 %v1819
        %2771 = vmatpush.msra.mxu0 %v1815
        %2772 = vmatpush.msra.mxu0 %v1811
        %2773 = vmatpush.msra.mxu0 %v1807
        %2774 = vmatpush.msra.mxu0 %v1803
        %2775 = vmatpush.msra.mxu0 %v1799
        %2776 = vmatpush.msra.mxu0 %v1795
        %2777 = vmatpush.msra.mxu0 %v1791
        %2778 = vmatpush.msra.mxu0 %v1787
        %2779 = vmatpush.msra.mxu0 %v1783
        %2780 = vmatpush.msra.mxu0 %v1779
        %2781 = vmatpush.msra.mxu0 %v1775
        %2782 = vmatmul.f32.gmra.mxu0 %v1473
        %v2783 = vpop.f32.mrf.mxu0
        %v2784 = vadd.f32 %v2758, %v2783
        %2785 = vmatmul.f32.gmra.mxu0 %v1478
        %v2786 = vpop.f32.mrf.mxu0
        %v2787 = vadd.f32 %v2761, %v2786
        %2788 = vmatmul.f32.gmra.mxu0 %v1482
        %v2789 = vpop.f32.mrf.mxu0
        %v2790 = vadd.f32 %v2764, %v2789
        %2791 = vdwg.mxu0
        %2792 = vmatpush.msra.mxu0 %v1899
        %2793 = vmatpush.msra.mxu0 %v1895
        %2794 = vmatpush.msra.mxu0 %v1891
        %2795 = vmatpush.msra.mxu0 %v1887
        %2796 = vmatpush.msra.mxu0 %v1883
        %2797 = vmatpush.msra.mxu0 %v1879
        %2798 = vmatpush.msra.mxu0 %v1875
        %2799 = vmatpush.msra.mxu0 %v1871
        %2800 = vmatpush.msra.mxu0 %v1867
        %2801 = vmatpush.msra.mxu0 %v1863
        %2802 = vmatpush.msra.mxu0 %v1859
        %2803 = vmatpush.msra.mxu0 %v1855
        %2804 = vmatpush.msra.mxu0 %v1851
        %2805 = vmatpush.msra.mxu0 %v1847
        %2806 = vmatpush.msra.mxu0 %v1843
        %2807 = vmatpush.msra.mxu0 %v1839
        %2808 = vmatmul.f32.gmra.mxu0 %v1476
        %v2809 = vpop.f32.mrf.mxu0
        %v2810 = vadd.f32 %v2784, %v2809
        %2811 = vmatmul.f32.gmra.mxu0 %v1480
        %v2812 = vpop.f32.mrf.mxu0
        %v2813 = vadd.f32 %v2787, %v2812
        %2814 = vmatmul.f32.gmra.mxu0 %v1484
        %v2815 = vpop.f32.mrf.mxu0
        %v2816 = vadd.f32 %v2790, %v2815
        %2817 = vdwg.mxu0
        %2818 = vmatpush.msra.mxu0 %v1963
        %2819 = vmatpush.msra.mxu0 %v1959
        %2820 = vmatpush.msra.mxu0 %v1955
        %2821 = vmatpush.msra.mxu0 %v1951
        %2822 = vmatpush.msra.mxu0 %v1947
        %2823 = vmatpush.msra.mxu0 %v1943
        %2824 = vmatpush.msra.mxu0 %v1939
        %2825 = vmatpush.msra.mxu0 %v1935
        %2826 = vmatpush.msra.mxu0 %v1931
        %2827 = vmatpush.msra.mxu0 %v1927
        %2828 = vmatpush.msra.mxu0 %v1923
        %2829 = vmatpush.msra.mxu0 %v1919
        %2830 = vmatpush.msra.mxu0 %v1915
        %2831 = vmatpush.msra.mxu0 %v1911
        %2832 = vmatpush.msra.mxu0 %v1907
        %2833 = vmatpush.msra.mxu0 %v1903
        %2834 = vmatmul.f32.gmra.mxu0 %v1498
        %v2835 = vpop.f32.mrf.mxu0
        %v2836 = vadd.f32 %v2810, %v2835
        %2837 = vmatmul.f32.gmra.mxu0 %v1503
        %v2838 = vpop.f32.mrf.mxu0
        %v2839 = vadd.f32 %v2813, %v2838
        %2840 = vmatmul.f32.gmra.mxu0 %v1507
        %v2841 = vpop.f32.mrf.mxu0
        %v2842 = vadd.f32 %v2816, %v2841
        %2843 = vdwg.mxu0
        %2844 = vmatpush.msra.mxu0 %v2027
        %2845 = vmatpush.msra.mxu0 %v2023
        %2846 = vmatpush.msra.mxu0 %v2019
        %2847 = vmatpush.msra.mxu0 %v2015
        %2848 = vmatpush.msra.mxu0 %v2011
        %2849 = vmatpush.msra.mxu0 %v2007
        %2850 = vmatpush.msra.mxu0 %v2003
        %2851 = vmatpush.msra.mxu0 %v1999
        %2852 = vmatpush.msra.mxu0 %v1995
        %2853 = vmatpush.msra.mxu0 %v1991
        %2854 = vmatpush.msra.mxu0 %v1987
        %2855 = vmatpush.msra.mxu0 %v1983
        %2856 = vmatpush.msra.mxu0 %v1979
        %2857 = vmatpush.msra.mxu0 %v1975
        %2858 = vmatpush.msra.mxu0 %v1971
        %2859 = vmatpush.msra.mxu0 %v1967
        %2860 = vmatmul.f32.gmra.mxu0 %v1501
        %v2861 = vpop.f32.mrf.mxu0
        %v2862 = vadd.f32 %v2836, %v2861
        %2863 = vmatmul.f32.gmra.mxu0 %v1505
        %v2864 = vpop.f32.mrf.mxu0
        %v2865 = vadd.f32 %v2839, %v2864
        %2866 = vmatmul.f32.gmra.mxu0 %v1509
        %v2867 = vpop.f32.mrf.mxu0
        %v2868 = vadd.f32 %v2842, %v2867
        %2869 = vdwg.mxu0
        %vm2870 = vcmp.ge.f32.partialorder %v2238, 0.0
        %vm2871 = vcmp.ge.f32.partialorder %v2446, 0.0
        %vm2872 = vcmp.ge.f32.partialorder %v2654, 0.0
        %vm2873 = vcmp.ge.f32.partialorder %v2862, 0.0
        %vm2874 = vcmp.ge.f32.partialorder %v2241, 0.0
        %vm2875 = vcmp.ge.f32.partialorder %v2449, 0.0
        %vm2876 = vcmp.ge.f32.partialorder %v2657, 0.0
        %vm2877 = vcmp.ge.f32.partialorder %v2865, 0.0
        %vm2878 = vcmp.ge.f32.partialorder %v2244, 0.0
        %vm2879 = vcmp.ge.f32.partialorder %v2452, 0.0
        %vm2880 = vcmp.ge.f32.partialorder %v2660, 0.0
        %vm2881 = vcmp.ge.f32.partialorder %v2868, 0.0
        %v2882 = vmul.f32 %v2238, 0.01
        %v2883 = vmul.f32 %v2446, 0.01
        %v2884 = vmul.f32 %v2654, 0.01
        %v2885 = vmul.f32 %v2862, 0.01
        %v2886 = vmul.f32 %v2241, 0.01
        %v2887 = vmul.f32 %v2449, 0.01
        %v2888 = vmul.f32 %v2657, 0.01
        %v2889 = vmul.f32 %v2865, 0.01
        %v2890 = vmul.f32 %v2244, 0.01
        %v2891 = vmul.f32 %v2452, 0.01
        %v2892 = vmul.f32 %v2660, 0.01
        %v2893 = vmul.f32 %v2868, 0.01
        %v2894 = vsel %vm2870, %v2238, %v2882
        %v2895 = vsel %vm2871, %v2446, %v2883
        %v2896 = vsel %vm2872, %v2654, %v2884
        %v2897 = vsel %vm2873, %v2862, %v2885
        %v2898 = vsel %vm2874, %v2241, %v2886
        %v2899 = vsel %vm2875, %v2449, %v2887
        %v2900 = vsel %vm2876, %v2657, %v2888
        %v2901 = vsel %vm2877, %v2865, %v2889
        %v2902 = vsel %vm2878, %v2244, %v2890
        %v2903 = vsel %vm2879, %v2452, %v2891
        %v2904 = vsel %vm2880, %v2660, %v2892
        %v2905 = vsel %vm2881, %v2868, %v2893
        %v2906 = vld [vmem:[#allocation14] sm:$0xff]
        %v2907 = vld [vmem:[#allocation14 + $0x8] sm:$0xff]
        %v2908 = vld [vmem:[#allocation14 + $0x10] sm:$0xff]
        %v2909 = vld [vmem:[#allocation14 + $0x18] sm:$0xff]
        %v2910 = vld [vmem:[#allocation14 + $0x20] sm:$0xff]
        %v2911 = vld [vmem:[#allocation14 + $0x28] sm:$0xff]
        %v2912 = vld [vmem:[#allocation14 + $0x30] sm:$0xff]
        %v2913 = vld [vmem:[#allocation14 + $0x38] sm:$0xff]
        %v2914 = vld [vmem:[#allocation14 + $0x40] sm:$0xff]
        %v2915 = vld [vmem:[#allocation14 + $0x48] sm:$0xff]
        %v2916 = vld [vmem:[#allocation14 + $0x50] sm:$0xff]
        %vm2917 = vcmask 785408
        %v2919 = vsel %vm2917, %v2906, 0
        %v2922 = vsel %vm2917, %v2907, 0
        %v2925 = vsel %vm2917, %v2908, 0
        %v2928 = vsel %vm2917, %v2909, 0
        %v2931 = vsel %vm2917, %v2910, 0
        %v2934 = vsel %vm2917, %v2911, 0
        %v2937 = vsel %vm2917, %v2912, 0
        %v2940 = vsel %vm2917, %v2913, 0
        %v2943 = vsel %vm2917, %v2914, 0
        %v2946 = vsel %vm2917, %v2915, 0
        %v2949 = vsel %vm2917, %v2916, 0
        %2951 = vmatpush.msra.mxu0 0.0
        %2952 = vmatpush.msra.mxu0 0.0
        %2953 = vmatpush.msra.mxu0 0.0
        %2954 = vmatpush.msra.mxu0 0.0
        %2955 = vmatpush.msra.mxu0 %v2905
        %2956 = vmatpush.msra.mxu0 %v2901
        %2957 = vmatpush.msra.mxu0 %v2897
        %2958 = vmatpush.msra.mxu0 %v2904
        %2959 = vmatpush.msra.mxu0 %v2900
        %2960 = vmatpush.msra.mxu0 %v2896
        %2961 = vmatpush.msra.mxu0 %v2903
        %2962 = vmatpush.msra.mxu0 %v2899
        %2963 = vmatpush.msra.mxu0 %v2895
        %2964 = vmatpush.msra.mxu0 %v2902
        %2965 = vmatpush.msra.mxu0 %v2898
        %2966 = vmatpush.msra.mxu0 %v2894
        %2967 = vmatmul.f32.gmra.mxu0 %v2919
        %v2968 = vpop.f32.mrf.mxu0
        %v2969 = vadd.f32 0.0, %v2968
        %2970 = vmatmul.f32.gmra.mxu0 %v2922
        %v2971 = vpop.f32.mrf.mxu0
        %v2972 = vadd.f32 0.0, %v2971
        %2973 = vmatmul.f32.gmra.mxu0 %v2925
        %v2974 = vpop.f32.mrf.mxu0
        %v2975 = vadd.f32 0.0, %v2974
        %2976 = vmatmul.f32.gmra.mxu0 %v2928
        %v2977 = vpop.f32.mrf.mxu0
        %v2978 = vadd.f32 0.0, %v2977
        %2979 = vmatmul.f32.gmra.mxu0 %v2931
        %v2980 = vpop.f32.mrf.mxu0
        %v2981 = vadd.f32 0.0, %v2980
        %2982 = vmatmul.f32.gmra.mxu0 %v2934
        %v2983 = vpop.f32.mrf.mxu0
        %v2984 = vadd.f32 0.0, %v2983
        %2985 = vmatmul.f32.gmra.mxu0 %v2937
        %v2986 = vpop.f32.mrf.mxu0
        %v2987 = vadd.f32 0.0, %v2986
        %2988 = vmatmul.f32.gmra.mxu0 %v2940
        %v2989 = vpop.f32.mrf.mxu0
        %v2990 = vadd.f32 0.0, %v2989
        %2991 = vmatmul.f32.gmra.mxu0 %v2943
        %v2992 = vpop.f32.mrf.mxu0
        %v2993 = vadd.f32 0.0, %v2992
        %2994 = vmatmul.f32.gmra.mxu0 %v2946
        %v2995 = vpop.f32.mrf.mxu0
        %v2996 = vadd.f32 0.0, %v2995
        %2997 = vmatmul.f32.gmra.mxu0 %v2949
        %v2998 = vpop.f32.mrf.mxu0
        %v2999 = vadd.f32 0.0, %v2998
        %3000 = vdwg.mxu0
        %3001 = vst [vmem:[#allocation3] sm:$0xff] %v2969
        %3002 = vst [vmem:[#allocation3 + $0x8] sm:$0xff] %v2972
        %3003 = vst [vmem:[#allocation3 + $0x10] sm:$0xff] %v2975
        %3004 = vst [vmem:[#allocation3 + $0x18] sm:$0xff] %v2978
        %3005 = vst [vmem:[#allocation3 + $0x20] sm:$0xff] %v2981
        %3006 = vst [vmem:[#allocation3 + $0x28] sm:$0xff] %v2984
        %3007 = vst [vmem:[#allocation3 + $0x30] sm:$0xff] %v2987
        %3008 = vst [vmem:[#allocation3 + $0x38] sm:$0xff] %v2990
        %3009 = vst [vmem:[#allocation3 + $0x40] sm:$0xff] %v2993
        %3010 = vst [vmem:[#allocation3 + $0x48] sm:$0xff] %v2996
        %3011 = vst [vmem:[#allocation3 + $0x50] sm:$0xff] %v2999
        %v3012 = vld [vmem:[#allocation3] sm:$0xff]
        %v3013 = vld [vmem:[#allocation3 + $0x8] sm:$0xff]
        %v3014 = vld [vmem:[#allocation3 + $0x10] sm:$0xff]
        %v3015 = vld [vmem:[#allocation3 + $0x18] sm:$0xff]
        %v3016 = vld [vmem:[#allocation3 + $0x20] sm:$0xff]
        %v3017 = vld [vmem:[#allocation3 + $0x28] sm:$0xff]
        %v3018 = vld [vmem:[#allocation3 + $0x30] sm:$0xff]
        %v3019 = vld [vmem:[#allocation3 + $0x38] sm:$0xff]
        %v3020 = vld [vmem:[#allocation3 + $0x40] sm:$0xff]
        %v3021 = vld [vmem:[#allocation3 + $0x1] sm:$0xff]
        %v3022 = vld [vmem:[#allocation3 + $0x9] sm:$0xff]
        %v3023 = vld [vmem:[#allocation3 + $0x11] sm:$0xff]
        %v3024 = vld [vmem:[#allocation3 + $0x19] sm:$0xff]
        %v3025 = vld [vmem:[#allocation3 + $0x21] sm:$0xff]
        %v3026 = vld [vmem:[#allocation3 + $0x29] sm:$0xff]
        %v3027 = vld [vmem:[#allocation3 + $0x31] sm:$0xff]
        %v3028 = vld [vmem:[#allocation3 + $0x39] sm:$0xff]
        %v3029 = vld [vmem:[#allocation3 + $0x41] sm:$0xff]
        %v3030 = vld [vmem:[#allocation3 + $0x49] sm:$0xff]
        %v3031 = vld [vmem:[#allocation3 + $0xa] sm:$0xff]
        %v3032 = vld [vmem:[#allocation3 + $0x12] sm:$0xff]
        %v3033 = vld [vmem:[#allocation3 + $0x1a] sm:$0xff]
        %v3034 = vld [vmem:[#allocation3 + $0x22] sm:$0xff]
        %v3035 = vld [vmem:[#allocation3 + $0x2a] sm:$0xff]
        %v3036 = vld [vmem:[#allocation3 + $0x32] sm:$0xff]
        %v3037 = vld [vmem:[#allocation3 + $0x3a] sm:$0xff]
        %v3038 = vld [vmem:[#allocation3 + $0x42] sm:$0xff]
        %v3039 = vld [vmem:[#allocation3 + $0x4a] sm:$0xff]
        %v3040 = vld [vmem:[#allocation16] sm:$0xff]
        %v3041 = vld [vmem:[#allocation16 + $0x8] sm:$0xff]
        %v3042 = vld [vmem:[#allocation16 + $0x10] sm:$0xff]
        %v3043 = vld [vmem:[#allocation16 + $0x18] sm:$0xff]
        %v3044 = vld [vmem:[#allocation16 + $0x20] sm:$0xff]
        %v3045 = vld [vmem:[#allocation16 + $0x28] sm:$0xff]
        %v3046 = vld [vmem:[#allocation16 + $0x30] sm:$0xff]
        %v3047 = vld [vmem:[#allocation16 + $0x38] sm:$0xff]
        %v3048 = vld [vmem:[#allocation16 + $0x40] sm:$0xff]
        %v3049 = vld [vmem:[#allocation16 + $0x48] sm:$0xff]
        %v3050 = vld [vmem:[#allocation16 + $0x50] sm:$0xff]
        %v3051 = vld [vmem:[#allocation16 + $0x58] sm:$0xff]
        %v3052 = vld [vmem:[#allocation16 + $0x60] sm:$0xff]
        %v3053 = vld [vmem:[#allocation16 + $0x68] sm:$0xff]
        %v3054 = vld [vmem:[#allocation16 + $0x70] sm:$0xff]
        %v3055 = vld [vmem:[#allocation16 + $0x78] sm:$0xff]
        %v3056 = vld [vmem:[#allocation16 + $0x80] sm:$0xff]
        %v3057 = vld [vmem:[#allocation16 + $0x88] sm:$0xff]
        %v3058 = vld [vmem:[#allocation16 + $0x90] sm:$0xff]
        %v3059 = vld [vmem:[#allocation16 + $0x98] sm:$0xff]
        %v3060 = vld [vmem:[#allocation16 + $0xa0] sm:$0xff]
        %v3061 = vld [vmem:[#allocation16 + $0xa8] sm:$0xff]
        %v3062 = vld [vmem:[#allocation16 + $0xb0] sm:$0xff]
        %v3063 = vld [vmem:[#allocation16 + $0xb8] sm:$0xff]
        %v3064 = vld [vmem:[#allocation16 + $0xc0] sm:$0xff]
        %v3065 = vld [vmem:[#allocation16 + $0xc8] sm:$0xff]
        %v3066 = vld [vmem:[#allocation16 + $0xd0] sm:$0xff]
        %v3067 = vld [vmem:[#allocation16 + $0xd8] sm:$0xff]
        %v3068 = vld [vmem:[#allocation16 + $0xe0] sm:$0xff]
        %v3069 = vld [vmem:[#allocation16 + $0xe8] sm:$0xff]
        %v3070 = vld [vmem:[#allocation16 + $0xf0] sm:$0xff]
        %v3071 = vld [vmem:[#allocation16 + $0xf8] sm:$0xff]
        %v3072 = vld [vmem:[#allocation16 + $0x100] sm:$0xff]
        %v3073 = vld [vmem:[#allocation16 + $0x108] sm:$0xff]
        %v3074 = vld [vmem:[#allocation16 + $0x110] sm:$0xff]
        %v3075 = vld [vmem:[#allocation16 + $0x118] sm:$0xff]
        %v3076 = vld [vmem:[#allocation16 + $0x120] sm:$0xff]
        %v3077 = vld [vmem:[#allocation16 + $0x128] sm:$0xff]
        %v3078 = vld [vmem:[#allocation16 + $0x130] sm:$0xff]
        %v3079 = vld [vmem:[#allocation16 + $0x138] sm:$0xff]
        %v3080 = vld [vmem:[#allocation16 + $0x140] sm:$0xff]
        %v3081 = vld [vmem:[#allocation16 + $0x148] sm:$0xff]
        %v3082 = vld [vmem:[#allocation16 + $0x150] sm:$0xff]
        %v3083 = vld [vmem:[#allocation16 + $0x158] sm:$0xff]
        %v3084 = vld [vmem:[#allocation16 + $0x160] sm:$0xff]
        %v3085 = vld [vmem:[#allocation16 + $0x168] sm:$0xff]
        %v3086 = vld [vmem:[#allocation16 + $0x170] sm:$0xff]
        %v3087 = vld [vmem:[#allocation16 + $0x178] sm:$0xff]
        %v3088 = vld [vmem:[#allocation16 + $0x180] sm:$0xff]
        %v3089 = vld [vmem:[#allocation16 + $0x188] sm:$0xff]
        %v3090 = vld [vmem:[#allocation16 + $0x190] sm:$0xff]
        %v3091 = vld [vmem:[#allocation16 + $0x198] sm:$0xff]
        %v3092 = vld [vmem:[#allocation16 + $0x1a0] sm:$0xff]
        %v3093 = vld [vmem:[#allocation16 + $0x1a8] sm:$0xff]
        %v3094 = vld [vmem:[#allocation16 + $0x1b0] sm:$0xff]
        %v3095 = vld [vmem:[#allocation16 + $0x1b8] sm:$0xff]
        %v3096 = vld [vmem:[#allocation16 + $0x1c0] sm:$0xff]
        %v3097 = vld [vmem:[#allocation16 + $0x1c8] sm:$0xff]
        %v3098 = vld [vmem:[#allocation16 + $0x1d0] sm:$0xff]
        %v3099 = vld [vmem:[#allocation16 + $0x1d8] sm:$0xff]
        %v3100 = vld [vmem:[#allocation16 + $0x1e0] sm:$0xff]
        %v3101 = vld [vmem:[#allocation16 + $0x1e8] sm:$0xff]
        %v3102 = vld [vmem:[#allocation16 + $0x1f0] sm:$0xff]
        %v3103 = vld [vmem:[#allocation16 + $0x1f8] sm:$0xff]
        %v3104 = vld [vmem:[#allocation16 + $0x200] sm:$0xff]
        %v3105 = vld [vmem:[#allocation16 + $0x208] sm:$0xff]
        %v3106 = vld [vmem:[#allocation16 + $0x210] sm:$0xff]
        %v3107 = vld [vmem:[#allocation16 + $0x218] sm:$0xff]
        %v3108 = vld [vmem:[#allocation16 + $0x220] sm:$0xff]
        %v3109 = vld [vmem:[#allocation16 + $0x228] sm:$0xff]
        %v3110 = vld [vmem:[#allocation16 + $0x230] sm:$0xff]
        %v3111 = vld [vmem:[#allocation16 + $0x238] sm:$0xff]
        %v3112 = vld [vmem:[#allocation16 + $0x240] sm:$0xff]
        %v3113 = vld [vmem:[#allocation16 + $0x248] sm:$0xff]
        %v3114 = vld [vmem:[#allocation16 + $0x250] sm:$0xff]
        %v3115 = vld [vmem:[#allocation16 + $0x258] sm:$0xff]
        %v3116 = vld [vmem:[#allocation16 + $0x260] sm:$0xff]
        %v3117 = vld [vmem:[#allocation16 + $0x268] sm:$0xff]
        %v3118 = vld [vmem:[#allocation16 + $0x270] sm:$0xff]
        %v3119 = vld [vmem:[#allocation16 + $0x278] sm:$0xff]
        %v3120 = vld [vmem:[#allocation16 + $0x280] sm:$0xff]
        %v3121 = vld [vmem:[#allocation16 + $0x288] sm:$0xff]
        %v3122 = vld [vmem:[#allocation16 + $0x290] sm:$0xff]
        %v3123 = vld [vmem:[#allocation16 + $0x298] sm:$0xff]
        %v3124 = vld [vmem:[#allocation16 + $0x2a0] sm:$0xff]
        %v3125 = vld [vmem:[#allocation16 + $0x2a8] sm:$0xff]
        %v3126 = vld [vmem:[#allocation16 + $0x2b0] sm:$0xff]
        %v3127 = vld [vmem:[#allocation16 + $0x2b8] sm:$0xff]
        %v3128 = vld [vmem:[#allocation16 + $0x2c0] sm:$0xff]
        %v3129 = vld [vmem:[#allocation16 + $0x2c8] sm:$0xff]
        %v3130 = vld [vmem:[#allocation16 + $0x2d0] sm:$0xff]
        %v3131 = vld [vmem:[#allocation16 + $0x2d8] sm:$0xff]
        %v3132 = vld [vmem:[#allocation16 + $0x2e0] sm:$0xff]
        %v3133 = vld [vmem:[#allocation16 + $0x2e8] sm:$0xff]
        %v3134 = vld [vmem:[#allocation16 + $0x2f0] sm:$0xff]
        %v3135 = vld [vmem:[#allocation16 + $0x2f8] sm:$0xff]
        %v3136 = vld [vmem:[#allocation16 + $0x300] sm:$0xff]
        %v3137 = vld [vmem:[#allocation16 + $0x308] sm:$0xff]
        %v3138 = vld [vmem:[#allocation16 + $0x310] sm:$0xff]
        %v3139 = vld [vmem:[#allocation16 + $0x318] sm:$0xff]
        %v3140 = vld [vmem:[#allocation16 + $0x320] sm:$0xff]
        %v3141 = vld [vmem:[#allocation16 + $0x328] sm:$0xff]
        %v3142 = vld [vmem:[#allocation16 + $0x330] sm:$0xff]
        %v3143 = vld [vmem:[#allocation16 + $0x338] sm:$0xff]
        %v3144 = vld [vmem:[#allocation16 + $0x340] sm:$0xff]
        %v3145 = vld [vmem:[#allocation16 + $0x348] sm:$0xff]
        %v3146 = vld [vmem:[#allocation16 + $0x350] sm:$0xff]
        %v3147 = vld [vmem:[#allocation16 + $0x358] sm:$0xff]
        %v3148 = vld [vmem:[#allocation16 + $0x360] sm:$0xff]
        %v3149 = vld [vmem:[#allocation16 + $0x368] sm:$0xff]
        %v3150 = vld [vmem:[#allocation16 + $0x370] sm:$0xff]
        %v3151 = vld [vmem:[#allocation16 + $0x378] sm:$0xff]
        %v3152 = vld [vmem:[#allocation16 + $0x380] sm:$0xff]
        %v3153 = vld [vmem:[#allocation16 + $0x388] sm:$0xff]
        %v3154 = vld [vmem:[#allocation16 + $0x390] sm:$0xff]
        %v3155 = vld [vmem:[#allocation16 + $0x398] sm:$0xff]
        %v3156 = vld [vmem:[#allocation16 + $0x3a0] sm:$0xff]
        %v3157 = vld [vmem:[#allocation16 + $0x3a8] sm:$0xff]
        %v3158 = vld [vmem:[#allocation16 + $0x3b0] sm:$0xff]
        %v3159 = vld [vmem:[#allocation16 + $0x3b8] sm:$0xff]
        %v3160 = vld [vmem:[#allocation16 + $0x3c0] sm:$0xff]
        %v3161 = vld [vmem:[#allocation16 + $0x3c8] sm:$0xff]
        %v3162 = vld [vmem:[#allocation16 + $0x3d0] sm:$0xff]
        %v3163 = vld [vmem:[#allocation16 + $0x3d8] sm:$0xff]
        %v3164 = vld [vmem:[#allocation16 + $0x3e0] sm:$0xff]
        %v3165 = vld [vmem:[#allocation16 + $0x3e8] sm:$0xff]
        %v3166 = vld [vmem:[#allocation16 + $0x3f0] sm:$0xff]
        %v3167 = vld [vmem:[#allocation16 + $0x3f8] sm:$0xff]
        %v3168 = vld [vmem:[#allocation17] sm:$0x3]
        %v3170 = vperm.slane %v3168, 0
        %v3171 = vperm.slane %v3168, 1
        %3174 = vmatpush.msra.mxu0 %v3070
        %3175 = vmatpush.msra.mxu0 %v3068
        %3176 = vmatpush.msra.mxu0 %v3066
        %3177 = vmatpush.msra.mxu0 %v3064
        %3178 = vmatpush.msra.mxu0 %v3062
        %3179 = vmatpush.msra.mxu0 %v3060
        %3180 = vmatpush.msra.mxu0 %v3058
        %3181 = vmatpush.msra.mxu0 %v3056
        %3182 = vmatpush.msra.mxu0 %v3054
        %3183 = vmatpush.msra.mxu0 %v3052
        %3184 = vmatpush.msra.mxu0 %v3050
        %3185 = vmatpush.msra.mxu0 %v3048
        %3186 = vmatpush.msra.mxu0 %v3046
        %3187 = vmatpush.msra.mxu0 %v3044
        %3188 = vmatpush.msra.mxu0 %v3042
        %3189 = vmatpush.msra.mxu0 %v3040
        %3190 = vmatmul.f32.gmra.mxu0 %v3012
        %v3191 = vpop.f32.mrf.mxu0
        %v3192 = vadd.f32 %v3170, %v3191
        %3193 = vmatmul.f32.gmra.mxu0 %v3013
        %v3194 = vpop.f32.mrf.mxu0
        %v3195 = vadd.f32 %v3170, %v3194
        %3196 = vmatmul.f32.gmra.mxu0 %v3014
        %v3197 = vpop.f32.mrf.mxu0
        %v3198 = vadd.f32 %v3170, %v3197
        %3199 = vmatmul.f32.gmra.mxu0 %v3015
        %v3200 = vpop.f32.mrf.mxu0
        %v3201 = vadd.f32 %v3170, %v3200
        %3202 = vmatmul.f32.gmra.mxu0 %v3016
        %v3203 = vpop.f32.mrf.mxu0
        %v3204 = vadd.f32 %v3170, %v3203
        %3205 = vmatmul.f32.gmra.mxu0 %v3017
        %v3206 = vpop.f32.mrf.mxu0
        %v3207 = vadd.f32 %v3170, %v3206
        %3208 = vmatmul.f32.gmra.mxu0 %v3018
        %v3209 = vpop.f32.mrf.mxu0
        %v3210 = vadd.f32 %v3170, %v3209
        %3211 = vmatmul.f32.gmra.mxu0 %v3019
        %v3212 = vpop.f32.mrf.mxu0
        %v3213 = vadd.f32 %v3170, %v3212
        %3214 = vmatmul.f32.gmra.mxu0 %v3020
        %v3215 = vpop.f32.mrf.mxu0
        %v3216 = vadd.f32 %v3170, %v3215
        %3217 = vdwg.mxu0
        %3218 = vmatpush.msra.mxu0 %v3102
        %3219 = vmatpush.msra.mxu0 %v3100
        %3220 = vmatpush.msra.mxu0 %v3098
        %3221 = vmatpush.msra.mxu0 %v3096
        %3222 = vmatpush.msra.mxu0 %v3094
        %3223 = vmatpush.msra.mxu0 %v3092
        %3224 = vmatpush.msra.mxu0 %v3090
        %3225 = vmatpush.msra.mxu0 %v3088
        %3226 = vmatpush.msra.mxu0 %v3086
        %3227 = vmatpush.msra.mxu0 %v3084
        %3228 = vmatpush.msra.mxu0 %v3082
        %3229 = vmatpush.msra.mxu0 %v3080
        %3230 = vmatpush.msra.mxu0 %v3078
        %3231 = vmatpush.msra.mxu0 %v3076
        %3232 = vmatpush.msra.mxu0 %v3074
        %3233 = vmatpush.msra.mxu0 %v3072
        %3234 = vmatmul.f32.gmra.mxu0 %v3021
        %v3235 = vpop.f32.mrf.mxu0
        %v3236 = vadd.f32 %v3192, %v3235
        %3237 = vmatmul.f32.gmra.mxu0 %v3022
        %v3238 = vpop.f32.mrf.mxu0
        %v3239 = vadd.f32 %v3195, %v3238
        %3240 = vmatmul.f32.gmra.mxu0 %v3023
        %v3241 = vpop.f32.mrf.mxu0
        %v3242 = vadd.f32 %v3198, %v3241
        %3243 = vmatmul.f32.gmra.mxu0 %v3024
        %v3244 = vpop.f32.mrf.mxu0
        %v3245 = vadd.f32 %v3201, %v3244
        %3246 = vmatmul.f32.gmra.mxu0 %v3025
        %v3247 = vpop.f32.mrf.mxu0
        %v3248 = vadd.f32 %v3204, %v3247
        %3249 = vmatmul.f32.gmra.mxu0 %v3026
        %v3250 = vpop.f32.mrf.mxu0
        %v3251 = vadd.f32 %v3207, %v3250
        %3252 = vmatmul.f32.gmra.mxu0 %v3027
        %v3253 = vpop.f32.mrf.mxu0
        %v3254 = vadd.f32 %v3210, %v3253
        %3255 = vmatmul.f32.gmra.mxu0 %v3028
        %v3256 = vpop.f32.mrf.mxu0
        %v3257 = vadd.f32 %v3213, %v3256
        %3258 = vmatmul.f32.gmra.mxu0 %v3029
        %v3259 = vpop.f32.mrf.mxu0
        %v3260 = vadd.f32 %v3216, %v3259
        %3261 = vdwg.mxu0
        %3262 = vmatpush.msra.mxu0 %v3134
        %3263 = vmatpush.msra.mxu0 %v3132
        %3264 = vmatpush.msra.mxu0 %v3130
        %3265 = vmatpush.msra.mxu0 %v3128
        %3266 = vmatpush.msra.mxu0 %v3126
        %3267 = vmatpush.msra.mxu0 %v3124
        %3268 = vmatpush.msra.mxu0 %v3122
        %3269 = vmatpush.msra.mxu0 %v3120
        %3270 = vmatpush.msra.mxu0 %v3118
        %3271 = vmatpush.msra.mxu0 %v3116
        %3272 = vmatpush.msra.mxu0 %v3114
        %3273 = vmatpush.msra.mxu0 %v3112
        %3274 = vmatpush.msra.mxu0 %v3110
        %3275 = vmatpush.msra.mxu0 %v3108
        %3276 = vmatpush.msra.mxu0 %v3106
        %3277 = vmatpush.msra.mxu0 %v3104
        %3278 = vmatmul.f32.gmra.mxu0 %v3022
        %v3279 = vpop.f32.mrf.mxu0
        %v3280 = vadd.f32 %v3236, %v3279
        %3281 = vmatmul.f32.gmra.mxu0 %v3023
        %v3282 = vpop.f32.mrf.mxu0
        %v3283 = vadd.f32 %v3239, %v3282
        %3284 = vmatmul.f32.gmra.mxu0 %v3024
        %v3285 = vpop.f32.mrf.mxu0
        %v3286 = vadd.f32 %v3242, %v3285
        %3287 = vmatmul.f32.gmra.mxu0 %v3025
        %v3288 = vpop.f32.mrf.mxu0
        %v3289 = vadd.f32 %v3245, %v3288
        %3290 = vmatmul.f32.gmra.mxu0 %v3026
        %v3291 = vpop.f32.mrf.mxu0
        %v3292 = vadd.f32 %v3248, %v3291
        %3293 = vmatmul.f32.gmra.mxu0 %v3027
        %v3294 = vpop.f32.mrf.mxu0
        %v3295 = vadd.f32 %v3251, %v3294
        %3296 = vmatmul.f32.gmra.mxu0 %v3028
        %v3297 = vpop.f32.mrf.mxu0
        %v3298 = vadd.f32 %v3254, %v3297
        %3299 = vmatmul.f32.gmra.mxu0 %v3029
        %v3300 = vpop.f32.mrf.mxu0
        %v3301 = vadd.f32 %v3257, %v3300
        %3302 = vmatmul.f32.gmra.mxu0 %v3030
        %v3303 = vpop.f32.mrf.mxu0
        %v3304 = vadd.f32 %v3260, %v3303
        %3305 = vdwg.mxu0
        %3306 = vmatpush.msra.mxu0 %v3166
        %3307 = vmatpush.msra.mxu0 %v3164
        %3308 = vmatpush.msra.mxu0 %v3162
        %3309 = vmatpush.msra.mxu0 %v3160
        %3310 = vmatpush.msra.mxu0 %v3158
        %3311 = vmatpush.msra.mxu0 %v3156
        %3312 = vmatpush.msra.mxu0 %v3154
        %3313 = vmatpush.msra.mxu0 %v3152
        %3314 = vmatpush.msra.mxu0 %v3150
        %3315 = vmatpush.msra.mxu0 %v3148
        %3316 = vmatpush.msra.mxu0 %v3146
        %3317 = vmatpush.msra.mxu0 %v3144
        %3318 = vmatpush.msra.mxu0 %v3142
        %3319 = vmatpush.msra.mxu0 %v3140
        %3320 = vmatpush.msra.mxu0 %v3138
        %3321 = vmatpush.msra.mxu0 %v3136
        %3322 = vmatmul.f32.gmra.mxu0 %v3031
        %v3323 = vpop.f32.mrf.mxu0
        %v3324 = vadd.f32 %v3280, %v3323
        %3325 = vmatmul.f32.gmra.mxu0 %v3032
        %v3326 = vpop.f32.mrf.mxu0
        %v3327 = vadd.f32 %v3283, %v3326
        %3328 = vmatmul.f32.gmra.mxu0 %v3033
        %v3329 = vpop.f32.mrf.mxu0
        %v3330 = vadd.f32 %v3286, %v3329
        %3331 = vmatmul.f32.gmra.mxu0 %v3034
        %v3332 = vpop.f32.mrf.mxu0
        %v3333 = vadd.f32 %v3289, %v3332
        %3334 = vmatmul.f32.gmra.mxu0 %v3035
        %v3335 = vpop.f32.mrf.mxu0
        %v3336 = vadd.f32 %v3292, %v3335
        %3337 = vmatmul.f32.gmra.mxu0 %v3036
        %v3338 = vpop.f32.mrf.mxu0
        %v3339 = vadd.f32 %v3295, %v3338
        %3340 = vmatmul.f32.gmra.mxu0 %v3037
        %v3341 = vpop.f32.mrf.mxu0
        %v3342 = vadd.f32 %v3298, %v3341
        %3343 = vmatmul.f32.gmra.mxu0 %v3038
        %v3344 = vpop.f32.mrf.mxu0
        %v3345 = vadd.f32 %v3301, %v3344
        %3346 = vmatmul.f32.gmra.mxu0 %v3039
        %v3347 = vpop.f32.mrf.mxu0
        %v3348 = vadd.f32 %v3304, %v3347
        %3349 = vdwg.mxu0
        %3350 = vmatpush.msra.mxu0 %v3071
        %3351 = vmatpush.msra.mxu0 %v3069
        %3352 = vmatpush.msra.mxu0 %v3067
        %3353 = vmatpush.msra.mxu0 %v3065
        %3354 = vmatpush.msra.mxu0 %v3063
        %3355 = vmatpush.msra.mxu0 %v3061
        %3356 = vmatpush.msra.mxu0 %v3059
        %3357 = vmatpush.msra.mxu0 %v3057
        %3358 = vmatpush.msra.mxu0 %v3055
        %3359 = vmatpush.msra.mxu0 %v3053
        %3360 = vmatpush.msra.mxu0 %v3051
        %3361 = vmatpush.msra.mxu0 %v3049
        %3362 = vmatpush.msra.mxu0 %v3047
        %3363 = vmatpush.msra.mxu0 %v3045
        %3364 = vmatpush.msra.mxu0 %v3043
        %3365 = vmatpush.msra.mxu0 %v3041
        %3366 = vmatmul.f32.gmra.mxu0 %v3012
        %v3367 = vpop.f32.mrf.mxu0
        %v3368 = vadd.f32 %v3171, %v3367
        %3369 = vmatmul.f32.gmra.mxu0 %v3013
        %v3370 = vpop.f32.mrf.mxu0
        %v3371 = vadd.f32 %v3171, %v3370
        %3372 = vmatmul.f32.gmra.mxu0 %v3014
        %v3373 = vpop.f32.mrf.mxu0
        %v3374 = vadd.f32 %v3171, %v3373
        %3375 = vmatmul.f32.gmra.mxu0 %v3015
        %v3376 = vpop.f32.mrf.mxu0
        %v3377 = vadd.f32 %v3171, %v3376
        %3378 = vmatmul.f32.gmra.mxu0 %v3016
        %v3379 = vpop.f32.mrf.mxu0
        %v3380 = vadd.f32 %v3171, %v3379
        %3381 = vmatmul.f32.gmra.mxu0 %v3017
        %v3382 = vpop.f32.mrf.mxu0
        %v3383 = vadd.f32 %v3171, %v3382
        %3384 = vmatmul.f32.gmra.mxu0 %v3018
        %v3385 = vpop.f32.mrf.mxu0
        %v3386 = vadd.f32 %v3171, %v3385
        %3387 = vmatmul.f32.gmra.mxu0 %v3019
        %v3388 = vpop.f32.mrf.mxu0
        %v3389 = vadd.f32 %v3171, %v3388
        %3390 = vmatmul.f32.gmra.mxu0 %v3020
        %v3391 = vpop.f32.mrf.mxu0
        %v3392 = vadd.f32 %v3171, %v3391
        %3393 = vdwg.mxu0
        %3394 = vmatpush.msra.mxu0 %v3103
        %3395 = vmatpush.msra.mxu0 %v3101
        %3396 = vmatpush.msra.mxu0 %v3099
        %3397 = vmatpush.msra.mxu0 %v3097
        %3398 = vmatpush.msra.mxu0 %v3095
        %3399 = vmatpush.msra.mxu0 %v3093
        %3400 = vmatpush.msra.mxu0 %v3091
        %3401 = vmatpush.msra.mxu0 %v3089
        %3402 = vmatpush.msra.mxu0 %v3087
        %3403 = vmatpush.msra.mxu0 %v3085
        %3404 = vmatpush.msra.mxu0 %v3083
        %3405 = vmatpush.msra.mxu0 %v3081
        %3406 = vmatpush.msra.mxu0 %v3079
        %3407 = vmatpush.msra.mxu0 %v3077
        %3408 = vmatpush.msra.mxu0 %v3075
        %3409 = vmatpush.msra.mxu0 %v3073
        %3410 = vmatmul.f32.gmra.mxu0 %v3021
        %v3411 = vpop.f32.mrf.mxu0
        %v3412 = vadd.f32 %v3368, %v3411
        %3413 = vmatmul.f32.gmra.mxu0 %v3022
        %v3414 = vpop.f32.mrf.mxu0
        %v3415 = vadd.f32 %v3371, %v3414
        %3416 = vmatmul.f32.gmra.mxu0 %v3023
        %v3417 = vpop.f32.mrf.mxu0
        %v3418 = vadd.f32 %v3374, %v3417
        %3419 = vmatmul.f32.gmra.mxu0 %v3024
        %v3420 = vpop.f32.mrf.mxu0
        %v3421 = vadd.f32 %v3377, %v3420
        %3422 = vmatmul.f32.gmra.mxu0 %v3025
        %v3423 = vpop.f32.mrf.mxu0
        %v3424 = vadd.f32 %v3380, %v3423
        %3425 = vmatmul.f32.gmra.mxu0 %v3026
        %v3426 = vpop.f32.mrf.mxu0
        %v3427 = vadd.f32 %v3383, %v3426
        %3428 = vmatmul.f32.gmra.mxu0 %v3027
        %v3429 = vpop.f32.mrf.mxu0
        %v3430 = vadd.f32 %v3386, %v3429
        %3431 = vmatmul.f32.gmra.mxu0 %v3028
        %v3432 = vpop.f32.mrf.mxu0
        %v3433 = vadd.f32 %v3389, %v3432
        %3434 = vmatmul.f32.gmra.mxu0 %v3029
        %v3435 = vpop.f32.mrf.mxu0
        %v3436 = vadd.f32 %v3392, %v3435
        %3437 = vdwg.mxu0
        %3438 = vmatpush.msra.mxu0 %v3135
        %3439 = vmatpush.msra.mxu0 %v3133
        %3440 = vmatpush.msra.mxu0 %v3131
        %3441 = vmatpush.msra.mxu0 %v3129
        %3442 = vmatpush.msra.mxu0 %v3127
        %3443 = vmatpush.msra.mxu0 %v3125
        %3444 = vmatpush.msra.mxu0 %v3123
        %3445 = vmatpush.msra.mxu0 %v3121
        %3446 = vmatpush.msra.mxu0 %v3119
        %3447 = vmatpush.msra.mxu0 %v3117
        %3448 = vmatpush.msra.mxu0 %v3115
        %3449 = vmatpush.msra.mxu0 %v3113
        %3450 = vmatpush.msra.mxu0 %v3111
        %3451 = vmatpush.msra.mxu0 %v3109
        %3452 = vmatpush.msra.mxu0 %v3107
        %3453 = vmatpush.msra.mxu0 %v3105
        %3454 = vmatmul.f32.gmra.mxu0 %v3022
        %v3455 = vpop.f32.mrf.mxu0
        %v3456 = vadd.f32 %v3412, %v3455
        %3457 = vmatmul.f32.gmra.mxu0 %v3023
        %v3458 = vpop.f32.mrf.mxu0
        %v3459 = vadd.f32 %v3415, %v3458
        %3460 = vmatmul.f32.gmra.mxu0 %v3024
        %v3461 = vpop.f32.mrf.mxu0
        %v3462 = vadd.f32 %v3418, %v3461
        %3463 = vmatmul.f32.gmra.mxu0 %v3025
        %v3464 = vpop.f32.mrf.mxu0
        %v3465 = vadd.f32 %v3421, %v3464
        %3466 = vmatmul.f32.gmra.mxu0 %v3026
        %v3467 = vpop.f32.mrf.mxu0
        %v3468 = vadd.f32 %v3424, %v3467
        %3469 = vmatmul.f32.gmra.mxu0 %v3027
        %v3470 = vpop.f32.mrf.mxu0
        %v3471 = vadd.f32 %v3427, %v3470
        %3472 = vmatmul.f32.gmra.mxu0 %v3028
        %v3473 = vpop.f32.mrf.mxu0
        %v3474 = vadd.f32 %v3430, %v3473
        %3475 = vmatmul.f32.gmra.mxu0 %v3029
        %v3476 = vpop.f32.mrf.mxu0
        %v3477 = vadd.f32 %v3433, %v3476
        %3478 = vmatmul.f32.gmra.mxu0 %v3030
        %v3479 = vpop.f32.mrf.mxu0
        %v3480 = vadd.f32 %v3436, %v3479
        %3481 = vdwg.mxu0
        %3482 = vmatpush.msra.mxu0 %v3167
        %3483 = vmatpush.msra.mxu0 %v3165
        %3484 = vmatpush.msra.mxu0 %v3163
        %3485 = vmatpush.msra.mxu0 %v3161
        %3486 = vmatpush.msra.mxu0 %v3159
        %3487 = vmatpush.msra.mxu0 %v3157
        %3488 = vmatpush.msra.mxu0 %v3155
        %3489 = vmatpush.msra.mxu0 %v3153
        %3490 = vmatpush.msra.mxu0 %v3151
        %3491 = vmatpush.msra.mxu0 %v3149
        %3492 = vmatpush.msra.mxu0 %v3147
        %3493 = vmatpush.msra.mxu0 %v3145
        %3494 = vmatpush.msra.mxu0 %v3143
        %3495 = vmatpush.msra.mxu0 %v3141
        %3496 = vmatpush.msra.mxu0 %v3139
        %3497 = vmatpush.msra.mxu0 %v3137
        %3498 = vmatmul.f32.gmra.mxu0 %v3031
        %v3499 = vpop.f32.mrf.mxu0
        %v3500 = vadd.f32 %v3456, %v3499
        %3501 = vmatmul.f32.gmra.mxu0 %v3032
        %v3502 = vpop.f32.mrf.mxu0
        %v3503 = vadd.f32 %v3459, %v3502
        %3504 = vmatmul.f32.gmra.mxu0 %v3033
        %v3505 = vpop.f32.mrf.mxu0
        %v3506 = vadd.f32 %v3462, %v3505
        %3507 = vmatmul.f32.gmra.mxu0 %v3034
        %v3508 = vpop.f32.mrf.mxu0
        %v3509 = vadd.f32 %v3465, %v3508
        %3510 = vmatmul.f32.gmra.mxu0 %v3035
        %v3511 = vpop.f32.mrf.mxu0
        %v3512 = vadd.f32 %v3468, %v3511
        %3513 = vmatmul.f32.gmra.mxu0 %v3036
        %v3514 = vpop.f32.mrf.mxu0
        %v3515 = vadd.f32 %v3471, %v3514
        %3516 = vmatmul.f32.gmra.mxu0 %v3037
        %v3517 = vpop.f32.mrf.mxu0
        %v3518 = vadd.f32 %v3474, %v3517
        %3519 = vmatmul.f32.gmra.mxu0 %v3038
        %v3520 = vpop.f32.mrf.mxu0
        %v3521 = vadd.f32 %v3477, %v3520
        %3522 = vmatmul.f32.gmra.mxu0 %v3039
        %v3523 = vpop.f32.mrf.mxu0
        %v3524 = vadd.f32 %v3480, %v3523
        %3525 = vdwg.mxu0
        %vm3526 = vcmp.ge.f32.partialorder %v3324, 0.0
        %vm3527 = vcmp.ge.f32.partialorder %v3500, 0.0
        %vm3528 = vcmp.ge.f32.partialorder %v3327, 0.0
        %vm3529 = vcmp.ge.f32.partialorder %v3503, 0.0
        %vm3530 = vcmp.ge.f32.partialorder %v3330, 0.0
        %vm3531 = vcmp.ge.f32.partialorder %v3506, 0.0
        %vm3532 = vcmp.ge.f32.partialorder %v3333, 0.0
        %vm3533 = vcmp.ge.f32.partialorder %v3509, 0.0
        %vm3534 = vcmp.ge.f32.partialorder %v3336, 0.0
        %vm3535 = vcmp.ge.f32.partialorder %v3512, 0.0
        %vm3536 = vcmp.ge.f32.partialorder %v3339, 0.0
        %vm3537 = vcmp.ge.f32.partialorder %v3515, 0.0
        %vm3538 = vcmp.ge.f32.partialorder %v3342, 0.0
        %vm3539 = vcmp.ge.f32.partialorder %v3518, 0.0
        %vm3540 = vcmp.ge.f32.partialorder %v3345, 0.0
        %vm3541 = vcmp.ge.f32.partialorder %v3521, 0.0
        %vm3542 = vcmp.ge.f32.partialorder %v3348, 0.0
        %vm3543 = vcmp.ge.f32.partialorder %v3524, 0.0
        %v3544 = vmul.f32 %v3324, 0.01
        %v3545 = vmul.f32 %v3500, 0.01
        %v3546 = vmul.f32 %v3327, 0.01
        %v3547 = vmul.f32 %v3503, 0.01
        %v3548 = vmul.f32 %v3330, 0.01
        %v3549 = vmul.f32 %v3506, 0.01
        %v3550 = vmul.f32 %v3333, 0.01
        %v3551 = vmul.f32 %v3509, 0.01
        %v3552 = vmul.f32 %v3336, 0.01
        %v3553 = vmul.f32 %v3512, 0.01
        %v3554 = vmul.f32 %v3339, 0.01
        %v3555 = vmul.f32 %v3515, 0.01
        %v3556 = vmul.f32 %v3342, 0.01
        %v3557 = vmul.f32 %v3518, 0.01
        %v3558 = vmul.f32 %v3345, 0.01
        %v3559 = vmul.f32 %v3521, 0.01
        %v3560 = vmul.f32 %v3348, 0.01
        %v3561 = vmul.f32 %v3524, 0.01
        %v3562 = vsel %vm3526, %v3324, %v3544
        %v3563 = vsel %vm3527, %v3500, %v3545
        %v3564 = vsel %vm3528, %v3327, %v3546
        %v3565 = vsel %vm3529, %v3503, %v3547
        %v3566 = vsel %vm3530, %v3330, %v3548
        %v3567 = vsel %vm3531, %v3506, %v3549
        %v3568 = vsel %vm3532, %v3333, %v3550
        %v3569 = vsel %vm3533, %v3509, %v3551
        %v3570 = vsel %vm3534, %v3336, %v3552
        %v3571 = vsel %vm3535, %v3512, %v3553
        %v3572 = vsel %vm3536, %v3339, %v3554
        %v3573 = vsel %vm3537, %v3515, %v3555
        %v3574 = vsel %vm3538, %v3342, %v3556
        %v3575 = vsel %vm3539, %v3518, %v3557
        %v3576 = vsel %vm3540, %v3345, %v3558
        %v3577 = vsel %vm3541, %v3521, %v3559
        %v3578 = vsel %vm3542, %v3348, %v3560
        %v3579 = vsel %vm3543, %v3524, %v3561
        %v3580 = vld [vmem:[%s8] sm:$0xff]
        %v3581 = vld [vmem:[%s8 + $0x8] sm:$0xff]
        %v3582 = vld [vmem:[%s8 + $0x10] sm:$0xff]
        %v3583 = vld [vmem:[%s8 + $0x18] sm:$0xff]
        %v3584 = vld [vmem:[%s8 + $0x20] sm:$0xff]
        %v3585 = vld [vmem:[%s8 + $0x28] sm:$0xff]
        %v3586 = vld [vmem:[%s8 + $0x30] sm:$0xff]
        %v3587 = vld [vmem:[%s8 + $0x38] sm:$0xff]
        %v3588 = vld [vmem:[%s8 + $0x40] sm:$0xff]
        %v3589 = vld [vmem:[%s8 + $0x48] sm:$0xff]
        %v3590 = vld [vmem:[%s8 + $0x50] sm:$0xff]
        %v3591 = vld [vmem:[%s8 + $0x58] sm:$0xff]
        %v3592 = vld [vmem:[%s8 + $0x60] sm:$0xff]
        %v3593 = vld [vmem:[%s8 + $0x68] sm:$0xff]
        %v3594 = vld [vmem:[%s8 + $0x70] sm:$0xff]
        %v3595 = vld [vmem:[%s8 + $0x78] sm:$0xff]
        %v3596 = vld [vmem:[%s8 + $0x80] sm:$0xff]
        %v3597 = vld [vmem:[%s8 + $0x88] sm:$0xff]
        %v3598 = vld [vmem:[%s8 + $0x90] sm:$0xff]
        %v3599 = vld [vmem:[%s8 + $0x98] sm:$0xff]
        %v3600 = vld [vmem:[%s8 + $0xa0] sm:$0xff]
        %v3601 = vld [vmem:[%s8 + $0xa8] sm:$0xff]
        %v3602 = vld [vmem:[%s8 + $0xb0] sm:$0xff]
        %v3603 = vld [vmem:[%s8 + $0xb8] sm:$0xff]
        %v3604 = vld [vmem:[%s8 + $0xc0] sm:$0xff]
        %v3605 = vld [vmem:[%s8 + $0xc8] sm:$0xff]
        %v3606 = vld [vmem:[%s8 + $0xd0] sm:$0xff]
        %v3607 = vld [vmem:[%s8 + $0xd8] sm:$0xff]
        %v3608 = vld [vmem:[%s8 + $0xe0] sm:$0xff]
        %v3609 = vld [vmem:[%s8 + $0xe8] sm:$0xff]
        %v3610 = vld [vmem:[%s8 + $0xf0] sm:$0xff]
        %v3611 = vld [vmem:[%s8 + $0xf8] sm:$0xff]
        %v3612 = vld [vmem:[%s8 + $0x100] sm:$0xff]
        %v3613 = vld [vmem:[%s8 + $0x108] sm:$0xff]
        %v3614 = vld [vmem:[%s8 + $0x110] sm:$0xff]
        %v3615 = vld [vmem:[%s8 + $0x118] sm:$0xff]
        %v3616 = vld [vmem:[%s8 + $0x120] sm:$0xff]
        %v3617 = vld [vmem:[%s8 + $0x128] sm:$0xff]
        %v3618 = vld [vmem:[%s8 + $0x130] sm:$0xff]
        %v3619 = vld [vmem:[%s8 + $0x138] sm:$0xff]
        %v3620 = vld [vmem:[%s8 + $0x140] sm:$0xff]
        %v3621 = vld [vmem:[%s8 + $0x148] sm:$0xff]
        %v3622 = vld [vmem:[%s8 + $0x150] sm:$0xff]
        %v3623 = vld [vmem:[%s8 + $0x158] sm:$0xff]
        %v3624 = vld [vmem:[%s8 + $0x160] sm:$0xff]
        %v3625 = vld [vmem:[%s8 + $0x168] sm:$0xff]
        %v3626 = vld [vmem:[%s8 + $0x170] sm:$0xff]
        %v3627 = vld [vmem:[%s8 + $0x178] sm:$0xff]
        %v3628 = vld [vmem:[%s8 + $0x180] sm:$0xff]
        %v3629 = vld [vmem:[%s8 + $0x188] sm:$0xff]
        %v3630 = vld [vmem:[%s8 + $0x190] sm:$0xff]
        %v3631 = vld [vmem:[%s8 + $0x198] sm:$0xff]
        %v3632 = vld [vmem:[%s8 + $0x1a0] sm:$0xff]
        %v3633 = vld [vmem:[%s8 + $0x1a8] sm:$0xff]
        %v3634 = vld [vmem:[%s8 + $0x1b0] sm:$0xff]
        %v3635 = vld [vmem:[%s8 + $0x1b8] sm:$0xff]
        %v3636 = vld [vmem:[%s8 + $0x1c0] sm:$0xff]
        %v3637 = vld [vmem:[%s8 + $0x1c8] sm:$0xff]
        %v3638 = vld [vmem:[%s8 + $0x1d0] sm:$0xff]
        %v3639 = vld [vmem:[%s8 + $0x1d8] sm:$0xff]
        %v3640 = vld [vmem:[%s8 + $0x1e0] sm:$0xff]
        %v3641 = vld [vmem:[%s8 + $0x1e8] sm:$0xff]
        %v3642 = vld [vmem:[%s8 + $0x1f0] sm:$0xff]
        %v3643 = vld [vmem:[%s8 + $0x1f8] sm:$0xff]
        %v3644 = vld [vmem:[%s8 + $0x200] sm:$0xff]
        %v3645 = vld [vmem:[%s8 + $0x208] sm:$0xff]
        %v3646 = vld [vmem:[%s8 + $0x210] sm:$0xff]
        %v3647 = vld [vmem:[%s8 + $0x218] sm:$0xff]
        %v3648 = vld [vmem:[%s8 + $0x220] sm:$0xff]
        %v3649 = vld [vmem:[%s8 + $0x228] sm:$0xff]
        %v3650 = vld [vmem:[%s8 + $0x230] sm:$0xff]
        %v3651 = vld [vmem:[%s8 + $0x238] sm:$0xff]
        %v3652 = vld [vmem:[%s8 + $0x240] sm:$0xff]
        %v3653 = vld [vmem:[%s8 + $0x248] sm:$0xff]
        %v3654 = vld [vmem:[%s8 + $0x250] sm:$0xff]
        %v3655 = vld [vmem:[%s8 + $0x258] sm:$0xff]
        %v3656 = vld [vmem:[%s8 + $0x260] sm:$0xff]
        %v3657 = vld [vmem:[%s8 + $0x268] sm:$0xff]
        %v3658 = vld [vmem:[%s8 + $0x270] sm:$0xff]
        %v3659 = vld [vmem:[%s8 + $0x278] sm:$0xff]
        %v3660 = vld [vmem:[%s8 + $0x280] sm:$0xff]
        %v3661 = vld [vmem:[%s8 + $0x288] sm:$0xff]
        %v3662 = vld [vmem:[%s8 + $0x290] sm:$0xff]
        %v3663 = vld [vmem:[%s8 + $0x298] sm:$0xff]
        %v3664 = vld [vmem:[%s8 + $0x2a0] sm:$0xff]
        %v3665 = vld [vmem:[%s8 + $0x2a8] sm:$0xff]
        %v3666 = vld [vmem:[%s8 + $0x2b0] sm:$0xff]
        %v3667 = vld [vmem:[%s8 + $0x2b8] sm:$0xff]
        %v3668 = vld [vmem:[%s8 + $0x2c0] sm:$0xff]
        %v3669 = vld [vmem:[%s8 + $0x2c8] sm:$0xff]
        %v3670 = vld [vmem:[%s8 + $0x2d0] sm:$0xff]
        %v3671 = vld [vmem:[%s8 + $0x2d8] sm:$0xff]
        %v3672 = vld [vmem:[%s8 + $0x2e0] sm:$0xff]
        %v3673 = vld [vmem:[%s8 + $0x2e8] sm:$0xff]
        %v3674 = vld [vmem:[%s8 + $0x2f0] sm:$0xff]
        %v3675 = vld [vmem:[%s8 + $0x2f8] sm:$0xff]
        %v3676 = vld [vmem:[%s8 + $0x300] sm:$0xff]
        %v3677 = vld [vmem:[%s8 + $0x308] sm:$0xff]
        %v3678 = vld [vmem:[%s8 + $0x310] sm:$0xff]
        %v3679 = vld [vmem:[%s8 + $0x318] sm:$0xff]
        %v3680 = vld [vmem:[%s8 + $0x320] sm:$0xff]
        %v3681 = vld [vmem:[%s8 + $0x328] sm:$0xff]
        %v3682 = vld [vmem:[%s8 + $0x330] sm:$0xff]
        %v3683 = vld [vmem:[%s8 + $0x338] sm:$0xff]
        %v3684 = vld [vmem:[%s8 + $0x340] sm:$0xff]
        %v3685 = vld [vmem:[%s8 + $0x348] sm:$0xff]
        %v3686 = vld [vmem:[%s8 + $0x350] sm:$0xff]
        %v3687 = vld [vmem:[%s8 + $0x358] sm:$0xff]
        %v3688 = vld [vmem:[%s8 + $0x360] sm:$0xff]
        %v3689 = vld [vmem:[%s8 + $0x368] sm:$0xff]
        %v3690 = vld [vmem:[%s8 + $0x370] sm:$0xff]
        %v3691 = vld [vmem:[%s8 + $0x378] sm:$0xff]
        %v3692 = vld [vmem:[%s8 + $0x380] sm:$0xff]
        %v3693 = vld [vmem:[%s8 + $0x388] sm:$0xff]
        %v3694 = vld [vmem:[%s8 + $0x390] sm:$0xff]
        %v3695 = vld [vmem:[%s8 + $0x398] sm:$0xff]
        %v3696 = vld [vmem:[%s8 + $0x3a0] sm:$0xff]
        %v3697 = vld [vmem:[%s8 + $0x3a8] sm:$0xff]
        %v3698 = vld [vmem:[%s8 + $0x3b0] sm:$0xff]
        %v3699 = vld [vmem:[%s8 + $0x3b8] sm:$0xff]
        %v3700 = vld [vmem:[%s8 + $0x3c0] sm:$0xff]
        %v3701 = vld [vmem:[%s8 + $0x3c8] sm:$0xff]
        %v3702 = vld [vmem:[%s8 + $0x3d0] sm:$0xff]
        %3712 = vrot.lane.b32.xlu0 %v3562, 64
        %v3713 = vpop.permute.xlu0 %3712
        %3714 = vrot.lane.b32.xlu0 %v3564, 64
        %v3715 = vpop.permute.xlu0 %3714
        %3716 = vrot.lane.b32.xlu0 %v3566, 64
        %v3717 = vpop.permute.xlu0 %3716
        %3718 = vrot.lane.b32.xlu0 %v3568, 64
        %v3719 = vpop.permute.xlu0 %3718
        %3720 = vrot.lane.b32.xlu0 %v3570, 64
        %v3721 = vpop.permute.xlu0 %3720
        %3722 = vrot.lane.b32.xlu0 %v3572, 64
        %v3723 = vpop.permute.xlu0 %3722
        %3724 = vrot.lane.b32.xlu0 %v3574, 64
        %v3725 = vpop.permute.xlu0 %3724
        %3726 = vrot.lane.b32.xlu0 %v3576, 64
        %v3727 = vpop.permute.xlu0 %3726
        %3728 = vrot.lane.b32.xlu0 %v3578, 64
        %v3729 = vpop.permute.xlu0 %3728
        %3748 = vrot.lane.b32.xlu0 %v3563, 64
        %v3749 = vpop.permute.xlu0 %3748
        %3750 = vrot.lane.b32.xlu0 %v3565, 64
        %v3751 = vpop.permute.xlu0 %3750
        %3752 = vrot.lane.b32.xlu0 %v3567, 64
        %v3753 = vpop.permute.xlu0 %3752
        %3754 = vrot.lane.b32.xlu0 %v3569, 64
        %v3755 = vpop.permute.xlu0 %3754
        %3756 = vrot.lane.b32.xlu0 %v3571, 64
        %v3757 = vpop.permute.xlu0 %3756
        %3758 = vrot.lane.b32.xlu0 %v3573, 64
        %v3759 = vpop.permute.xlu0 %3758
        %3760 = vrot.lane.b32.xlu0 %v3575, 64
        %v3761 = vpop.permute.xlu0 %3760
        %3762 = vrot.lane.b32.xlu0 %v3577, 64
        %v3763 = vpop.permute.xlu0 %3762
        %3764 = vrot.lane.b32.xlu0 %v3579, 64
        %v3765 = vpop.permute.xlu0 %3764
        %vm3775 = vcmask 261120
        %v3777 = vsel %vm3775, %v3582, 0
        %v3780 = vsel %vm3775, %v3585, 0
        %v3783 = vsel %vm3775, %v3588, 0
        %v3786 = vsel %vm3775, %v3591, 0
        %v3789 = vsel %vm3775, %v3594, 0
        %v3792 = vsel %vm3775, %v3597, 0
        %v3795 = vsel %vm3775, %v3600, 0
        %v3798 = vsel %vm3775, %v3603, 0
        %v3801 = vsel %vm3775, %v3606, 0
        %v3804 = vsel %vm3775, %v3609, 0
        %v3807 = vsel %vm3775, %v3612, 0
        %v3810 = vsel %vm3775, %v3615, 0
        %v3813 = vsel %vm3775, %v3618, 0
        %v3816 = vsel %vm3775, %v3621, 0
        %v3819 = vsel %vm3775, %v3624, 0
        %v3822 = vsel %vm3775, %v3627, 0
        %v3825 = vsel %vm3775, %v3630, 0
        %v3828 = vsel %vm3775, %v3633, 0
        %v3831 = vsel %vm3775, %v3636, 0
        %v3834 = vsel %vm3775, %v3639, 0
        %v3837 = vsel %vm3775, %v3642, 0
        %v3840 = vsel %vm3775, %v3645, 0
        %v3843 = vsel %vm3775, %v3648, 0
        %v3846 = vsel %vm3775, %v3651, 0
        %v3849 = vsel %vm3775, %v3654, 0
        %v3852 = vsel %vm3775, %v3657, 0
        %v3855 = vsel %vm3775, %v3660, 0
        %v3858 = vsel %vm3775, %v3663, 0
        %v3861 = vsel %vm3775, %v3666, 0
        %v3864 = vsel %vm3775, %v3669, 0
        %v3867 = vsel %vm3775, %v3672, 0
        %v3870 = vsel %vm3775, %v3675, 0
        %v3873 = vsel %vm3775, %v3678, 0
        %v3876 = vsel %vm3775, %v3681, 0
        %v3879 = vsel %vm3775, %v3684, 0
        %v3882 = vsel %vm3775, %v3687, 0
        %v3885 = vsel %vm3775, %v3690, 0
        %v3888 = vsel %vm3775, %v3693, 0
        %v3891 = vsel %vm3775, %v3696, 0
        %v3894 = vsel %vm3775, %v3699, 0
        %v3897 = vsel %vm3775, %v3702, 0
        %3899 = vmatpush.msra.mxu0 %v3725
        %3900 = vmatpush.msra.mxu0 %v3723
        %3901 = vmatpush.msra.mxu0 %v3721
        %3902 = vmatpush.msra.mxu0 %v3719
        %3903 = vmatpush.msra.mxu0 %v3717
        %3904 = vmatpush.msra.mxu0 %v3715
        %3905 = vmatpush.msra.mxu0 %v3713
        %3906 = vmatpush.msra.mxu0 %v3578
        %3907 = vmatpush.msra.mxu0 %v3576
        %3908 = vmatpush.msra.mxu0 %v3574
        %3909 = vmatpush.msra.mxu0 %v3572
        %3910 = vmatpush.msra.mxu0 %v3570
        %3911 = vmatpush.msra.mxu0 %v3568
        %3912 = vmatpush.msra.mxu0 %v3566
        %3913 = vmatpush.msra.mxu0 %v3564
        %3914 = vmatpush.msra.mxu0 %v3562
        %3915 = vmatmul.f32.gmra.mxu0 %v3580
        %v3916 = vpop.f32.mrf.mxu0
        %v3917 = vadd.f32 0.0, %v3916
        %3918 = vmatmul.f32.gmra.mxu0 %v3583
        %v3919 = vpop.f32.mrf.mxu0
        %v3920 = vadd.f32 0.0, %v3919
        %3921 = vmatmul.f32.gmra.mxu0 %v3586
        %v3922 = vpop.f32.mrf.mxu0
        %v3923 = vadd.f32 0.0, %v3922
        %3924 = vmatmul.f32.gmra.mxu0 %v3589
        %v3925 = vpop.f32.mrf.mxu0
        %v3926 = vadd.f32 0.0, %v3925
        %3927 = vmatmul.f32.gmra.mxu0 %v3592
        %v3928 = vpop.f32.mrf.mxu0
        %v3929 = vadd.f32 0.0, %v3928
        %3930 = vmatmul.f32.gmra.mxu0 %v3595
        %v3931 = vpop.f32.mrf.mxu0
        %v3932 = vadd.f32 0.0, %v3931
        %3933 = vmatmul.f32.gmra.mxu0 %v3598
        %v3934 = vpop.f32.mrf.mxu0
        %v3935 = vadd.f32 0.0, %v3934
        %3936 = vmatmul.f32.gmra.mxu0 %v3601
        %v3937 = vpop.f32.mrf.mxu0
        %v3938 = vadd.f32 0.0, %v3937
        %3939 = vmatmul.f32.gmra.mxu0 %v3604
        %v3940 = vpop.f32.mrf.mxu0
        %v3941 = vadd.f32 0.0, %v3940
        %3942 = vmatmul.f32.gmra.mxu0 %v3607
        %v3943 = vpop.f32.mrf.mxu0
        %v3944 = vadd.f32 0.0, %v3943
        %3945 = vmatmul.f32.gmra.mxu0 %v3610
        %v3946 = vpop.f32.mrf.mxu0
        %v3947 = vadd.f32 0.0, %v3946
        %3948 = vmatmul.f32.gmra.mxu0 %v3613
        %v3949 = vpop.f32.mrf.mxu0
        %v3950 = vadd.f32 0.0, %v3949
        %3951 = vmatmul.f32.gmra.mxu0 %v3616
        %v3952 = vpop.f32.mrf.mxu0
        %v3953 = vadd.f32 0.0, %v3952
        %3954 = vmatmul.f32.gmra.mxu0 %v3619
        %v3955 = vpop.f32.mrf.mxu0
        %v3956 = vadd.f32 0.0, %v3955
        %3957 = vmatmul.f32.gmra.mxu0 %v3622
        %v3958 = vpop.f32.mrf.mxu0
        %v3959 = vadd.f32 0.0, %v3958
        %3960 = vmatmul.f32.gmra.mxu0 %v3625
        %v3961 = vpop.f32.mrf.mxu0
        %v3962 = vadd.f32 0.0, %v3961
        %3963 = vmatmul.f32.gmra.mxu0 %v3628
        %v3964 = vpop.f32.mrf.mxu0
        %v3965 = vadd.f32 0.0, %v3964
        %3966 = vmatmul.f32.gmra.mxu0 %v3631
        %v3967 = vpop.f32.mrf.mxu0
        %v3968 = vadd.f32 0.0, %v3967
        %3969 = vmatmul.f32.gmra.mxu0 %v3634
        %v3970 = vpop.f32.mrf.mxu0
        %v3971 = vadd.f32 0.0, %v3970
        %3972 = vmatmul.f32.gmra.mxu0 %v3637
        %v3973 = vpop.f32.mrf.mxu0
        %v3974 = vadd.f32 0.0, %v3973
        %3975 = vmatmul.f32.gmra.mxu0 %v3640
        %v3976 = vpop.f32.mrf.mxu0
        %v3977 = vadd.f32 0.0, %v3976
        %3978 = vmatmul.f32.gmra.mxu0 %v3643
        %v3979 = vpop.f32.mrf.mxu0
        %v3980 = vadd.f32 0.0, %v3979
        %3981 = vmatmul.f32.gmra.mxu0 %v3646
        %v3982 = vpop.f32.mrf.mxu0
        %v3983 = vadd.f32 0.0, %v3982
        %3984 = vmatmul.f32.gmra.mxu0 %v3649
        %v3985 = vpop.f32.mrf.mxu0
        %v3986 = vadd.f32 0.0, %v3985
        %3987 = vmatmul.f32.gmra.mxu0 %v3652
        %v3988 = vpop.f32.mrf.mxu0
        %v3989 = vadd.f32 0.0, %v3988
        %3990 = vmatmul.f32.gmra.mxu0 %v3655
        %v3991 = vpop.f32.mrf.mxu0
        %v3992 = vadd.f32 0.0, %v3991
        %3993 = vmatmul.f32.gmra.mxu0 %v3658
        %v3994 = vpop.f32.mrf.mxu0
        %v3995 = vadd.f32 0.0, %v3994
        %3996 = vmatmul.f32.gmra.mxu0 %v3661
        %v3997 = vpop.f32.mrf.mxu0
        %v3998 = vadd.f32 0.0, %v3997
        %3999 = vmatmul.f32.gmra.mxu0 %v3664
        %v4000 = vpop.f32.mrf.mxu0
        %v4001 = vadd.f32 0.0, %v4000
        %4002 = vmatmul.f32.gmra.mxu0 %v3667
        %v4003 = vpop.f32.mrf.mxu0
        %v4004 = vadd.f32 0.0, %v4003
        %4005 = vmatmul.f32.gmra.mxu0 %v3670
        %v4006 = vpop.f32.mrf.mxu0
        %v4007 = vadd.f32 0.0, %v4006
        %4008 = vmatmul.f32.gmra.mxu0 %v3673
        %v4009 = vpop.f32.mrf.mxu0
        %v4010 = vadd.f32 0.0, %v4009
        %4011 = vmatmul.f32.gmra.mxu0 %v3676
        %v4012 = vpop.f32.mrf.mxu0
        %v4013 = vadd.f32 0.0, %v4012
        %4014 = vmatmul.f32.gmra.mxu0 %v3679
        %v4015 = vpop.f32.mrf.mxu0
        %v4016 = vadd.f32 0.0, %v4015
        %4017 = vmatmul.f32.gmra.mxu0 %v3682
        %v4018 = vpop.f32.mrf.mxu0
        %v4019 = vadd.f32 0.0, %v4018
        %4020 = vmatmul.f32.gmra.mxu0 %v3685
        %v4021 = vpop.f32.mrf.mxu0
        %v4022 = vadd.f32 0.0, %v4021
        %4023 = vmatmul.f32.gmra.mxu0 %v3688
        %v4024 = vpop.f32.mrf.mxu0
        %v4025 = vadd.f32 0.0, %v4024
        %4026 = vmatmul.f32.gmra.mxu0 %v3691
        %v4027 = vpop.f32.mrf.mxu0
        %v4028 = vadd.f32 0.0, %v4027
        %4029 = vmatmul.f32.gmra.mxu0 %v3694
        %v4030 = vpop.f32.mrf.mxu0
        %v4031 = vadd.f32 0.0, %v4030
        %4032 = vmatmul.f32.gmra.mxu0 %v3697
        %v4033 = vpop.f32.mrf.mxu0
        %v4034 = vadd.f32 0.0, %v4033
        %4035 = vmatmul.f32.gmra.mxu0 %v3700
        %v4036 = vpop.f32.mrf.mxu0
        %v4037 = vadd.f32 0.0, %v4036
        %4038 = vdwg.mxu0
        %4039 = vmatpush.msra.mxu0 %v3757
        %4040 = vmatpush.msra.mxu0 %v3755
        %4041 = vmatpush.msra.mxu0 %v3753
        %4042 = vmatpush.msra.mxu0 %v3751
        %4043 = vmatpush.msra.mxu0 %v3749
        %4044 = vmatpush.msra.mxu0 %v3579
        %4045 = vmatpush.msra.mxu0 %v3577
        %4046 = vmatpush.msra.mxu0 %v3575
        %4047 = vmatpush.msra.mxu0 %v3573
        %4048 = vmatpush.msra.mxu0 %v3571
        %4049 = vmatpush.msra.mxu0 %v3569
        %4050 = vmatpush.msra.mxu0 %v3567
        %4051 = vmatpush.msra.mxu0 %v3565
        %4052 = vmatpush.msra.mxu0 %v3563
        %4053 = vmatpush.msra.mxu0 %v3729
        %4054 = vmatpush.msra.mxu0 %v3727
        %4055 = vmatmul.f32.gmra.mxu0 %v3581
        %v4056 = vpop.f32.mrf.mxu0
        %v4057 = vadd.f32 %v3917, %v4056
        %4058 = vmatmul.f32.gmra.mxu0 %v3584
        %v4059 = vpop.f32.mrf.mxu0
        %v4060 = vadd.f32 %v3920, %v4059
        %4061 = vmatmul.f32.gmra.mxu0 %v3587
        %v4062 = vpop.f32.mrf.mxu0
        %v4063 = vadd.f32 %v3923, %v4062
        %4064 = vmatmul.f32.gmra.mxu0 %v3590
        %v4065 = vpop.f32.mrf.mxu0
        %v4066 = vadd.f32 %v3926, %v4065
        %4067 = vmatmul.f32.gmra.mxu0 %v3593
        %v4068 = vpop.f32.mrf.mxu0
        %v4069 = vadd.f32 %v3929, %v4068
        %4070 = vmatmul.f32.gmra.mxu0 %v3596
        %v4071 = vpop.f32.mrf.mxu0
        %v4072 = vadd.f32 %v3932, %v4071
        %4073 = vmatmul.f32.gmra.mxu0 %v3599
        %v4074 = vpop.f32.mrf.mxu0
        %v4075 = vadd.f32 %v3935, %v4074
        %4076 = vmatmul.f32.gmra.mxu0 %v3602
        %v4077 = vpop.f32.mrf.mxu0
        %v4078 = vadd.f32 %v3938, %v4077
        %4079 = vmatmul.f32.gmra.mxu0 %v3605
        %v4080 = vpop.f32.mrf.mxu0
        %v4081 = vadd.f32 %v3941, %v4080
        %4082 = vmatmul.f32.gmra.mxu0 %v3608
        %v4083 = vpop.f32.mrf.mxu0
        %v4084 = vadd.f32 %v3944, %v4083
        %4085 = vmatmul.f32.gmra.mxu0 %v3611
        %v4086 = vpop.f32.mrf.mxu0
        %v4087 = vadd.f32 %v3947, %v4086
        %4088 = vmatmul.f32.gmra.mxu0 %v3614
        %v4089 = vpop.f32.mrf.mxu0
        %v4090 = vadd.f32 %v3950, %v4089
        %4091 = vmatmul.f32.gmra.mxu0 %v3617
        %v4092 = vpop.f32.mrf.mxu0
        %v4093 = vadd.f32 %v3953, %v4092
        %4094 = vmatmul.f32.gmra.mxu0 %v3620
        %v4095 = vpop.f32.mrf.mxu0
        %v4096 = vadd.f32 %v3956, %v4095
        %4097 = vmatmul.f32.gmra.mxu0 %v3623
        %v4098 = vpop.f32.mrf.mxu0
        %v4099 = vadd.f32 %v3959, %v4098
        %4100 = vmatmul.f32.gmra.mxu0 %v3626
        %v4101 = vpop.f32.mrf.mxu0
        %v4102 = vadd.f32 %v3962, %v4101
        %4103 = vmatmul.f32.gmra.mxu0 %v3629
        %v4104 = vpop.f32.mrf.mxu0
        %v4105 = vadd.f32 %v3965, %v4104
        %4106 = vmatmul.f32.gmra.mxu0 %v3632
        %v4107 = vpop.f32.mrf.mxu0
        %v4108 = vadd.f32 %v3968, %v4107
        %4109 = vmatmul.f32.gmra.mxu0 %v3635
        %v4110 = vpop.f32.mrf.mxu0
        %v4111 = vadd.f32 %v3971, %v4110
        %4112 = vmatmul.f32.gmra.mxu0 %v3638
        %v4113 = vpop.f32.mrf.mxu0
        %v4114 = vadd.f32 %v3974, %v4113
        %4115 = vmatmul.f32.gmra.mxu0 %v3641
        %v4116 = vpop.f32.mrf.mxu0
        %v4117 = vadd.f32 %v3977, %v4116
        %4118 = vmatmul.f32.gmra.mxu0 %v3644
        %v4119 = vpop.f32.mrf.mxu0
        %v4120 = vadd.f32 %v3980, %v4119
        %4121 = vmatmul.f32.gmra.mxu0 %v3647
        %v4122 = vpop.f32.mrf.mxu0
        %v4123 = vadd.f32 %v3983, %v4122
        %4124 = vmatmul.f32.gmra.mxu0 %v3650
        %v4125 = vpop.f32.mrf.mxu0
        %v4126 = vadd.f32 %v3986, %v4125
        %4127 = vmatmul.f32.gmra.mxu0 %v3653
        %v4128 = vpop.f32.mrf.mxu0
        %v4129 = vadd.f32 %v3989, %v4128
        %4130 = vmatmul.f32.gmra.mxu0 %v3656
        %v4131 = vpop.f32.mrf.mxu0
        %v4132 = vadd.f32 %v3992, %v4131
        %4133 = vmatmul.f32.gmra.mxu0 %v3659
        %v4134 = vpop.f32.mrf.mxu0
        %v4135 = vadd.f32 %v3995, %v4134
        %4136 = vmatmul.f32.gmra.mxu0 %v3662
        %v4137 = vpop.f32.mrf.mxu0
        %v4138 = vadd.f32 %v3998, %v4137
        %4139 = vmatmul.f32.gmra.mxu0 %v3665
        %v4140 = vpop.f32.mrf.mxu0
        %v4141 = vadd.f32 %v4001, %v4140
        %4142 = vmatmul.f32.gmra.mxu0 %v3668
        %v4143 = vpop.f32.mrf.mxu0
        %v4144 = vadd.f32 %v4004, %v4143
        %4145 = vmatmul.f32.gmra.mxu0 %v3671
        %v4146 = vpop.f32.mrf.mxu0
        %v4147 = vadd.f32 %v4007, %v4146
        %4148 = vmatmul.f32.gmra.mxu0 %v3674
        %v4149 = vpop.f32.mrf.mxu0
        %v4150 = vadd.f32 %v4010, %v4149
        %4151 = vmatmul.f32.gmra.mxu0 %v3677
        %v4152 = vpop.f32.mrf.mxu0
        %v4153 = vadd.f32 %v4013, %v4152
        %4154 = vmatmul.f32.gmra.mxu0 %v3680
        %v4155 = vpop.f32.mrf.mxu0
        %v4156 = vadd.f32 %v4016, %v4155
        %4157 = vmatmul.f32.gmra.mxu0 %v3683
        %v4158 = vpop.f32.mrf.mxu0
        %v4159 = vadd.f32 %v4019, %v4158
        %4160 = vmatmul.f32.gmra.mxu0 %v3686
        %v4161 = vpop.f32.mrf.mxu0
        %v4162 = vadd.f32 %v4022, %v4161
        %4163 = vmatmul.f32.gmra.mxu0 %v3689
        %v4164 = vpop.f32.mrf.mxu0
        %v4165 = vadd.f32 %v4025, %v4164
        %4166 = vmatmul.f32.gmra.mxu0 %v3692
        %v4167 = vpop.f32.mrf.mxu0
        %v4168 = vadd.f32 %v4028, %v4167
        %4169 = vmatmul.f32.gmra.mxu0 %v3695
        %v4170 = vpop.f32.mrf.mxu0
        %v4171 = vadd.f32 %v4031, %v4170
        %4172 = vmatmul.f32.gmra.mxu0 %v3698
        %v4173 = vpop.f32.mrf.mxu0
        %v4174 = vadd.f32 %v4034, %v4173
        %4175 = vmatmul.f32.gmra.mxu0 %v3701
        %v4176 = vpop.f32.mrf.mxu0
        %v4177 = vadd.f32 %v4037, %v4176
        %4178 = vdwg.mxu0
        %4179 = vmatpush.msra.mxu0 0.0
        %4180 = vmatpush.msra.mxu0 0.0
        %4181 = vmatpush.msra.mxu0 0.0
        %4182 = vmatpush.msra.mxu0 0.0
        %4183 = vmatpush.msra.mxu0 0.0
        %4184 = vmatpush.msra.mxu0 0.0
        %4185 = vmatpush.msra.mxu0 0.0
        %4186 = vmatpush.msra.mxu0 0.0
        %4187 = vmatpush.msra.mxu0 0.0
        %4188 = vmatpush.msra.mxu0 0.0
        %4189 = vmatpush.msra.mxu0 0.0
        %4190 = vmatpush.msra.mxu0 0.0
        %4191 = vmatpush.msra.mxu0 %v3765
        %4192 = vmatpush.msra.mxu0 %v3763
        %4193 = vmatpush.msra.mxu0 %v3761
        %4194 = vmatpush.msra.mxu0 %v3759
        %4195 = vmatmul.f32.gmra.mxu0 %v3777
        %v4196 = vpop.f32.mrf.mxu0
        %v4197 = vadd.f32 %v4057, %v4196
        %4198 = vmatmul.f32.gmra.mxu0 %v3780
        %v4199 = vpop.f32.mrf.mxu0
        %v4200 = vadd.f32 %v4060, %v4199
        %4201 = vmatmul.f32.gmra.mxu0 %v3783
        %v4202 = vpop.f32.mrf.mxu0
        %v4203 = vadd.f32 %v4063, %v4202
        %4204 = vmatmul.f32.gmra.mxu0 %v3786
        %v4205 = vpop.f32.mrf.mxu0
        %v4206 = vadd.f32 %v4066, %v4205
        %4207 = vmatmul.f32.gmra.mxu0 %v3789
        %v4208 = vpop.f32.mrf.mxu0
        %v4209 = vadd.f32 %v4069, %v4208
        %4210 = vmatmul.f32.gmra.mxu0 %v3792
        %v4211 = vpop.f32.mrf.mxu0
        %v4212 = vadd.f32 %v4072, %v4211
        %4213 = vmatmul.f32.gmra.mxu0 %v3795
        %v4214 = vpop.f32.mrf.mxu0
        %v4215 = vadd.f32 %v4075, %v4214
        %4216 = vmatmul.f32.gmra.mxu0 %v3798
        %v4217 = vpop.f32.mrf.mxu0
        %v4218 = vadd.f32 %v4078, %v4217
        %4219 = vmatmul.f32.gmra.mxu0 %v3801
        %v4220 = vpop.f32.mrf.mxu0
        %v4221 = vadd.f32 %v4081, %v4220
        %4222 = vmatmul.f32.gmra.mxu0 %v3804
        %v4223 = vpop.f32.mrf.mxu0
        %v4224 = vadd.f32 %v4084, %v4223
        %4225 = vmatmul.f32.gmra.mxu0 %v3807
        %v4226 = vpop.f32.mrf.mxu0
        %v4227 = vadd.f32 %v4087, %v4226
        %4228 = vmatmul.f32.gmra.mxu0 %v3810
        %v4229 = vpop.f32.mrf.mxu0
        %v4230 = vadd.f32 %v4090, %v4229
        %4231 = vmatmul.f32.gmra.mxu0 %v3813
        %v4232 = vpop.f32.mrf.mxu0
        %v4233 = vadd.f32 %v4093, %v4232
        %4234 = vmatmul.f32.gmra.mxu0 %v3816
        %v4235 = vpop.f32.mrf.mxu0
        %v4236 = vadd.f32 %v4096, %v4235
        %4237 = vmatmul.f32.gmra.mxu0 %v3819
        %v4238 = vpop.f32.mrf.mxu0
        %v4239 = vadd.f32 %v4099, %v4238
        %4240 = vmatmul.f32.gmra.mxu0 %v3822
        %v4241 = vpop.f32.mrf.mxu0
        %v4242 = vadd.f32 %v4102, %v4241
        %4243 = vmatmul.f32.gmra.mxu0 %v3825
        %v4244 = vpop.f32.mrf.mxu0
        %v4245 = vadd.f32 %v4105, %v4244
        %4246 = vmatmul.f32.gmra.mxu0 %v3828
        %v4247 = vpop.f32.mrf.mxu0
        %v4248 = vadd.f32 %v4108, %v4247
        %4249 = vmatmul.f32.gmra.mxu0 %v3831
        %v4250 = vpop.f32.mrf.mxu0
        %v4251 = vadd.f32 %v4111, %v4250
        %4252 = vmatmul.f32.gmra.mxu0 %v3834
        %v4253 = vpop.f32.mrf.mxu0
        %v4254 = vadd.f32 %v4114, %v4253
        %4255 = vmatmul.f32.gmra.mxu0 %v3837
        %v4256 = vpop.f32.mrf.mxu0
        %v4257 = vadd.f32 %v4117, %v4256
        %4258 = vmatmul.f32.gmra.mxu0 %v3840
        %v4259 = vpop.f32.mrf.mxu0
        %v4260 = vadd.f32 %v4120, %v4259
        %4261 = vmatmul.f32.gmra.mxu0 %v3843
        %v4262 = vpop.f32.mrf.mxu0
        %v4263 = vadd.f32 %v4123, %v4262
        %4264 = vmatmul.f32.gmra.mxu0 %v3846
        %v4265 = vpop.f32.mrf.mxu0
        %v4266 = vadd.f32 %v4126, %v4265
        %4267 = vmatmul.f32.gmra.mxu0 %v3849
        %v4268 = vpop.f32.mrf.mxu0
        %v4269 = vadd.f32 %v4129, %v4268
        %4270 = vmatmul.f32.gmra.mxu0 %v3852
        %v4271 = vpop.f32.mrf.mxu0
        %v4272 = vadd.f32 %v4132, %v4271
        %4273 = vmatmul.f32.gmra.mxu0 %v3855
        %v4274 = vpop.f32.mrf.mxu0
        %v4275 = vadd.f32 %v4135, %v4274
        %4276 = vmatmul.f32.gmra.mxu0 %v3858
        %v4277 = vpop.f32.mrf.mxu0
        %v4278 = vadd.f32 %v4138, %v4277
        %4279 = vmatmul.f32.gmra.mxu0 %v3861
        %v4280 = vpop.f32.mrf.mxu0
        %v4281 = vadd.f32 %v4141, %v4280
        %4282 = vmatmul.f32.gmra.mxu0 %v3864
        %v4283 = vpop.f32.mrf.mxu0
        %v4284 = vadd.f32 %v4144, %v4283
        %4285 = vmatmul.f32.gmra.mxu0 %v3867
        %v4286 = vpop.f32.mrf.mxu0
        %v4287 = vadd.f32 %v4147, %v4286
        %4288 = vmatmul.f32.gmra.mxu0 %v3870
        %v4289 = vpop.f32.mrf.mxu0
        %v4290 = vadd.f32 %v4150, %v4289
        %4291 = vmatmul.f32.gmra.mxu0 %v3873
        %v4292 = vpop.f32.mrf.mxu0
        %v4293 = vadd.f32 %v4153, %v4292
        %4294 = vmatmul.f32.gmra.mxu0 %v3876
        %v4295 = vpop.f32.mrf.mxu0
        %v4296 = vadd.f32 %v4156, %v4295
        %4297 = vmatmul.f32.gmra.mxu0 %v3879
        %v4298 = vpop.f32.mrf.mxu0
        %v4299 = vadd.f32 %v4159, %v4298
        %4300 = vmatmul.f32.gmra.mxu0 %v3882
        %v4301 = vpop.f32.mrf.mxu0
        %v4302 = vadd.f32 %v4162, %v4301
        %4303 = vmatmul.f32.gmra.mxu0 %v3885
        %v4304 = vpop.f32.mrf.mxu0
        %v4305 = vadd.f32 %v4165, %v4304
        %4306 = vmatmul.f32.gmra.mxu0 %v3888
        %v4307 = vpop.f32.mrf.mxu0
        %v4308 = vadd.f32 %v4168, %v4307
        %4309 = vmatmul.f32.gmra.mxu0 %v3891
        %v4310 = vpop.f32.mrf.mxu0
        %v4311 = vadd.f32 %v4171, %v4310
        %4312 = vmatmul.f32.gmra.mxu0 %v3894
        %v4313 = vpop.f32.mrf.mxu0
        %v4314 = vadd.f32 %v4174, %v4313
        %4315 = vmatmul.f32.gmra.mxu0 %v3897
        %v4316 = vpop.f32.mrf.mxu0
        %v4317 = vadd.f32 %v4177, %v4316
        %4318 = vdwg.mxu0
        %vm4319 = vcmask 523264
        %4320 = vst.msk [vmem:[#allocation4] sm:$0xff] %vm4319, %v4197
        %4321 = vst.msk [vmem:[#allocation4 + $0x8] sm:$0xff] %vm4319, %v4200
        %4322 = vst.msk [vmem:[#allocation4 + $0x10] sm:$0xff] %vm4319, %v4203
        %4323 = vst.msk [vmem:[#allocation4 + $0x18] sm:$0xff] %vm4319, %v4206
        %4324 = vst.msk [vmem:[#allocation4 + $0x20] sm:$0xff] %vm4319, %v4209
        %4325 = vst.msk [vmem:[#allocation4 + $0x28] sm:$0xff] %vm4319, %v4212
        %4326 = vst.msk [vmem:[#allocation4 + $0x30] sm:$0xff] %vm4319, %v4215
        %4327 = vst.msk [vmem:[#allocation4 + $0x38] sm:$0xff] %vm4319, %v4218
        %4328 = vst.msk [vmem:[#allocation4 + $0x40] sm:$0xff] %vm4319, %v4221
        %4329 = vst.msk [vmem:[#allocation4 + $0x48] sm:$0xff] %vm4319, %v4224
        %4330 = vst.msk [vmem:[#allocation4 + $0x50] sm:$0xff] %vm4319, %v4227
        %4331 = vst.msk [vmem:[#allocation4 + $0x58] sm:$0xff] %vm4319, %v4230
        %4332 = vst.msk [vmem:[#allocation4 + $0x60] sm:$0xff] %vm4319, %v4233
        %4333 = vst.msk [vmem:[#allocation4 + $0x68] sm:$0xff] %vm4319, %v4236
        %4334 = vst.msk [vmem:[#allocation4 + $0x70] sm:$0xff] %vm4319, %v4239
        %4335 = vst.msk [vmem:[#allocation4 + $0x78] sm:$0xff] %vm4319, %v4242
        %4336 = vst.msk [vmem:[#allocation4 + $0x80] sm:$0xff] %vm4319, %v4245
        %4337 = vst.msk [vmem:[#allocation4 + $0x88] sm:$0xff] %vm4319, %v4248
        %4338 = vst.msk [vmem:[#allocation4 + $0x90] sm:$0xff] %vm4319, %v4251
        %4339 = vst.msk [vmem:[#allocation4 + $0x98] sm:$0xff] %vm4319, %v4254
        %4340 = vst.msk [vmem:[#allocation4 + $0xa0] sm:$0xff] %vm4319, %v4257
        %4341 = vst.msk [vmem:[#allocation4 + $0xa8] sm:$0xff] %vm4319, %v4260
        %4342 = vst.msk [vmem:[#allocation4 + $0xb0] sm:$0xff] %vm4319, %v4263
        %4343 = vst.msk [vmem:[#allocation4 + $0xb8] sm:$0xff] %vm4319, %v4266
        %4344 = vst.msk [vmem:[#allocation4 + $0xc0] sm:$0xff] %vm4319, %v4269
        %4345 = vst.msk [vmem:[#allocation4 + $0xc8] sm:$0xff] %vm4319, %v4272
        %4346 = vst.msk [vmem:[#allocation4 + $0xd0] sm:$0xff] %vm4319, %v4275
        %4347 = vst.msk [vmem:[#allocation4 + $0xd8] sm:$0xff] %vm4319, %v4278
        %4348 = vst.msk [vmem:[#allocation4 + $0xe0] sm:$0xff] %vm4319, %v4281
        %4349 = vst.msk [vmem:[#allocation4 + $0xe8] sm:$0xff] %vm4319, %v4284
        %4350 = vst.msk [vmem:[#allocation4 + $0xf0] sm:$0xff] %vm4319, %v4287
        %4351 = vst.msk [vmem:[#allocation4 + $0xf8] sm:$0xff] %vm4319, %v4290
        %4352 = vst.msk [vmem:[#allocation4 + $0x100] sm:$0xff] %vm4319, %v4293
        %4353 = vst.msk [vmem:[#allocation4 + $0x108] sm:$0xff] %vm4319, %v4296
        %4354 = vst.msk [vmem:[#allocation4 + $0x110] sm:$0xff] %vm4319, %v4299
        %4355 = vst.msk [vmem:[#allocation4 + $0x118] sm:$0xff] %vm4319, %v4302
        %4356 = vst.msk [vmem:[#allocation4 + $0x120] sm:$0xff] %vm4319, %v4305
        %4357 = vst.msk [vmem:[#allocation4 + $0x128] sm:$0xff] %vm4319, %v4308
        %4358 = vst.msk [vmem:[#allocation4 + $0x130] sm:$0xff] %vm4319, %v4311
        %4359 = vst.msk [vmem:[#allocation4 + $0x138] sm:$0xff] %vm4319, %v4314
        %4360 = vst.msk [vmem:[#allocation4 + $0x140] sm:$0xff] %vm4319, %v4317
        %v4361 = vld [vmem:[#allocation19] sm:$0x1]
        %v4362 = vld [vmem:[#allocation4] sm:$0xff]
        %v4363 = vld [vmem:[#allocation4 + $0x8] sm:$0xff]
        %v4364 = vld [vmem:[#allocation4 + $0x10] sm:$0xff]
        %v4365 = vld [vmem:[#allocation4 + $0x18] sm:$0xff]
        %v4366 = vld [vmem:[#allocation4 + $0x20] sm:$0xff]
        %v4367 = vld [vmem:[#allocation4 + $0x28] sm:$0xff]
        %v4368 = vld [vmem:[#allocation4 + $0x30] sm:$0xff]
        %v4369 = vld [vmem:[#allocation4 + $0x38] sm:$0xff]
        %v4370 = vld [vmem:[#allocation4 + $0x40] sm:$0xff]
        %v4371 = vld [vmem:[#allocation4 + $0x48] sm:$0xff]
        %v4372 = vld [vmem:[#allocation4 + $0x50] sm:$0xff]
        %v4373 = vld [vmem:[#allocation4 + $0x58] sm:$0xff]
        %v4374 = vld [vmem:[#allocation4 + $0x60] sm:$0xff]
        %v4375 = vld [vmem:[#allocation4 + $0x68] sm:$0xff]
        %v4376 = vld [vmem:[#allocation4 + $0x70] sm:$0xff]
        %v4377 = vld [vmem:[#allocation4 + $0x78] sm:$0xff]
        %v4378 = vld [vmem:[#allocation4 + $0x80] sm:$0xff]
        %v4379 = vld [vmem:[#allocation4 + $0x88] sm:$0xff]
        %v4380 = vld [vmem:[#allocation4 + $0x90] sm:$0xff]
        %v4381 = vld [vmem:[#allocation4 + $0x98] sm:$0xff]
        %v4382 = vld [vmem:[#allocation4 + $0xa0] sm:$0xff]
        %v4383 = vld [vmem:[#allocation4 + $0xa8] sm:$0xff]
        %v4384 = vld [vmem:[#allocation4 + $0xb0] sm:$0xff]
        %v4385 = vld [vmem:[#allocation4 + $0xb8] sm:$0xff]
        %v4386 = vld [vmem:[#allocation4 + $0xc0] sm:$0xff]
        %v4387 = vld [vmem:[#allocation4 + $0xc8] sm:$0xff]
        %v4388 = vld [vmem:[#allocation4 + $0xd0] sm:$0xff]
        %v4389 = vld [vmem:[#allocation4 + $0xd8] sm:$0xff]
        %v4390 = vld [vmem:[#allocation4 + $0xe0] sm:$0xff]
        %v4391 = vld [vmem:[#allocation4 + $0xe8] sm:$0xff]
        %v4392 = vld [vmem:[#allocation4 + $0xf0] sm:$0xff]
        %v4393 = vld [vmem:[#allocation4 + $0xf8] sm:$0xff]
        %v4394 = vld [vmem:[#allocation4 + $0x100] sm:$0xff]
        %v4395 = vld [vmem:[#allocation4 + $0x108] sm:$0xff]
        %v4396 = vld [vmem:[#allocation4 + $0x110] sm:$0xff]
        %v4397 = vld [vmem:[#allocation4 + $0x118] sm:$0xff]
        %v4398 = vld [vmem:[#allocation19 + $0x1] sm:$0x1]
        %v4399 = vld [vmem:[#allocation4 + $0x1] sm:$0xff]
        %v4400 = vld [vmem:[#allocation4 + $0x9] sm:$0xff]
        %v4401 = vld [vmem:[#allocation4 + $0x11] sm:$0xff]
        %v4402 = vld [vmem:[#allocation4 + $0x19] sm:$0xff]
        %v4403 = vld [vmem:[#allocation4 + $0x21] sm:$0xff]
        %v4404 = vld [vmem:[#allocation4 + $0x29] sm:$0xff]
        %v4405 = vld [vmem:[#allocation4 + $0x31] sm:$0xff]
        %v4406 = vld [vmem:[#allocation4 + $0x39] sm:$0xff]
        %v4407 = vld [vmem:[#allocation4 + $0x41] sm:$0xff]
        %v4408 = vld [vmem:[#allocation4 + $0x49] sm:$0xff]
        %v4409 = vld [vmem:[#allocation4 + $0x51] sm:$0xff]
        %v4410 = vld [vmem:[#allocation4 + $0x59] sm:$0xff]
        %v4411 = vld [vmem:[#allocation4 + $0x61] sm:$0xff]
        %v4412 = vld [vmem:[#allocation4 + $0x69] sm:$0xff]
        %v4413 = vld [vmem:[#allocation4 + $0x71] sm:$0xff]
        %v4414 = vld [vmem:[#allocation4 + $0x79] sm:$0xff]
        %v4415 = vld [vmem:[#allocation4 + $0x81] sm:$0xff]
        %v4416 = vld [vmem:[#allocation4 + $0x89] sm:$0xff]
        %v4417 = vld [vmem:[#allocation4 + $0x91] sm:$0xff]
        %v4418 = vld [vmem:[#allocation4 + $0x99] sm:$0xff]
        %v4419 = vld [vmem:[#allocation4 + $0xa1] sm:$0xff]
        %v4420 = vld [vmem:[#allocation4 + $0xa9] sm:$0xff]
        %v4421 = vld [vmem:[#allocation4 + $0xb1] sm:$0xff]
        %v4422 = vld [vmem:[#allocation4 + $0xb9] sm:$0xff]
        %v4423 = vld [vmem:[#allocation4 + $0xc1] sm:$0xff]
        %v4424 = vld [vmem:[#allocation4 + $0xc9] sm:$0xff]
        %v4425 = vld [vmem:[#allocation4 + $0xd1] sm:$0xff]
        %v4426 = vld [vmem:[#allocation4 + $0xd9] sm:$0xff]
        %v4427 = vld [vmem:[#allocation4 + $0xe1] sm:$0xff]
        %v4428 = vld [vmem:[#allocation4 + $0xe9] sm:$0xff]
        %v4429 = vld [vmem:[#allocation4 + $0xf1] sm:$0xff]
        %v4430 = vld [vmem:[#allocation4 + $0xf9] sm:$0xff]
        %v4431 = vld [vmem:[#allocation4 + $0x101] sm:$0xff]
        %v4432 = vld [vmem:[#allocation4 + $0x109] sm:$0xff]
        %v4433 = vld [vmem:[#allocation4 + $0x111] sm:$0xff]
        %v4434 = vld [vmem:[#allocation4 + $0x119] sm:$0xff]
        %v4436 = vsel %vm4319, %v4398, 0
        %v4439 = vsel %vm4319, %v4399, 0
        %v4442 = vsel %vm4319, %v4400, 0
        %v4445 = vsel %vm4319, %v4401, 0
        %v4448 = vsel %vm4319, %v4402, 0
        %v4451 = vsel %vm4319, %v4403, 0
        %v4454 = vsel %vm4319, %v4404, 0
        %v4457 = vsel %vm4319, %v4405, 0
        %v4460 = vsel %vm4319, %v4406, 0
        %v4463 = vsel %vm4319, %v4407, 0
        %v4466 = vsel %vm4319, %v4408, 0
        %v4469 = vsel %vm4319, %v4409, 0
        %v4472 = vsel %vm4319, %v4410, 0
        %v4475 = vsel %vm4319, %v4411, 0
        %v4478 = vsel %vm4319, %v4412, 0
        %v4481 = vsel %vm4319, %v4413, 0
        %v4484 = vsel %vm4319, %v4414, 0
        %v4487 = vsel %vm4319, %v4415, 0
        %v4490 = vsel %vm4319, %v4416, 0
        %v4493 = vsel %vm4319, %v4417, 0
        %v4496 = vsel %vm4319, %v4418, 0
        %v4499 = vsel %vm4319, %v4419, 0
        %v4502 = vsel %vm4319, %v4420, 0
        %v4505 = vsel %vm4319, %v4421, 0
        %v4508 = vsel %vm4319, %v4422, 0
        %v4511 = vsel %vm4319, %v4423, 0
        %v4514 = vsel %vm4319, %v4424, 0
        %v4517 = vsel %vm4319, %v4425, 0
        %v4520 = vsel %vm4319, %v4426, 0
        %v4523 = vsel %vm4319, %v4427, 0
        %v4526 = vsel %vm4319, %v4428, 0
        %v4529 = vsel %vm4319, %v4429, 0
        %v4532 = vsel %vm4319, %v4430, 0
        %v4535 = vsel %vm4319, %v4431, 0
        %v4538 = vsel %vm4319, %v4432, 0
        %v4541 = vsel %vm4319, %v4433, 0
        %v4544 = vsel %vm4319, %v4434, 0
        %4546 = vmatpush.xpose.msra.mxu0 %v4484
        %4547 = vmatpush.xpose.msra.mxu0 %v4481
        %4548 = vmatpush.xpose.msra.mxu0 %v4478
        %4549 = vmatpush.xpose.msra.mxu0 %v4475
        %4550 = vmatpush.xpose.msra.mxu0 %v4472
        %4551 = vmatpush.xpose.msra.mxu0 %v4469
        %4552 = vmatpush.xpose.msra.mxu0 %v4466
        %4553 = vmatpush.xpose.msra.mxu0 %v4463
        %4554 = vmatpush.xpose.msra.mxu0 %v4460
        %4555 = vmatpush.xpose.msra.mxu0 %v4457
        %4556 = vmatpush.xpose.msra.mxu0 %v4454
        %4557 = vmatpush.xpose.msra.mxu0 %v4451
        %4558 = vmatpush.xpose.msra.mxu0 %v4448
        %4559 = vmatpush.xpose.msra.mxu0 %v4445
        %4560 = vmatpush.xpose.msra.mxu0 %v4442
        %4561 = vmatpush.xpose.msra.mxu0 %v4439
        %4562 = vmatmul.f32.gmra.mxu0 %v4436
        %v4563 = vpop.f32.mrf.mxu0
        %v4564 = vadd.f32 0.0, %v4563
        %4565 = vdwg.mxu0
        %4566 = vmatpush.xpose.msra.mxu0 %v4532
        %4567 = vmatpush.xpose.msra.mxu0 %v4529
        %4568 = vmatpush.xpose.msra.mxu0 %v4526
        %4569 = vmatpush.xpose.msra.mxu0 %v4523
        %4570 = vmatpush.xpose.msra.mxu0 %v4520
        %4571 = vmatpush.xpose.msra.mxu0 %v4517
        %4572 = vmatpush.xpose.msra.mxu0 %v4514
        %4573 = vmatpush.xpose.msra.mxu0 %v4511
        %4574 = vmatpush.xpose.msra.mxu0 %v4508
        %4575 = vmatpush.xpose.msra.mxu0 %v4505
        %4576 = vmatpush.xpose.msra.mxu0 %v4502
        %4577 = vmatpush.xpose.msra.mxu0 %v4499
        %4578 = vmatpush.xpose.msra.mxu0 %v4496
        %4579 = vmatpush.xpose.msra.mxu0 %v4493
        %4580 = vmatpush.xpose.msra.mxu0 %v4490
        %4581 = vmatpush.xpose.msra.mxu0 %v4487
        %4582 = vmatmul.f32.gmra.mxu0 %v4436
        %v4583 = vpop.f32.mrf.mxu0
        %v4584 = vadd.f32 0.0, %v4583
        %4585 = vdwg.mxu0
        %4586 = vmatpush.xpose.msra.mxu0 0.0
        %4587 = vmatpush.xpose.msra.mxu0 0.0
        %4588 = vmatpush.xpose.msra.mxu0 0.0
        %4589 = vmatpush.xpose.msra.mxu0 0.0
        %4590 = vmatpush.xpose.msra.mxu0 0.0
        %4591 = vmatpush.xpose.msra.mxu0 0.0
        %4592 = vmatpush.xpose.msra.mxu0 0.0
        %4593 = vmatpush.xpose.msra.mxu0 0.0
        %4594 = vmatpush.xpose.msra.mxu0 0.0
        %4595 = vmatpush.xpose.msra.mxu0 0.0
        %4596 = vmatpush.xpose.msra.mxu0 0.0
        %4597 = vmatpush.xpose.msra.mxu0 0.0
        %4598 = vmatpush.xpose.msra.mxu0 %v4544
        %4599 = vmatpush.xpose.msra.mxu0 %v4541
        %4600 = vmatpush.xpose.msra.mxu0 %v4538
        %4601 = vmatpush.xpose.msra.mxu0 %v4535
        %4602 = vmatmul.f32.gmra.mxu0 %v4436
        %v4603 = vpop.f32.mrf.mxu0
        %v4604 = vadd.f32 0.0, %v4603
        %4605 = vdwg.mxu0
        %v4607 = vsel %vm4319, %v4361, 0
        %v4610 = vsel %vm4319, %v4362, 0
        %v4613 = vsel %vm4319, %v4363, 0
        %v4616 = vsel %vm4319, %v4364, 0
        %v4619 = vsel %vm4319, %v4365, 0
        %v4622 = vsel %vm4319, %v4366, 0
        %v4625 = vsel %vm4319, %v4367, 0
        %v4628 = vsel %vm4319, %v4368, 0
        %v4631 = vsel %vm4319, %v4369, 0
        %v4634 = vsel %vm4319, %v4370, 0
        %v4637 = vsel %vm4319, %v4371, 0
        %v4640 = vsel %vm4319, %v4372, 0
        %v4643 = vsel %vm4319, %v4373, 0
        %v4646 = vsel %vm4319, %v4374, 0
        %v4649 = vsel %vm4319, %v4375, 0
        %v4652 = vsel %vm4319, %v4376, 0
        %v4655 = vsel %vm4319, %v4377, 0
        %v4658 = vsel %vm4319, %v4378, 0
        %v4661 = vsel %vm4319, %v4379, 0
        %v4664 = vsel %vm4319, %v4380, 0
        %v4667 = vsel %vm4319, %v4381, 0
        %v4670 = vsel %vm4319, %v4382, 0
        %v4673 = vsel %vm4319, %v4383, 0
        %v4676 = vsel %vm4319, %v4384, 0
        %v4679 = vsel %vm4319, %v4385, 0
        %v4682 = vsel %vm4319, %v4386, 0
        %v4685 = vsel %vm4319, %v4387, 0
        %v4688 = vsel %vm4319, %v4388, 0
        %v4691 = vsel %vm4319, %v4389, 0
        %v4694 = vsel %vm4319, %v4390, 0
        %v4697 = vsel %vm4319, %v4391, 0
        %v4700 = vsel %vm4319, %v4392, 0
        %v4703 = vsel %vm4319, %v4393, 0
        %v4706 = vsel %vm4319, %v4394, 0
        %v4709 = vsel %vm4319, %v4395, 0
        %v4712 = vsel %vm4319, %v4396, 0
        %v4715 = vsel %vm4319, %v4397, 0
        %4717 = vmatpush.xpose.msra.mxu0 %v4655
        %4718 = vmatpush.xpose.msra.mxu0 %v4652
        %4719 = vmatpush.xpose.msra.mxu0 %v4649
        %4720 = vmatpush.xpose.msra.mxu0 %v4646
        %4721 = vmatpush.xpose.msra.mxu0 %v4643
        %4722 = vmatpush.xpose.msra.mxu0 %v4640
        %4723 = vmatpush.xpose.msra.mxu0 %v4637
        %4724 = vmatpush.xpose.msra.mxu0 %v4634
        %4725 = vmatpush.xpose.msra.mxu0 %v4631
        %4726 = vmatpush.xpose.msra.mxu0 %v4628
        %4727 = vmatpush.xpose.msra.mxu0 %v4625
        %4728 = vmatpush.xpose.msra.mxu0 %v4622
        %4729 = vmatpush.xpose.msra.mxu0 %v4619
        %4730 = vmatpush.xpose.msra.mxu0 %v4616
        %4731 = vmatpush.xpose.msra.mxu0 %v4613
        %4732 = vmatpush.xpose.msra.mxu0 %v4610
        %4733 = vmatmul.f32.gmra.mxu0 %v4607
        %v4734 = vpop.f32.mrf.mxu0
        %v4735 = vadd.f32 %v4564, %v4734
        %4736 = vdwg.mxu0
        %4737 = vmatpush.xpose.msra.mxu0 %v4703
        %4738 = vmatpush.xpose.msra.mxu0 %v4700
        %4739 = vmatpush.xpose.msra.mxu0 %v4697
        %4740 = vmatpush.xpose.msra.mxu0 %v4694
        %4741 = vmatpush.xpose.msra.mxu0 %v4691
        %4742 = vmatpush.xpose.msra.mxu0 %v4688
        %4743 = vmatpush.xpose.msra.mxu0 %v4685
        %4744 = vmatpush.xpose.msra.mxu0 %v4682
        %4745 = vmatpush.xpose.msra.mxu0 %v4679
        %4746 = vmatpush.xpose.msra.mxu0 %v4676
        %4747 = vmatpush.xpose.msra.mxu0 %v4673
        %4748 = vmatpush.xpose.msra.mxu0 %v4670
        %4749 = vmatpush.xpose.msra.mxu0 %v4667
        %4750 = vmatpush.xpose.msra.mxu0 %v4664
        %4751 = vmatpush.xpose.msra.mxu0 %v4661
        %4752 = vmatpush.xpose.msra.mxu0 %v4658
        %4753 = vmatmul.f32.gmra.mxu0 %v4607
        %v4754 = vpop.f32.mrf.mxu0
        %v4755 = vadd.f32 %v4584, %v4754
        %4756 = vdwg.mxu0
        %4757 = vmatpush.xpose.msra.mxu0 0.0
        %4758 = vmatpush.xpose.msra.mxu0 0.0
        %4759 = vmatpush.xpose.msra.mxu0 0.0
        %4760 = vmatpush.xpose.msra.mxu0 0.0
        %4761 = vmatpush.xpose.msra.mxu0 0.0
        %4762 = vmatpush.xpose.msra.mxu0 0.0
        %4763 = vmatpush.xpose.msra.mxu0 0.0
        %4764 = vmatpush.xpose.msra.mxu0 0.0
        %4765 = vmatpush.xpose.msra.mxu0 0.0
        %4766 = vmatpush.xpose.msra.mxu0 0.0
        %4767 = vmatpush.xpose.msra.mxu0 0.0
        %4768 = vmatpush.xpose.msra.mxu0 0.0
        %4769 = vmatpush.xpose.msra.mxu0 %v4715
        %4770 = vmatpush.xpose.msra.mxu0 %v4712
        %4771 = vmatpush.xpose.msra.mxu0 %v4709
        %4772 = vmatpush.xpose.msra.mxu0 %v4706
        %4773 = vmatmul.f32.gmra.mxu0 %v4607
        %v4774 = vpop.f32.mrf.mxu0
        %v4775 = vadd.f32 %v4604, %v4774
        %4776 = vdwg.mxu0
        %v4777 = vld [vmem:[#allocation19 + $0x2] sm:$0x1]
        %v4778 = vld [vmem:[#allocation4 + $0x2] sm:$0xff]
        %v4779 = vld [vmem:[#allocation4 + $0xa] sm:$0xff]
        %v4780 = vld [vmem:[#allocation4 + $0x12] sm:$0xff]
        %v4781 = vld [vmem:[#allocation4 + $0x1a] sm:$0xff]
        %v4782 = vld [vmem:[#allocation4 + $0x22] sm:$0xff]
        %v4783 = vld [vmem:[#allocation4 + $0x2a] sm:$0xff]
        %v4784 = vld [vmem:[#allocation4 + $0x32] sm:$0xff]
        %v4785 = vld [vmem:[#allocation4 + $0x3a] sm:$0xff]
        %v4786 = vld [vmem:[#allocation4 + $0x42] sm:$0xff]
        %v4787 = vld [vmem:[#allocation4 + $0x4a] sm:$0xff]
        %v4788 = vld [vmem:[#allocation4 + $0x52] sm:$0xff]
        %v4789 = vld [vmem:[#allocation4 + $0x5a] sm:$0xff]
        %v4790 = vld [vmem:[#allocation4 + $0x62] sm:$0xff]
        %v4791 = vld [vmem:[#allocation4 + $0x6a] sm:$0xff]
        %v4792 = vld [vmem:[#allocation4 + $0x72] sm:$0xff]
        %v4793 = vld [vmem:[#allocation4 + $0x7a] sm:$0xff]
        %v4794 = vld [vmem:[#allocation4 + $0x82] sm:$0xff]
        %v4795 = vld [vmem:[#allocation4 + $0x8a] sm:$0xff]
        %v4796 = vld [vmem:[#allocation4 + $0x92] sm:$0xff]
        %v4797 = vld [vmem:[#allocation4 + $0x9a] sm:$0xff]
        %v4798 = vld [vmem:[#allocation4 + $0xa2] sm:$0xff]
        %v4799 = vld [vmem:[#allocation4 + $0xaa] sm:$0xff]
        %v4800 = vld [vmem:[#allocation4 + $0xb2] sm:$0xff]
        %v4801 = vld [vmem:[#allocation4 + $0xba] sm:$0xff]
        %v4802 = vld [vmem:[#allocation4 + $0xc2] sm:$0xff]
        %v4803 = vld [vmem:[#allocation4 + $0xca] sm:$0xff]
        %v4804 = vld [vmem:[#allocation4 + $0xd2] sm:$0xff]
        %v4805 = vld [vmem:[#allocation4 + $0xda] sm:$0xff]
        %v4806 = vld [vmem:[#allocation4 + $0xe2] sm:$0xff]
        %v4807 = vld [vmem:[#allocation4 + $0xea] sm:$0xff]
        %v4808 = vld [vmem:[#allocation4 + $0xf2] sm:$0xff]
        %v4809 = vld [vmem:[#allocation4 + $0xfa] sm:$0xff]
        %v4810 = vld [vmem:[#allocation4 + $0x102] sm:$0xff]
        %v4811 = vld [vmem:[#allocation4 + $0x10a] sm:$0xff]
        %v4812 = vld [vmem:[#allocation4 + $0x112] sm:$0xff]
        %v4813 = vld [vmem:[#allocation4 + $0x11a] sm:$0xff]
        %v4815 = vsel %vm4319, %v4777, 0
        %v4818 = vsel %vm4319, %v4778, 0
        %v4821 = vsel %vm4319, %v4779, 0
        %v4824 = vsel %vm4319, %v4780, 0
        %v4827 = vsel %vm4319, %v4781, 0
        %v4830 = vsel %vm4319, %v4782, 0
        %v4833 = vsel %vm4319, %v4783, 0
        %v4836 = vsel %vm4319, %v4784, 0
        %v4839 = vsel %vm4319, %v4785, 0
        %v4842 = vsel %vm4319, %v4786, 0
        %v4845 = vsel %vm4319, %v4787, 0
        %v4848 = vsel %vm4319, %v4788, 0
        %v4851 = vsel %vm4319, %v4789, 0
        %v4854 = vsel %vm4319, %v4790, 0
        %v4857 = vsel %vm4319, %v4791, 0
        %v4860 = vsel %vm4319, %v4792, 0
        %v4863 = vsel %vm4319, %v4793, 0
        %v4866 = vsel %vm4319, %v4794, 0
        %v4869 = vsel %vm4319, %v4795, 0
        %v4872 = vsel %vm4319, %v4796, 0
        %v4875 = vsel %vm4319, %v4797, 0
        %v4878 = vsel %vm4319, %v4798, 0
        %v4881 = vsel %vm4319, %v4799, 0
        %v4884 = vsel %vm4319, %v4800, 0
        %v4887 = vsel %vm4319, %v4801, 0
        %v4890 = vsel %vm4319, %v4802, 0
        %v4893 = vsel %vm4319, %v4803, 0
        %v4896 = vsel %vm4319, %v4804, 0
        %v4899 = vsel %vm4319, %v4805, 0
        %v4902 = vsel %vm4319, %v4806, 0
        %v4905 = vsel %vm4319, %v4807, 0
        %v4908 = vsel %vm4319, %v4808, 0
        %v4911 = vsel %vm4319, %v4809, 0
        %v4914 = vsel %vm4319, %v4810, 0
        %v4917 = vsel %vm4319, %v4811, 0
        %v4920 = vsel %vm4319, %v4812, 0
        %v4923 = vsel %vm4319, %v4813, 0
        %4925 = vmatpush.xpose.msra.mxu0 %v4863
        %4926 = vmatpush.xpose.msra.mxu0 %v4860
        %4927 = vmatpush.xpose.msra.mxu0 %v4857
        %4928 = vmatpush.xpose.msra.mxu0 %v4854
        %4929 = vmatpush.xpose.msra.mxu0 %v4851
        %4930 = vmatpush.xpose.msra.mxu0 %v4848
        %4931 = vmatpush.xpose.msra.mxu0 %v4845
        %4932 = vmatpush.xpose.msra.mxu0 %v4842
        %4933 = vmatpush.xpose.msra.mxu0 %v4839
        %4934 = vmatpush.xpose.msra.mxu0 %v4836
        %4935 = vmatpush.xpose.msra.mxu0 %v4833
        %4936 = vmatpush.xpose.msra.mxu0 %v4830
        %4937 = vmatpush.xpose.msra.mxu0 %v4827
        %4938 = vmatpush.xpose.msra.mxu0 %v4824
        %4939 = vmatpush.xpose.msra.mxu0 %v4821
        %4940 = vmatpush.xpose.msra.mxu0 %v4818
        %4941 = vmatmul.f32.gmra.mxu0 %v4815
        %v4942 = vpop.f32.mrf.mxu0
        %v4943 = vadd.f32 0.0, %v4942
        %4944 = vdwg.mxu0
        %4945 = vmatpush.xpose.msra.mxu0 %v4911
        %4946 = vmatpush.xpose.msra.mxu0 %v4908
        %4947 = vmatpush.xpose.msra.mxu0 %v4905
        %4948 = vmatpush.xpose.msra.mxu0 %v4902
        %4949 = vmatpush.xpose.msra.mxu0 %v4899
        %4950 = vmatpush.xpose.msra.mxu0 %v4896
        %4951 = vmatpush.xpose.msra.mxu0 %v4893
        %4952 = vmatpush.xpose.msra.mxu0 %v4890
        %4953 = vmatpush.xpose.msra.mxu0 %v4887
        %4954 = vmatpush.xpose.msra.mxu0 %v4884
        %4955 = vmatpush.xpose.msra.mxu0 %v4881
        %4956 = vmatpush.xpose.msra.mxu0 %v4878
        %4957 = vmatpush.xpose.msra.mxu0 %v4875
        %4958 = vmatpush.xpose.msra.mxu0 %v4872
        %4959 = vmatpush.xpose.msra.mxu0 %v4869
        %4960 = vmatpush.xpose.msra.mxu0 %v4866
        %4961 = vmatmul.f32.gmra.mxu0 %v4815
        %v4962 = vpop.f32.mrf.mxu0
        %v4963 = vadd.f32 0.0, %v4962
        %4964 = vdwg.mxu0
        %4965 = vmatpush.xpose.msra.mxu0 0.0
        %4966 = vmatpush.xpose.msra.mxu0 0.0
        %4967 = vmatpush.xpose.msra.mxu0 0.0
        %4968 = vmatpush.xpose.msra.mxu0 0.0
        %4969 = vmatpush.xpose.msra.mxu0 0.0
        %4970 = vmatpush.xpose.msra.mxu0 0.0
        %4971 = vmatpush.xpose.msra.mxu0 0.0
        %4972 = vmatpush.xpose.msra.mxu0 0.0
        %4973 = vmatpush.xpose.msra.mxu0 0.0
        %4974 = vmatpush.xpose.msra.mxu0 0.0
        %4975 = vmatpush.xpose.msra.mxu0 0.0
        %4976 = vmatpush.xpose.msra.mxu0 0.0
        %4977 = vmatpush.xpose.msra.mxu0 %v4923
        %4978 = vmatpush.xpose.msra.mxu0 %v4920
        %4979 = vmatpush.xpose.msra.mxu0 %v4917
        %4980 = vmatpush.xpose.msra.mxu0 %v4914
        %4981 = vmatmul.f32.gmra.mxu0 %v4815
        %v4982 = vpop.f32.mrf.mxu0
        %v4983 = vadd.f32 0.0, %v4982
        %4984 = vdwg.mxu0
        %v4985 = vadd.f32 %v4735, %v4943
        %v4986 = vadd.f32 %v4755, %v4963
        %v4987 = vadd.f32 %v4775, %v4983
        %v4988 = vld [vmem:[#allocation19 + $0x3] sm:$0x1]
        %v4989 = vld [vmem:[#allocation4 + $0x12] sm:$0xff]
        %v4990 = vld [vmem:[#allocation4 + $0x1a] sm:$0xff]
        %v4991 = vld [vmem:[#allocation4 + $0x22] sm:$0xff]
        %v4992 = vld [vmem:[#allocation4 + $0x2a] sm:$0xff]
        %v4993 = vld [vmem:[#allocation4 + $0x32] sm:$0xff]
        %v4994 = vld [vmem:[#allocation4 + $0x3a] sm:$0xff]
        %v4995 = vld [vmem:[#allocation4 + $0x42] sm:$0xff]
        %v4996 = vld [vmem:[#allocation4 + $0x4a] sm:$0xff]
        %v4997 = vld [vmem:[#allocation4 + $0x52] sm:$0xff]
        %v4998 = vld [vmem:[#allocation4 + $0x5a] sm:$0xff]
        %v4999 = vld [vmem:[#allocation4 + $0x62] sm:$0xff]
        %v5000 = vld [vmem:[#allocation4 + $0x6a] sm:$0xff]
        %v5001 = vld [vmem:[#allocation4 + $0x72] sm:$0xff]
        %v5002 = vld [vmem:[#allocation4 + $0x7a] sm:$0xff]
        %v5003 = vld [vmem:[#allocation4 + $0x82] sm:$0xff]
        %v5004 = vld [vmem:[#allocation4 + $0x8a] sm:$0xff]
        %v5005 = vld [vmem:[#allocation4 + $0x92] sm:$0xff]
        %v5006 = vld [vmem:[#allocation4 + $0x9a] sm:$0xff]
        %v5007 = vld [vmem:[#allocation4 + $0xa2] sm:$0xff]
        %v5008 = vld [vmem:[#allocation4 + $0xaa] sm:$0xff]
        %v5009 = vld [vmem:[#allocation4 + $0xb2] sm:$0xff]
        %v5010 = vld [vmem:[#allocation4 + $0xba] sm:$0xff]
        %v5011 = vld [vmem:[#allocation4 + $0xc2] sm:$0xff]
        %v5012 = vld [vmem:[#allocation4 + $0xca] sm:$0xff]
        %v5013 = vld [vmem:[#allocation4 + $0xd2] sm:$0xff]
        %v5014 = vld [vmem:[#allocation4 + $0xda] sm:$0xff]
        %v5015 = vld [vmem:[#allocation4 + $0xe2] sm:$0xff]
        %v5016 = vld [vmem:[#allocation4 + $0xea] sm:$0xff]
        %v5017 = vld [vmem:[#allocation4 + $0xf2] sm:$0xff]
        %v5018 = vld [vmem:[#allocation4 + $0xfa] sm:$0xff]
        %v5019 = vld [vmem:[#allocation4 + $0x102] sm:$0xff]
        %v5020 = vld [vmem:[#allocation4 + $0x10a] sm:$0xff]
        %v5021 = vld [vmem:[#allocation4 + $0x112] sm:$0xff]
        %v5022 = vld [vmem:[#allocation4 + $0x11a] sm:$0xff]
        %v5023 = vld [vmem:[#allocation4 + $0x122] sm:$0xff]
        %v5024 = vld [vmem:[#allocation4 + $0x12a] sm:$0xff]
        %v5026 = vsel %vm4319, %v4988, 0
        %v5029 = vsel %vm4319, %v4989, 0
        %v5032 = vsel %vm4319, %v4990, 0
        %v5035 = vsel %vm4319, %v4991, 0
        %v5038 = vsel %vm4319, %v4992, 0
        %v5041 = vsel %vm4319, %v4993, 0
        %v5044 = vsel %vm4319, %v4994, 0
        %v5047 = vsel %vm4319, %v4995, 0
        %v5050 = vsel %vm4319, %v4996, 0
        %v5053 = vsel %vm4319, %v4997, 0
        %v5056 = vsel %vm4319, %v4998, 0
        %v5059 = vsel %vm4319, %v4999, 0
        %v5062 = vsel %vm4319, %v5000, 0
        %v5065 = vsel %vm4319, %v5001, 0
        %v5068 = vsel %vm4319, %v5002, 0
        %v5071 = vsel %vm4319, %v5003, 0
        %v5074 = vsel %vm4319, %v5004, 0
        %v5077 = vsel %vm4319, %v5005, 0
        %v5080 = vsel %vm4319, %v5006, 0
        %v5083 = vsel %vm4319, %v5007, 0
        %v5086 = vsel %vm4319, %v5008, 0
        %v5089 = vsel %vm4319, %v5009, 0
        %v5092 = vsel %vm4319, %v5010, 0
        %v5095 = vsel %vm4319, %v5011, 0
        %v5098 = vsel %vm4319, %v5012, 0
        %v5101 = vsel %vm4319, %v5013, 0
        %v5104 = vsel %vm4319, %v5014, 0
        %v5107 = vsel %vm4319, %v5015, 0
        %v5110 = vsel %vm4319, %v5016, 0
        %v5113 = vsel %vm4319, %v5017, 0
        %v5116 = vsel %vm4319, %v5018, 0
        %v5119 = vsel %vm4319, %v5019, 0
        %v5122 = vsel %vm4319, %v5020, 0
        %v5125 = vsel %vm4319, %v5021, 0
        %v5128 = vsel %vm4319, %v5022, 0
        %v5131 = vsel %vm4319, %v5023, 0
        %v5134 = vsel %vm4319, %v5024, 0
        %5136 = vmatpush.xpose.msra.mxu0 %v5074
        %5137 = vmatpush.xpose.msra.mxu0 %v5071
        %5138 = vmatpush.xpose.msra.mxu0 %v5068
        %5139 = vmatpush.xpose.msra.mxu0 %v5065
        %5140 = vmatpush.xpose.msra.mxu0 %v5062
        %5141 = vmatpush.xpose.msra.mxu0 %v5059
        %5142 = vmatpush.xpose.msra.mxu0 %v5056
        %5143 = vmatpush.xpose.msra.mxu0 %v5053
        %5144 = vmatpush.xpose.msra.mxu0 %v5050
        %5145 = vmatpush.xpose.msra.mxu0 %v5047
        %5146 = vmatpush.xpose.msra.mxu0 %v5044
        %5147 = vmatpush.xpose.msra.mxu0 %v5041
        %5148 = vmatpush.xpose.msra.mxu0 %v5038
        %5149 = vmatpush.xpose.msra.mxu0 %v5035
        %5150 = vmatpush.xpose.msra.mxu0 %v5032
        %5151 = vmatpush.xpose.msra.mxu0 %v5029
        %5152 = vmatmul.f32.gmra.mxu0 %v5026
        %v5153 = vpop.f32.mrf.mxu0
        %v5154 = vadd.f32 0.0, %v5153
        %5155 = vdwg.mxu0
        %5156 = vmatpush.xpose.msra.mxu0 %v5122
        %5157 = vmatpush.xpose.msra.mxu0 %v5119
        %5158 = vmatpush.xpose.msra.mxu0 %v5116
        %5159 = vmatpush.xpose.msra.mxu0 %v5113
        %5160 = vmatpush.xpose.msra.mxu0 %v5110
        %5161 = vmatpush.xpose.msra.mxu0 %v5107
        %5162 = vmatpush.xpose.msra.mxu0 %v5104
        %5163 = vmatpush.xpose.msra.mxu0 %v5101
        %5164 = vmatpush.xpose.msra.mxu0 %v5098
        %5165 = vmatpush.xpose.msra.mxu0 %v5095
        %5166 = vmatpush.xpose.msra.mxu0 %v5092
        %5167 = vmatpush.xpose.msra.mxu0 %v5089
        %5168 = vmatpush.xpose.msra.mxu0 %v5086
        %5169 = vmatpush.xpose.msra.mxu0 %v5083
        %5170 = vmatpush.xpose.msra.mxu0 %v5080
        %5171 = vmatpush.xpose.msra.mxu0 %v5077
        %5172 = vmatmul.f32.gmra.mxu0 %v5026
        %v5173 = vpop.f32.mrf.mxu0
        %v5174 = vadd.f32 0.0, %v5173
        %5175 = vdwg.mxu0
        %5176 = vmatpush.xpose.msra.mxu0 0.0
        %5177 = vmatpush.xpose.msra.mxu0 0.0
        %5178 = vmatpush.xpose.msra.mxu0 0.0
        %5179 = vmatpush.xpose.msra.mxu0 0.0
        %5180 = vmatpush.xpose.msra.mxu0 0.0
        %5181 = vmatpush.xpose.msra.mxu0 0.0
        %5182 = vmatpush.xpose.msra.mxu0 0.0
        %5183 = vmatpush.xpose.msra.mxu0 0.0
        %5184 = vmatpush.xpose.msra.mxu0 0.0
        %5185 = vmatpush.xpose.msra.mxu0 0.0
        %5186 = vmatpush.xpose.msra.mxu0 0.0
        %5187 = vmatpush.xpose.msra.mxu0 0.0
        %5188 = vmatpush.xpose.msra.mxu0 %v5134
        %5189 = vmatpush.xpose.msra.mxu0 %v5131
        %5190 = vmatpush.xpose.msra.mxu0 %v5128
        %5191 = vmatpush.xpose.msra.mxu0 %v5125
        %5192 = vmatmul.f32.gmra.mxu0 %v5026
        %v5193 = vpop.f32.mrf.mxu0
        %v5194 = vadd.f32 0.0, %v5193
        %5195 = vdwg.mxu0
        %v5196 = vadd.f32 %v4985, %v5154
        %v5197 = vadd.f32 %v4986, %v5174
        %v5198 = vadd.f32 %v4987, %v5194
        %v5199 = vld [vmem:[#allocation19 + $0x4] sm:$0x1]
        %v5200 = vld [vmem:[#allocation4 + $0x13] sm:$0xff]
        %v5201 = vld [vmem:[#allocation4 + $0x1b] sm:$0xff]
        %v5202 = vld [vmem:[#allocation4 + $0x23] sm:$0xff]
        %v5203 = vld [vmem:[#allocation4 + $0x2b] sm:$0xff]
        %v5204 = vld [vmem:[#allocation4 + $0x33] sm:$0xff]
        %v5205 = vld [vmem:[#allocation4 + $0x3b] sm:$0xff]
        %v5206 = vld [vmem:[#allocation4 + $0x43] sm:$0xff]
        %v5207 = vld [vmem:[#allocation4 + $0x4b] sm:$0xff]
        %v5208 = vld [vmem:[#allocation4 + $0x53] sm:$0xff]
        %v5209 = vld [vmem:[#allocation4 + $0x5b] sm:$0xff]
        %v5210 = vld [vmem:[#allocation4 + $0x63] sm:$0xff]
        %v5211 = vld [vmem:[#allocation4 + $0x6b] sm:$0xff]
        %v5212 = vld [vmem:[#allocation4 + $0x73] sm:$0xff]
        %v5213 = vld [vmem:[#allocation4 + $0x7b] sm:$0xff]
        %v5214 = vld [vmem:[#allocation4 + $0x83] sm:$0xff]
        %v5215 = vld [vmem:[#allocation4 + $0x8b] sm:$0xff]
        %v5216 = vld [vmem:[#allocation4 + $0x93] sm:$0xff]
        %v5217 = vld [vmem:[#allocation4 + $0x9b] sm:$0xff]
        %v5218 = vld [vmem:[#allocation4 + $0xa3] sm:$0xff]
        %v5219 = vld [vmem:[#allocation4 + $0xab] sm:$0xff]
        %v5220 = vld [vmem:[#allocation4 + $0xb3] sm:$0xff]
        %v5221 = vld [vmem:[#allocation4 + $0xbb] sm:$0xff]
        %v5222 = vld [vmem:[#allocation4 + $0xc3] sm:$0xff]
        %v5223 = vld [vmem:[#allocation4 + $0xcb] sm:$0xff]
        %v5224 = vld [vmem:[#allocation4 + $0xd3] sm:$0xff]
        %v5225 = vld [vmem:[#allocation4 + $0xdb] sm:$0xff]
        %v5226 = vld [vmem:[#allocation4 + $0xe3] sm:$0xff]
        %v5227 = vld [vmem:[#allocation4 + $0xeb] sm:$0xff]
        %v5228 = vld [vmem:[#allocation4 + $0xf3] sm:$0xff]
        %v5229 = vld [vmem:[#allocation4 + $0xfb] sm:$0xff]
        %v5230 = vld [vmem:[#allocation4 + $0x103] sm:$0xff]
        %v5231 = vld [vmem:[#allocation4 + $0x10b] sm:$0xff]
        %v5232 = vld [vmem:[#allocation4 + $0x113] sm:$0xff]
        %v5233 = vld [vmem:[#allocation4 + $0x11b] sm:$0xff]
        %v5234 = vld [vmem:[#allocation4 + $0x123] sm:$0xff]
        %v5235 = vld [vmem:[#allocation4 + $0x12b] sm:$0xff]
        %v5237 = vsel %vm4319, %v5199, 0
        %v5240 = vsel %vm4319, %v5200, 0
        %v5243 = vsel %vm4319, %v5201, 0
        %v5246 = vsel %vm4319, %v5202, 0
        %v5249 = vsel %vm4319, %v5203, 0
        %v5252 = vsel %vm4319, %v5204, 0
        %v5255 = vsel %vm4319, %v5205, 0
        %v5258 = vsel %vm4319, %v5206, 0
        %v5261 = vsel %vm4319, %v5207, 0
        %v5264 = vsel %vm4319, %v5208, 0
        %v5267 = vsel %vm4319, %v5209, 0
        %v5270 = vsel %vm4319, %v5210, 0
        %v5273 = vsel %vm4319, %v5211, 0
        %v5276 = vsel %vm4319, %v5212, 0
        %v5279 = vsel %vm4319, %v5213, 0
        %v5282 = vsel %vm4319, %v5214, 0
        %v5285 = vsel %vm4319, %v5215, 0
        %v5288 = vsel %vm4319, %v5216, 0
        %v5291 = vsel %vm4319, %v5217, 0
        %v5294 = vsel %vm4319, %v5218, 0
        %v5297 = vsel %vm4319, %v5219, 0
        %v5300 = vsel %vm4319, %v5220, 0
        %v5303 = vsel %vm4319, %v5221, 0
        %v5306 = vsel %vm4319, %v5222, 0
        %v5309 = vsel %vm4319, %v5223, 0
        %v5312 = vsel %vm4319, %v5224, 0
        %v5315 = vsel %vm4319, %v5225, 0
        %v5318 = vsel %vm4319, %v5226, 0
        %v5321 = vsel %vm4319, %v5227, 0
        %v5324 = vsel %vm4319, %v5228, 0
        %v5327 = vsel %vm4319, %v5229, 0
        %v5330 = vsel %vm4319, %v5230, 0
        %v5333 = vsel %vm4319, %v5231, 0
        %v5336 = vsel %vm4319, %v5232, 0
        %v5339 = vsel %vm4319, %v5233, 0
        %v5342 = vsel %vm4319, %v5234, 0
        %v5345 = vsel %vm4319, %v5235, 0
        %5347 = vmatpush.xpose.msra.mxu0 %v5285
        %5348 = vmatpush.xpose.msra.mxu0 %v5282
        %5349 = vmatpush.xpose.msra.mxu0 %v5279
        %5350 = vmatpush.xpose.msra.mxu0 %v5276
        %5351 = vmatpush.xpose.msra.mxu0 %v5273
        %5352 = vmatpush.xpose.msra.mxu0 %v5270
        %5353 = vmatpush.xpose.msra.mxu0 %v5267
        %5354 = vmatpush.xpose.msra.mxu0 %v5264
        %5355 = vmatpush.xpose.msra.mxu0 %v5261
        %5356 = vmatpush.xpose.msra.mxu0 %v5258
        %5357 = vmatpush.xpose.msra.mxu0 %v5255
        %5358 = vmatpush.xpose.msra.mxu0 %v5252
        %5359 = vmatpush.xpose.msra.mxu0 %v5249
        %5360 = vmatpush.xpose.msra.mxu0 %v5246
        %5361 = vmatpush.xpose.msra.mxu0 %v5243
        %5362 = vmatpush.xpose.msra.mxu0 %v5240
        %5363 = vmatmul.f32.gmra.mxu0 %v5237
        %v5364 = vpop.f32.mrf.mxu0
        %v5365 = vadd.f32 0.0, %v5364
        %5366 = vdwg.mxu0
        %5367 = vmatpush.xpose.msra.mxu0 %v5333
        %5368 = vmatpush.xpose.msra.mxu0 %v5330
        %5369 = vmatpush.xpose.msra.mxu0 %v5327
        %5370 = vmatpush.xpose.msra.mxu0 %v5324
        %5371 = vmatpush.xpose.msra.mxu0 %v5321
        %5372 = vmatpush.xpose.msra.mxu0 %v5318
        %5373 = vmatpush.xpose.msra.mxu0 %v5315
        %5374 = vmatpush.xpose.msra.mxu0 %v5312
        %5375 = vmatpush.xpose.msra.mxu0 %v5309
        %5376 = vmatpush.xpose.msra.mxu0 %v5306
        %5377 = vmatpush.xpose.msra.mxu0 %v5303
        %5378 = vmatpush.xpose.msra.mxu0 %v5300
        %5379 = vmatpush.xpose.msra.mxu0 %v5297
        %5380 = vmatpush.xpose.msra.mxu0 %v5294
        %5381 = vmatpush.xpose.msra.mxu0 %v5291
        %5382 = vmatpush.xpose.msra.mxu0 %v5288
        %5383 = vmatmul.f32.gmra.mxu0 %v5237
        %v5384 = vpop.f32.mrf.mxu0
        %v5385 = vadd.f32 0.0, %v5384
        %5386 = vdwg.mxu0
        %5387 = vmatpush.xpose.msra.mxu0 0.0
        %5388 = vmatpush.xpose.msra.mxu0 0.0
        %5389 = vmatpush.xpose.msra.mxu0 0.0
        %5390 = vmatpush.xpose.msra.mxu0 0.0
        %5391 = vmatpush.xpose.msra.mxu0 0.0
        %5392 = vmatpush.xpose.msra.mxu0 0.0
        %5393 = vmatpush.xpose.msra.mxu0 0.0
        %5394 = vmatpush.xpose.msra.mxu0 0.0
        %5395 = vmatpush.xpose.msra.mxu0 0.0
        %5396 = vmatpush.xpose.msra.mxu0 0.0
        %5397 = vmatpush.xpose.msra.mxu0 0.0
        %5398 = vmatpush.xpose.msra.mxu0 0.0
        %5399 = vmatpush.xpose.msra.mxu0 %v5345
        %5400 = vmatpush.xpose.msra.mxu0 %v5342
        %5401 = vmatpush.xpose.msra.mxu0 %v5339
        %5402 = vmatpush.xpose.msra.mxu0 %v5336
        %5403 = vmatmul.f32.gmra.mxu0 %v5237
        %v5404 = vpop.f32.mrf.mxu0
        %v5405 = vadd.f32 0.0, %v5404
        %5406 = vdwg.mxu0
        %v5407 = vadd.f32 %v5196, %v5365
        %v5408 = vadd.f32 %v5197, %v5385
        %v5409 = vadd.f32 %v5198, %v5405
        %v5410 = vld [vmem:[#allocation19 + $0x5] sm:$0x1]
        %v5411 = vld [vmem:[#allocation4 + $0x14] sm:$0xff]
        %v5412 = vld [vmem:[#allocation4 + $0x1c] sm:$0xff]
        %v5413 = vld [vmem:[#allocation4 + $0x24] sm:$0xff]
        %v5414 = vld [vmem:[#allocation4 + $0x2c] sm:$0xff]
        %v5415 = vld [vmem:[#allocation4 + $0x34] sm:$0xff]
        %v5416 = vld [vmem:[#allocation4 + $0x3c] sm:$0xff]
        %v5417 = vld [vmem:[#allocation4 + $0x44] sm:$0xff]
        %v5418 = vld [vmem:[#allocation4 + $0x4c] sm:$0xff]
        %v5419 = vld [vmem:[#allocation4 + $0x54] sm:$0xff]
        %v5420 = vld [vmem:[#allocation4 + $0x5c] sm:$0xff]
        %v5421 = vld [vmem:[#allocation4 + $0x64] sm:$0xff]
        %v5422 = vld [vmem:[#allocation4 + $0x6c] sm:$0xff]
        %v5423 = vld [vmem:[#allocation4 + $0x74] sm:$0xff]
        %v5424 = vld [vmem:[#allocation4 + $0x7c] sm:$0xff]
        %v5425 = vld [vmem:[#allocation4 + $0x84] sm:$0xff]
        %v5426 = vld [vmem:[#allocation4 + $0x8c] sm:$0xff]
        %v5427 = vld [vmem:[#allocation4 + $0x94] sm:$0xff]
        %v5428 = vld [vmem:[#allocation4 + $0x9c] sm:$0xff]
        %v5429 = vld [vmem:[#allocation4 + $0xa4] sm:$0xff]
        %v5430 = vld [vmem:[#allocation4 + $0xac] sm:$0xff]
        %v5431 = vld [vmem:[#allocation4 + $0xb4] sm:$0xff]
        %v5432 = vld [vmem:[#allocation4 + $0xbc] sm:$0xff]
        %v5433 = vld [vmem:[#allocation4 + $0xc4] sm:$0xff]
        %v5434 = vld [vmem:[#allocation4 + $0xcc] sm:$0xff]
        %v5435 = vld [vmem:[#allocation4 + $0xd4] sm:$0xff]
        %v5436 = vld [vmem:[#allocation4 + $0xdc] sm:$0xff]
        %v5437 = vld [vmem:[#allocation4 + $0xe4] sm:$0xff]
        %v5438 = vld [vmem:[#allocation4 + $0xec] sm:$0xff]
        %v5439 = vld [vmem:[#allocation4 + $0xf4] sm:$0xff]
        %v5440 = vld [vmem:[#allocation4 + $0xfc] sm:$0xff]
        %v5441 = vld [vmem:[#allocation4 + $0x104] sm:$0xff]
        %v5442 = vld [vmem:[#allocation4 + $0x10c] sm:$0xff]
        %v5443 = vld [vmem:[#allocation4 + $0x114] sm:$0xff]
        %v5444 = vld [vmem:[#allocation4 + $0x11c] sm:$0xff]
        %v5445 = vld [vmem:[#allocation4 + $0x124] sm:$0xff]
        %v5446 = vld [vmem:[#allocation4 + $0x12c] sm:$0xff]
        %v5448 = vsel %vm4319, %v5410, 0
        %v5451 = vsel %vm4319, %v5411, 0
        %v5454 = vsel %vm4319, %v5412, 0
        %v5457 = vsel %vm4319, %v5413, 0
        %v5460 = vsel %vm4319, %v5414, 0
        %v5463 = vsel %vm4319, %v5415, 0
        %v5466 = vsel %vm4319, %v5416, 0
        %v5469 = vsel %vm4319, %v5417, 0
        %v5472 = vsel %vm4319, %v5418, 0
        %v5475 = vsel %vm4319, %v5419, 0
        %v5478 = vsel %vm4319, %v5420, 0
        %v5481 = vsel %vm4319, %v5421, 0
        %v5484 = vsel %vm4319, %v5422, 0
        %v5487 = vsel %vm4319, %v5423, 0
        %v5490 = vsel %vm4319, %v5424, 0
        %v5493 = vsel %vm4319, %v5425, 0
        %v5496 = vsel %vm4319, %v5426, 0
        %v5499 = vsel %vm4319, %v5427, 0
        %v5502 = vsel %vm4319, %v5428, 0
        %v5505 = vsel %vm4319, %v5429, 0
        %v5508 = vsel %vm4319, %v5430, 0
        %v5511 = vsel %vm4319, %v5431, 0
        %v5514 = vsel %vm4319, %v5432, 0
        %v5517 = vsel %vm4319, %v5433, 0
        %v5520 = vsel %vm4319, %v5434, 0
        %v5523 = vsel %vm4319, %v5435, 0
        %v5526 = vsel %vm4319, %v5436, 0
        %v5529 = vsel %vm4319, %v5437, 0
        %v5532 = vsel %vm4319, %v5438, 0
        %v5535 = vsel %vm4319, %v5439, 0
        %v5538 = vsel %vm4319, %v5440, 0
        %v5541 = vsel %vm4319, %v5441, 0
        %v5544 = vsel %vm4319, %v5442, 0
        %v5547 = vsel %vm4319, %v5443, 0
        %v5550 = vsel %vm4319, %v5444, 0
        %v5553 = vsel %vm4319, %v5445, 0
        %v5556 = vsel %vm4319, %v5446, 0
        %5558 = vmatpush.xpose.msra.mxu0 %v5496
        %5559 = vmatpush.xpose.msra.mxu0 %v5493
        %5560 = vmatpush.xpose.msra.mxu0 %v5490
        %5561 = vmatpush.xpose.msra.mxu0 %v5487
        %5562 = vmatpush.xpose.msra.mxu0 %v5484
        %5563 = vmatpush.xpose.msra.mxu0 %v5481
        %5564 = vmatpush.xpose.msra.mxu0 %v5478
        %5565 = vmatpush.xpose.msra.mxu0 %v5475
        %5566 = vmatpush.xpose.msra.mxu0 %v5472
        %5567 = vmatpush.xpose.msra.mxu0 %v5469
        %5568 = vmatpush.xpose.msra.mxu0 %v5466
        %5569 = vmatpush.xpose.msra.mxu0 %v5463
        %5570 = vmatpush.xpose.msra.mxu0 %v5460
        %5571 = vmatpush.xpose.msra.mxu0 %v5457
        %5572 = vmatpush.xpose.msra.mxu0 %v5454
        %5573 = vmatpush.xpose.msra.mxu0 %v5451
        %5574 = vmatmul.f32.gmra.mxu0 %v5448
        %v5575 = vpop.f32.mrf.mxu0
        %v5576 = vadd.f32 0.0, %v5575
        %5577 = vdwg.mxu0
        %5578 = vmatpush.xpose.msra.mxu0 %v5544
        %5579 = vmatpush.xpose.msra.mxu0 %v5541
        %5580 = vmatpush.xpose.msra.mxu0 %v5538
        %5581 = vmatpush.xpose.msra.mxu0 %v5535
        %5582 = vmatpush.xpose.msra.mxu0 %v5532
        %5583 = vmatpush.xpose.msra.mxu0 %v5529
        %5584 = vmatpush.xpose.msra.mxu0 %v5526
        %5585 = vmatpush.xpose.msra.mxu0 %v5523
        %5586 = vmatpush.xpose.msra.mxu0 %v5520
        %5587 = vmatpush.xpose.msra.mxu0 %v5517
        %5588 = vmatpush.xpose.msra.mxu0 %v5514
        %5589 = vmatpush.xpose.msra.mxu0 %v5511
        %5590 = vmatpush.xpose.msra.mxu0 %v5508
        %5591 = vmatpush.xpose.msra.mxu0 %v5505
        %5592 = vmatpush.xpose.msra.mxu0 %v5502
        %5593 = vmatpush.xpose.msra.mxu0 %v5499
        %5594 = vmatmul.f32.gmra.mxu0 %v5448
        %v5595 = vpop.f32.mrf.mxu0
        %v5596 = vadd.f32 0.0, %v5595
        %5597 = vdwg.mxu0
        %5598 = vmatpush.xpose.msra.mxu0 0.0
        %5599 = vmatpush.xpose.msra.mxu0 0.0
        %5600 = vmatpush.xpose.msra.mxu0 0.0
        %5601 = vmatpush.xpose.msra.mxu0 0.0
        %5602 = vmatpush.xpose.msra.mxu0 0.0
        %5603 = vmatpush.xpose.msra.mxu0 0.0
        %5604 = vmatpush.xpose.msra.mxu0 0.0
        %5605 = vmatpush.xpose.msra.mxu0 0.0
        %5606 = vmatpush.xpose.msra.mxu0 0.0
        %5607 = vmatpush.xpose.msra.mxu0 0.0
        %5608 = vmatpush.xpose.msra.mxu0 0.0
        %5609 = vmatpush.xpose.msra.mxu0 0.0
        %5610 = vmatpush.xpose.msra.mxu0 %v5556
        %5611 = vmatpush.xpose.msra.mxu0 %v5553
        %5612 = vmatpush.xpose.msra.mxu0 %v5550
        %5613 = vmatpush.xpose.msra.mxu0 %v5547
        %5614 = vmatmul.f32.gmra.mxu0 %v5448
        %v5615 = vpop.f32.mrf.mxu0
        %v5616 = vadd.f32 0.0, %v5615
        %5617 = vdwg.mxu0
        %v5618 = vadd.f32 %v5407, %v5576
        %v5619 = vadd.f32 %v5408, %v5596
        %v5620 = vadd.f32 %v5409, %v5616
        %v5621 = vld [vmem:[#allocation19 + $0x6] sm:$0x1]
        %v5622 = vld [vmem:[#allocation4 + $0x24] sm:$0xff]
        %v5623 = vld [vmem:[#allocation4 + $0x2c] sm:$0xff]
        %v5624 = vld [vmem:[#allocation4 + $0x34] sm:$0xff]
        %v5625 = vld [vmem:[#allocation4 + $0x3c] sm:$0xff]
        %v5626 = vld [vmem:[#allocation4 + $0x44] sm:$0xff]
        %v5627 = vld [vmem:[#allocation4 + $0x4c] sm:$0xff]
        %v5628 = vld [vmem:[#allocation4 + $0x54] sm:$0xff]
        %v5629 = vld [vmem:[#allocation4 + $0x5c] sm:$0xff]
        %v5630 = vld [vmem:[#allocation4 + $0x64] sm:$0xff]
        %v5631 = vld [vmem:[#allocation4 + $0x6c] sm:$0xff]
        %v5632 = vld [vmem:[#allocation4 + $0x74] sm:$0xff]
        %v5633 = vld [vmem:[#allocation4 + $0x7c] sm:$0xff]
        %v5634 = vld [vmem:[#allocation4 + $0x84] sm:$0xff]
        %v5635 = vld [vmem:[#allocation4 + $0x8c] sm:$0xff]
        %v5636 = vld [vmem:[#allocation4 + $0x94] sm:$0xff]
        %v5637 = vld [vmem:[#allocation4 + $0x9c] sm:$0xff]
        %v5638 = vld [vmem:[#allocation4 + $0xa4] sm:$0xff]
        %v5639 = vld [vmem:[#allocation4 + $0xac] sm:$0xff]
        %v5640 = vld [vmem:[#allocation4 + $0xb4] sm:$0xff]
        %v5641 = vld [vmem:[#allocation4 + $0xbc] sm:$0xff]
        %v5642 = vld [vmem:[#allocation4 + $0xc4] sm:$0xff]
        %v5643 = vld [vmem:[#allocation4 + $0xcc] sm:$0xff]
        %v5644 = vld [vmem:[#allocation4 + $0xd4] sm:$0xff]
        %v5645 = vld [vmem:[#allocation4 + $0xdc] sm:$0xff]
        %v5646 = vld [vmem:[#allocation4 + $0xe4] sm:$0xff]
        %v5647 = vld [vmem:[#allocation4 + $0xec] sm:$0xff]
        %v5648 = vld [vmem:[#allocation4 + $0xf4] sm:$0xff]
        %v5649 = vld [vmem:[#allocation4 + $0xfc] sm:$0xff]
        %v5650 = vld [vmem:[#allocation4 + $0x104] sm:$0xff]
        %v5651 = vld [vmem:[#allocation4 + $0x10c] sm:$0xff]
        %v5652 = vld [vmem:[#allocation4 + $0x114] sm:$0xff]
        %v5653 = vld [vmem:[#allocation4 + $0x11c] sm:$0xff]
        %v5654 = vld [vmem:[#allocation4 + $0x124] sm:$0xff]
        %v5655 = vld [vmem:[#allocation4 + $0x12c] sm:$0xff]
        %v5656 = vld [vmem:[#allocation4 + $0x134] sm:$0xff]
        %v5657 = vld [vmem:[#allocation4 + $0x13c] sm:$0xff]
        %v5659 = vsel %vm4319, %v5621, 0
        %v5662 = vsel %vm4319, %v5622, 0
        %v5665 = vsel %vm4319, %v5623, 0
        %v5668 = vsel %vm4319, %v5624, 0
        %v5671 = vsel %vm4319, %v5625, 0
        %v5674 = vsel %vm4319, %v5626, 0
        %v5677 = vsel %vm4319, %v5627, 0
        %v5680 = vsel %vm4319, %v5628, 0
        %v5683 = vsel %vm4319, %v5629, 0
        %v5686 = vsel %vm4319, %v5630, 0
        %v5689 = vsel %vm4319, %v5631, 0
        %v5692 = vsel %vm4319, %v5632, 0
        %v5695 = vsel %vm4319, %v5633, 0
        %v5698 = vsel %vm4319, %v5634, 0
        %v5701 = vsel %vm4319, %v5635, 0
        %v5704 = vsel %vm4319, %v5636, 0
        %v5707 = vsel %vm4319, %v5637, 0
        %v5710 = vsel %vm4319, %v5638, 0
        %v5713 = vsel %vm4319, %v5639, 0
        %v5716 = vsel %vm4319, %v5640, 0
        %v5719 = vsel %vm4319, %v5641, 0
        %v5722 = vsel %vm4319, %v5642, 0
        %v5725 = vsel %vm4319, %v5643, 0
        %v5728 = vsel %vm4319, %v5644, 0
        %v5731 = vsel %vm4319, %v5645, 0
        %v5734 = vsel %vm4319, %v5646, 0
        %v5737 = vsel %vm4319, %v5647, 0
        %v5740 = vsel %vm4319, %v5648, 0
        %v5743 = vsel %vm4319, %v5649, 0
        %v5746 = vsel %vm4319, %v5650, 0
        %v5749 = vsel %vm4319, %v5651, 0
        %v5752 = vsel %vm4319, %v5652, 0
        %v5755 = vsel %vm4319, %v5653, 0
        %v5758 = vsel %vm4319, %v5654, 0
        %v5761 = vsel %vm4319, %v5655, 0
        %v5764 = vsel %vm4319, %v5656, 0
        %v5767 = vsel %vm4319, %v5657, 0
        %5769 = vmatpush.xpose.msra.mxu0 %v5707
        %5770 = vmatpush.xpose.msra.mxu0 %v5704
        %5771 = vmatpush.xpose.msra.mxu0 %v5701
        %5772 = vmatpush.xpose.msra.mxu0 %v5698
        %5773 = vmatpush.xpose.msra.mxu0 %v5695
        %5774 = vmatpush.xpose.msra.mxu0 %v5692
        %5775 = vmatpush.xpose.msra.mxu0 %v5689
        %5776 = vmatpush.xpose.msra.mxu0 %v5686
        %5777 = vmatpush.xpose.msra.mxu0 %v5683
        %5778 = vmatpush.xpose.msra.mxu0 %v5680
        %5779 = vmatpush.xpose.msra.mxu0 %v5677
        %5780 = vmatpush.xpose.msra.mxu0 %v5674
        %5781 = vmatpush.xpose.msra.mxu0 %v5671
        %5782 = vmatpush.xpose.msra.mxu0 %v5668
        %5783 = vmatpush.xpose.msra.mxu0 %v5665
        %5784 = vmatpush.xpose.msra.mxu0 %v5662
        %5785 = vmatmul.f32.gmra.mxu0 %v5659
        %v5786 = vpop.f32.mrf.mxu0
        %v5787 = vadd.f32 0.0, %v5786
        %5788 = vdwg.mxu0
        %5789 = vmatpush.xpose.msra.mxu0 %v5755
        %5790 = vmatpush.xpose.msra.mxu0 %v5752
        %5791 = vmatpush.xpose.msra.mxu0 %v5749
        %5792 = vmatpush.xpose.msra.mxu0 %v5746
        %5793 = vmatpush.xpose.msra.mxu0 %v5743
        %5794 = vmatpush.xpose.msra.mxu0 %v5740
        %5795 = vmatpush.xpose.msra.mxu0 %v5737
        %5796 = vmatpush.xpose.msra.mxu0 %v5734
        %5797 = vmatpush.xpose.msra.mxu0 %v5731
        %5798 = vmatpush.xpose.msra.mxu0 %v5728
        %5799 = vmatpush.xpose.msra.mxu0 %v5725
        %5800 = vmatpush.xpose.msra.mxu0 %v5722
        %5801 = vmatpush.xpose.msra.mxu0 %v5719
        %5802 = vmatpush.xpose.msra.mxu0 %v5716
        %5803 = vmatpush.xpose.msra.mxu0 %v5713
        %5804 = vmatpush.xpose.msra.mxu0 %v5710
        %5805 = vmatmul.f32.gmra.mxu0 %v5659
        %v5806 = vpop.f32.mrf.mxu0
        %v5807 = vadd.f32 0.0, %v5806
        %5808 = vdwg.mxu0
        %5809 = vmatpush.xpose.msra.mxu0 0.0
        %5810 = vmatpush.xpose.msra.mxu0 0.0
        %5811 = vmatpush.xpose.msra.mxu0 0.0
        %5812 = vmatpush.xpose.msra.mxu0 0.0
        %5813 = vmatpush.xpose.msra.mxu0 0.0
        %5814 = vmatpush.xpose.msra.mxu0 0.0
        %5815 = vmatpush.xpose.msra.mxu0 0.0
        %5816 = vmatpush.xpose.msra.mxu0 0.0
        %5817 = vmatpush.xpose.msra.mxu0 0.0
        %5818 = vmatpush.xpose.msra.mxu0 0.0
        %5819 = vmatpush.xpose.msra.mxu0 0.0
        %5820 = vmatpush.xpose.msra.mxu0 0.0
        %5821 = vmatpush.xpose.msra.mxu0 %v5767
        %5822 = vmatpush.xpose.msra.mxu0 %v5764
        %5823 = vmatpush.xpose.msra.mxu0 %v5761
        %5824 = vmatpush.xpose.msra.mxu0 %v5758
        %5825 = vmatmul.f32.gmra.mxu0 %v5659
        %v5826 = vpop.f32.mrf.mxu0
        %v5827 = vadd.f32 0.0, %v5826
        %5828 = vdwg.mxu0
        %v5829 = vadd.f32 %v5618, %v5787
        %v5830 = vadd.f32 %v5619, %v5807
        %v5831 = vadd.f32 %v5620, %v5827
        %v5832 = vld [vmem:[#allocation19 + $0x7] sm:$0x1]
        %v5833 = vld [vmem:[#allocation4 + $0x25] sm:$0xff]
        %v5834 = vld [vmem:[#allocation4 + $0x2d] sm:$0xff]
        %v5835 = vld [vmem:[#allocation4 + $0x35] sm:$0xff]
        %v5836 = vld [vmem:[#allocation4 + $0x3d] sm:$0xff]
        %v5837 = vld [vmem:[#allocation4 + $0x45] sm:$0xff]
        %v5838 = vld [vmem:[#allocation4 + $0x4d] sm:$0xff]
        %v5839 = vld [vmem:[#allocation4 + $0x55] sm:$0xff]
        %v5840 = vld [vmem:[#allocation4 + $0x5d] sm:$0xff]
        %v5841 = vld [vmem:[#allocation4 + $0x65] sm:$0xff]
        %v5842 = vld [vmem:[#allocation4 + $0x6d] sm:$0xff]
        %v5843 = vld [vmem:[#allocation4 + $0x75] sm:$0xff]
        %v5844 = vld [vmem:[#allocation4 + $0x7d] sm:$0xff]
        %v5845 = vld [vmem:[#allocation4 + $0x85] sm:$0xff]
        %v5846 = vld [vmem:[#allocation4 + $0x8d] sm:$0xff]
        %v5847 = vld [vmem:[#allocation4 + $0x95] sm:$0xff]
        %v5848 = vld [vmem:[#allocation4 + $0x9d] sm:$0xff]
        %v5849 = vld [vmem:[#allocation4 + $0xa5] sm:$0xff]
        %v5850 = vld [vmem:[#allocation4 + $0xad] sm:$0xff]
        %v5851 = vld [vmem:[#allocation4 + $0xb5] sm:$0xff]
        %v5852 = vld [vmem:[#allocation4 + $0xbd] sm:$0xff]
        %v5853 = vld [vmem:[#allocation4 + $0xc5] sm:$0xff]
        %v5854 = vld [vmem:[#allocation4 + $0xcd] sm:$0xff]
        %v5855 = vld [vmem:[#allocation4 + $0xd5] sm:$0xff]
        %v5856 = vld [vmem:[#allocation4 + $0xdd] sm:$0xff]
        %v5857 = vld [vmem:[#allocation4 + $0xe5] sm:$0xff]
        %v5858 = vld [vmem:[#allocation4 + $0xed] sm:$0xff]
        %v5859 = vld [vmem:[#allocation4 + $0xf5] sm:$0xff]
        %v5860 = vld [vmem:[#allocation4 + $0xfd] sm:$0xff]
        %v5861 = vld [vmem:[#allocation4 + $0x105] sm:$0xff]
        %v5862 = vld [vmem:[#allocation4 + $0x10d] sm:$0xff]
        %v5863 = vld [vmem:[#allocation4 + $0x115] sm:$0xff]
        %v5864 = vld [vmem:[#allocation4 + $0x11d] sm:$0xff]
        %v5865 = vld [vmem:[#allocation4 + $0x125] sm:$0xff]
        %v5866 = vld [vmem:[#allocation4 + $0x12d] sm:$0xff]
        %v5867 = vld [vmem:[#allocation4 + $0x135] sm:$0xff]
        %v5868 = vld [vmem:[#allocation4 + $0x13d] sm:$0xff]
        %v5870 = vsel %vm4319, %v5832, 0
        %v5873 = vsel %vm4319, %v5833, 0
        %v5876 = vsel %vm4319, %v5834, 0
        %v5879 = vsel %vm4319, %v5835, 0
        %v5882 = vsel %vm4319, %v5836, 0
        %v5885 = vsel %vm4319, %v5837, 0
        %v5888 = vsel %vm4319, %v5838, 0
        %v5891 = vsel %vm4319, %v5839, 0
        %v5894 = vsel %vm4319, %v5840, 0
        %v5897 = vsel %vm4319, %v5841, 0
        %v5900 = vsel %vm4319, %v5842, 0
        %v5903 = vsel %vm4319, %v5843, 0
        %v5906 = vsel %vm4319, %v5844, 0
        %v5909 = vsel %vm4319, %v5845, 0
        %v5912 = vsel %vm4319, %v5846, 0
        %v5915 = vsel %vm4319, %v5847, 0
        %v5918 = vsel %vm4319, %v5848, 0
        %v5921 = vsel %vm4319, %v5849, 0
        %v5924 = vsel %vm4319, %v5850, 0
        %v5927 = vsel %vm4319, %v5851, 0
        %v5930 = vsel %vm4319, %v5852, 0
        %v5933 = vsel %vm4319, %v5853, 0
        %v5936 = vsel %vm4319, %v5854, 0
        %v5939 = vsel %vm4319, %v5855, 0
        %v5942 = vsel %vm4319, %v5856, 0
        %v5945 = vsel %vm4319, %v5857, 0
        %v5948 = vsel %vm4319, %v5858, 0
        %v5951 = vsel %vm4319, %v5859, 0
        %v5954 = vsel %vm4319, %v5860, 0
        %v5957 = vsel %vm4319, %v5861, 0
        %v5960 = vsel %vm4319, %v5862, 0
        %v5963 = vsel %vm4319, %v5863, 0
        %v5966 = vsel %vm4319, %v5864, 0
        %v5969 = vsel %vm4319, %v5865, 0
        %v5972 = vsel %vm4319, %v5866, 0
        %v5975 = vsel %vm4319, %v5867, 0
        %v5978 = vsel %vm4319, %v5868, 0
        %5980 = vmatpush.xpose.msra.mxu0 %v5918
        %5981 = vmatpush.xpose.msra.mxu0 %v5915
        %5982 = vmatpush.xpose.msra.mxu0 %v5912
        %5983 = vmatpush.xpose.msra.mxu0 %v5909
        %5984 = vmatpush.xpose.msra.mxu0 %v5906
        %5985 = vmatpush.xpose.msra.mxu0 %v5903
        %5986 = vmatpush.xpose.msra.mxu0 %v5900
        %5987 = vmatpush.xpose.msra.mxu0 %v5897
        %5988 = vmatpush.xpose.msra.mxu0 %v5894
        %5989 = vmatpush.xpose.msra.mxu0 %v5891
        %5990 = vmatpush.xpose.msra.mxu0 %v5888
        %5991 = vmatpush.xpose.msra.mxu0 %v5885
        %5992 = vmatpush.xpose.msra.mxu0 %v5882
        %5993 = vmatpush.xpose.msra.mxu0 %v5879
        %5994 = vmatpush.xpose.msra.mxu0 %v5876
        %5995 = vmatpush.xpose.msra.mxu0 %v5873
        %5996 = vmatmul.f32.gmra.mxu0 %v5870
        %v5997 = vpop.f32.mrf.mxu0
        %v5998 = vadd.f32 0.0, %v5997
        %5999 = vdwg.mxu0
        %6000 = vmatpush.xpose.msra.mxu0 %v5966
        %6001 = vmatpush.xpose.msra.mxu0 %v5963
        %6002 = vmatpush.xpose.msra.mxu0 %v5960
        %6003 = vmatpush.xpose.msra.mxu0 %v5957
        %6004 = vmatpush.xpose.msra.mxu0 %v5954
        %6005 = vmatpush.xpose.msra.mxu0 %v5951
        %6006 = vmatpush.xpose.msra.mxu0 %v5948
        %6007 = vmatpush.xpose.msra.mxu0 %v5945
        %6008 = vmatpush.xpose.msra.mxu0 %v5942
        %6009 = vmatpush.xpose.msra.mxu0 %v5939
        %6010 = vmatpush.xpose.msra.mxu0 %v5936
        %6011 = vmatpush.xpose.msra.mxu0 %v5933
        %6012 = vmatpush.xpose.msra.mxu0 %v5930
        %6013 = vmatpush.xpose.msra.mxu0 %v5927
        %6014 = vmatpush.xpose.msra.mxu0 %v5924
        %6015 = vmatpush.xpose.msra.mxu0 %v5921
        %6016 = vmatmul.f32.gmra.mxu0 %v5870
        %v6017 = vpop.f32.mrf.mxu0
        %v6018 = vadd.f32 0.0, %v6017
        %6019 = vdwg.mxu0
        %6020 = vmatpush.xpose.msra.mxu0 0.0
        %6021 = vmatpush.xpose.msra.mxu0 0.0
        %6022 = vmatpush.xpose.msra.mxu0 0.0
        %6023 = vmatpush.xpose.msra.mxu0 0.0
        %6024 = vmatpush.xpose.msra.mxu0 0.0
        %6025 = vmatpush.xpose.msra.mxu0 0.0
        %6026 = vmatpush.xpose.msra.mxu0 0.0
        %6027 = vmatpush.xpose.msra.mxu0 0.0
        %6028 = vmatpush.xpose.msra.mxu0 0.0
        %6029 = vmatpush.xpose.msra.mxu0 0.0
        %6030 = vmatpush.xpose.msra.mxu0 0.0
        %6031 = vmatpush.xpose.msra.mxu0 0.0
        %6032 = vmatpush.xpose.msra.mxu0 %v5978
        %6033 = vmatpush.xpose.msra.mxu0 %v5975
        %6034 = vmatpush.xpose.msra.mxu0 %v5972
        %6035 = vmatpush.xpose.msra.mxu0 %v5969
        %6036 = vmatmul.f32.gmra.mxu0 %v5870
        %v6037 = vpop.f32.mrf.mxu0
        %v6038 = vadd.f32 0.0, %v6037
        %6039 = vdwg.mxu0
        %v6040 = vadd.f32 %v5829, %v5998
        %v6041 = vadd.f32 %v5830, %v6018
        %v6042 = vadd.f32 %v5831, %v6038
        %v6043 = vld [vmem:[#allocation19 + $0x8] sm:$0x1]
        %v6044 = vld [vmem:[#allocation4 + $0x26] sm:$0xff]
        %v6045 = vld [vmem:[#allocation4 + $0x2e] sm:$0xff]
        %v6046 = vld [vmem:[#allocation4 + $0x36] sm:$0xff]
        %v6047 = vld [vmem:[#allocation4 + $0x3e] sm:$0xff]
        %v6048 = vld [vmem:[#allocation4 + $0x46] sm:$0xff]
        %v6049 = vld [vmem:[#allocation4 + $0x4e] sm:$0xff]
        %v6050 = vld [vmem:[#allocation4 + $0x56] sm:$0xff]
        %v6051 = vld [vmem:[#allocation4 + $0x5e] sm:$0xff]
        %v6052 = vld [vmem:[#allocation4 + $0x66] sm:$0xff]
        %v6053 = vld [vmem:[#allocation4 + $0x6e] sm:$0xff]
        %v6054 = vld [vmem:[#allocation4 + $0x76] sm:$0xff]
        %v6055 = vld [vmem:[#allocation4 + $0x7e] sm:$0xff]
        %v6056 = vld [vmem:[#allocation4 + $0x86] sm:$0xff]
        %v6057 = vld [vmem:[#allocation4 + $0x8e] sm:$0xff]
        %v6058 = vld [vmem:[#allocation4 + $0x96] sm:$0xff]
        %v6059 = vld [vmem:[#allocation4 + $0x9e] sm:$0xff]
        %v6060 = vld [vmem:[#allocation4 + $0xa6] sm:$0xff]
        %v6061 = vld [vmem:[#allocation4 + $0xae] sm:$0xff]
        %v6062 = vld [vmem:[#allocation4 + $0xb6] sm:$0xff]
        %v6063 = vld [vmem:[#allocation4 + $0xbe] sm:$0xff]
        %v6064 = vld [vmem:[#allocation4 + $0xc6] sm:$0xff]
        %v6065 = vld [vmem:[#allocation4 + $0xce] sm:$0xff]
        %v6066 = vld [vmem:[#allocation4 + $0xd6] sm:$0xff]
        %v6067 = vld [vmem:[#allocation4 + $0xde] sm:$0xff]
        %v6068 = vld [vmem:[#allocation4 + $0xe6] sm:$0xff]
        %v6069 = vld [vmem:[#allocation4 + $0xee] sm:$0xff]
        %v6070 = vld [vmem:[#allocation4 + $0xf6] sm:$0xff]
        %v6071 = vld [vmem:[#allocation4 + $0xfe] sm:$0xff]
        %v6072 = vld [vmem:[#allocation4 + $0x106] sm:$0xff]
        %v6073 = vld [vmem:[#allocation4 + $0x10e] sm:$0xff]
        %v6074 = vld [vmem:[#allocation4 + $0x116] sm:$0xff]
        %v6075 = vld [vmem:[#allocation4 + $0x11e] sm:$0xff]
        %v6076 = vld [vmem:[#allocation4 + $0x126] sm:$0xff]
        %v6077 = vld [vmem:[#allocation4 + $0x12e] sm:$0xff]
        %v6078 = vld [vmem:[#allocation4 + $0x136] sm:$0xff]
        %v6079 = vld [vmem:[#allocation4 + $0x13e] sm:$0xff]
        %v6081 = vsel %vm4319, %v6043, 0
        %v6084 = vsel %vm4319, %v6044, 0
        %v6087 = vsel %vm4319, %v6045, 0
        %v6090 = vsel %vm4319, %v6046, 0
        %v6093 = vsel %vm4319, %v6047, 0
        %v6096 = vsel %vm4319, %v6048, 0
        %v6099 = vsel %vm4319, %v6049, 0
        %v6102 = vsel %vm4319, %v6050, 0
        %v6105 = vsel %vm4319, %v6051, 0
        %v6108 = vsel %vm4319, %v6052, 0
        %v6111 = vsel %vm4319, %v6053, 0
        %v6114 = vsel %vm4319, %v6054, 0
        %v6117 = vsel %vm4319, %v6055, 0
        %v6120 = vsel %vm4319, %v6056, 0
        %v6123 = vsel %vm4319, %v6057, 0
        %v6126 = vsel %vm4319, %v6058, 0
        %v6129 = vsel %vm4319, %v6059, 0
        %v6132 = vsel %vm4319, %v6060, 0
        %v6135 = vsel %vm4319, %v6061, 0
        %v6138 = vsel %vm4319, %v6062, 0
        %v6141 = vsel %vm4319, %v6063, 0
        %v6144 = vsel %vm4319, %v6064, 0
        %v6147 = vsel %vm4319, %v6065, 0
        %v6150 = vsel %vm4319, %v6066, 0
        %v6153 = vsel %vm4319, %v6067, 0
        %v6156 = vsel %vm4319, %v6068, 0
        %v6159 = vsel %vm4319, %v6069, 0
        %v6162 = vsel %vm4319, %v6070, 0
        %v6165 = vsel %vm4319, %v6071, 0
        %v6168 = vsel %vm4319, %v6072, 0
        %v6171 = vsel %vm4319, %v6073, 0
        %v6174 = vsel %vm4319, %v6074, 0
        %v6177 = vsel %vm4319, %v6075, 0
        %v6180 = vsel %vm4319, %v6076, 0
        %v6183 = vsel %vm4319, %v6077, 0
        %v6186 = vsel %vm4319, %v6078, 0
        %v6189 = vsel %vm4319, %v6079, 0
        %6191 = vmatpush.xpose.msra.mxu0 %v6129
        %6192 = vmatpush.xpose.msra.mxu0 %v6126
        %6193 = vmatpush.xpose.msra.mxu0 %v6123
        %6194 = vmatpush.xpose.msra.mxu0 %v6120
        %6195 = vmatpush.xpose.msra.mxu0 %v6117
        %6196 = vmatpush.xpose.msra.mxu0 %v6114
        %6197 = vmatpush.xpose.msra.mxu0 %v6111
        %6198 = vmatpush.xpose.msra.mxu0 %v6108
        %6199 = vmatpush.xpose.msra.mxu0 %v6105
        %6200 = vmatpush.xpose.msra.mxu0 %v6102
        %6201 = vmatpush.xpose.msra.mxu0 %v6099
        %6202 = vmatpush.xpose.msra.mxu0 %v6096
        %6203 = vmatpush.xpose.msra.mxu0 %v6093
        %6204 = vmatpush.xpose.msra.mxu0 %v6090
        %6205 = vmatpush.xpose.msra.mxu0 %v6087
        %6206 = vmatpush.xpose.msra.mxu0 %v6084
        %6207 = vmatmul.f32.gmra.mxu0 %v6081
        %v6208 = vpop.f32.mrf.mxu0
        %v6209 = vadd.f32 0.0, %v6208
        %6210 = vdwg.mxu0
        %6211 = vmatpush.xpose.msra.mxu0 %v6177
        %6212 = vmatpush.xpose.msra.mxu0 %v6174
        %6213 = vmatpush.xpose.msra.mxu0 %v6171
        %6214 = vmatpush.xpose.msra.mxu0 %v6168
        %6215 = vmatpush.xpose.msra.mxu0 %v6165
        %6216 = vmatpush.xpose.msra.mxu0 %v6162
        %6217 = vmatpush.xpose.msra.mxu0 %v6159
        %6218 = vmatpush.xpose.msra.mxu0 %v6156
        %6219 = vmatpush.xpose.msra.mxu0 %v6153
        %6220 = vmatpush.xpose.msra.mxu0 %v6150
        %6221 = vmatpush.xpose.msra.mxu0 %v6147
        %6222 = vmatpush.xpose.msra.mxu0 %v6144
        %6223 = vmatpush.xpose.msra.mxu0 %v6141
        %6224 = vmatpush.xpose.msra.mxu0 %v6138
        %6225 = vmatpush.xpose.msra.mxu0 %v6135
        %6226 = vmatpush.xpose.msra.mxu0 %v6132
        %6227 = vmatmul.f32.gmra.mxu0 %v6081
        %v6228 = vpop.f32.mrf.mxu0
        %v6229 = vadd.f32 0.0, %v6228
        %6230 = vdwg.mxu0
        %6231 = vmatpush.xpose.msra.mxu0 0.0
        %6232 = vmatpush.xpose.msra.mxu0 0.0
        %6233 = vmatpush.xpose.msra.mxu0 0.0
        %6234 = vmatpush.xpose.msra.mxu0 0.0
        %6235 = vmatpush.xpose.msra.mxu0 0.0
        %6236 = vmatpush.xpose.msra.mxu0 0.0
        %6237 = vmatpush.xpose.msra.mxu0 0.0
        %6238 = vmatpush.xpose.msra.mxu0 0.0
        %6239 = vmatpush.xpose.msra.mxu0 0.0
        %6240 = vmatpush.xpose.msra.mxu0 0.0
        %6241 = vmatpush.xpose.msra.mxu0 0.0
        %6242 = vmatpush.xpose.msra.mxu0 0.0
        %6243 = vmatpush.xpose.msra.mxu0 %v6189
        %6244 = vmatpush.xpose.msra.mxu0 %v6186
        %6245 = vmatpush.xpose.msra.mxu0 %v6183
        %6246 = vmatpush.xpose.msra.mxu0 %v6180
        %6247 = vmatmul.f32.gmra.mxu0 %v6081
        %v6248 = vpop.f32.mrf.mxu0
        %v6249 = vadd.f32 0.0, %v6248
        %6250 = vdwg.mxu0
        %v6251 = vadd.f32 %v6040, %v6209
        %v6252 = vadd.f32 %v6041, %v6229
        %v6253 = vadd.f32 %v6042, %v6249
        %v6254 = vld [vmem:[#allocation5] sm:$0x1]
        %6256 = vset.pattern.permute.xlu0 0
        %6257 = vperm.xlu0 %6256, %v6254
        %v6258 = vpop.permute.xlu0 %6257
        %v6260 = vperm.slane %v6258, 0
        %v6261 = vadd.f32 %v6251, %v6260
        %v6262 = vadd.f32 %v6252, %v6260
        %v6263 = vadd.f32 %v6253, %v6260
        %v6267 = vrot.slane %v6262, 7
        %v6268 = vrot.slane %v6263, 6
        %v6269 = vsel %vm1286, %v6261, %v6267
        %v6270 = vsel %vm1495, %v6269, %v6268
        %vm6272 = vcmp.lt.s32.totalorder %v1289, 288
        %vm6273 = vmand %vm1290, %vm6272
        %6274 = vst.msk [vmem:[%s525] sm:$0x7] %vm6273, %v6270
        %p6275 = scmp.lt.s32.totalorder %s31, 1
        %s6276 = scalar_select %p6275, %s31, 1
        %s6277 = smul.addr %s6276, 3
        %s6278 = scalar_lea.vmem %s11, %s6277
        // Predicated region
        $region101: #{decoder_forward.1} parent=63 // pred_check
          %p6279 = pneg %p285
        $region102: #{decoder_forward.1} parent=63 // pred_check_branch
          %6281 = sbr.rel (%p6279) target = $region104
        $region103: #{decoder_forward.1} parent=63 // pred_region
          _
        $region104: #{decoder_forward.1} parent=63 // pred_fallthru
          _
      $region64: #{decoder_forward.1} parent=5 // pred_fallthru
        _
      %p6282 = scmp.le.s32.totalorder 2, %s26
      // Predicated region
      $region105: #{decoder_forward.1} parent=5 // pred_check
        %p6283 = pneg %p6282
      $region106: #{decoder_forward.1} parent=5 // pred_check_branch
        %6285 = sbr.rel (%p6283) target = $region108
      $region107: #{decoder_forward.1} parent=5 // pred_region
        %s6286 = ssub.s32 %s26, 2
        // Predicated region
        $region109: #{decoder_forward.1} parent=107 // pred_check
          %p6287 = pneg %p291
        $region110: #{decoder_forward.1} parent=107 // pred_check_branch
          %6289 = sbr.rel (%p6287) target = $region112
        $region111: #{decoder_forward.1} parent=107 // pred_region
          %p6290 = scmp.lt.s32.totalorder %s32, 1
          %s6291 = scalar_select %p6290, %s32, 1
          %s6292 = smul.addr %s6291, 3
          %s6293 = scalar_lea.vmem %s11, %s6292
        $region112: #{decoder_forward.1} parent=107 // pred_fallthru
          _
      $region108: #{decoder_forward.1} parent=5 // pred_fallthru
        _
    $region6: #{decoder_forward.1} parent=1 // loop_footer
      %s30 = sadd.s32 1, %s26
    $region7: #{decoder_forward.1} parent=1 // loop_footer_branch
      %25 = sbr.rel target = $region3
    $region8: #{decoder_forward.1} parent=1 // loop_exit
      _
    %6294 = vsyncpa [#allocation7], 1
    %s6295 = scalar_lea.sflag [#allocation7], 1
    %6296 = vsyncpa %s6295, 1
    %6297 = vsyncpa [#allocation9], 1
    %6298 = vsyncpa [#allocation12], 1
    %6299 = vsyncpa [#allocation15], 1
    %6300 = vsyncpa [#allocation18], 1

</llo_original>
